<compile_context>
chip_gen: v7x
topology: tpu7x:2x2x1
jax: 0.10.0
libtpu: 0.0.40
codegen_flags: <defaults>
</compile_context>

<pallas_src>
import functools

import jax
import jax.numpy as jnp
from jax.experimental import pallas as pl
from jax.experimental.pallas import tpu as pltpu

NEG_SLOPE = 0.01  # F.leaky_relu default negative_slope


def gat_kernel(rhs_ref, src_ref, rel_ref, pdst_ref, wcat_ref, out_ref, *,
               din, num_heads, dout, num_rels):
    """Grid = (node_tile,). One step computes ALL heads for one tile of nodes."""
    Din, H, Dout, R = din, num_heads, dout, num_rels
    N = rhs_ref.shape[0]
    TN, K = src_ref.shape

    src = src_ref[...]                        # [TN, K] int32
    rel = rel_ref[...]                        # [TN, K] int32
    e_dst = pdst_ref[...]                     # [TN, H] f32   (h_dst @ a_dst, precomputed)

    # ---- phase 1: fused one-hot gather — ONE MXU pass over the augmented RHS ----
    node_iota = jax.lax.broadcasted_iota(jnp.int32, (TN, N), 1)
    g_blocks = [(node_iota == src[:, k:k + 1]).astype(jnp.bfloat16) for k in range(K)]
    G = jnp.concatenate(g_blocks, axis=0)                                   # [K*TN, N] bf16
    HS = jnp.dot(G, rhs_ref[...], preferred_element_type=jnp.float32)      # [K*TN, AUGW] f32
    # rows k*TN:(k+1)*TN of HS:  [:, :Din]       = gathered source features (f32-exact bf16)
    #                            [:, Din:Din+H]  = gathered a_src . h_src   (source logits)

    # ---- attention logits + softmax over the K in-edges (per head, f32) ----
    e_cols = []
    for k in range(K):                        # K small & static: unrolled
        e_k = HS[k * TN:(k + 1) * TN, Din:Din + H] + e_dst                  # [TN, H]
        e_cols.append(jnp.where(e_k > 0, e_k, NEG_SLOPE * e_k))             # leaky_relu
    m = e_cols[0]
    for k in range(1, K):
        m = jnp.maximum(m, e_cols[k])
    p_cols = [jnp.exp(e - m) for e in e_cols]
    denom = p_cols[0]
    for k in range(1, K):
        denom = denom + p_cols[k]
    inv_denom = pl.reciprocal(denom, approx=True)                           # [TN, H]
    alpha = [p * inv_denom for p in p_cols]                                 # K x [TN, H]

    # ---- phase 2: hoisted broadcasts + relation routing + per-relation matmuls ----
    wh = []      # wh[k][h] = alpha[k][:, h] * hsrc_k     (K*H lane broadcasts total)
    relb = []    # relb[k]  = rel[:, k] broadcast [TN,Din] (K lane broadcasts total)
    for k in range(K):
        hsrc_k = HS[k * TN:(k + 1) * TN, :Din]                              # [TN, Din] f32
        wh.append([alpha[k][:, h:h + 1] * hsrc_k for h in range(H)])
        relb.append(jnp.broadcast_to(rel[:, k:k + 1], (TN, Din)))

    out_acc = [jnp.zeros((TN, Dout), jnp.float32) for _ in range(H)]
    for r in range(R):
        acc = [jnp.zeros((TN, Din), jnp.float32) for _ in range(H)]
        for k in range(K):
            sel = relb[k] == r                                              # [TN, Din] bool
            for h in range(H):
                acc[h] = acc[h] + jnp.where(sel, wh[k][h], 0.0)
        # consume the relation block immediately (only one [TN, Din] block live per head)
        for h in range(H):
            out_acc[h] = out_acc[h] + jnp.dot(
                acc[h].astype(jnp.bfloat16),
                wcat_ref[h, r * Din:(r + 1) * Din, :],
                preferred_element_type=jnp.float32)                          # [TN, Dout]

    # single lane-dense store of all heads
    out_ref[...] = jnp.concatenate(out_acc, axis=1).astype(out_ref.dtype)   # [TN, H*Dout]


def multi_head_gat_forward(h, src_idx, rel_idx, params, *, merge="cat", tile_n=128):
    """params: list (len = num_heads) of dicts with fc_w, attn_w, w, w_comp."""
    N, Din = h.shape
    K = src_idx.shape[1]
    H = len(params)
    Dout = params[0]["fc_w"].shape[0]
    R, B = params[0]["w_comp"].shape

    assert N % tile_n == 0, "N must be a multiple of tile_n (pad the graph if needed)"
    assert tile_n % 8 == 0, "tile_n must be a multiple of 8 (sublane alignment)"

    # NOTE: the reference computes z = self.fc(h) but never reads ndata['z'] -> dead compute.

    asrc_l, adst_l, wcat_l = [], [], []
    for p in params:
        attn = p["attn_w"].reshape(2, Din)                      # [a_src; a_dst]
        asrc_l.append(attn[0])
        adst_l.append(attn[1])
        # exact replication of message_func's weight construction (raw view/reshape semantics)
        w_viewed = p["w"].reshape(Dout, B, Din)                 # w.view(out, bases, in)
        w_rel = jnp.matmul(p["w_comp"], w_viewed)               # [Dout, R, Din]
        w_rel = w_rel.reshape(R, Dout, Din)                     # .view(R, out, in)
        # lay out as [R*Din, Dout] so each relation block contracts over the feature dim
        wcat_l.append(jnp.transpose(w_rel, (0, 2, 1)).reshape(R * Din, Dout))

    a_src = jnp.stack(asrc_l, axis=1)                           # [Din, H] f32
    a_dst = jnp.stack(adst_l, axis=1)                           # [Din, H] f32
    wcat = jnp.stack(wcat_l, axis=0).astype(jnp.bfloat16)       # [H, R*Din, Dout]

    # fold the skinny attention projections out of the kernel (f32 projection, then bf16)
    proj_src = h @ a_src                                        # [N, H] f32
    proj_dst = (h @ a_dst).astype(jnp.float32)                  # [N, H] f32

    # augmented gather RHS: [h | proj_src | zero-pad to a lane multiple]
    augw = Din + H
    pad = (-augw) % 128
    rhs = jnp.concatenate([h, proj_src], axis=1)
    if pad:
        rhs = jnp.concatenate([rhs, jnp.zeros((N, pad), h.dtype)], axis=1)
    rhs = rhs.astype(jnp.bfloat16)                              # [N, AUGW]
    AUGW = augw + pad

    grid = (N // tile_n,)
    kernel = functools.partial(gat_kernel, din=Din, num_heads=H, dout=Dout, num_rels=R)

    out = pl.pallas_call(
        kernel,
        out_shape=jax.ShapeDtypeStruct((N, H * Dout), jnp.float32),
        grid_spec=pltpu.PrefetchScalarGridSpec(
            num_scalar_prefetch=0,
            grid=grid,
            in_specs=[
                pl.BlockSpec((N, AUGW), lambda j: (0, 0)),              # full RHS (demo-scale)
                pl.BlockSpec((tile_n, K), lambda j: (j, 0)),            # src idx tile
                pl.BlockSpec((tile_n, K), lambda j: (j, 0)),            # rel idx tile
                pl.BlockSpec((tile_n, H), lambda j: (j, 0)),            # dst attention logits
                pl.BlockSpec((H, R * Din, Dout), lambda j: (0, 0, 0)),  # relational weights
            ],
            out_specs=pl.BlockSpec((tile_n, H * Dout), lambda j: (j, 0)),
        ),
        compiler_params=pltpu.CompilerParams(
            dimension_semantics=("parallel",),
            vmem_limit_bytes=32 * 1024 * 1024),   # generous headroom; actual use is a few MiB
    )(rhs, src_idx, rel_idx, proj_dst, wcat)

    if merge == "cat":
        # torch.cat(head_outs, dim=1) -> [N, H*Dout] with head blocks contiguous
        return out
    # else branch of the reference: torch.mean(torch.stack(head_outs)) -> scalar
    return jnp.mean(out)


def reference_forward(h, src_idx, rel_idx, attn, wrel_3d):
    """Pure-JAX (f32) reference of the same semantics, for validation."""
    H = attn.shape[0]
    outs = []
    for i in range(H):
        a_src, a_dst = attn[i, 0], attn[i, 1]
        hs = h[src_idx]                                              # [N, K, Din]
        e = jnp.einsum("nkd,d->nk", hs, a_src) + (h @ a_dst)[:, None]
        e = jnp.where(e > 0, e, NEG_SLOPE * e)
        alpha = jax.nn.softmax(e, axis=1)
        We = wrel_3d[i][rel_idx]                                     # [N, K, Dout, Din]
        msg = jnp.einsum("nkod,nkd->nko", We, hs)
        outs.append(jnp.sum(alpha[..., None] * msg, axis=1))
    return jnp.concatenate(outs, axis=1)


def init_params(key, in_dim, out_dim, num_heads, num_rels, num_bases=1):
    params = []
    for _ in range(num_heads):
        k1, k2, k3, k4, key = jax.random.split(key, 5)
        b_fc = (6.0 / (in_dim + out_dim)) ** 0.5
        b_at = (6.0 / (2 * in_dim + 1)) ** 0.5
        gain = 2.0 ** 0.5
        b_w = gain * (6.0 / (in_dim * out_dim + num_bases * out_dim)) ** 0.5
        b_wc = gain * (6.0 / (num_rels + num_bases)) ** 0.5
        params.append(dict(
            fc_w=jax.random.uniform(k1, (out_dim, in_dim), jnp.float32, -b_fc, b_fc),
            attn_w=jax.random.uniform(k2, (1, 2 * in_dim), jnp.float32, -b_at, b_at),
            w=jax.random.uniform(k3, (num_bases, in_dim, out_dim), jnp.float32, -b_w, b_w),
            w_comp=jax.random.uniform(k4, (num_rels, num_bases), jnp.float32, -b_wc, b_wc),
        ))
    return params


if __name__ == "__main__":
    N, Din, Dout = 256, 128, 64
    K, H, R, B = 8, 2, 4, 1
    TILE_N = 128

    key = jax.random.PRNGKey(0)
    kh, ks, kr, kp = jax.random.split(key, 4)
    h = jax.random.normal(kh, (N, Din), jnp.float32)
    src_idx = jax.random.randint(ks, (N, K), 0, N, jnp.int32)
    rel_idx = jax.random.randint(kr, (N, K), 0, R, jnp.int32)
    params = init_params(kp, Din, Dout, H, R, B)

    fwd = jax.jit(functools.partial(multi_head_gat_forward, merge="cat", tile_n=TILE_N))
    out = jax.block_until_ready(fwd(h, src_idx, rel_idx, params))
    assert out.shape == (N, H * Dout)

    # validate against a pure-JAX f32 reference (kernel uses bf16 MXU operands -> loose tol)
    attn_ref = jnp.stack([p["attn_w"].reshape(2, Din) for p in params])
    wrel_ref = jnp.stack([
        jnp.matmul(p["w_comp"], p["w"].reshape(Dout, B, Din)).reshape(R, Dout, Din)
        for p in params])
    ref = jax.block_until_ready(reference_forward(h, src_idx, rel_idx, attn_ref, wrel_ref))
    max_err = float(jnp.max(jnp.abs(out - ref)))
    assert bool(jnp.allclose(out, ref, rtol=2e-2, atol=2e-2)), f"mismatch vs reference (max_abs_err={max_err})"

    print("KERNEL_OK")
</pallas_src>

<mosaic_0001>
module attributes {stable_mosaic.version = 11 : i64} {
  func.func @gat_kernel(%arg0: i32, %arg1: memref<256x256xbf16, #tpu.memory_space<vmem>>, %arg2: memref<128x8xi32, #tpu.memory_space<vmem>>, %arg3: memref<128x8xi32, #tpu.memory_space<vmem>>, %arg4: memref<128x2xf32, #tpu.memory_space<vmem>>, %arg5: memref<2x512x64xbf16, #tpu.memory_space<vmem>>, %arg6: memref<128x128xf32, #tpu.memory_space<vmem>>) attributes {dimension_semantics = [#tpu.dimension_semantics<parallel>], iteration_bounds = array<i64: 2>, scalar_prefetch = 0 : i64, scratch_operands = 0 : i64, tpu.core_type = #tpu.core_type<tc>, window_params = [{pipeline_mode = #tpu.pipeline_mode<synchronous>, transform_indices = @transform_0, window_bounds = array<i64: 256, 256>}, {transform_indices = @transform_1, window_bounds = array<i64: 128, 8>}, {transform_indices = @transform_2, window_bounds = array<i64: 128, 8>}, {transform_indices = @transform_3, window_bounds = array<i64: 128, 2>}, {pipeline_mode = #tpu.pipeline_mode<synchronous>, transform_indices = @transform_4, window_bounds = array<i64: 2, 512, 64>}, {transform_indices = @transform_5, window_bounds = array<i64: 128, 128>}]} {
    %c0 = arith.constant 0 : index
    %c0_0 = arith.constant 0 : index
    %0 = vector.load %arg2[%c0, %c0_0] : memref<128x8xi32, #tpu.memory_space<vmem>>, vector<128x8xi32>
    %c0_1 = arith.constant 0 : index
    %c0_2 = arith.constant 0 : index
    %1 = vector.load %arg3[%c0_1, %c0_2] : memref<128x8xi32, #tpu.memory_space<vmem>>, vector<128x8xi32>
    %c0_3 = arith.constant 0 : index
    %c0_4 = arith.constant 0 : index
    %2 = vector.load %arg4[%c0_3, %c0_4] : memref<128x2xf32, #tpu.memory_space<vmem>>, vector<128x2xf32>
    %3 = tpu.iota {dimensions = array<i32: 1>} : vector<128x256xi32>
    %4 = vector.extract_strided_slice %0 {offsets = [0, 0], sizes = [128, 1], strides = [1, 1]} : vector<128x8xi32> to vector<128x1xi32>
    %5 = vector.broadcast %4 : vector<128x1xi32> to vector<128x256xi32>
    %6 = arith.cmpi eq, %3, %5 : vector<128x256xi32>
    %7 = arith.extui %6 : vector<128x256xi1> to vector<128x256xi32>
    %8 = arith.sitofp %7 : vector<128x256xi32> to vector<128x256xf32>
    %9 = arith.truncf %8 : vector<128x256xf32> to vector<128x256xbf16>
    %10 = vector.extract_strided_slice %0 {offsets = [0, 1], sizes = [128, 1], strides = [1, 1]} : vector<128x8xi32> to vector<128x1xi32>
    %11 = vector.broadcast %10 : vector<128x1xi32> to vector<128x256xi32>
    %12 = arith.cmpi eq, %3, %11 : vector<128x256xi32>
    %13 = arith.extui %12 : vector<128x256xi1> to vector<128x256xi32>
    %14 = arith.sitofp %13 : vector<128x256xi32> to vector<128x256xf32>
    %15 = arith.truncf %14 : vector<128x256xf32> to vector<128x256xbf16>
    %16 = vector.extract_strided_slice %0 {offsets = [0, 2], sizes = [128, 1], strides = [1, 1]} : vector<128x8xi32> to vector<128x1xi32>
    %17 = vector.broadcast %16 : vector<128x1xi32> to vector<128x256xi32>
    %18 = arith.cmpi eq, %3, %17 : vector<128x256xi32>
    %19 = arith.extui %18 : vector<128x256xi1> to vector<128x256xi32>
    %20 = arith.sitofp %19 : vector<128x256xi32> to vector<128x256xf32>
    %21 = arith.truncf %20 : vector<128x256xf32> to vector<128x256xbf16>
    %22 = vector.extract_strided_slice %0 {offsets = [0, 3], sizes = [128, 1], strides = [1, 1]} : vector<128x8xi32> to vector<128x1xi32>
    %23 = vector.broadcast %22 : vector<128x1xi32> to vector<128x256xi32>
    %24 = arith.cmpi eq, %3, %23 : vector<128x256xi32>
    %25 = arith.extui %24 : vector<128x256xi1> to vector<128x256xi32>
    %26 = arith.sitofp %25 : vector<128x256xi32> to vector<128x256xf32>
    %27 = arith.truncf %26 : vector<128x256xf32> to vector<128x256xbf16>
    %28 = vector.extract_strided_slice %0 {offsets = [0, 4], sizes = [128, 1], strides = [1, 1]} : vector<128x8xi32> to vector<128x1xi32>
    %29 = vector.broadcast %28 : vector<128x1xi32> to vector<128x256xi32>
    %30 = arith.cmpi eq, %3, %29 : vector<128x256xi32>
    %31 = arith.extui %30 : vector<128x256xi1> to vector<128x256xi32>
    %32 = arith.sitofp %31 : vector<128x256xi32> to vector<128x256xf32>
    %33 = arith.truncf %32 : vector<128x256xf32> to vector<128x256xbf16>
    %34 = vector.extract_strided_slice %0 {offsets = [0, 5], sizes = [128, 1], strides = [1, 1]} : vector<128x8xi32> to vector<128x1xi32>
    %35 = vector.broadcast %34 : vector<128x1xi32> to vector<128x256xi32>
    %36 = arith.cmpi eq, %3, %35 : vector<128x256xi32>
    %37 = arith.extui %36 : vector<128x256xi1> to vector<128x256xi32>
    %38 = arith.sitofp %37 : vector<128x256xi32> to vector<128x256xf32>
    %39 = arith.truncf %38 : vector<128x256xf32> to vector<128x256xbf16>
    %40 = vector.extract_strided_slice %0 {offsets = [0, 6], sizes = [128, 1], strides = [1, 1]} : vector<128x8xi32> to vector<128x1xi32>
    %41 = vector.broadcast %40 : vector<128x1xi32> to vector<128x256xi32>
    %42 = arith.cmpi eq, %3, %41 : vector<128x256xi32>
    %43 = arith.extui %42 : vector<128x256xi1> to vector<128x256xi32>
    %44 = arith.sitofp %43 : vector<128x256xi32> to vector<128x256xf32>
    %45 = arith.truncf %44 : vector<128x256xf32> to vector<128x256xbf16>
    %46 = vector.extract_strided_slice %0 {offsets = [0, 7], sizes = [128, 1], strides = [1, 1]} : vector<128x8xi32> to vector<128x1xi32>
    %47 = vector.broadcast %46 : vector<128x1xi32> to vector<128x256xi32>
    %48 = arith.cmpi eq, %3, %47 : vector<128x256xi32>
    %49 = arith.extui %48 : vector<128x256xi1> to vector<128x256xi32>
    %50 = arith.sitofp %49 : vector<128x256xi32> to vector<128x256xf32>
    %51 = arith.truncf %50 : vector<128x256xf32> to vector<128x256xbf16>
    %52 = tpu.concatenate %9, %15, %21, %27, %33, %39, %45, %51 in 0 : vector<128x256xbf16>, vector<128x256xbf16>, vector<128x256xbf16>, vector<128x256xbf16>, vector<128x256xbf16>, vector<128x256xbf16>, vector<128x256xbf16>, vector<128x256xbf16> -> vector<1024x256xbf16>
    %c0_5 = arith.constant 0 : index
    %c0_6 = arith.constant 0 : index
    %53 = vector.load %arg1[%c0_5, %c0_6] : memref<256x256xbf16, #tpu.memory_space<vmem>>, vector<256x256xbf16>
    %cst = arith.constant dense<0.000000e+00> : vector<1024x256xf32>
    %54 = tpu.matmul %52, %53, %cst {dimension_numbers = #tpu.dot_dimension_numbers<[1], [0], [0], [1], [0, 0, 1, 1], [], []>} : vector<1024x256xbf16>, vector<256x256xbf16>, vector<1024x256xf32> -> vector<1024x256xf32>
    %55 = vector.extract_strided_slice %54 {offsets = [0, 128], sizes = [128, 2], strides = [1, 1]} : vector<1024x256xf32> to vector<128x2xf32>
    %56 = arith.addf %55, %2 : vector<128x2xf32>
    %cst_7 = arith.constant 0.000000e+00 : f32
    %57 = vector.broadcast %cst_7 : f32 to vector<128x2xf32>
    %58 = arith.cmpf ogt, %56, %57 : vector<128x2xf32>
    %cst_8 = arith.constant 0.00999999977 : f32
    %59 = vector.broadcast %cst_8 : f32 to vector<128x2xf32>
    %60 = arith.mulf %59, %56 : vector<128x2xf32>
    %61 = arith.select %58, %56, %60 : vector<128x2xi1>, vector<128x2xf32>
    %62 = vector.extract_strided_slice %54 {offsets = [128, 128], sizes = [128, 2], strides = [1, 1]} : vector<1024x256xf32> to vector<128x2xf32>
    %63 = arith.addf %62, %2 : vector<128x2xf32>
    %cst_9 = arith.constant 0.000000e+00 : f32
    %64 = vector.broadcast %cst_9 : f32 to vector<128x2xf32>
    %65 = arith.cmpf ogt, %63, %64 : vector<128x2xf32>
    %cst_10 = arith.constant 0.00999999977 : f32
    %66 = vector.broadcast %cst_10 : f32 to vector<128x2xf32>
    %67 = arith.mulf %66, %63 : vector<128x2xf32>
    %68 = arith.select %65, %63, %67 : vector<128x2xi1>, vector<128x2xf32>
    %69 = vector.extract_strided_slice %54 {offsets = [256, 128], sizes = [128, 2], strides = [1, 1]} : vector<1024x256xf32> to vector<128x2xf32>
    %70 = arith.addf %69, %2 : vector<128x2xf32>
    %cst_11 = arith.constant 0.000000e+00 : f32
    %71 = vector.broadcast %cst_11 : f32 to vector<128x2xf32>
    %72 = arith.cmpf ogt, %70, %71 : vector<128x2xf32>
    %cst_12 = arith.constant 0.00999999977 : f32
    %73 = vector.broadcast %cst_12 : f32 to vector<128x2xf32>
    %74 = arith.mulf %73, %70 : vector<128x2xf32>
    %75 = arith.select %72, %70, %74 : vector<128x2xi1>, vector<128x2xf32>
    %76 = vector.extract_strided_slice %54 {offsets = [384, 128], sizes = [128, 2], strides = [1, 1]} : vector<1024x256xf32> to vector<128x2xf32>
    %77 = arith.addf %76, %2 : vector<128x2xf32>
    %cst_13 = arith.constant 0.000000e+00 : f32
    %78 = vector.broadcast %cst_13 : f32 to vector<128x2xf32>
    %79 = arith.cmpf ogt, %77, %78 : vector<128x2xf32>
    %cst_14 = arith.constant 0.00999999977 : f32
    %80 = vector.broadcast %cst_14 : f32 to vector<128x2xf32>
    %81 = arith.mulf %80, %77 : vector<128x2xf32>
    %82 = arith.select %79, %77, %81 : vector<128x2xi1>, vector<128x2xf32>
    %83 = vector.extract_strided_slice %54 {offsets = [512, 128], sizes = [128, 2], strides = [1, 1]} : vector<1024x256xf32> to vector<128x2xf32>
    %84 = arith.addf %83, %2 : vector<128x2xf32>
    %cst_15 = arith.constant 0.000000e+00 : f32
    %85 = vector.broadcast %cst_15 : f32 to vector<128x2xf32>
    %86 = arith.cmpf ogt, %84, %85 : vector<128x2xf32>
    %cst_16 = arith.constant 0.00999999977 : f32
    %87 = vector.broadcast %cst_16 : f32 to vector<128x2xf32>
    %88 = arith.mulf %87, %84 : vector<128x2xf32>
    %89 = arith.select %86, %84, %88 : vector<128x2xi1>, vector<128x2xf32>
    %90 = vector.extract_strided_slice %54 {offsets = [640, 128], sizes = [128, 2], strides = [1, 1]} : vector<1024x256xf32> to vector<128x2xf32>
    %91 = arith.addf %90, %2 : vector<128x2xf32>
    %cst_17 = arith.constant 0.000000e+00 : f32
    %92 = vector.broadcast %cst_17 : f32 to vector<128x2xf32>
    %93 = arith.cmpf ogt, %91, %92 : vector<128x2xf32>
    %cst_18 = arith.constant 0.00999999977 : f32
    %94 = vector.broadcast %cst_18 : f32 to vector<128x2xf32>
    %95 = arith.mulf %94, %91 : vector<128x2xf32>
    %96 = arith.select %93, %91, %95 : vector<128x2xi1>, vector<128x2xf32>
    %97 = vector.extract_strided_slice %54 {offsets = [768, 128], sizes = [128, 2], strides = [1, 1]} : vector<1024x256xf32> to vector<128x2xf32>
    %98 = arith.addf %97, %2 : vector<128x2xf32>
    %cst_19 = arith.constant 0.000000e+00 : f32
    %99 = vector.broadcast %cst_19 : f32 to vector<128x2xf32>
    %100 = arith.cmpf ogt, %98, %99 : vector<128x2xf32>
    %cst_20 = arith.constant 0.00999999977 : f32
    %101 = vector.broadcast %cst_20 : f32 to vector<128x2xf32>
    %102 = arith.mulf %101, %98 : vector<128x2xf32>
    %103 = arith.select %100, %98, %102 : vector<128x2xi1>, vector<128x2xf32>
    %104 = vector.extract_strided_slice %54 {offsets = [896, 128], sizes = [128, 2], strides = [1, 1]} : vector<1024x256xf32> to vector<128x2xf32>
    %105 = arith.addf %104, %2 : vector<128x2xf32>
    %cst_21 = arith.constant 0.000000e+00 : f32
    %106 = vector.broadcast %cst_21 : f32 to vector<128x2xf32>
    %107 = arith.cmpf ogt, %105, %106 : vector<128x2xf32>
    %cst_22 = arith.constant 0.00999999977 : f32
    %108 = vector.broadcast %cst_22 : f32 to vector<128x2xf32>
    %109 = arith.mulf %108, %105 : vector<128x2xf32>
    %110 = arith.select %107, %105, %109 : vector<128x2xi1>, vector<128x2xf32>
    %111 = arith.maximumf %61, %68 : vector<128x2xf32>
    %112 = arith.maximumf %111, %75 : vector<128x2xf32>
    %113 = arith.maximumf %112, %82 : vector<128x2xf32>
    %114 = arith.maximumf %113, %89 : vector<128x2xf32>
    %115 = arith.maximumf %114, %96 : vector<128x2xf32>
    %116 = arith.maximumf %115, %103 : vector<128x2xf32>
    %117 = arith.maximumf %116, %110 : vector<128x2xf32>
    %118 = arith.subf %61, %117 : vector<128x2xf32>
    %119 = math.exp %118 : vector<128x2xf32>
    %120 = arith.subf %68, %117 : vector<128x2xf32>
    %121 = math.exp %120 : vector<128x2xf32>
    %122 = arith.subf %75, %117 : vector<128x2xf32>
    %123 = math.exp %122 : vector<128x2xf32>
    %124 = arith.subf %82, %117 : vector<128x2xf32>
    %125 = math.exp %124 : vector<128x2xf32>
    %126 = arith.subf %89, %117 : vector<128x2xf32>
    %127 = math.exp %126 : vector<128x2xf32>
    %128 = arith.subf %96, %117 : vector<128x2xf32>
    %129 = math.exp %128 : vector<128x2xf32>
    %130 = arith.subf %103, %117 : vector<128x2xf32>
    %131 = math.exp %130 : vector<128x2xf32>
    %132 = arith.subf %110, %117 : vector<128x2xf32>
    %133 = math.exp %132 : vector<128x2xf32>
    %134 = arith.addf %119, %121 : vector<128x2xf32>
    %135 = arith.addf %134, %123 : vector<128x2xf32>
    %136 = arith.addf %135, %125 : vector<128x2xf32>
    %137 = arith.addf %136, %127 : vector<128x2xf32>
    %138 = arith.addf %137, %129 : vector<128x2xf32>
    %139 = arith.addf %138, %131 : vector<128x2xf32>
    %140 = arith.addf %139, %133 : vector<128x2xf32>
    %141 = tpu.reciprocal %140 {approx = true} : vector<128x2xf32> -> vector<128x2xf32>
    %142 = arith.mulf %119, %141 : vector<128x2xf32>
    %143 = arith.mulf %121, %141 : vector<128x2xf32>
    %144 = arith.mulf %123, %141 : vector<128x2xf32>
    %145 = arith.mulf %125, %141 : vector<128x2xf32>
    %146 = arith.mulf %127, %141 : vector<128x2xf32>
    %147 = arith.mulf %129, %141 : vector<128x2xf32>
    %148 = arith.mulf %131, %141 : vector<128x2xf32>
    %149 = arith.mulf %133, %141 : vector<128x2xf32>
    %150 = vector.extract_strided_slice %54 {offsets = [0, 0], sizes = [128, 128], strides = [1, 1]} : vector<1024x256xf32> to vector<128x128xf32>
    %151 = vector.extract_strided_slice %142 {offsets = [0, 0], sizes = [128, 1], strides = [1, 1]} : vector<128x2xf32> to vector<128x1xf32>
    %152 = vector.broadcast %151 : vector<128x1xf32> to vector<128x128xf32>
    %153 = arith.mulf %152, %150 : vector<128x128xf32>
    %154 = vector.extract_strided_slice %142 {offsets = [0, 1], sizes = [128, 1], strides = [1, 1]} : vector<128x2xf32> to vector<128x1xf32>
    %155 = vector.broadcast %154 : vector<128x1xf32> to vector<128x128xf32>
    %156 = arith.mulf %155, %150 : vector<128x128xf32>
    %157 = vector.extract_strided_slice %1 {offsets = [0, 0], sizes = [128, 1], strides = [1, 1]} : vector<128x8xi32> to vector<128x1xi32>
    %158 = vector.shape_cast %157 : vector<128x1xi32> to vector<128x1xi32>
    %159 = vector.broadcast %158 : vector<128x1xi32> to vector<128x128xi32>
    %160 = vector.extract_strided_slice %54 {offsets = [128, 0], sizes = [128, 128], strides = [1, 1]} : vector<1024x256xf32> to vector<128x128xf32>
    %161 = vector.extract_strided_slice %143 {offsets = [0, 0], sizes = [128, 1], strides = [1, 1]} : vector<128x2xf32> to vector<128x1xf32>
    %162 = vector.broadcast %161 : vector<128x1xf32> to vector<128x128xf32>
    %163 = arith.mulf %162, %160 : vector<128x128xf32>
    %164 = vector.extract_strided_slice %143 {offsets = [0, 1], sizes = [128, 1], strides = [1, 1]} : vector<128x2xf32> to vector<128x1xf32>
    %165 = vector.broadcast %164 : vector<128x1xf32> to vector<128x128xf32>
    %166 = arith.mulf %165, %160 : vector<128x128xf32>
    %167 = vector.extract_strided_slice %1 {offsets = [0, 1], sizes = [128, 1], strides = [1, 1]} : vector<128x8xi32> to vector<128x1xi32>
    %168 = vector.shape_cast %167 : vector<128x1xi32> to vector<128x1xi32>
    %169 = vector.broadcast %168 : vector<128x1xi32> to vector<128x128xi32>
    %170 = vector.extract_strided_slice %54 {offsets = [256, 0], sizes = [128, 128], strides = [1, 1]} : vector<1024x256xf32> to vector<128x128xf32>
    %171 = vector.extract_strided_slice %144 {offsets = [0, 0], sizes = [128, 1], strides = [1, 1]} : vector<128x2xf32> to vector<128x1xf32>
    %172 = vector.broadcast %171 : vector<128x1xf32> to vector<128x128xf32>
    %173 = arith.mulf %172, %170 : vector<128x128xf32>
    %174 = vector.extract_strided_slice %144 {offsets = [0, 1], sizes = [128, 1], strides = [1, 1]} : vector<128x2xf32> to vector<128x1xf32>
    %175 = vector.broadcast %174 : vector<128x1xf32> to vector<128x128xf32>
    %176 = arith.mulf %175, %170 : vector<128x128xf32>
    %177 = vector.extract_strided_slice %1 {offsets = [0, 2], sizes = [128, 1], strides = [1, 1]} : vector<128x8xi32> to vector<128x1xi32>
    %178 = vector.shape_cast %177 : vector<128x1xi32> to vector<128x1xi32>
    %179 = vector.broadcast %178 : vector<128x1xi32> to vector<128x128xi32>
    %180 = vector.extract_strided_slice %54 {offsets = [384, 0], sizes = [128, 128], strides = [1, 1]} : vector<1024x256xf32> to vector<128x128xf32>
    %181 = vector.extract_strided_slice %145 {offsets = [0, 0], sizes = [128, 1], strides = [1, 1]} : vector<128x2xf32> to vector<128x1xf32>
    %182 = vector.broadcast %181 : vector<128x1xf32> to vector<128x128xf32>
    %183 = arith.mulf %182, %180 : vector<128x128xf32>
    %184 = vector.extract_strided_slice %145 {offsets = [0, 1], sizes = [128, 1], strides = [1, 1]} : vector<128x2xf32> to vector<128x1xf32>
    %185 = vector.broadcast %184 : vector<128x1xf32> to vector<128x128xf32>
    %186 = arith.mulf %185, %180 : vector<128x128xf32>
    %187 = vector.extract_strided_slice %1 {offsets = [0, 3], sizes = [128, 1], strides = [1, 1]} : vector<128x8xi32> to vector<128x1xi32>
    %188 = vector.shape_cast %187 : vector<128x1xi32> to vector<128x1xi32>
    %189 = vector.broadcast %188 : vector<128x1xi32> to vector<128x128xi32>
    %190 = vector.extract_strided_slice %54 {offsets = [512, 0], sizes = [128, 128], strides = [1, 1]} : vector<1024x256xf32> to vector<128x128xf32>
    %191 = vector.extract_strided_slice %146 {offsets = [0, 0], sizes = [128, 1], strides = [1, 1]} : vector<128x2xf32> to vector<128x1xf32>
    %192 = vector.broadcast %191 : vector<128x1xf32> to vector<128x128xf32>
    %193 = arith.mulf %192, %190 : vector<128x128xf32>
    %194 = vector.extract_strided_slice %146 {offsets = [0, 1], sizes = [128, 1], strides = [1, 1]} : vector<128x2xf32> to vector<128x1xf32>
    %195 = vector.broadcast %194 : vector<128x1xf32> to vector<128x128xf32>
    %196 = arith.mulf %195, %190 : vector<128x128xf32>
    %197 = vector.extract_strided_slice %1 {offsets = [0, 4], sizes = [128, 1], strides = [1, 1]} : vector<128x8xi32> to vector<128x1xi32>
    %198 = vector.shape_cast %197 : vector<128x1xi32> to vector<128x1xi32>
    %199 = vector.broadcast %198 : vector<128x1xi32> to vector<128x128xi32>
    %200 = vector.extract_strided_slice %54 {offsets = [640, 0], sizes = [128, 128], strides = [1, 1]} : vector<1024x256xf32> to vector<128x128xf32>
    %201 = vector.extract_strided_slice %147 {offsets = [0, 0], sizes = [128, 1], strides = [1, 1]} : vector<128x2xf32> to vector<128x1xf32>
    %202 = vector.broadcast %201 : vector<128x1xf32> to vector<128x128xf32>
    %203 = arith.mulf %202, %200 : vector<128x128xf32>
    %204 = vector.extract_strided_slice %147 {offsets = [0, 1], sizes = [128, 1], strides = [1, 1]} : vector<128x2xf32> to vector<128x1xf32>
    %205 = vector.broadcast %204 : vector<128x1xf32> to vector<128x128xf32>
    %206 = arith.mulf %205, %200 : vector<128x128xf32>
    %207 = vector.extract_strided_slice %1 {offsets = [0, 5], sizes = [128, 1], strides = [1, 1]} : vector<128x8xi32> to vector<128x1xi32>
    %208 = vector.shape_cast %207 : vector<128x1xi32> to vector<128x1xi32>
    %209 = vector.broadcast %208 : vector<128x1xi32> to vector<128x128xi32>
    %210 = vector.extract_strided_slice %54 {offsets = [768, 0], sizes = [128, 128], strides = [1, 1]} : vector<1024x256xf32> to vector<128x128xf32>
    %211 = vector.extract_strided_slice %148 {offsets = [0, 0], sizes = [128, 1], strides = [1, 1]} : vector<128x2xf32> to vector<128x1xf32>
    %212 = vector.broadcast %211 : vector<128x1xf32> to vector<128x128xf32>
    %213 = arith.mulf %212, %210 : vector<128x128xf32>
    %214 = vector.extract_strided_slice %148 {offsets = [0, 1], sizes = [128, 1], strides = [1, 1]} : vector<128x2xf32> to vector<128x1xf32>
    %215 = vector.broadcast %214 : vector<128x1xf32> to vector<128x128xf32>
    %216 = arith.mulf %215, %210 : vector<128x128xf32>
    %217 = vector.extract_strided_slice %1 {offsets = [0, 6], sizes = [128, 1], strides = [1, 1]} : vector<128x8xi32> to vector<128x1xi32>
    %218 = vector.shape_cast %217 : vector<128x1xi32> to vector<128x1xi32>
    %219 = vector.broadcast %218 : vector<128x1xi32> to vector<128x128xi32>
    %220 = vector.extract_strided_slice %54 {offsets = [896, 0], sizes = [128, 128], strides = [1, 1]} : vector<1024x256xf32> to vector<128x128xf32>
    %221 = vector.extract_strided_slice %149 {offsets = [0, 0], sizes = [128, 1], strides = [1, 1]} : vector<128x2xf32> to vector<128x1xf32>
    %222 = vector.broadcast %221 : vector<128x1xf32> to vector<128x128xf32>
    %223 = arith.mulf %222, %220 : vector<128x128xf32>
    %224 = vector.extract_strided_slice %149 {offsets = [0, 1], sizes = [128, 1], strides = [1, 1]} : vector<128x2xf32> to vector<128x1xf32>
    %225 = vector.broadcast %224 : vector<128x1xf32> to vector<128x128xf32>
    %226 = arith.mulf %225, %220 : vector<128x128xf32>
    %227 = vector.extract_strided_slice %1 {offsets = [0, 7], sizes = [128, 1], strides = [1, 1]} : vector<128x8xi32> to vector<128x1xi32>
    %228 = vector.shape_cast %227 : vector<128x1xi32> to vector<128x1xi32>
    %229 = vector.broadcast %228 : vector<128x1xi32> to vector<128x128xi32>
    %cst_23 = arith.constant 0.000000e+00 : f32
    %230 = vector.broadcast %cst_23 : f32 to vector<128x64xf32>
    %cst_24 = arith.constant 0.000000e+00 : f32
    %231 = vector.broadcast %cst_24 : f32 to vector<128x64xf32>
    %cst_25 = arith.constant 0.000000e+00 : f32
    %232 = vector.broadcast %cst_25 : f32 to vector<128x128xf32>
    %cst_26 = arith.constant 0.000000e+00 : f32
    %233 = vector.broadcast %cst_26 : f32 to vector<128x128xf32>
    %c0_i32 = arith.constant 0 : i32
    %234 = vector.broadcast %c0_i32 : i32 to vector<128x128xi32>
    %235 = arith.cmpi eq, %159, %234 : vector<128x128xi32>
    %cst_27 = arith.constant 0.000000e+00 : f32
    %236 = vector.broadcast %cst_27 : f32 to vector<128x128xf32>
    %237 = arith.select %235, %153, %236 : vector<128x128xi1>, vector<128x128xf32>
    %238 = arith.addf %232, %237 : vector<128x128xf32>
    %cst_28 = arith.constant 0.000000e+00 : f32
    %239 = vector.broadcast %cst_28 : f32 to vector<128x128xf32>
    %240 = arith.select %235, %156, %239 : vector<128x128xi1>, vector<128x128xf32>
    %241 = arith.addf %233, %240 : vector<128x128xf32>
    %c0_i32_29 = arith.constant 0 : i32
    %242 = vector.broadcast %c0_i32_29 : i32 to vector<128x128xi32>
    %243 = arith.cmpi eq, %169, %242 : vector<128x128xi32>
    %cst_30 = arith.constant 0.000000e+00 : f32
    %244 = vector.broadcast %cst_30 : f32 to vector<128x128xf32>
    %245 = arith.select %243, %163, %244 : vector<128x128xi1>, vector<128x128xf32>
    %246 = arith.addf %238, %245 : vector<128x128xf32>
    %cst_31 = arith.constant 0.000000e+00 : f32
    %247 = vector.broadcast %cst_31 : f32 to vector<128x128xf32>
    %248 = arith.select %243, %166, %247 : vector<128x128xi1>, vector<128x128xf32>
    %249 = arith.addf %241, %248 : vector<128x128xf32>
    %c0_i32_32 = arith.constant 0 : i32
    %250 = vector.broadcast %c0_i32_32 : i32 to vector<128x128xi32>
    %251 = arith.cmpi eq, %179, %250 : vector<128x128xi32>
    %cst_33 = arith.constant 0.000000e+00 : f32
    %252 = vector.broadcast %cst_33 : f32 to vector<128x128xf32>
    %253 = arith.select %251, %173, %252 : vector<128x128xi1>, vector<128x128xf32>
    %254 = arith.addf %246, %253 : vector<128x128xf32>
    %cst_34 = arith.constant 0.000000e+00 : f32
    %255 = vector.broadcast %cst_34 : f32 to vector<128x128xf32>
    %256 = arith.select %251, %176, %255 : vector<128x128xi1>, vector<128x128xf32>
    %257 = arith.addf %249, %256 : vector<128x128xf32>
    %c0_i32_35 = arith.constant 0 : i32
    %258 = vector.broadcast %c0_i32_35 : i32 to vector<128x128xi32>
    %259 = arith.cmpi eq, %189, %258 : vector<128x128xi32>
    %cst_36 = arith.constant 0.000000e+00 : f32
    %260 = vector.broadcast %cst_36 : f32 to vector<128x128xf32>
    %261 = arith.select %259, %183, %260 : vector<128x128xi1>, vector<128x128xf32>
    %262 = arith.addf %254, %261 : vector<128x128xf32>
    %cst_37 = arith.constant 0.000000e+00 : f32
    %263 = vector.broadcast %cst_37 : f32 to vector<128x128xf32>
    %264 = arith.select %259, %186, %263 : vector<128x128xi1>, vector<128x128xf32>
    %265 = arith.addf %257, %264 : vector<128x128xf32>
    %c0_i32_38 = arith.constant 0 : i32
    %266 = vector.broadcast %c0_i32_38 : i32 to vector<128x128xi32>
    %267 = arith.cmpi eq, %199, %266 : vector<128x128xi32>
    %cst_39 = arith.constant 0.000000e+00 : f32
    %268 = vector.broadcast %cst_39 : f32 to vector<128x128xf32>
    %269 = arith.select %267, %193, %268 : vector<128x128xi1>, vector<128x128xf32>
    %270 = arith.addf %262, %269 : vector<128x128xf32>
    %cst_40 = arith.constant 0.000000e+00 : f32
    %271 = vector.broadcast %cst_40 : f32 to vector<128x128xf32>
    %272 = arith.select %267, %196, %271 : vector<128x128xi1>, vector<128x128xf32>
    %273 = arith.addf %265, %272 : vector<128x128xf32>
    %c0_i32_41 = arith.constant 0 : i32
    %274 = vector.broadcast %c0_i32_41 : i32 to vector<128x128xi32>
    %275 = arith.cmpi eq, %209, %274 : vector<128x128xi32>
    %cst_42 = arith.constant 0.000000e+00 : f32
    %276 = vector.broadcast %cst_42 : f32 to vector<128x128xf32>
    %277 = arith.select %275, %203, %276 : vector<128x128xi1>, vector<128x128xf32>
    %278 = arith.addf %270, %277 : vector<128x128xf32>
    %cst_43 = arith.constant 0.000000e+00 : f32
    %279 = vector.broadcast %cst_43 : f32 to vector<128x128xf32>
    %280 = arith.select %275, %206, %279 : vector<128x128xi1>, vector<128x128xf32>
    %281 = arith.addf %273, %280 : vector<128x128xf32>
    %c0_i32_44 = arith.constant 0 : i32
    %282 = vector.broadcast %c0_i32_44 : i32 to vector<128x128xi32>
    %283 = arith.cmpi eq, %219, %282 : vector<128x128xi32>
    %cst_45 = arith.constant 0.000000e+00 : f32
    %284 = vector.broadcast %cst_45 : f32 to vector<128x128xf32>
    %285 = arith.select %283, %213, %284 : vector<128x128xi1>, vector<128x128xf32>
    %286 = arith.addf %278, %285 : vector<128x128xf32>
    %cst_46 = arith.constant 0.000000e+00 : f32
    %287 = vector.broadcast %cst_46 : f32 to vector<128x128xf32>
    %288 = arith.select %283, %216, %287 : vector<128x128xi1>, vector<128x128xf32>
    %289 = arith.addf %281, %288 : vector<128x128xf32>
    %c0_i32_47 = arith.constant 0 : i32
    %290 = vector.broadcast %c0_i32_47 : i32 to vector<128x128xi32>
    %291 = arith.cmpi eq, %229, %290 : vector<128x128xi32>
    %cst_48 = arith.constant 0.000000e+00 : f32
    %292 = vector.broadcast %cst_48 : f32 to vector<128x128xf32>
    %293 = arith.select %291, %223, %292 : vector<128x128xi1>, vector<128x128xf32>
    %294 = arith.addf %286, %293 : vector<128x128xf32>
    %cst_49 = arith.constant 0.000000e+00 : f32
    %295 = vector.broadcast %cst_49 : f32 to vector<128x128xf32>
    %296 = arith.select %291, %226, %295 : vector<128x128xi1>, vector<128x128xf32>
    %297 = arith.addf %289, %296 : vector<128x128xf32>
    %298 = arith.truncf %294 : vector<128x128xf32> to vector<128x128xbf16>
    %c0_50 = arith.constant 0 : index
    %c0_51 = arith.constant 0 : index
    %c0_52 = arith.constant 0 : index
    %299 = vector.load %arg5[%c0_50, %c0_51, %c0_52] : memref<2x512x64xbf16, #tpu.memory_space<vmem>>, vector<1x128x64xbf16>
    %300 = vector.shape_cast %299 : vector<1x128x64xbf16> to vector<128x64xbf16>
    %cst_53 = arith.constant dense<0.000000e+00> : vector<128x64xf32>
    %301 = tpu.matmul %298, %300, %cst_53 {dimension_numbers = #tpu.dot_dimension_numbers<[1], [0], [0], [1], [0, 0, 1, 1], [], []>} : vector<128x128xbf16>, vector<128x64xbf16>, vector<128x64xf32> -> vector<128x64xf32>
    %302 = arith.addf %230, %301 : vector<128x64xf32>
    %303 = arith.truncf %297 : vector<128x128xf32> to vector<128x128xbf16>
    %c1 = arith.constant 1 : index
    %c0_54 = arith.constant 0 : index
    %c0_55 = arith.constant 0 : index
    %304 = vector.load %arg5[%c1, %c0_54, %c0_55] : memref<2x512x64xbf16, #tpu.memory_space<vmem>>, vector<1x128x64xbf16>
    %305 = vector.shape_cast %304 : vector<1x128x64xbf16> to vector<128x64xbf16>
    %cst_56 = arith.constant dense<0.000000e+00> : vector<128x64xf32>
    %306 = tpu.matmul %303, %305, %cst_56 {dimension_numbers = #tpu.dot_dimension_numbers<[1], [0], [0], [1], [0, 0, 1, 1], [], []>} : vector<128x128xbf16>, vector<128x64xbf16>, vector<128x64xf32> -> vector<128x64xf32>
    %307 = arith.addf %231, %306 : vector<128x64xf32>
    %cst_57 = arith.constant 0.000000e+00 : f32
    %308 = vector.broadcast %cst_57 : f32 to vector<128x128xf32>
    %cst_58 = arith.constant 0.000000e+00 : f32
    %309 = vector.broadcast %cst_58 : f32 to vector<128x128xf32>
    %c1_i32 = arith.constant 1 : i32
    %310 = vector.broadcast %c1_i32 : i32 to vector<128x128xi32>
    %311 = arith.cmpi eq, %159, %310 : vector<128x128xi32>
    %cst_59 = arith.constant 0.000000e+00 : f32
    %312 = vector.broadcast %cst_59 : f32 to vector<128x128xf32>
    %313 = arith.select %311, %153, %312 : vector<128x128xi1>, vector<128x128xf32>
    %314 = arith.addf %308, %313 : vector<128x128xf32>
    %cst_60 = arith.constant 0.000000e+00 : f32
    %315 = vector.broadcast %cst_60 : f32 to vector<128x128xf32>
    %316 = arith.select %311, %156, %315 : vector<128x128xi1>, vector<128x128xf32>
    %317 = arith.addf %309, %316 : vector<128x128xf32>
    %c1_i32_61 = arith.constant 1 : i32
    %318 = vector.broadcast %c1_i32_61 : i32 to vector<128x128xi32>
    %319 = arith.cmpi eq, %169, %318 : vector<128x128xi32>
    %cst_62 = arith.constant 0.000000e+00 : f32
    %320 = vector.broadcast %cst_62 : f32 to vector<128x128xf32>
    %321 = arith.select %319, %163, %320 : vector<128x128xi1>, vector<128x128xf32>
    %322 = arith.addf %314, %321 : vector<128x128xf32>
    %cst_63 = arith.constant 0.000000e+00 : f32
    %323 = vector.broadcast %cst_63 : f32 to vector<128x128xf32>
    %324 = arith.select %319, %166, %323 : vector<128x128xi1>, vector<128x128xf32>
    %325 = arith.addf %317, %324 : vector<128x128xf32>
    %c1_i32_64 = arith.constant 1 : i32
    %326 = vector.broadcast %c1_i32_64 : i32 to vector<128x128xi32>
    %327 = arith.cmpi eq, %179, %326 : vector<128x128xi32>
    %cst_65 = arith.constant 0.000000e+00 : f32
    %328 = vector.broadcast %cst_65 : f32 to vector<128x128xf32>
    %329 = arith.select %327, %173, %328 : vector<128x128xi1>, vector<128x128xf32>
    %330 = arith.addf %322, %329 : vector<128x128xf32>
    %cst_66 = arith.constant 0.000000e+00 : f32
    %331 = vector.broadcast %cst_66 : f32 to vector<128x128xf32>
    %332 = arith.select %327, %176, %331 : vector<128x128xi1>, vector<128x128xf32>
    %333 = arith.addf %325, %332 : vector<128x128xf32>
    %c1_i32_67 = arith.constant 1 : i32
    %334 = vector.broadcast %c1_i32_67 : i32 to vector<128x128xi32>
    %335 = arith.cmpi eq, %189, %334 : vector<128x128xi32>
    %cst_68 = arith.constant 0.000000e+00 : f32
    %336 = vector.broadcast %cst_68 : f32 to vector<128x128xf32>
    %337 = arith.select %335, %183, %336 : vector<128x128xi1>, vector<128x128xf32>
    %338 = arith.addf %330, %337 : vector<128x128xf32>
    %cst_69 = arith.constant 0.000000e+00 : f32
    %339 = vector.broadcast %cst_69 : f32 to vector<128x128xf32>
    %340 = arith.select %335, %186, %339 : vector<128x128xi1>, vector<128x128xf32>
    %341 = arith.addf %333, %340 : vector<128x128xf32>
    %c1_i32_70 = arith.constant 1 : i32
    %342 = vector.broadcast %c1_i32_70 : i32 to vector<128x128xi32>
    %343 = arith.cmpi eq, %199, %342 : vector<128x128xi32>
    %cst_71 = arith.constant 0.000000e+00 : f32
    %344 = vector.broadcast %cst_71 : f32 to vector<128x128xf32>
    %345 = arith.select %343, %193, %344 : vector<128x128xi1>, vector<128x128xf32>
    %346 = arith.addf %338, %345 : vector<128x128xf32>
    %cst_72 = arith.constant 0.000000e+00 : f32
    %347 = vector.broadcast %cst_72 : f32 to vector<128x128xf32>
    %348 = arith.select %343, %196, %347 : vector<128x128xi1>, vector<128x128xf32>
    %349 = arith.addf %341, %348 : vector<128x128xf32>
    %c1_i32_73 = arith.constant 1 : i32
    %350 = vector.broadcast %c1_i32_73 : i32 to vector<128x128xi32>
    %351 = arith.cmpi eq, %209, %350 : vector<128x128xi32>
    %cst_74 = arith.constant 0.000000e+00 : f32
    %352 = vector.broadcast %cst_74 : f32 to vector<128x128xf32>
    %353 = arith.select %351, %203, %352 : vector<128x128xi1>, vector<128x128xf32>
    %354 = arith.addf %346, %353 : vector<128x128xf32>
    %cst_75 = arith.constant 0.000000e+00 : f32
    %355 = vector.broadcast %cst_75 : f32 to vector<128x128xf32>
    %356 = arith.select %351, %206, %355 : vector<128x128xi1>, vector<128x128xf32>
    %357 = arith.addf %349, %356 : vector<128x128xf32>
    %c1_i32_76 = arith.constant 1 : i32
    %358 = vector.broadcast %c1_i32_76 : i32 to vector<128x128xi32>
    %359 = arith.cmpi eq, %219, %358 : vector<128x128xi32>
    %cst_77 = arith.constant 0.000000e+00 : f32
    %360 = vector.broadcast %cst_77 : f32 to vector<128x128xf32>
    %361 = arith.select %359, %213, %360 : vector<128x128xi1>, vector<128x128xf32>
    %362 = arith.addf %354, %361 : vector<128x128xf32>
    %cst_78 = arith.constant 0.000000e+00 : f32
    %363 = vector.broadcast %cst_78 : f32 to vector<128x128xf32>
    %364 = arith.select %359, %216, %363 : vector<128x128xi1>, vector<128x128xf32>
    %365 = arith.addf %357, %364 : vector<128x128xf32>
    %c1_i32_79 = arith.constant 1 : i32
    %366 = vector.broadcast %c1_i32_79 : i32 to vector<128x128xi32>
    %367 = arith.cmpi eq, %229, %366 : vector<128x128xi32>
    %cst_80 = arith.constant 0.000000e+00 : f32
    %368 = vector.broadcast %cst_80 : f32 to vector<128x128xf32>
    %369 = arith.select %367, %223, %368 : vector<128x128xi1>, vector<128x128xf32>
    %370 = arith.addf %362, %369 : vector<128x128xf32>
    %cst_81 = arith.constant 0.000000e+00 : f32
    %371 = vector.broadcast %cst_81 : f32 to vector<128x128xf32>
    %372 = arith.select %367, %226, %371 : vector<128x128xi1>, vector<128x128xf32>
    %373 = arith.addf %365, %372 : vector<128x128xf32>
    %374 = arith.truncf %370 : vector<128x128xf32> to vector<128x128xbf16>
    %c0_82 = arith.constant 0 : index
    %c128 = arith.constant 128 : index
    %c0_83 = arith.constant 0 : index
    %375 = vector.load %arg5[%c0_82, %c128, %c0_83] : memref<2x512x64xbf16, #tpu.memory_space<vmem>>, vector<1x128x64xbf16>
    %376 = vector.shape_cast %375 : vector<1x128x64xbf16> to vector<128x64xbf16>
    %cst_84 = arith.constant dense<0.000000e+00> : vector<128x64xf32>
    %377 = tpu.matmul %374, %376, %cst_84 {dimension_numbers = #tpu.dot_dimension_numbers<[1], [0], [0], [1], [0, 0, 1, 1], [], []>} : vector<128x128xbf16>, vector<128x64xbf16>, vector<128x64xf32> -> vector<128x64xf32>
    %378 = arith.addf %302, %377 : vector<128x64xf32>
    %379 = arith.truncf %373 : vector<128x128xf32> to vector<128x128xbf16>
    %c1_85 = arith.constant 1 : index
    %c128_86 = arith.constant 128 : index
    %c0_87 = arith.constant 0 : index
    %380 = vector.load %arg5[%c1_85, %c128_86, %c0_87] : memref<2x512x64xbf16, #tpu.memory_space<vmem>>, vector<1x128x64xbf16>
    %381 = vector.shape_cast %380 : vector<1x128x64xbf16> to vector<128x64xbf16>
    %cst_88 = arith.constant dense<0.000000e+00> : vector<128x64xf32>
    %382 = tpu.matmul %379, %381, %cst_88 {dimension_numbers = #tpu.dot_dimension_numbers<[1], [0], [0], [1], [0, 0, 1, 1], [], []>} : vector<128x128xbf16>, vector<128x64xbf16>, vector<128x64xf32> -> vector<128x64xf32>
    %383 = arith.addf %307, %382 : vector<128x64xf32>
    %cst_89 = arith.constant 0.000000e+00 : f32
    %384 = vector.broadcast %cst_89 : f32 to vector<128x128xf32>
    %cst_90 = arith.constant 0.000000e+00 : f32
    %385 = vector.broadcast %cst_90 : f32 to vector<128x128xf32>
    %c2_i32 = arith.constant 2 : i32
    %386 = vector.broadcast %c2_i32 : i32 to vector<128x128xi32>
    %387 = arith.cmpi eq, %159, %386 : vector<128x128xi32>
    %cst_91 = arith.constant 0.000000e+00 : f32
    %388 = vector.broadcast %cst_91 : f32 to vector<128x128xf32>
    %389 = arith.select %387, %153, %388 : vector<128x128xi1>, vector<128x128xf32>
    %390 = arith.addf %384, %389 : vector<128x128xf32>
    %cst_92 = arith.constant 0.000000e+00 : f32
    %391 = vector.broadcast %cst_92 : f32 to vector<128x128xf32>
    %392 = arith.select %387, %156, %391 : vector<128x128xi1>, vector<128x128xf32>
    %393 = arith.addf %385, %392 : vector<128x128xf32>
    %c2_i32_93 = arith.constant 2 : i32
    %394 = vector.broadcast %c2_i32_93 : i32 to vector<128x128xi32>
    %395 = arith.cmpi eq, %169, %394 : vector<128x128xi32>
    %cst_94 = arith.constant 0.000000e+00 : f32
    %396 = vector.broadcast %cst_94 : f32 to vector<128x128xf32>
    %397 = arith.select %395, %163, %396 : vector<128x128xi1>, vector<128x128xf32>
    %398 = arith.addf %390, %397 : vector<128x128xf32>
    %cst_95 = arith.constant 0.000000e+00 : f32
    %399 = vector.broadcast %cst_95 : f32 to vector<128x128xf32>
    %400 = arith.select %395, %166, %399 : vector<128x128xi1>, vector<128x128xf32>
    %401 = arith.addf %393, %400 : vector<128x128xf32>
    %c2_i32_96 = arith.constant 2 : i32
    %402 = vector.broadcast %c2_i32_96 : i32 to vector<128x128xi32>
    %403 = arith.cmpi eq, %179, %402 : vector<128x128xi32>
    %cst_97 = arith.constant 0.000000e+00 : f32
    %404 = vector.broadcast %cst_97 : f32 to vector<128x128xf32>
    %405 = arith.select %403, %173, %404 : vector<128x128xi1>, vector<128x128xf32>
    %406 = arith.addf %398, %405 : vector<128x128xf32>
    %cst_98 = arith.constant 0.000000e+00 : f32
    %407 = vector.broadcast %cst_98 : f32 to vector<128x128xf32>
    %408 = arith.select %403, %176, %407 : vector<128x128xi1>, vector<128x128xf32>
    %409 = arith.addf %401, %408 : vector<128x128xf32>
    %c2_i32_99 = arith.constant 2 : i32
    %410 = vector.broadcast %c2_i32_99 : i32 to vector<128x128xi32>
    %411 = arith.cmpi eq, %189, %410 : vector<128x128xi32>
    %cst_100 = arith.constant 0.000000e+00 : f32
    %412 = vector.broadcast %cst_100 : f32 to vector<128x128xf32>
    %413 = arith.select %411, %183, %412 : vector<128x128xi1>, vector<128x128xf32>
    %414 = arith.addf %406, %413 : vector<128x128xf32>
    %cst_101 = arith.constant 0.000000e+00 : f32
    %415 = vector.broadcast %cst_101 : f32 to vector<128x128xf32>
    %416 = arith.select %411, %186, %415 : vector<128x128xi1>, vector<128x128xf32>
    %417 = arith.addf %409, %416 : vector<128x128xf32>
    %c2_i32_102 = arith.constant 2 : i32
    %418 = vector.broadcast %c2_i32_102 : i32 to vector<128x128xi32>
    %419 = arith.cmpi eq, %199, %418 : vector<128x128xi32>
    %cst_103 = arith.constant 0.000000e+00 : f32
    %420 = vector.broadcast %cst_103 : f32 to vector<128x128xf32>
    %421 = arith.select %419, %193, %420 : vector<128x128xi1>, vector<128x128xf32>
    %422 = arith.addf %414, %421 : vector<128x128xf32>
    %cst_104 = arith.constant 0.000000e+00 : f32
    %423 = vector.broadcast %cst_104 : f32 to vector<128x128xf32>
    %424 = arith.select %419, %196, %423 : vector<128x128xi1>, vector<128x128xf32>
    %425 = arith.addf %417, %424 : vector<128x128xf32>
    %c2_i32_105 = arith.constant 2 : i32
    %426 = vector.broadcast %c2_i32_105 : i32 to vector<128x128xi32>
    %427 = arith.cmpi eq, %209, %426 : vector<128x128xi32>
    %cst_106 = arith.constant 0.000000e+00 : f32
    %428 = vector.broadcast %cst_106 : f32 to vector<128x128xf32>
    %429 = arith.select %427, %203, %428 : vector<128x128xi1>, vector<128x128xf32>
    %430 = arith.addf %422, %429 : vector<128x128xf32>
    %cst_107 = arith.constant 0.000000e+00 : f32
    %431 = vector.broadcast %cst_107 : f32 to vector<128x128xf32>
    %432 = arith.select %427, %206, %431 : vector<128x128xi1>, vector<128x128xf32>
    %433 = arith.addf %425, %432 : vector<128x128xf32>
    %c2_i32_108 = arith.constant 2 : i32
    %434 = vector.broadcast %c2_i32_108 : i32 to vector<128x128xi32>
    %435 = arith.cmpi eq, %219, %434 : vector<128x128xi32>
    %cst_109 = arith.constant 0.000000e+00 : f32
    %436 = vector.broadcast %cst_109 : f32 to vector<128x128xf32>
    %437 = arith.select %435, %213, %436 : vector<128x128xi1>, vector<128x128xf32>
    %438 = arith.addf %430, %437 : vector<128x128xf32>
    %cst_110 = arith.constant 0.000000e+00 : f32
    %439 = vector.broadcast %cst_110 : f32 to vector<128x128xf32>
    %440 = arith.select %435, %216, %439 : vector<128x128xi1>, vector<128x128xf32>
    %441 = arith.addf %433, %440 : vector<128x128xf32>
    %c2_i32_111 = arith.constant 2 : i32
    %442 = vector.broadcast %c2_i32_111 : i32 to vector<128x128xi32>
    %443 = arith.cmpi eq, %229, %442 : vector<128x128xi32>
    %cst_112 = arith.constant 0.000000e+00 : f32
    %444 = vector.broadcast %cst_112 : f32 to vector<128x128xf32>
    %445 = arith.select %443, %223, %444 : vector<128x128xi1>, vector<128x128xf32>
    %446 = arith.addf %438, %445 : vector<128x128xf32>
    %cst_113 = arith.constant 0.000000e+00 : f32
    %447 = vector.broadcast %cst_113 : f32 to vector<128x128xf32>
    %448 = arith.select %443, %226, %447 : vector<128x128xi1>, vector<128x128xf32>
    %449 = arith.addf %441, %448 : vector<128x128xf32>
    %450 = arith.truncf %446 : vector<128x128xf32> to vector<128x128xbf16>
    %c0_114 = arith.constant 0 : index
    %c256 = arith.constant 256 : index
    %c0_115 = arith.constant 0 : index
    %451 = vector.load %arg5[%c0_114, %c256, %c0_115] : memref<2x512x64xbf16, #tpu.memory_space<vmem>>, vector<1x128x64xbf16>
    %452 = vector.shape_cast %451 : vector<1x128x64xbf16> to vector<128x64xbf16>
    %cst_116 = arith.constant dense<0.000000e+00> : vector<128x64xf32>
    %453 = tpu.matmul %450, %452, %cst_116 {dimension_numbers = #tpu.dot_dimension_numbers<[1], [0], [0], [1], [0, 0, 1, 1], [], []>} : vector<128x128xbf16>, vector<128x64xbf16>, vector<128x64xf32> -> vector<128x64xf32>
    %454 = arith.addf %378, %453 : vector<128x64xf32>
    %455 = arith.truncf %449 : vector<128x128xf32> to vector<128x128xbf16>
    %c1_117 = arith.constant 1 : index
    %c256_118 = arith.constant 256 : index
    %c0_119 = arith.constant 0 : index
    %456 = vector.load %arg5[%c1_117, %c256_118, %c0_119] : memref<2x512x64xbf16, #tpu.memory_space<vmem>>, vector<1x128x64xbf16>
    %457 = vector.shape_cast %456 : vector<1x128x64xbf16> to vector<128x64xbf16>
    %cst_120 = arith.constant dense<0.000000e+00> : vector<128x64xf32>
    %458 = tpu.matmul %455, %457, %cst_120 {dimension_numbers = #tpu.dot_dimension_numbers<[1], [0], [0], [1], [0, 0, 1, 1], [], []>} : vector<128x128xbf16>, vector<128x64xbf16>, vector<128x64xf32> -> vector<128x64xf32>
    %459 = arith.addf %383, %458 : vector<128x64xf32>
    %cst_121 = arith.constant 0.000000e+00 : f32
    %460 = vector.broadcast %cst_121 : f32 to vector<128x128xf32>
    %cst_122 = arith.constant 0.000000e+00 : f32
    %461 = vector.broadcast %cst_122 : f32 to vector<128x128xf32>
    %c3_i32 = arith.constant 3 : i32
    %462 = vector.broadcast %c3_i32 : i32 to vector<128x128xi32>
    %463 = arith.cmpi eq, %159, %462 : vector<128x128xi32>
    %cst_123 = arith.constant 0.000000e+00 : f32
    %464 = vector.broadcast %cst_123 : f32 to vector<128x128xf32>
    %465 = arith.select %463, %153, %464 : vector<128x128xi1>, vector<128x128xf32>
    %466 = arith.addf %460, %465 : vector<128x128xf32>
    %cst_124 = arith.constant 0.000000e+00 : f32
    %467 = vector.broadcast %cst_124 : f32 to vector<128x128xf32>
    %468 = arith.select %463, %156, %467 : vector<128x128xi1>, vector<128x128xf32>
    %469 = arith.addf %461, %468 : vector<128x128xf32>
    %c3_i32_125 = arith.constant 3 : i32
    %470 = vector.broadcast %c3_i32_125 : i32 to vector<128x128xi32>
    %471 = arith.cmpi eq, %169, %470 : vector<128x128xi32>
    %cst_126 = arith.constant 0.000000e+00 : f32
    %472 = vector.broadcast %cst_126 : f32 to vector<128x128xf32>
    %473 = arith.select %471, %163, %472 : vector<128x128xi1>, vector<128x128xf32>
    %474 = arith.addf %466, %473 : vector<128x128xf32>
    %cst_127 = arith.constant 0.000000e+00 : f32
    %475 = vector.broadcast %cst_127 : f32 to vector<128x128xf32>
    %476 = arith.select %471, %166, %475 : vector<128x128xi1>, vector<128x128xf32>
    %477 = arith.addf %469, %476 : vector<128x128xf32>
    %c3_i32_128 = arith.constant 3 : i32
    %478 = vector.broadcast %c3_i32_128 : i32 to vector<128x128xi32>
    %479 = arith.cmpi eq, %179, %478 : vector<128x128xi32>
    %cst_129 = arith.constant 0.000000e+00 : f32
    %480 = vector.broadcast %cst_129 : f32 to vector<128x128xf32>
    %481 = arith.select %479, %173, %480 : vector<128x128xi1>, vector<128x128xf32>
    %482 = arith.addf %474, %481 : vector<128x128xf32>
    %cst_130 = arith.constant 0.000000e+00 : f32
    %483 = vector.broadcast %cst_130 : f32 to vector<128x128xf32>
    %484 = arith.select %479, %176, %483 : vector<128x128xi1>, vector<128x128xf32>
    %485 = arith.addf %477, %484 : vector<128x128xf32>
    %c3_i32_131 = arith.constant 3 : i32
    %486 = vector.broadcast %c3_i32_131 : i32 to vector<128x128xi32>
    %487 = arith.cmpi eq, %189, %486 : vector<128x128xi32>
    %cst_132 = arith.constant 0.000000e+00 : f32
    %488 = vector.broadcast %cst_132 : f32 to vector<128x128xf32>
    %489 = arith.select %487, %183, %488 : vector<128x128xi1>, vector<128x128xf32>
    %490 = arith.addf %482, %489 : vector<128x128xf32>
    %cst_133 = arith.constant 0.000000e+00 : f32
    %491 = vector.broadcast %cst_133 : f32 to vector<128x128xf32>
    %492 = arith.select %487, %186, %491 : vector<128x128xi1>, vector<128x128xf32>
    %493 = arith.addf %485, %492 : vector<128x128xf32>
    %c3_i32_134 = arith.constant 3 : i32
    %494 = vector.broadcast %c3_i32_134 : i32 to vector<128x128xi32>
    %495 = arith.cmpi eq, %199, %494 : vector<128x128xi32>
    %cst_135 = arith.constant 0.000000e+00 : f32
    %496 = vector.broadcast %cst_135 : f32 to vector<128x128xf32>
    %497 = arith.select %495, %193, %496 : vector<128x128xi1>, vector<128x128xf32>
    %498 = arith.addf %490, %497 : vector<128x128xf32>
    %cst_136 = arith.constant 0.000000e+00 : f32
    %499 = vector.broadcast %cst_136 : f32 to vector<128x128xf32>
    %500 = arith.select %495, %196, %499 : vector<128x128xi1>, vector<128x128xf32>
    %501 = arith.addf %493, %500 : vector<128x128xf32>
    %c3_i32_137 = arith.constant 3 : i32
    %502 = vector.broadcast %c3_i32_137 : i32 to vector<128x128xi32>
    %503 = arith.cmpi eq, %209, %502 : vector<128x128xi32>
    %cst_138 = arith.constant 0.000000e+00 : f32
    %504 = vector.broadcast %cst_138 : f32 to vector<128x128xf32>
    %505 = arith.select %503, %203, %504 : vector<128x128xi1>, vector<128x128xf32>
    %506 = arith.addf %498, %505 : vector<128x128xf32>
    %cst_139 = arith.constant 0.000000e+00 : f32
    %507 = vector.broadcast %cst_139 : f32 to vector<128x128xf32>
    %508 = arith.select %503, %206, %507 : vector<128x128xi1>, vector<128x128xf32>
    %509 = arith.addf %501, %508 : vector<128x128xf32>
    %c3_i32_140 = arith.constant 3 : i32
    %510 = vector.broadcast %c3_i32_140 : i32 to vector<128x128xi32>
    %511 = arith.cmpi eq, %219, %510 : vector<128x128xi32>
    %cst_141 = arith.constant 0.000000e+00 : f32
    %512 = vector.broadcast %cst_141 : f32 to vector<128x128xf32>
    %513 = arith.select %511, %213, %512 : vector<128x128xi1>, vector<128x128xf32>
    %514 = arith.addf %506, %513 : vector<128x128xf32>
    %cst_142 = arith.constant 0.000000e+00 : f32
    %515 = vector.broadcast %cst_142 : f32 to vector<128x128xf32>
    %516 = arith.select %511, %216, %515 : vector<128x128xi1>, vector<128x128xf32>
    %517 = arith.addf %509, %516 : vector<128x128xf32>
    %c3_i32_143 = arith.constant 3 : i32
    %518 = vector.broadcast %c3_i32_143 : i32 to vector<128x128xi32>
    %519 = arith.cmpi eq, %229, %518 : vector<128x128xi32>
    %cst_144 = arith.constant 0.000000e+00 : f32
    %520 = vector.broadcast %cst_144 : f32 to vector<128x128xf32>
    %521 = arith.select %519, %223, %520 : vector<128x128xi1>, vector<128x128xf32>
    %522 = arith.addf %514, %521 : vector<128x128xf32>
    %cst_145 = arith.constant 0.000000e+00 : f32
    %523 = vector.broadcast %cst_145 : f32 to vector<128x128xf32>
    %524 = arith.select %519, %226, %523 : vector<128x128xi1>, vector<128x128xf32>
    %525 = arith.addf %517, %524 : vector<128x128xf32>
    %526 = arith.truncf %522 : vector<128x128xf32> to vector<128x128xbf16>
    %c0_146 = arith.constant 0 : index
    %c384 = arith.constant 384 : index
    %c0_147 = arith.constant 0 : index
    %527 = vector.load %arg5[%c0_146, %c384, %c0_147] : memref<2x512x64xbf16, #tpu.memory_space<vmem>>, vector<1x128x64xbf16>
    %528 = vector.shape_cast %527 : vector<1x128x64xbf16> to vector<128x64xbf16>
    %cst_148 = arith.constant dense<0.000000e+00> : vector<128x64xf32>
    %529 = tpu.matmul %526, %528, %cst_148 {dimension_numbers = #tpu.dot_dimension_numbers<[1], [0], [0], [1], [0, 0, 1, 1], [], []>} : vector<128x128xbf16>, vector<128x64xbf16>, vector<128x64xf32> -> vector<128x64xf32>
    %530 = arith.addf %454, %529 : vector<128x64xf32>
    %531 = arith.truncf %525 : vector<128x128xf32> to vector<128x128xbf16>
    %c1_149 = arith.constant 1 : index
    %c384_150 = arith.constant 384 : index
    %c0_151 = arith.constant 0 : index
    %532 = vector.load %arg5[%c1_149, %c384_150, %c0_151] : memref<2x512x64xbf16, #tpu.memory_space<vmem>>, vector<1x128x64xbf16>
    %533 = vector.shape_cast %532 : vector<1x128x64xbf16> to vector<128x64xbf16>
    %cst_152 = arith.constant dense<0.000000e+00> : vector<128x64xf32>
    %534 = tpu.matmul %531, %533, %cst_152 {dimension_numbers = #tpu.dot_dimension_numbers<[1], [0], [0], [1], [0, 0, 1, 1], [], []>} : vector<128x128xbf16>, vector<128x64xbf16>, vector<128x64xf32> -> vector<128x64xf32>
    %535 = arith.addf %459, %534 : vector<128x64xf32>
    %536 = tpu.concatenate %530, %535 in 1 : vector<128x64xf32>, vector<128x64xf32> -> vector<128x128xf32>
    %c0_153 = arith.constant 0 : index
    %c0_154 = arith.constant 0 : index
    %537 = vector.load %arg6[%c0_153, %c0_154] : memref<128x128xf32, #tpu.memory_space<vmem>>, vector<128x128xf32>
    tpu.vector_store %arg6[%c0_153, %c0_154], %536 {strides = array<i32>} : memref<128x128xf32, #tpu.memory_space<vmem>>, vector<128x128xf32>,
    return
  }
  func.func @transform_0(%arg0: i32) -> (i32, i32) {
    %c0_i32 = arith.constant 0 : i32
    %c0_i32_0 = arith.constant 0 : i32
    %c0_i32_1 = arith.constant 0 : i32
    return %c0_i32, %c0_i32_0 : i32, i32
  }
  func.func @transform_1(%arg0: i32) -> (i32, i32) {
    %c0_i32 = arith.constant 0 : i32
    %c0_i32_0 = arith.constant 0 : i32
    return %arg0, %c0_i32 : i32, i32
  }
  func.func @transform_2(%arg0: i32) -> (i32, i32) {
    %c0_i32 = arith.constant 0 : i32
    %c0_i32_0 = arith.constant 0 : i32
    return %arg0, %c0_i32 : i32, i32
  }
  func.func @transform_3(%arg0: i32) -> (i32, i32) {
    %c0_i32 = arith.constant 0 : i32
    %c0_i32_0 = arith.constant 0 : i32
    return %arg0, %c0_i32 : i32, i32
  }
  func.func @transform_4(%arg0: i32) -> (i32, i32, i32) {
    %c0_i32 = arith.constant 0 : i32
    %c0_i32_0 = arith.constant 0 : i32
    %c0_i32_1 = arith.constant 0 : i32
    %c0_i32_2 = arith.constant 0 : i32
    return %c0_i32, %c0_i32_0, %c0_i32_1 : i32, i32, i32
  }
  func.func @transform_5(%arg0: i32) -> (i32, i32) {
    %c0_i32 = arith.constant 0 : i32
    %c0_i32_0 = arith.constant 0 : i32
    return %arg0, %c0_i32 : i32, i32
  }
}

</mosaic_0001>

<llo_original>
// kernel: multi_head_gat_forward.1
$region0: #{multi_head_gat_forward.1}
  #allocation0 [shape = 'u32[]', space=smem, size = 0x4, offset = 0x4, fixed_abs, tag = 'smem constant byte address 0x4 - core index']
  #allocation1 [shape = 'u32[144,128]{1,0:T(1,128)}', space=vmem, size = 0x12000, scoped, tag = 'internal scratch']
  %s0 = inlined_call_operand.vmem [shape: bf16[256,256], index: 0, kind: input, shape index: {}]
  %s1 = inlined_call_operand.vmem [shape: s32[256,8], index: 1, kind: input, shape index: {}]
  %s2 = inlined_call_operand.vmem [shape: s32[256,8], index: 2, kind: input, shape index: {}]
  %s3 = inlined_call_operand.vmem [shape: f32[256,2], index: 3, kind: input, shape index: {}]
  %s4 = inlined_call_operand.vmem [shape: bf16[2,512,64], index: 4, kind: input, shape index: {}]
  %s5 = inlined_call_operand.hbm [shape: f32[256,128], index: 5, kind: output, shape index: {}]
  %s6 = sld [smem:[#allocation0]]
  $region53: #{multi_head_gat_forward.1} parent=0
    _
  %s8 = ssub.s32 1, %s6
  %s9 = scalar_select 0, %s8, %s6
  $region1: #{multi_head_gat_forward.1} parent=0
    #allocation2 [shape = 'u8[131072]{0}', space=vmem, size = 0x20000, scoped, tag = 'output window, operand 0']
    #allocation3 [shape = 's32[2]{0}', space=sflag, size = 0x8, scoped, tag = 'scoped memory for multi_head_gat_forward.1']
    %10 = vsyncpa [#allocation3], 0
    %s11 = scalar_lea.sflag [#allocation3], 1
    %12 = vsyncpa %s11, 0
    loop: start=0, step=1, limit=4
    $region2: #{multi_head_gat_forward.1} parent=1 // loop_pre_header
      _
    $region3: #{multi_head_gat_forward.1} parent=1 // loop_header
      %s14 = sphi 0, %s18
      %p15 = scmp.ge.s32.totalorder %s14, 4
      %s22 = sphi 0, %s22
      %s24 = sphi 0, %s22
      %s25 = sphi 0, %s24
      %s39 = sphi 0, %s25
      %s45 = sphi 0, %s47
      %s48 = sphi 0, %s45
      %s49 = sphi 0, %s48
      %s65 = sphi 0, %s49
      %s71 = sphi 0, %s73
      %s74 = sphi 0, %s71
      %s75 = sphi 0, %s74
      %s91 = sphi 0, %s75
      %s97 = sphi 0, %s99
      %s100 = sphi 0, %s97
      %s101 = sphi 0, %s100
      %s117 = sphi 0, %s101
      %s121 = sphi 0, %s121
      %s123 = sphi 0, %s121
      %s124 = sphi 0, %s123
      %s138 = sphi 0, %s124
      %s144 = sphi 0, %s146
      %s147 = sphi 0, %s144
      %s148 = sphi 0, %s147
      %s164 = sphi 0, %s148
    $region4: #{multi_head_gat_forward.1} parent=1 // loop_header_branch
      %17 = sbr.rel (%p15) target = $region8
    $region5: #{multi_head_gat_forward.1} parent=1 // loop_body
      %s19 = ssub.s32 %s14, 1
      %s20 = ssub.s32 %s14, 2
      %s21 = sadd.s32 %s14, 1
      %s23 = sadd.s32 %s22, 1
      %p26 = scmp.eq.s32.totalorder %s14, 1
      %p27 = scmp.ne.s32.totalorder %s22, %s24
      %p28 = scmp.eq.s32.totalorder %s14, 0
      %p29 = por %p27, %p28
      %p30 = scmp.ne.s32.totalorder %s22, %s24
      %p31 = scmp.eq.s32.totalorder %s19, 1
      %p32 = por %p30, %p31
      %p33 = scmp.ne.s32.totalorder %s24, %s25
      %p34 = scmp.eq.s32.totalorder %s19, 0
      %p35 = por %p33, %p34
      %p36 = scmp.ne.s32.totalorder %s24, %s25
      %p37 = scmp.eq.s32.totalorder %s20, 1
      %p38 = por %p36, %p37
      %p40 = scmp.ne.s32.totalorder %s25, %s39
      %p41 = scmp.eq.s32.totalorder %s20, 0
      %p42 = por %p40, %p41
      %s43 = ssub.s32 %s14, %s21
      %p44 = scmp.eq.s32.totalorder %s43, 0
      %s46 = sadd.s32 %s45, 1
      %s47 = scalar_select %p44, %s45, %s46
      %p50 = pneg %p44
      %p51 = scmp.eq.s32.totalorder %s14, 1
      %p52 = por %p50, %p51
      %p53 = scmp.ne.s32.totalorder %s45, %s48
      %p54 = scmp.eq.s32.totalorder %s14, 0
      %p55 = por %p53, %p54
      %p56 = scmp.ne.s32.totalorder %s45, %s48
      %p57 = scmp.eq.s32.totalorder %s19, 1
      %p58 = por %p56, %p57
      %p59 = scmp.ne.s32.totalorder %s48, %s49
      %p60 = scmp.eq.s32.totalorder %s19, 0
      %p61 = por %p59, %p60
      %p62 = scmp.ne.s32.totalorder %s48, %s49
      %p63 = scmp.eq.s32.totalorder %s20, 1
      %p64 = por %p62, %p63
      %p66 = scmp.ne.s32.totalorder %s49, %s65
      %p67 = scmp.eq.s32.totalorder %s20, 0
      %p68 = por %p66, %p67
      %s69 = ssub.s32 %s14, %s21
      %p70 = scmp.eq.s32.totalorder %s69, 0
      %s72 = sadd.s32 %s71, 1
      %s73 = scalar_select %p70, %s71, %s72
      %p76 = pneg %p70
      %p77 = scmp.eq.s32.totalorder %s14, 1
      %p78 = por %p76, %p77
      %p79 = scmp.ne.s32.totalorder %s71, %s74
      %p80 = scmp.eq.s32.totalorder %s14, 0
      %p81 = por %p79, %p80
      %p82 = scmp.ne.s32.totalorder %s71, %s74
      %p83 = scmp.eq.s32.totalorder %s19, 1
      %p84 = por %p82, %p83
      %p85 = scmp.ne.s32.totalorder %s74, %s75
      %p86 = scmp.eq.s32.totalorder %s19, 0
      %p87 = por %p85, %p86
      %p88 = scmp.ne.s32.totalorder %s74, %s75
      %p89 = scmp.eq.s32.totalorder %s20, 1
      %p90 = por %p88, %p89
      %p92 = scmp.ne.s32.totalorder %s75, %s91
      %p93 = scmp.eq.s32.totalorder %s20, 0
      %p94 = por %p92, %p93
      %s95 = ssub.s32 %s14, %s21
      %p96 = scmp.eq.s32.totalorder %s95, 0
      %s98 = sadd.s32 %s97, 1
      %s99 = scalar_select %p96, %s97, %s98
      %p102 = pneg %p96
      %p103 = scmp.eq.s32.totalorder %s14, 1
      %p104 = por %p102, %p103
      %p105 = scmp.ne.s32.totalorder %s97, %s100
      %p106 = scmp.eq.s32.totalorder %s14, 0
      %p107 = por %p105, %p106
      %p108 = scmp.ne.s32.totalorder %s97, %s100
      %p109 = scmp.eq.s32.totalorder %s19, 1
      %p110 = por %p108, %p109
      %p111 = scmp.ne.s32.totalorder %s100, %s101
      %p112 = scmp.eq.s32.totalorder %s19, 0
      %p113 = por %p111, %p112
      %p114 = scmp.ne.s32.totalorder %s100, %s101
      %p115 = scmp.eq.s32.totalorder %s20, 1
      %p116 = por %p114, %p115
      %p118 = scmp.ne.s32.totalorder %s101, %s117
      %p119 = scmp.eq.s32.totalorder %s20, 0
      %p120 = por %p118, %p119
      %s122 = sadd.s32 %s121, 1
      %p125 = scmp.eq.s32.totalorder %s14, 1
      %p126 = scmp.ne.s32.totalorder %s121, %s123
      %p127 = scmp.eq.s32.totalorder %s14, 0
      %p128 = por %p126, %p127
      %p129 = scmp.ne.s32.totalorder %s121, %s123
      %p130 = scmp.eq.s32.totalorder %s19, 1
      %p131 = por %p129, %p130
      %p132 = scmp.ne.s32.totalorder %s123, %s124
      %p133 = scmp.eq.s32.totalorder %s19, 0
      %p134 = por %p132, %p133
      %p135 = scmp.ne.s32.totalorder %s123, %s124
      %p136 = scmp.eq.s32.totalorder %s20, 1
      %p137 = por %p135, %p136
      %p139 = scmp.ne.s32.totalorder %s124, %s138
      %p140 = scmp.eq.s32.totalorder %s20, 0
      %p141 = por %p139, %p140
      %s142 = ssub.s32 %s14, %s21
      %p143 = scmp.eq.s32.totalorder %s142, 0
      %s145 = sadd.s32 %s144, 1
      %s146 = scalar_select %p143, %s144, %s145
      %p149 = pneg %p143
      %p150 = scmp.eq.s32.totalorder %s14, 1
      %p151 = por %p149, %p150
      %p152 = scmp.ne.s32.totalorder %s144, %s147
      %p153 = scmp.eq.s32.totalorder %s14, 0
      %p154 = por %p152, %p153
      %p155 = scmp.ne.s32.totalorder %s144, %s147
      %p156 = scmp.eq.s32.totalorder %s19, 1
      %p157 = por %p155, %p156
      %p158 = scmp.ne.s32.totalorder %s147, %s148
      %p159 = scmp.eq.s32.totalorder %s19, 0
      %p160 = por %p158, %p159
      %p161 = scmp.ne.s32.totalorder %s147, %s148
      %p162 = scmp.eq.s32.totalorder %s20, 1
      %p163 = por %p161, %p162
      %p165 = scmp.ne.s32.totalorder %s148, %s164
      %p166 = scmp.eq.s32.totalorder %s20, 0
      %p167 = por %p165, %p166
      %p168 = scmp.le.s32.totalorder 1, %s14
      %p169 = scmp.lt.s32.totalorder %s14, 3
      %p170 = pnand %p168, %p169
      %p171 = pneg %p170
      // Predicated region
      $region9: #{multi_head_gat_forward.1} parent=5 // pred_check
        _
      $region10: #{multi_head_gat_forward.1} parent=5 // pred_check_branch
        %173 = sbr.rel (%p170) target = $region12
      $region11: #{multi_head_gat_forward.1} parent=5 // pred_region
        %s174 = ssub.s32 %s14, 1
        // Predicated region
        $region13: #{multi_head_gat_forward.1} parent=11 // pred_check
          %p175 = pneg %p35
        $region14: #{multi_head_gat_forward.1} parent=11 // pred_check_branch
          %177 = sbr.rel (%p175) target = $region16
        $region15: #{multi_head_gat_forward.1} parent=11 // pred_region
          _
        $region16: #{multi_head_gat_forward.1} parent=11 // pred_fallthru
          _
        // Predicated region
        $region17: #{multi_head_gat_forward.1} parent=11 // pred_check
          %p178 = pneg %p134
        $region18: #{multi_head_gat_forward.1} parent=11 // pred_check_branch
          %180 = sbr.rel (%p178) target = $region20
        $region19: #{multi_head_gat_forward.1} parent=11 // pred_region
          _
        $region20: #{multi_head_gat_forward.1} parent=11 // pred_fallthru
          _
      $region12: #{multi_head_gat_forward.1} parent=5 // pred_fallthru
        _
      %p181 = scmp.lt.s32.totalorder %s14, 2
      // Predicated region
      $region21: #{multi_head_gat_forward.1} parent=5 // pred_check
        %p182 = pneg %p181
      $region22: #{multi_head_gat_forward.1} parent=5 // pred_check_branch
        %184 = sbr.rel (%p182) target = $region24
      $region23: #{multi_head_gat_forward.1} parent=5 // pred_region
        // Predicated region
        $region25: #{multi_head_gat_forward.1} parent=23 // pred_check
          %p185 = pneg %p55
        $region26: #{multi_head_gat_forward.1} parent=23 // pred_check_branch
          %187 = sbr.rel (%p185) target = $region28
        $region27: #{multi_head_gat_forward.1} parent=23 // pred_region
          %s188 = smul.u32 16, %s14
          %p189 = scmp.lt.s32.totalorder %s188, 31
          %s190 = scalar_select %p189, %s188, 31
          %s191 = smul.addr %s190, 8
          %s192 = scalar_lea.vmem %s1, %s191
          %s193 = smul.u32 16, %s14
        $region28: #{multi_head_gat_forward.1} parent=23 // pred_fallthru
          _
        // Predicated region
        $region29: #{multi_head_gat_forward.1} parent=23 // pred_check
          %p194 = pneg %p81
        $region30: #{multi_head_gat_forward.1} parent=23 // pred_check_branch
          %196 = sbr.rel (%p194) target = $region32
        $region31: #{multi_head_gat_forward.1} parent=23 // pred_region
          %s197 = smul.u32 16, %s14
          %p198 = scmp.lt.s32.totalorder %s197, 31
          %s199 = scalar_select %p198, %s197, 31
          %s200 = smul.addr %s199, 8
          %s201 = scalar_lea.vmem %s2, %s200
          %s202 = smul.u32 16, %s14
        $region32: #{multi_head_gat_forward.1} parent=23 // pred_fallthru
          _
        // Predicated region
        $region33: #{multi_head_gat_forward.1} parent=23 // pred_check
          %p203 = pneg %p107
        $region34: #{multi_head_gat_forward.1} parent=23 // pred_check_branch
          %205 = sbr.rel (%p203) target = $region36
        $region35: #{multi_head_gat_forward.1} parent=23 // pred_region
          %s206 = smul.u32 16, %s14
          %p207 = scmp.lt.s32.totalorder %s206, 31
          %s208 = scalar_select %p207, %s206, 31
          %s209 = smul.addr %s208, 8
          %s210 = scalar_lea.vmem %s3, %s209
          %s211 = smul.u32 16, %s14
        $region36: #{multi_head_gat_forward.1} parent=23 // pred_fallthru
          _
      $region24: #{multi_head_gat_forward.1} parent=5 // pred_fallthru
        _
      %p212 = scmp.le.s32.totalorder 1, %s14
      %p213 = scmp.lt.s32.totalorder %s14, 3
      %p214 = pnand %p212, %p213
      %p215 = pneg %p214
      // Predicated region
      $region37: #{multi_head_gat_forward.1} parent=5 // pred_check
        _
      $region38: #{multi_head_gat_forward.1} parent=5 // pred_check_branch
        %217 = sbr.rel (%p214) target = $region40
      $region39: #{multi_head_gat_forward.1} parent=5 // pred_region
        %s218 = ssub.s32 %s14, 1
        %p219 = pneg %p35
        %p220 = pneg %p32
        %s221 = smul.u32 16, %s19
        %p222 = scmp.lt.s32.totalorder %s221, 31
        %s223 = scalar_select %p222, %s221, 31
        %s224 = smul.addr %s223, 8
        %s225 = scalar_lea.vmem %s1, %s224
        %p226 = pneg %p61
        %p227 = pneg %p58
        %s228 = smul.u32 16, %s19
        %p229 = scmp.lt.s32.totalorder %s228, 31
        %s230 = scalar_select %p229, %s228, 31
        %s231 = smul.addr %s230, 8
        %s232 = scalar_lea.vmem %s2, %s231
        %p233 = pneg %p87
        %p234 = pneg %p84
        %s235 = smul.u32 16, %s19
        %p236 = scmp.lt.s32.totalorder %s235, 31
        %s237 = scalar_select %p236, %s235, 31
        %s238 = smul.addr %s237, 8
        %s239 = scalar_lea.vmem %s3, %s238
        %p240 = pneg %p113
        %p241 = pneg %p110
        %p242 = pneg %p134
        %p243 = pneg %p131
        %p244 = pneg %p160
        %p245 = pneg %p157
        %s246 = sand.u32 %s147, 1
        %s247 = scalar_lea.sflag [#allocation3], %s246
        %s248 = sand.u32 %s147, 1
        %s249 = smul.addr %s248, 128
        %s250 = scalar_lea.vmem [#allocation2], %s249
        %s251 = smul.u32 16, %s19
        %p252 = scmp.lt.s32.totalorder %s251, 31
        %s253 = scalar_select %p252, %s251, 31
        %s254 = smul.addr %s253, 8
        %s255 = scalar_lea.vmem %s1, %s254
        %s256 = smul.u32 16, %s19
        %s257 = smul.u32 16, %s19
        %p258 = scmp.lt.s32.totalorder %s257, 31
        %s259 = scalar_select %p258, %s257, 31
        %s260 = smul.addr %s259, 8
        %s261 = scalar_lea.vmem %s2, %s260
        %s262 = smul.u32 16, %s19
        %s263 = smul.u32 16, %s19
        %p264 = scmp.lt.s32.totalorder %s263, 31
        %s265 = scalar_select %p264, %s263, 31
        %s266 = smul.addr %s265, 8
        %s267 = scalar_lea.vmem %s3, %s266
        %s268 = smul.u32 16, %s19
        %s269 = smul.u32 16, %s19
        %v271 = vld [vmem:[%s255] sm:$0xff]
        %v272 = vld [vmem:[%s255 + $0x8] sm:$0xff]
        %v273 = vld [vmem:[%s255 + $0x10] sm:$0xff]
        %v274 = vld [vmem:[%s255 + $0x18] sm:$0xff]
        %v275 = vld [vmem:[%s255 + $0x20] sm:$0xff]
        %v276 = vld [vmem:[%s255 + $0x28] sm:$0xff]
        %v277 = vld [vmem:[%s255 + $0x30] sm:$0xff]
        %v278 = vld [vmem:[%s255 + $0x38] sm:$0xff]
        %v279 = vld [vmem:[%s255 + $0x40] sm:$0xff]
        %v280 = vld [vmem:[%s255 + $0x48] sm:$0xff]
        %v281 = vld [vmem:[%s255 + $0x50] sm:$0xff]
        %v282 = vld [vmem:[%s255 + $0x58] sm:$0xff]
        %v283 = vld [vmem:[%s255 + $0x60] sm:$0xff]
        %v284 = vld [vmem:[%s255 + $0x68] sm:$0xff]
        %v285 = vld [vmem:[%s255 + $0x70] sm:$0xff]
        %v286 = vld [vmem:[%s255 + $0x78] sm:$0xff]
        %v287 = vld [vmem:[%s261] sm:$0xff]
        %v288 = vld [vmem:[%s261 + $0x8] sm:$0xff]
        %v289 = vld [vmem:[%s261 + $0x10] sm:$0xff]
        %v290 = vld [vmem:[%s261 + $0x18] sm:$0xff]
        %v291 = vld [vmem:[%s261 + $0x20] sm:$0xff]
        %v292 = vld [vmem:[%s261 + $0x28] sm:$0xff]
        %v293 = vld [vmem:[%s261 + $0x30] sm:$0xff]
        %v294 = vld [vmem:[%s261 + $0x38] sm:$0xff]
        %v295 = vld [vmem:[%s261 + $0x40] sm:$0xff]
        %v296 = vld [vmem:[%s261 + $0x48] sm:$0xff]
        %v297 = vld [vmem:[%s261 + $0x50] sm:$0xff]
        %v298 = vld [vmem:[%s261 + $0x58] sm:$0xff]
        %v299 = vld [vmem:[%s261 + $0x60] sm:$0xff]
        %v300 = vld [vmem:[%s261 + $0x68] sm:$0xff]
        %v301 = vld [vmem:[%s261 + $0x70] sm:$0xff]
        %v302 = vld [vmem:[%s261 + $0x78] sm:$0xff]
        %v303 = vld [vmem:[%s267] sm:$0xff]
        %v304 = vld [vmem:[%s267 + $0x8] sm:$0xff]
        %v305 = vld [vmem:[%s267 + $0x10] sm:$0xff]
        %v306 = vld [vmem:[%s267 + $0x18] sm:$0xff]
        %v307 = vld [vmem:[%s267 + $0x20] sm:$0xff]
        %v308 = vld [vmem:[%s267 + $0x28] sm:$0xff]
        %v309 = vld [vmem:[%s267 + $0x30] sm:$0xff]
        %v310 = vld [vmem:[%s267 + $0x38] sm:$0xff]
        %v311 = vld [vmem:[%s267 + $0x40] sm:$0xff]
        %v312 = vld [vmem:[%s267 + $0x48] sm:$0xff]
        %v313 = vld [vmem:[%s267 + $0x50] sm:$0xff]
        %v314 = vld [vmem:[%s267 + $0x58] sm:$0xff]
        %v315 = vld [vmem:[%s267 + $0x60] sm:$0xff]
        %v316 = vld [vmem:[%s267 + $0x68] sm:$0xff]
        %v317 = vld [vmem:[%s267 + $0x70] sm:$0xff]
        %v318 = vld [vmem:[%s267 + $0x78] sm:$0xff]
        %v319 = vlaneseq
        %v320 = vand.u32 %v319, 127
        %v321 = vadd.s32 %v320, 128
        %322 = vset.pattern.permute.xlu0 0
        %323 = vperm.xlu0 %322, %v271
        %v324 = vpop.permute.xlu0 %323
        %325 = vset.pattern.permute.xlu0 0
        %326 = vperm.xlu0 %325, %v272
        %v327 = vpop.permute.xlu0 %326
        %328 = vset.pattern.permute.xlu0 0
        %329 = vperm.xlu0 %328, %v273
        %v330 = vpop.permute.xlu0 %329
        %331 = vset.pattern.permute.xlu0 0
        %332 = vperm.xlu0 %331, %v274
        %v333 = vpop.permute.xlu0 %332
        %334 = vset.pattern.permute.xlu0 0
        %335 = vperm.xlu0 %334, %v275
        %v336 = vpop.permute.xlu0 %335
        %337 = vset.pattern.permute.xlu0 0
        %338 = vperm.xlu0 %337, %v276
        %v339 = vpop.permute.xlu0 %338
        %340 = vset.pattern.permute.xlu0 0
        %341 = vperm.xlu0 %340, %v277
        %v342 = vpop.permute.xlu0 %341
        %343 = vset.pattern.permute.xlu0 0
        %344 = vperm.xlu0 %343, %v278
        %v345 = vpop.permute.xlu0 %344
        %346 = vset.pattern.permute.xlu0 0
        %347 = vperm.xlu0 %346, %v279
        %v348 = vpop.permute.xlu0 %347
        %349 = vset.pattern.permute.xlu0 0
        %350 = vperm.xlu0 %349, %v280
        %v351 = vpop.permute.xlu0 %350
        %352 = vset.pattern.permute.xlu0 0
        %353 = vperm.xlu0 %352, %v281
        %v354 = vpop.permute.xlu0 %353
        %355 = vset.pattern.permute.xlu0 0
        %356 = vperm.xlu0 %355, %v282
        %v357 = vpop.permute.xlu0 %356
        %358 = vset.pattern.permute.xlu0 0
        %359 = vperm.xlu0 %358, %v283
        %v360 = vpop.permute.xlu0 %359
        %361 = vset.pattern.permute.xlu0 0
        %362 = vperm.xlu0 %361, %v284
        %v363 = vpop.permute.xlu0 %362
        %364 = vset.pattern.permute.xlu0 0
        %365 = vperm.xlu0 %364, %v285
        %v366 = vpop.permute.xlu0 %365
        %367 = vset.pattern.permute.xlu0 0
        %368 = vperm.xlu0 %367, %v286
        %v369 = vpop.permute.xlu0 %368
        %vm370 = vcmp.eq.s32.totalorder %v320, %v324
        %vm371 = vcmp.eq.s32.totalorder %v321, %v324
        %vm372 = vcmp.eq.s32.totalorder %v320, %v327
        %vm373 = vcmp.eq.s32.totalorder %v321, %v327
        %vm374 = vcmp.eq.s32.totalorder %v320, %v330
        %vm375 = vcmp.eq.s32.totalorder %v321, %v330
        %vm376 = vcmp.eq.s32.totalorder %v320, %v333
        %vm377 = vcmp.eq.s32.totalorder %v321, %v333
        %vm378 = vcmp.eq.s32.totalorder %v320, %v336
        %vm379 = vcmp.eq.s32.totalorder %v321, %v336
        %vm380 = vcmp.eq.s32.totalorder %v320, %v339
        %vm381 = vcmp.eq.s32.totalorder %v321, %v339
        %vm382 = vcmp.eq.s32.totalorder %v320, %v342
        %vm383 = vcmp.eq.s32.totalorder %v321, %v342
        %vm384 = vcmp.eq.s32.totalorder %v320, %v345
        %vm385 = vcmp.eq.s32.totalorder %v321, %v345
        %vm386 = vcmp.eq.s32.totalorder %v320, %v348
        %vm387 = vcmp.eq.s32.totalorder %v321, %v348
        %vm388 = vcmp.eq.s32.totalorder %v320, %v351
        %vm389 = vcmp.eq.s32.totalorder %v321, %v351
        %vm390 = vcmp.eq.s32.totalorder %v320, %v354
        %vm391 = vcmp.eq.s32.totalorder %v321, %v354
        %vm392 = vcmp.eq.s32.totalorder %v320, %v357
        %vm393 = vcmp.eq.s32.totalorder %v321, %v357
        %vm394 = vcmp.eq.s32.totalorder %v320, %v360
        %vm395 = vcmp.eq.s32.totalorder %v321, %v360
        %vm396 = vcmp.eq.s32.totalorder %v320, %v363
        %vm397 = vcmp.eq.s32.totalorder %v321, %v363
        %vm398 = vcmp.eq.s32.totalorder %v320, %v366
        %vm399 = vcmp.eq.s32.totalorder %v321, %v366
        %vm400 = vcmp.eq.s32.totalorder %v320, %v369
        %vm401 = vcmp.eq.s32.totalorder %v321, %v369
        %v402 = vsel %vm370, 1, 0
        %v403 = vsel %vm371, 1, 0
        %v404 = vsel %vm372, 1, 0
        %v405 = vsel %vm373, 1, 0
        %v406 = vsel %vm374, 1, 0
        %v407 = vsel %vm375, 1, 0
        %v408 = vsel %vm376, 1, 0
        %v409 = vsel %vm377, 1, 0
        %v410 = vsel %vm378, 1, 0
        %v411 = vsel %vm379, 1, 0
        %v412 = vsel %vm380, 1, 0
        %v413 = vsel %vm381, 1, 0
        %v414 = vsel %vm382, 1, 0
        %v415 = vsel %vm383, 1, 0
        %v416 = vsel %vm384, 1, 0
        %v417 = vsel %vm385, 1, 0
        %v418 = vsel %vm386, 1, 0
        %v419 = vsel %vm387, 1, 0
        %v420 = vsel %vm388, 1, 0
        %v421 = vsel %vm389, 1, 0
        %v422 = vsel %vm390, 1, 0
        %v423 = vsel %vm391, 1, 0
        %v424 = vsel %vm392, 1, 0
        %v425 = vsel %vm393, 1, 0
        %v426 = vsel %vm394, 1, 0
        %v427 = vsel %vm395, 1, 0
        %v428 = vsel %vm396, 1, 0
        %v429 = vsel %vm397, 1, 0
        %v430 = vsel %vm398, 1, 0
        %v431 = vsel %vm399, 1, 0
        %v432 = vsel %vm400, 1, 0
        %v433 = vsel %vm401, 1, 0
        %v434 = vcvt.s32.f32 %v402
        %v435 = vcvt.s32.f32 %v403
        %v436 = vcvt.s32.f32 %v404
        %v437 = vcvt.s32.f32 %v405
        %v438 = vcvt.s32.f32 %v406
        %v439 = vcvt.s32.f32 %v407
        %v440 = vcvt.s32.f32 %v408
        %v441 = vcvt.s32.f32 %v409
        %v442 = vcvt.s32.f32 %v410
        %v443 = vcvt.s32.f32 %v411
        %v444 = vcvt.s32.f32 %v412
        %v445 = vcvt.s32.f32 %v413
        %v446 = vcvt.s32.f32 %v414
        %v447 = vcvt.s32.f32 %v415
        %v448 = vcvt.s32.f32 %v416
        %v449 = vcvt.s32.f32 %v417
        %v450 = vcvt.s32.f32 %v418
        %v451 = vcvt.s32.f32 %v419
        %v452 = vcvt.s32.f32 %v420
        %v453 = vcvt.s32.f32 %v421
        %v454 = vcvt.s32.f32 %v422
        %v455 = vcvt.s32.f32 %v423
        %v456 = vcvt.s32.f32 %v424
        %v457 = vcvt.s32.f32 %v425
        %v458 = vcvt.s32.f32 %v426
        %v459 = vcvt.s32.f32 %v427
        %v460 = vcvt.s32.f32 %v428
        %v461 = vcvt.s32.f32 %v429
        %v462 = vcvt.s32.f32 %v430
        %v463 = vcvt.s32.f32 %v431
        %v464 = vcvt.s32.f32 %v432
        %v465 = vcvt.s32.f32 %v433
        %v466 = vpack.c.bf16 %v436, %v434
        %v467 = vpack.c.bf16 %v437, %v435
        %v468 = vpack.c.bf16 %v440, %v438
        %v469 = vpack.c.bf16 %v441, %v439
        %v470 = vpack.c.bf16 %v444, %v442
        %v471 = vpack.c.bf16 %v445, %v443
        %v472 = vpack.c.bf16 %v448, %v446
        %v473 = vpack.c.bf16 %v449, %v447
        %v474 = vpack.c.bf16 %v452, %v450
        %v475 = vpack.c.bf16 %v453, %v451
        %v476 = vpack.c.bf16 %v456, %v454
        %v477 = vpack.c.bf16 %v457, %v455
        %v478 = vpack.c.bf16 %v460, %v458
        %v479 = vpack.c.bf16 %v461, %v459
        %v480 = vpack.c.bf16 %v464, %v462
        %v481 = vpack.c.bf16 %v465, %v463
        %482 = vset.pattern.permute.xlu0 1
        %483 = vperm.xlu0 %482, %v271
        %v484 = vpop.permute.xlu0 %483
        %485 = vset.pattern.permute.xlu0 1
        %486 = vperm.xlu0 %485, %v272
        %v487 = vpop.permute.xlu0 %486
        %488 = vset.pattern.permute.xlu0 1
        %489 = vperm.xlu0 %488, %v273
        %v490 = vpop.permute.xlu0 %489
        %491 = vset.pattern.permute.xlu0 1
        %492 = vperm.xlu0 %491, %v274
        %v493 = vpop.permute.xlu0 %492
        %494 = vset.pattern.permute.xlu0 1
        %495 = vperm.xlu0 %494, %v275
        %v496 = vpop.permute.xlu0 %495
        %497 = vset.pattern.permute.xlu0 1
        %498 = vperm.xlu0 %497, %v276
        %v499 = vpop.permute.xlu0 %498
        %500 = vset.pattern.permute.xlu0 1
        %501 = vperm.xlu0 %500, %v277
        %v502 = vpop.permute.xlu0 %501
        %503 = vset.pattern.permute.xlu0 1
        %504 = vperm.xlu0 %503, %v278
        %v505 = vpop.permute.xlu0 %504
        %506 = vset.pattern.permute.xlu0 1
        %507 = vperm.xlu0 %506, %v279
        %v508 = vpop.permute.xlu0 %507
        %509 = vset.pattern.permute.xlu0 1
        %510 = vperm.xlu0 %509, %v280
        %v511 = vpop.permute.xlu0 %510
        %512 = vset.pattern.permute.xlu0 1
        %513 = vperm.xlu0 %512, %v281
        %v514 = vpop.permute.xlu0 %513
        %515 = vset.pattern.permute.xlu0 1
        %516 = vperm.xlu0 %515, %v282
        %v517 = vpop.permute.xlu0 %516
        %518 = vset.pattern.permute.xlu0 1
        %519 = vperm.xlu0 %518, %v283
        %v520 = vpop.permute.xlu0 %519
        %521 = vset.pattern.permute.xlu0 1
        %522 = vperm.xlu0 %521, %v284
        %v523 = vpop.permute.xlu0 %522
        %524 = vset.pattern.permute.xlu0 1
        %525 = vperm.xlu0 %524, %v285
        %v526 = vpop.permute.xlu0 %525
        %527 = vset.pattern.permute.xlu0 1
        %528 = vperm.xlu0 %527, %v286
        %v529 = vpop.permute.xlu0 %528
        %vm530 = vcmp.eq.s32.totalorder %v320, %v484
        %vm531 = vcmp.eq.s32.totalorder %v321, %v484
        %vm532 = vcmp.eq.s32.totalorder %v320, %v487
        %vm533 = vcmp.eq.s32.totalorder %v321, %v487
        %vm534 = vcmp.eq.s32.totalorder %v320, %v490
        %vm535 = vcmp.eq.s32.totalorder %v321, %v490
        %vm536 = vcmp.eq.s32.totalorder %v320, %v493
        %vm537 = vcmp.eq.s32.totalorder %v321, %v493
        %vm538 = vcmp.eq.s32.totalorder %v320, %v496
        %vm539 = vcmp.eq.s32.totalorder %v321, %v496
        %vm540 = vcmp.eq.s32.totalorder %v320, %v499
        %vm541 = vcmp.eq.s32.totalorder %v321, %v499
        %vm542 = vcmp.eq.s32.totalorder %v320, %v502
        %vm543 = vcmp.eq.s32.totalorder %v321, %v502
        %vm544 = vcmp.eq.s32.totalorder %v320, %v505
        %vm545 = vcmp.eq.s32.totalorder %v321, %v505
        %vm546 = vcmp.eq.s32.totalorder %v320, %v508
        %vm547 = vcmp.eq.s32.totalorder %v321, %v508
        %vm548 = vcmp.eq.s32.totalorder %v320, %v511
        %vm549 = vcmp.eq.s32.totalorder %v321, %v511
        %vm550 = vcmp.eq.s32.totalorder %v320, %v514
        %vm551 = vcmp.eq.s32.totalorder %v321, %v514
        %vm552 = vcmp.eq.s32.totalorder %v320, %v517
        %vm553 = vcmp.eq.s32.totalorder %v321, %v517
        %vm554 = vcmp.eq.s32.totalorder %v320, %v520
        %vm555 = vcmp.eq.s32.totalorder %v321, %v520
        %vm556 = vcmp.eq.s32.totalorder %v320, %v523
        %vm557 = vcmp.eq.s32.totalorder %v321, %v523
        %vm558 = vcmp.eq.s32.totalorder %v320, %v526
        %vm559 = vcmp.eq.s32.totalorder %v321, %v526
        %vm560 = vcmp.eq.s32.totalorder %v320, %v529
        %vm561 = vcmp.eq.s32.totalorder %v321, %v529
        %v562 = vsel %vm530, 1, 0
        %v563 = vsel %vm531, 1, 0
        %v564 = vsel %vm532, 1, 0
        %v565 = vsel %vm533, 1, 0
        %v566 = vsel %vm534, 1, 0
        %v567 = vsel %vm535, 1, 0
        %v568 = vsel %vm536, 1, 0
        %v569 = vsel %vm537, 1, 0
        %v570 = vsel %vm538, 1, 0
        %v571 = vsel %vm539, 1, 0
        %v572 = vsel %vm540, 1, 0
        %v573 = vsel %vm541, 1, 0
        %v574 = vsel %vm542, 1, 0
        %v575 = vsel %vm543, 1, 0
        %v576 = vsel %vm544, 1, 0
        %v577 = vsel %vm545, 1, 0
        %v578 = vsel %vm546, 1, 0
        %v579 = vsel %vm547, 1, 0
        %v580 = vsel %vm548, 1, 0
        %v581 = vsel %vm549, 1, 0
        %v582 = vsel %vm550, 1, 0
        %v583 = vsel %vm551, 1, 0
        %v584 = vsel %vm552, 1, 0
        %v585 = vsel %vm553, 1, 0
        %v586 = vsel %vm554, 1, 0
        %v587 = vsel %vm555, 1, 0
        %v588 = vsel %vm556, 1, 0
        %v589 = vsel %vm557, 1, 0
        %v590 = vsel %vm558, 1, 0
        %v591 = vsel %vm559, 1, 0
        %v592 = vsel %vm560, 1, 0
        %v593 = vsel %vm561, 1, 0
        %v594 = vcvt.s32.f32 %v562
        %v595 = vcvt.s32.f32 %v563
        %v596 = vcvt.s32.f32 %v564
        %v597 = vcvt.s32.f32 %v565
        %v598 = vcvt.s32.f32 %v566
        %v599 = vcvt.s32.f32 %v567
        %v600 = vcvt.s32.f32 %v568
        %v601 = vcvt.s32.f32 %v569
        %v602 = vcvt.s32.f32 %v570
        %v603 = vcvt.s32.f32 %v571
        %v604 = vcvt.s32.f32 %v572
        %v605 = vcvt.s32.f32 %v573
        %v606 = vcvt.s32.f32 %v574
        %v607 = vcvt.s32.f32 %v575
        %v608 = vcvt.s32.f32 %v576
        %v609 = vcvt.s32.f32 %v577
        %v610 = vcvt.s32.f32 %v578
        %v611 = vcvt.s32.f32 %v579
        %v612 = vcvt.s32.f32 %v580
        %v613 = vcvt.s32.f32 %v581
        %v614 = vcvt.s32.f32 %v582
        %v615 = vcvt.s32.f32 %v583
        %v616 = vcvt.s32.f32 %v584
        %v617 = vcvt.s32.f32 %v585
        %v618 = vcvt.s32.f32 %v586
        %v619 = vcvt.s32.f32 %v587
        %v620 = vcvt.s32.f32 %v588
        %v621 = vcvt.s32.f32 %v589
        %v622 = vcvt.s32.f32 %v590
        %v623 = vcvt.s32.f32 %v591
        %v624 = vcvt.s32.f32 %v592
        %v625 = vcvt.s32.f32 %v593
        %v626 = vpack.c.bf16 %v596, %v594
        %v627 = vpack.c.bf16 %v597, %v595
        %v628 = vpack.c.bf16 %v600, %v598
        %v629 = vpack.c.bf16 %v601, %v599
        %v630 = vpack.c.bf16 %v604, %v602
        %v631 = vpack.c.bf16 %v605, %v603
        %v632 = vpack.c.bf16 %v608, %v606
        %v633 = vpack.c.bf16 %v609, %v607
        %v634 = vpack.c.bf16 %v612, %v610
        %v635 = vpack.c.bf16 %v613, %v611
        %v636 = vpack.c.bf16 %v616, %v614
        %v637 = vpack.c.bf16 %v617, %v615
        %v638 = vpack.c.bf16 %v620, %v618
        %v639 = vpack.c.bf16 %v621, %v619
        %v640 = vpack.c.bf16 %v624, %v622
        %v641 = vpack.c.bf16 %v625, %v623
        %642 = vset.pattern.permute.xlu0 2
        %643 = vperm.xlu0 %642, %v271
        %v644 = vpop.permute.xlu0 %643
        %645 = vset.pattern.permute.xlu0 2
        %646 = vperm.xlu0 %645, %v272
        %v647 = vpop.permute.xlu0 %646
        %648 = vset.pattern.permute.xlu0 2
        %649 = vperm.xlu0 %648, %v273
        %v650 = vpop.permute.xlu0 %649
        %651 = vset.pattern.permute.xlu0 2
        %652 = vperm.xlu0 %651, %v274
        %v653 = vpop.permute.xlu0 %652
        %654 = vset.pattern.permute.xlu0 2
        %655 = vperm.xlu0 %654, %v275
        %v656 = vpop.permute.xlu0 %655
        %657 = vset.pattern.permute.xlu0 2
        %658 = vperm.xlu0 %657, %v276
        %v659 = vpop.permute.xlu0 %658
        %660 = vset.pattern.permute.xlu0 2
        %661 = vperm.xlu0 %660, %v277
        %v662 = vpop.permute.xlu0 %661
        %663 = vset.pattern.permute.xlu0 2
        %664 = vperm.xlu0 %663, %v278
        %v665 = vpop.permute.xlu0 %664
        %666 = vset.pattern.permute.xlu0 2
        %667 = vperm.xlu0 %666, %v279
        %v668 = vpop.permute.xlu0 %667
        %669 = vset.pattern.permute.xlu0 2
        %670 = vperm.xlu0 %669, %v280
        %v671 = vpop.permute.xlu0 %670
        %672 = vset.pattern.permute.xlu0 2
        %673 = vperm.xlu0 %672, %v281
        %v674 = vpop.permute.xlu0 %673
        %675 = vset.pattern.permute.xlu0 2
        %676 = vperm.xlu0 %675, %v282
        %v677 = vpop.permute.xlu0 %676
        %678 = vset.pattern.permute.xlu0 2
        %679 = vperm.xlu0 %678, %v283
        %v680 = vpop.permute.xlu0 %679
        %681 = vset.pattern.permute.xlu0 2
        %682 = vperm.xlu0 %681, %v284
        %v683 = vpop.permute.xlu0 %682
        %684 = vset.pattern.permute.xlu0 2
        %685 = vperm.xlu0 %684, %v285
        %v686 = vpop.permute.xlu0 %685
        %687 = vset.pattern.permute.xlu0 2
        %688 = vperm.xlu0 %687, %v286
        %v689 = vpop.permute.xlu0 %688
        %vm690 = vcmp.eq.s32.totalorder %v320, %v644
        %vm691 = vcmp.eq.s32.totalorder %v321, %v644
        %vm692 = vcmp.eq.s32.totalorder %v320, %v647
        %vm693 = vcmp.eq.s32.totalorder %v321, %v647
        %vm694 = vcmp.eq.s32.totalorder %v320, %v650
        %vm695 = vcmp.eq.s32.totalorder %v321, %v650
        %vm696 = vcmp.eq.s32.totalorder %v320, %v653
        %vm697 = vcmp.eq.s32.totalorder %v321, %v653
        %vm698 = vcmp.eq.s32.totalorder %v320, %v656
        %vm699 = vcmp.eq.s32.totalorder %v321, %v656
        %vm700 = vcmp.eq.s32.totalorder %v320, %v659
        %vm701 = vcmp.eq.s32.totalorder %v321, %v659
        %vm702 = vcmp.eq.s32.totalorder %v320, %v662
        %vm703 = vcmp.eq.s32.totalorder %v321, %v662
        %vm704 = vcmp.eq.s32.totalorder %v320, %v665
        %vm705 = vcmp.eq.s32.totalorder %v321, %v665
        %vm706 = vcmp.eq.s32.totalorder %v320, %v668
        %vm707 = vcmp.eq.s32.totalorder %v321, %v668
        %vm708 = vcmp.eq.s32.totalorder %v320, %v671
        %vm709 = vcmp.eq.s32.totalorder %v321, %v671
        %vm710 = vcmp.eq.s32.totalorder %v320, %v674
        %vm711 = vcmp.eq.s32.totalorder %v321, %v674
        %vm712 = vcmp.eq.s32.totalorder %v320, %v677
        %vm713 = vcmp.eq.s32.totalorder %v321, %v677
        %vm714 = vcmp.eq.s32.totalorder %v320, %v680
        %vm715 = vcmp.eq.s32.totalorder %v321, %v680
        %vm716 = vcmp.eq.s32.totalorder %v320, %v683
        %vm717 = vcmp.eq.s32.totalorder %v321, %v683
        %vm718 = vcmp.eq.s32.totalorder %v320, %v686
        %vm719 = vcmp.eq.s32.totalorder %v321, %v686
        %vm720 = vcmp.eq.s32.totalorder %v320, %v689
        %vm721 = vcmp.eq.s32.totalorder %v321, %v689
        %v722 = vsel %vm690, 1, 0
        %v723 = vsel %vm691, 1, 0
        %v724 = vsel %vm692, 1, 0
        %v725 = vsel %vm693, 1, 0
        %v726 = vsel %vm694, 1, 0
        %v727 = vsel %vm695, 1, 0
        %v728 = vsel %vm696, 1, 0
        %v729 = vsel %vm697, 1, 0
        %v730 = vsel %vm698, 1, 0
        %v731 = vsel %vm699, 1, 0
        %v732 = vsel %vm700, 1, 0
        %v733 = vsel %vm701, 1, 0
        %v734 = vsel %vm702, 1, 0
        %v735 = vsel %vm703, 1, 0
        %v736 = vsel %vm704, 1, 0
        %v737 = vsel %vm705, 1, 0
        %v738 = vsel %vm706, 1, 0
        %v739 = vsel %vm707, 1, 0
        %v740 = vsel %vm708, 1, 0
        %v741 = vsel %vm709, 1, 0
        %v742 = vsel %vm710, 1, 0
        %v743 = vsel %vm711, 1, 0
        %v744 = vsel %vm712, 1, 0
        %v745 = vsel %vm713, 1, 0
        %v746 = vsel %vm714, 1, 0
        %v747 = vsel %vm715, 1, 0
        %v748 = vsel %vm716, 1, 0
        %v749 = vsel %vm717, 1, 0
        %v750 = vsel %vm718, 1, 0
        %v751 = vsel %vm719, 1, 0
        %v752 = vsel %vm720, 1, 0
        %v753 = vsel %vm721, 1, 0
        %v754 = vcvt.s32.f32 %v722
        %v755 = vcvt.s32.f32 %v723
        %v756 = vcvt.s32.f32 %v724
        %v757 = vcvt.s32.f32 %v725
        %v758 = vcvt.s32.f32 %v726
        %v759 = vcvt.s32.f32 %v727
        %v760 = vcvt.s32.f32 %v728
        %v761 = vcvt.s32.f32 %v729
        %v762 = vcvt.s32.f32 %v730
        %v763 = vcvt.s32.f32 %v731
        %v764 = vcvt.s32.f32 %v732
        %v765 = vcvt.s32.f32 %v733
        %v766 = vcvt.s32.f32 %v734
        %v767 = vcvt.s32.f32 %v735
        %v768 = vcvt.s32.f32 %v736
        %v769 = vcvt.s32.f32 %v737
        %v770 = vcvt.s32.f32 %v738
        %v771 = vcvt.s32.f32 %v739
        %v772 = vcvt.s32.f32 %v740
        %v773 = vcvt.s32.f32 %v741
        %v774 = vcvt.s32.f32 %v742
        %v775 = vcvt.s32.f32 %v743
        %v776 = vcvt.s32.f32 %v744
        %v777 = vcvt.s32.f32 %v745
        %v778 = vcvt.s32.f32 %v746
        %v779 = vcvt.s32.f32 %v747
        %v780 = vcvt.s32.f32 %v748
        %v781 = vcvt.s32.f32 %v749
        %v782 = vcvt.s32.f32 %v750
        %v783 = vcvt.s32.f32 %v751
        %v784 = vcvt.s32.f32 %v752
        %v785 = vcvt.s32.f32 %v753
        %v786 = vpack.c.bf16 %v756, %v754
        %v787 = vpack.c.bf16 %v757, %v755
        %v788 = vpack.c.bf16 %v760, %v758
        %v789 = vpack.c.bf16 %v761, %v759
        %v790 = vpack.c.bf16 %v764, %v762
        %v791 = vpack.c.bf16 %v765, %v763
        %v792 = vpack.c.bf16 %v768, %v766
        %v793 = vpack.c.bf16 %v769, %v767
        %v794 = vpack.c.bf16 %v772, %v770
        %v795 = vpack.c.bf16 %v773, %v771
        %v796 = vpack.c.bf16 %v776, %v774
        %v797 = vpack.c.bf16 %v777, %v775
        %v798 = vpack.c.bf16 %v780, %v778
        %v799 = vpack.c.bf16 %v781, %v779
        %v800 = vpack.c.bf16 %v784, %v782
        %v801 = vpack.c.bf16 %v785, %v783
        %802 = vset.pattern.permute.xlu0 3
        %803 = vperm.xlu0 %802, %v271
        %v804 = vpop.permute.xlu0 %803
        %805 = vset.pattern.permute.xlu0 3
        %806 = vperm.xlu0 %805, %v272
        %v807 = vpop.permute.xlu0 %806
        %808 = vset.pattern.permute.xlu0 3
        %809 = vperm.xlu0 %808, %v273
        %v810 = vpop.permute.xlu0 %809
        %811 = vset.pattern.permute.xlu0 3
        %812 = vperm.xlu0 %811, %v274
        %v813 = vpop.permute.xlu0 %812
        %814 = vset.pattern.permute.xlu0 3
        %815 = vperm.xlu0 %814, %v275
        %v816 = vpop.permute.xlu0 %815
        %817 = vset.pattern.permute.xlu0 3
        %818 = vperm.xlu0 %817, %v276
        %v819 = vpop.permute.xlu0 %818
        %820 = vset.pattern.permute.xlu0 3
        %821 = vperm.xlu0 %820, %v277
        %v822 = vpop.permute.xlu0 %821
        %823 = vset.pattern.permute.xlu0 3
        %824 = vperm.xlu0 %823, %v278
        %v825 = vpop.permute.xlu0 %824
        %826 = vset.pattern.permute.xlu0 3
        %827 = vperm.xlu0 %826, %v279
        %v828 = vpop.permute.xlu0 %827
        %829 = vset.pattern.permute.xlu0 3
        %830 = vperm.xlu0 %829, %v280
        %v831 = vpop.permute.xlu0 %830
        %832 = vset.pattern.permute.xlu0 3
        %833 = vperm.xlu0 %832, %v281
        %v834 = vpop.permute.xlu0 %833
        %835 = vset.pattern.permute.xlu0 3
        %836 = vperm.xlu0 %835, %v282
        %v837 = vpop.permute.xlu0 %836
        %838 = vset.pattern.permute.xlu0 3
        %839 = vperm.xlu0 %838, %v283
        %v840 = vpop.permute.xlu0 %839
        %841 = vset.pattern.permute.xlu0 3
        %842 = vperm.xlu0 %841, %v284
        %v843 = vpop.permute.xlu0 %842
        %844 = vset.pattern.permute.xlu0 3
        %845 = vperm.xlu0 %844, %v285
        %v846 = vpop.permute.xlu0 %845
        %847 = vset.pattern.permute.xlu0 3
        %848 = vperm.xlu0 %847, %v286
        %v849 = vpop.permute.xlu0 %848
        %vm850 = vcmp.eq.s32.totalorder %v320, %v804
        %vm851 = vcmp.eq.s32.totalorder %v321, %v804
        %vm852 = vcmp.eq.s32.totalorder %v320, %v807
        %vm853 = vcmp.eq.s32.totalorder %v321, %v807
        %vm854 = vcmp.eq.s32.totalorder %v320, %v810
        %vm855 = vcmp.eq.s32.totalorder %v321, %v810
        %vm856 = vcmp.eq.s32.totalorder %v320, %v813
        %vm857 = vcmp.eq.s32.totalorder %v321, %v813
        %vm858 = vcmp.eq.s32.totalorder %v320, %v816
        %vm859 = vcmp.eq.s32.totalorder %v321, %v816
        %vm860 = vcmp.eq.s32.totalorder %v320, %v819
        %vm861 = vcmp.eq.s32.totalorder %v321, %v819
        %vm862 = vcmp.eq.s32.totalorder %v320, %v822
        %vm863 = vcmp.eq.s32.totalorder %v321, %v822
        %vm864 = vcmp.eq.s32.totalorder %v320, %v825
        %vm865 = vcmp.eq.s32.totalorder %v321, %v825
        %vm866 = vcmp.eq.s32.totalorder %v320, %v828
        %vm867 = vcmp.eq.s32.totalorder %v321, %v828
        %vm868 = vcmp.eq.s32.totalorder %v320, %v831
        %vm869 = vcmp.eq.s32.totalorder %v321, %v831
        %vm870 = vcmp.eq.s32.totalorder %v320, %v834
        %vm871 = vcmp.eq.s32.totalorder %v321, %v834
        %vm872 = vcmp.eq.s32.totalorder %v320, %v837
        %vm873 = vcmp.eq.s32.totalorder %v321, %v837
        %vm874 = vcmp.eq.s32.totalorder %v320, %v840
        %vm875 = vcmp.eq.s32.totalorder %v321, %v840
        %vm876 = vcmp.eq.s32.totalorder %v320, %v843
        %vm877 = vcmp.eq.s32.totalorder %v321, %v843
        %vm878 = vcmp.eq.s32.totalorder %v320, %v846
        %vm879 = vcmp.eq.s32.totalorder %v321, %v846
        %vm880 = vcmp.eq.s32.totalorder %v320, %v849
        %vm881 = vcmp.eq.s32.totalorder %v321, %v849
        %v882 = vsel %vm850, 1, 0
        %v883 = vsel %vm851, 1, 0
        %v884 = vsel %vm852, 1, 0
        %v885 = vsel %vm853, 1, 0
        %v886 = vsel %vm854, 1, 0
        %v887 = vsel %vm855, 1, 0
        %v888 = vsel %vm856, 1, 0
        %v889 = vsel %vm857, 1, 0
        %v890 = vsel %vm858, 1, 0
        %v891 = vsel %vm859, 1, 0
        %v892 = vsel %vm860, 1, 0
        %v893 = vsel %vm861, 1, 0
        %v894 = vsel %vm862, 1, 0
        %v895 = vsel %vm863, 1, 0
        %v896 = vsel %vm864, 1, 0
        %v897 = vsel %vm865, 1, 0
        %v898 = vsel %vm866, 1, 0
        %v899 = vsel %vm867, 1, 0
        %v900 = vsel %vm868, 1, 0
        %v901 = vsel %vm869, 1, 0
        %v902 = vsel %vm870, 1, 0
        %v903 = vsel %vm871, 1, 0
        %v904 = vsel %vm872, 1, 0
        %v905 = vsel %vm873, 1, 0
        %v906 = vsel %vm874, 1, 0
        %v907 = vsel %vm875, 1, 0
        %v908 = vsel %vm876, 1, 0
        %v909 = vsel %vm877, 1, 0
        %v910 = vsel %vm878, 1, 0
        %v911 = vsel %vm879, 1, 0
        %v912 = vsel %vm880, 1, 0
        %v913 = vsel %vm881, 1, 0
        %v914 = vcvt.s32.f32 %v882
        %v915 = vcvt.s32.f32 %v883
        %v916 = vcvt.s32.f32 %v884
        %v917 = vcvt.s32.f32 %v885
        %v918 = vcvt.s32.f32 %v886
        %v919 = vcvt.s32.f32 %v887
        %v920 = vcvt.s32.f32 %v888
        %v921 = vcvt.s32.f32 %v889
        %v922 = vcvt.s32.f32 %v890
        %v923 = vcvt.s32.f32 %v891
        %v924 = vcvt.s32.f32 %v892
        %v925 = vcvt.s32.f32 %v893
        %v926 = vcvt.s32.f32 %v894
        %v927 = vcvt.s32.f32 %v895
        %v928 = vcvt.s32.f32 %v896
        %v929 = vcvt.s32.f32 %v897
        %v930 = vcvt.s32.f32 %v898
        %v931 = vcvt.s32.f32 %v899
        %v932 = vcvt.s32.f32 %v900
        %v933 = vcvt.s32.f32 %v901
        %v934 = vcvt.s32.f32 %v902
        %v935 = vcvt.s32.f32 %v903
        %v936 = vcvt.s32.f32 %v904
        %v937 = vcvt.s32.f32 %v905
        %v938 = vcvt.s32.f32 %v906
        %v939 = vcvt.s32.f32 %v907
        %v940 = vcvt.s32.f32 %v908
        %v941 = vcvt.s32.f32 %v909
        %v942 = vcvt.s32.f32 %v910
        %v943 = vcvt.s32.f32 %v911
        %v944 = vcvt.s32.f32 %v912
        %v945 = vcvt.s32.f32 %v913
        %v946 = vpack.c.bf16 %v916, %v914
        %v947 = vpack.c.bf16 %v917, %v915
        %v948 = vpack.c.bf16 %v920, %v918
        %v949 = vpack.c.bf16 %v921, %v919
        %v950 = vpack.c.bf16 %v924, %v922
        %v951 = vpack.c.bf16 %v925, %v923
        %v952 = vpack.c.bf16 %v928, %v926
        %v953 = vpack.c.bf16 %v929, %v927
        %v954 = vpack.c.bf16 %v932, %v930
        %v955 = vpack.c.bf16 %v933, %v931
        %v956 = vpack.c.bf16 %v936, %v934
        %v957 = vpack.c.bf16 %v937, %v935
        %v958 = vpack.c.bf16 %v940, %v938
        %v959 = vpack.c.bf16 %v941, %v939
        %v960 = vpack.c.bf16 %v944, %v942
        %v961 = vpack.c.bf16 %v945, %v943
        %962 = vset.pattern.permute.xlu0 4
        %963 = vperm.xlu0 %962, %v271
        %v964 = vpop.permute.xlu0 %963
        %965 = vset.pattern.permute.xlu0 4
        %966 = vperm.xlu0 %965, %v272
        %v967 = vpop.permute.xlu0 %966
        %968 = vset.pattern.permute.xlu0 4
        %969 = vperm.xlu0 %968, %v273
        %v970 = vpop.permute.xlu0 %969
        %971 = vset.pattern.permute.xlu0 4
        %972 = vperm.xlu0 %971, %v274
        %v973 = vpop.permute.xlu0 %972
        %974 = vset.pattern.permute.xlu0 4
        %975 = vperm.xlu0 %974, %v275
        %v976 = vpop.permute.xlu0 %975
        %977 = vset.pattern.permute.xlu0 4
        %978 = vperm.xlu0 %977, %v276
        %v979 = vpop.permute.xlu0 %978
        %980 = vset.pattern.permute.xlu0 4
        %981 = vperm.xlu0 %980, %v277
        %v982 = vpop.permute.xlu0 %981
        %983 = vset.pattern.permute.xlu0 4
        %984 = vperm.xlu0 %983, %v278
        %v985 = vpop.permute.xlu0 %984
        %986 = vset.pattern.permute.xlu0 4
        %987 = vperm.xlu0 %986, %v279
        %v988 = vpop.permute.xlu0 %987
        %989 = vset.pattern.permute.xlu0 4
        %990 = vperm.xlu0 %989, %v280
        %v991 = vpop.permute.xlu0 %990
        %992 = vset.pattern.permute.xlu0 4
        %993 = vperm.xlu0 %992, %v281
        %v994 = vpop.permute.xlu0 %993
        %995 = vset.pattern.permute.xlu0 4
        %996 = vperm.xlu0 %995, %v282
        %v997 = vpop.permute.xlu0 %996
        %998 = vset.pattern.permute.xlu0 4
        %999 = vperm.xlu0 %998, %v283
        %v1000 = vpop.permute.xlu0 %999
        %1001 = vset.pattern.permute.xlu0 4
        %1002 = vperm.xlu0 %1001, %v284
        %v1003 = vpop.permute.xlu0 %1002
        %1004 = vset.pattern.permute.xlu0 4
        %1005 = vperm.xlu0 %1004, %v285
        %v1006 = vpop.permute.xlu0 %1005
        %1007 = vset.pattern.permute.xlu0 4
        %1008 = vperm.xlu0 %1007, %v286
        %v1009 = vpop.permute.xlu0 %1008
        %vm1010 = vcmp.eq.s32.totalorder %v320, %v964
        %vm1011 = vcmp.eq.s32.totalorder %v321, %v964
        %vm1012 = vcmp.eq.s32.totalorder %v320, %v967
        %vm1013 = vcmp.eq.s32.totalorder %v321, %v967
        %vm1014 = vcmp.eq.s32.totalorder %v320, %v970
        %vm1015 = vcmp.eq.s32.totalorder %v321, %v970
        %vm1016 = vcmp.eq.s32.totalorder %v320, %v973
        %vm1017 = vcmp.eq.s32.totalorder %v321, %v973
        %vm1018 = vcmp.eq.s32.totalorder %v320, %v976
        %vm1019 = vcmp.eq.s32.totalorder %v321, %v976
        %vm1020 = vcmp.eq.s32.totalorder %v320, %v979
        %vm1021 = vcmp.eq.s32.totalorder %v321, %v979
        %vm1022 = vcmp.eq.s32.totalorder %v320, %v982
        %vm1023 = vcmp.eq.s32.totalorder %v321, %v982
        %vm1024 = vcmp.eq.s32.totalorder %v320, %v985
        %vm1025 = vcmp.eq.s32.totalorder %v321, %v985
        %vm1026 = vcmp.eq.s32.totalorder %v320, %v988
        %vm1027 = vcmp.eq.s32.totalorder %v321, %v988
        %vm1028 = vcmp.eq.s32.totalorder %v320, %v991
        %vm1029 = vcmp.eq.s32.totalorder %v321, %v991
        %vm1030 = vcmp.eq.s32.totalorder %v320, %v994
        %vm1031 = vcmp.eq.s32.totalorder %v321, %v994
        %vm1032 = vcmp.eq.s32.totalorder %v320, %v997
        %vm1033 = vcmp.eq.s32.totalorder %v321, %v997
        %vm1034 = vcmp.eq.s32.totalorder %v320, %v1000
        %vm1035 = vcmp.eq.s32.totalorder %v321, %v1000
        %vm1036 = vcmp.eq.s32.totalorder %v320, %v1003
        %vm1037 = vcmp.eq.s32.totalorder %v321, %v1003
        %vm1038 = vcmp.eq.s32.totalorder %v320, %v1006
        %vm1039 = vcmp.eq.s32.totalorder %v321, %v1006
        %vm1040 = vcmp.eq.s32.totalorder %v320, %v1009
        %vm1041 = vcmp.eq.s32.totalorder %v321, %v1009
        %v1042 = vsel %vm1010, 1, 0
        %v1043 = vsel %vm1011, 1, 0
        %v1044 = vsel %vm1012, 1, 0
        %v1045 = vsel %vm1013, 1, 0
        %v1046 = vsel %vm1014, 1, 0
        %v1047 = vsel %vm1015, 1, 0
        %v1048 = vsel %vm1016, 1, 0
        %v1049 = vsel %vm1017, 1, 0
        %v1050 = vsel %vm1018, 1, 0
        %v1051 = vsel %vm1019, 1, 0
        %v1052 = vsel %vm1020, 1, 0
        %v1053 = vsel %vm1021, 1, 0
        %v1054 = vsel %vm1022, 1, 0
        %v1055 = vsel %vm1023, 1, 0
        %v1056 = vsel %vm1024, 1, 0
        %v1057 = vsel %vm1025, 1, 0
        %v1058 = vsel %vm1026, 1, 0
        %v1059 = vsel %vm1027, 1, 0
        %v1060 = vsel %vm1028, 1, 0
        %v1061 = vsel %vm1029, 1, 0
        %v1062 = vsel %vm1030, 1, 0
        %v1063 = vsel %vm1031, 1, 0
        %v1064 = vsel %vm1032, 1, 0
        %v1065 = vsel %vm1033, 1, 0
        %v1066 = vsel %vm1034, 1, 0
        %v1067 = vsel %vm1035, 1, 0
        %v1068 = vsel %vm1036, 1, 0
        %v1069 = vsel %vm1037, 1, 0
        %v1070 = vsel %vm1038, 1, 0
        %v1071 = vsel %vm1039, 1, 0
        %v1072 = vsel %vm1040, 1, 0
        %v1073 = vsel %vm1041, 1, 0
        %v1074 = vcvt.s32.f32 %v1042
        %v1075 = vcvt.s32.f32 %v1043
        %v1076 = vcvt.s32.f32 %v1044
        %v1077 = vcvt.s32.f32 %v1045
        %v1078 = vcvt.s32.f32 %v1046
        %v1079 = vcvt.s32.f32 %v1047
        %v1080 = vcvt.s32.f32 %v1048
        %v1081 = vcvt.s32.f32 %v1049
        %v1082 = vcvt.s32.f32 %v1050
        %v1083 = vcvt.s32.f32 %v1051
        %v1084 = vcvt.s32.f32 %v1052
        %v1085 = vcvt.s32.f32 %v1053
        %v1086 = vcvt.s32.f32 %v1054
        %v1087 = vcvt.s32.f32 %v1055
        %v1088 = vcvt.s32.f32 %v1056
        %v1089 = vcvt.s32.f32 %v1057
        %v1090 = vcvt.s32.f32 %v1058
        %v1091 = vcvt.s32.f32 %v1059
        %v1092 = vcvt.s32.f32 %v1060
        %v1093 = vcvt.s32.f32 %v1061
        %v1094 = vcvt.s32.f32 %v1062
        %v1095 = vcvt.s32.f32 %v1063
        %v1096 = vcvt.s32.f32 %v1064
        %v1097 = vcvt.s32.f32 %v1065
        %v1098 = vcvt.s32.f32 %v1066
        %v1099 = vcvt.s32.f32 %v1067
        %v1100 = vcvt.s32.f32 %v1068
        %v1101 = vcvt.s32.f32 %v1069
        %v1102 = vcvt.s32.f32 %v1070
        %v1103 = vcvt.s32.f32 %v1071
        %v1104 = vcvt.s32.f32 %v1072
        %v1105 = vcvt.s32.f32 %v1073
        %v1106 = vpack.c.bf16 %v1076, %v1074
        %v1107 = vpack.c.bf16 %v1077, %v1075
        %v1108 = vpack.c.bf16 %v1080, %v1078
        %v1109 = vpack.c.bf16 %v1081, %v1079
        %v1110 = vpack.c.bf16 %v1084, %v1082
        %v1111 = vpack.c.bf16 %v1085, %v1083
        %v1112 = vpack.c.bf16 %v1088, %v1086
        %v1113 = vpack.c.bf16 %v1089, %v1087
        %v1114 = vpack.c.bf16 %v1092, %v1090
        %v1115 = vpack.c.bf16 %v1093, %v1091
        %v1116 = vpack.c.bf16 %v1096, %v1094
        %v1117 = vpack.c.bf16 %v1097, %v1095
        %v1118 = vpack.c.bf16 %v1100, %v1098
        %v1119 = vpack.c.bf16 %v1101, %v1099
        %v1120 = vpack.c.bf16 %v1104, %v1102
        %v1121 = vpack.c.bf16 %v1105, %v1103
        %1122 = vset.pattern.permute.xlu0 5
        %1123 = vperm.xlu0 %1122, %v271
        %v1124 = vpop.permute.xlu0 %1123
        %1125 = vset.pattern.permute.xlu0 5
        %1126 = vperm.xlu0 %1125, %v272
        %v1127 = vpop.permute.xlu0 %1126
        %1128 = vset.pattern.permute.xlu0 5
        %1129 = vperm.xlu0 %1128, %v273
        %v1130 = vpop.permute.xlu0 %1129
        %1131 = vset.pattern.permute.xlu0 5
        %1132 = vperm.xlu0 %1131, %v274
        %v1133 = vpop.permute.xlu0 %1132
        %1134 = vset.pattern.permute.xlu0 5
        %1135 = vperm.xlu0 %1134, %v275
        %v1136 = vpop.permute.xlu0 %1135
        %1137 = vset.pattern.permute.xlu0 5
        %1138 = vperm.xlu0 %1137, %v276
        %v1139 = vpop.permute.xlu0 %1138
        %1140 = vset.pattern.permute.xlu0 5
        %1141 = vperm.xlu0 %1140, %v277
        %v1142 = vpop.permute.xlu0 %1141
        %1143 = vset.pattern.permute.xlu0 5
        %1144 = vperm.xlu0 %1143, %v278
        %v1145 = vpop.permute.xlu0 %1144
        %1146 = vset.pattern.permute.xlu0 5
        %1147 = vperm.xlu0 %1146, %v279
        %v1148 = vpop.permute.xlu0 %1147
        %1149 = vset.pattern.permute.xlu0 5
        %1150 = vperm.xlu0 %1149, %v280
        %v1151 = vpop.permute.xlu0 %1150
        %1152 = vset.pattern.permute.xlu0 5
        %1153 = vperm.xlu0 %1152, %v281
        %v1154 = vpop.permute.xlu0 %1153
        %1155 = vset.pattern.permute.xlu0 5
        %1156 = vperm.xlu0 %1155, %v282
        %v1157 = vpop.permute.xlu0 %1156
        %1158 = vset.pattern.permute.xlu0 5
        %1159 = vperm.xlu0 %1158, %v283
        %v1160 = vpop.permute.xlu0 %1159
        %1161 = vset.pattern.permute.xlu0 5
        %1162 = vperm.xlu0 %1161, %v284
        %v1163 = vpop.permute.xlu0 %1162
        %1164 = vset.pattern.permute.xlu0 5
        %1165 = vperm.xlu0 %1164, %v285
        %v1166 = vpop.permute.xlu0 %1165
        %1167 = vset.pattern.permute.xlu0 5
        %1168 = vperm.xlu0 %1167, %v286
        %v1169 = vpop.permute.xlu0 %1168
        %vm1170 = vcmp.eq.s32.totalorder %v320, %v1124
        %vm1171 = vcmp.eq.s32.totalorder %v321, %v1124
        %vm1172 = vcmp.eq.s32.totalorder %v320, %v1127
        %vm1173 = vcmp.eq.s32.totalorder %v321, %v1127
        %vm1174 = vcmp.eq.s32.totalorder %v320, %v1130
        %vm1175 = vcmp.eq.s32.totalorder %v321, %v1130
        %vm1176 = vcmp.eq.s32.totalorder %v320, %v1133
        %vm1177 = vcmp.eq.s32.totalorder %v321, %v1133
        %vm1178 = vcmp.eq.s32.totalorder %v320, %v1136
        %vm1179 = vcmp.eq.s32.totalorder %v321, %v1136
        %vm1180 = vcmp.eq.s32.totalorder %v320, %v1139
        %vm1181 = vcmp.eq.s32.totalorder %v321, %v1139
        %vm1182 = vcmp.eq.s32.totalorder %v320, %v1142
        %vm1183 = vcmp.eq.s32.totalorder %v321, %v1142
        %vm1184 = vcmp.eq.s32.totalorder %v320, %v1145
        %vm1185 = vcmp.eq.s32.totalorder %v321, %v1145
        %vm1186 = vcmp.eq.s32.totalorder %v320, %v1148
        %vm1187 = vcmp.eq.s32.totalorder %v321, %v1148
        %vm1188 = vcmp.eq.s32.totalorder %v320, %v1151
        %vm1189 = vcmp.eq.s32.totalorder %v321, %v1151
        %vm1190 = vcmp.eq.s32.totalorder %v320, %v1154
        %vm1191 = vcmp.eq.s32.totalorder %v321, %v1154
        %vm1192 = vcmp.eq.s32.totalorder %v320, %v1157
        %vm1193 = vcmp.eq.s32.totalorder %v321, %v1157
        %vm1194 = vcmp.eq.s32.totalorder %v320, %v1160
        %vm1195 = vcmp.eq.s32.totalorder %v321, %v1160
        %vm1196 = vcmp.eq.s32.totalorder %v320, %v1163
        %vm1197 = vcmp.eq.s32.totalorder %v321, %v1163
        %vm1198 = vcmp.eq.s32.totalorder %v320, %v1166
        %vm1199 = vcmp.eq.s32.totalorder %v321, %v1166
        %vm1200 = vcmp.eq.s32.totalorder %v320, %v1169
        %vm1201 = vcmp.eq.s32.totalorder %v321, %v1169
        %v1202 = vsel %vm1170, 1, 0
        %v1203 = vsel %vm1171, 1, 0
        %v1204 = vsel %vm1172, 1, 0
        %v1205 = vsel %vm1173, 1, 0
        %v1206 = vsel %vm1174, 1, 0
        %v1207 = vsel %vm1175, 1, 0
        %v1208 = vsel %vm1176, 1, 0
        %v1209 = vsel %vm1177, 1, 0
        %v1210 = vsel %vm1178, 1, 0
        %v1211 = vsel %vm1179, 1, 0
        %v1212 = vsel %vm1180, 1, 0
        %v1213 = vsel %vm1181, 1, 0
        %v1214 = vsel %vm1182, 1, 0
        %v1215 = vsel %vm1183, 1, 0
        %v1216 = vsel %vm1184, 1, 0
        %v1217 = vsel %vm1185, 1, 0
        %v1218 = vsel %vm1186, 1, 0
        %v1219 = vsel %vm1187, 1, 0
        %v1220 = vsel %vm1188, 1, 0
        %v1221 = vsel %vm1189, 1, 0
        %v1222 = vsel %vm1190, 1, 0
        %v1223 = vsel %vm1191, 1, 0
        %v1224 = vsel %vm1192, 1, 0
        %v1225 = vsel %vm1193, 1, 0
        %v1226 = vsel %vm1194, 1, 0
        %v1227 = vsel %vm1195, 1, 0
        %v1228 = vsel %vm1196, 1, 0
        %v1229 = vsel %vm1197, 1, 0
        %v1230 = vsel %vm1198, 1, 0
        %v1231 = vsel %vm1199, 1, 0
        %v1232 = vsel %vm1200, 1, 0
        %v1233 = vsel %vm1201, 1, 0
        %v1234 = vcvt.s32.f32 %v1202
        %v1235 = vcvt.s32.f32 %v1203
        %v1236 = vcvt.s32.f32 %v1204
        %v1237 = vcvt.s32.f32 %v1205
        %v1238 = vcvt.s32.f32 %v1206
        %v1239 = vcvt.s32.f32 %v1207
        %v1240 = vcvt.s32.f32 %v1208
        %v1241 = vcvt.s32.f32 %v1209
        %v1242 = vcvt.s32.f32 %v1210
        %v1243 = vcvt.s32.f32 %v1211
        %v1244 = vcvt.s32.f32 %v1212
        %v1245 = vcvt.s32.f32 %v1213
        %v1246 = vcvt.s32.f32 %v1214
        %v1247 = vcvt.s32.f32 %v1215
        %v1248 = vcvt.s32.f32 %v1216
        %v1249 = vcvt.s32.f32 %v1217
        %v1250 = vcvt.s32.f32 %v1218
        %v1251 = vcvt.s32.f32 %v1219
        %v1252 = vcvt.s32.f32 %v1220
        %v1253 = vcvt.s32.f32 %v1221
        %v1254 = vcvt.s32.f32 %v1222
        %v1255 = vcvt.s32.f32 %v1223
        %v1256 = vcvt.s32.f32 %v1224
        %v1257 = vcvt.s32.f32 %v1225
        %v1258 = vcvt.s32.f32 %v1226
        %v1259 = vcvt.s32.f32 %v1227
        %v1260 = vcvt.s32.f32 %v1228
        %v1261 = vcvt.s32.f32 %v1229
        %v1262 = vcvt.s32.f32 %v1230
        %v1263 = vcvt.s32.f32 %v1231
        %v1264 = vcvt.s32.f32 %v1232
        %v1265 = vcvt.s32.f32 %v1233
        %v1266 = vpack.c.bf16 %v1236, %v1234
        %v1267 = vpack.c.bf16 %v1237, %v1235
        %v1268 = vpack.c.bf16 %v1240, %v1238
        %v1269 = vpack.c.bf16 %v1241, %v1239
        %v1270 = vpack.c.bf16 %v1244, %v1242
        %v1271 = vpack.c.bf16 %v1245, %v1243
        %v1272 = vpack.c.bf16 %v1248, %v1246
        %v1273 = vpack.c.bf16 %v1249, %v1247
        %v1274 = vpack.c.bf16 %v1252, %v1250
        %v1275 = vpack.c.bf16 %v1253, %v1251
        %v1276 = vpack.c.bf16 %v1256, %v1254
        %v1277 = vpack.c.bf16 %v1257, %v1255
        %v1278 = vpack.c.bf16 %v1260, %v1258
        %v1279 = vpack.c.bf16 %v1261, %v1259
        %v1280 = vpack.c.bf16 %v1264, %v1262
        %v1281 = vpack.c.bf16 %v1265, %v1263
        %1282 = vset.pattern.permute.xlu0 6
        %1283 = vperm.xlu0 %1282, %v271
        %v1284 = vpop.permute.xlu0 %1283
        %1285 = vset.pattern.permute.xlu0 6
        %1286 = vperm.xlu0 %1285, %v272
        %v1287 = vpop.permute.xlu0 %1286
        %1288 = vset.pattern.permute.xlu0 6
        %1289 = vperm.xlu0 %1288, %v273
        %v1290 = vpop.permute.xlu0 %1289
        %1291 = vset.pattern.permute.xlu0 6
        %1292 = vperm.xlu0 %1291, %v274
        %v1293 = vpop.permute.xlu0 %1292
        %1294 = vset.pattern.permute.xlu0 6
        %1295 = vperm.xlu0 %1294, %v275
        %v1296 = vpop.permute.xlu0 %1295
        %1297 = vset.pattern.permute.xlu0 6
        %1298 = vperm.xlu0 %1297, %v276
        %v1299 = vpop.permute.xlu0 %1298
        %1300 = vset.pattern.permute.xlu0 6
        %1301 = vperm.xlu0 %1300, %v277
        %v1302 = vpop.permute.xlu0 %1301
        %1303 = vset.pattern.permute.xlu0 6
        %1304 = vperm.xlu0 %1303, %v278
        %v1305 = vpop.permute.xlu0 %1304
        %1306 = vset.pattern.permute.xlu0 6
        %1307 = vperm.xlu0 %1306, %v279
        %v1308 = vpop.permute.xlu0 %1307
        %1309 = vset.pattern.permute.xlu0 6
        %1310 = vperm.xlu0 %1309, %v280
        %v1311 = vpop.permute.xlu0 %1310
        %1312 = vset.pattern.permute.xlu0 6
        %1313 = vperm.xlu0 %1312, %v281
        %v1314 = vpop.permute.xlu0 %1313
        %1315 = vset.pattern.permute.xlu0 6
        %1316 = vperm.xlu0 %1315, %v282
        %v1317 = vpop.permute.xlu0 %1316
        %1318 = vset.pattern.permute.xlu0 6
        %1319 = vperm.xlu0 %1318, %v283
        %v1320 = vpop.permute.xlu0 %1319
        %1321 = vset.pattern.permute.xlu0 6
        %1322 = vperm.xlu0 %1321, %v284
        %v1323 = vpop.permute.xlu0 %1322
        %1324 = vset.pattern.permute.xlu0 6
        %1325 = vperm.xlu0 %1324, %v285
        %v1326 = vpop.permute.xlu0 %1325
        %1327 = vset.pattern.permute.xlu0 6
        %1328 = vperm.xlu0 %1327, %v286
        %v1329 = vpop.permute.xlu0 %1328
        %vm1330 = vcmp.eq.s32.totalorder %v320, %v1284
        %vm1331 = vcmp.eq.s32.totalorder %v321, %v1284
        %vm1332 = vcmp.eq.s32.totalorder %v320, %v1287
        %vm1333 = vcmp.eq.s32.totalorder %v321, %v1287
        %vm1334 = vcmp.eq.s32.totalorder %v320, %v1290
        %vm1335 = vcmp.eq.s32.totalorder %v321, %v1290
        %vm1336 = vcmp.eq.s32.totalorder %v320, %v1293
        %vm1337 = vcmp.eq.s32.totalorder %v321, %v1293
        %vm1338 = vcmp.eq.s32.totalorder %v320, %v1296
        %vm1339 = vcmp.eq.s32.totalorder %v321, %v1296
        %vm1340 = vcmp.eq.s32.totalorder %v320, %v1299
        %vm1341 = vcmp.eq.s32.totalorder %v321, %v1299
        %vm1342 = vcmp.eq.s32.totalorder %v320, %v1302
        %vm1343 = vcmp.eq.s32.totalorder %v321, %v1302
        %vm1344 = vcmp.eq.s32.totalorder %v320, %v1305
        %vm1345 = vcmp.eq.s32.totalorder %v321, %v1305
        %vm1346 = vcmp.eq.s32.totalorder %v320, %v1308
        %vm1347 = vcmp.eq.s32.totalorder %v321, %v1308
        %vm1348 = vcmp.eq.s32.totalorder %v320, %v1311
        %vm1349 = vcmp.eq.s32.totalorder %v321, %v1311
        %vm1350 = vcmp.eq.s32.totalorder %v320, %v1314
        %vm1351 = vcmp.eq.s32.totalorder %v321, %v1314
        %vm1352 = vcmp.eq.s32.totalorder %v320, %v1317
        %vm1353 = vcmp.eq.s32.totalorder %v321, %v1317
        %vm1354 = vcmp.eq.s32.totalorder %v320, %v1320
        %vm1355 = vcmp.eq.s32.totalorder %v321, %v1320
        %vm1356 = vcmp.eq.s32.totalorder %v320, %v1323
        %vm1357 = vcmp.eq.s32.totalorder %v321, %v1323
        %vm1358 = vcmp.eq.s32.totalorder %v320, %v1326
        %vm1359 = vcmp.eq.s32.totalorder %v321, %v1326
        %vm1360 = vcmp.eq.s32.totalorder %v320, %v1329
        %vm1361 = vcmp.eq.s32.totalorder %v321, %v1329
        %v1362 = vsel %vm1330, 1, 0
        %v1363 = vsel %vm1331, 1, 0
        %v1364 = vsel %vm1332, 1, 0
        %v1365 = vsel %vm1333, 1, 0
        %v1366 = vsel %vm1334, 1, 0
        %v1367 = vsel %vm1335, 1, 0
        %v1368 = vsel %vm1336, 1, 0
        %v1369 = vsel %vm1337, 1, 0
        %v1370 = vsel %vm1338, 1, 0
        %v1371 = vsel %vm1339, 1, 0
        %v1372 = vsel %vm1340, 1, 0
        %v1373 = vsel %vm1341, 1, 0
        %v1374 = vsel %vm1342, 1, 0
        %v1375 = vsel %vm1343, 1, 0
        %v1376 = vsel %vm1344, 1, 0
        %v1377 = vsel %vm1345, 1, 0
        %v1378 = vsel %vm1346, 1, 0
        %v1379 = vsel %vm1347, 1, 0
        %v1380 = vsel %vm1348, 1, 0
        %v1381 = vsel %vm1349, 1, 0
        %v1382 = vsel %vm1350, 1, 0
        %v1383 = vsel %vm1351, 1, 0
        %v1384 = vsel %vm1352, 1, 0
        %v1385 = vsel %vm1353, 1, 0
        %v1386 = vsel %vm1354, 1, 0
        %v1387 = vsel %vm1355, 1, 0
        %v1388 = vsel %vm1356, 1, 0
        %v1389 = vsel %vm1357, 1, 0
        %v1390 = vsel %vm1358, 1, 0
        %v1391 = vsel %vm1359, 1, 0
        %v1392 = vsel %vm1360, 1, 0
        %v1393 = vsel %vm1361, 1, 0
        %v1394 = vcvt.s32.f32 %v1362
        %v1395 = vcvt.s32.f32 %v1363
        %v1396 = vcvt.s32.f32 %v1364
        %v1397 = vcvt.s32.f32 %v1365
        %v1398 = vcvt.s32.f32 %v1366
        %v1399 = vcvt.s32.f32 %v1367
        %v1400 = vcvt.s32.f32 %v1368
        %v1401 = vcvt.s32.f32 %v1369
        %v1402 = vcvt.s32.f32 %v1370
        %v1403 = vcvt.s32.f32 %v1371
        %v1404 = vcvt.s32.f32 %v1372
        %v1405 = vcvt.s32.f32 %v1373
        %v1406 = vcvt.s32.f32 %v1374
        %v1407 = vcvt.s32.f32 %v1375
        %v1408 = vcvt.s32.f32 %v1376
        %v1409 = vcvt.s32.f32 %v1377
        %v1410 = vcvt.s32.f32 %v1378
        %v1411 = vcvt.s32.f32 %v1379
        %v1412 = vcvt.s32.f32 %v1380
        %v1413 = vcvt.s32.f32 %v1381
        %v1414 = vcvt.s32.f32 %v1382
        %v1415 = vcvt.s32.f32 %v1383
        %v1416 = vcvt.s32.f32 %v1384
        %v1417 = vcvt.s32.f32 %v1385
        %v1418 = vcvt.s32.f32 %v1386
        %v1419 = vcvt.s32.f32 %v1387
        %v1420 = vcvt.s32.f32 %v1388
        %v1421 = vcvt.s32.f32 %v1389
        %v1422 = vcvt.s32.f32 %v1390
        %v1423 = vcvt.s32.f32 %v1391
        %v1424 = vcvt.s32.f32 %v1392
        %v1425 = vcvt.s32.f32 %v1393
        %v1426 = vpack.c.bf16 %v1396, %v1394
        %v1427 = vpack.c.bf16 %v1397, %v1395
        %v1428 = vpack.c.bf16 %v1400, %v1398
        %v1429 = vpack.c.bf16 %v1401, %v1399
        %v1430 = vpack.c.bf16 %v1404, %v1402
        %v1431 = vpack.c.bf16 %v1405, %v1403
        %v1432 = vpack.c.bf16 %v1408, %v1406
        %v1433 = vpack.c.bf16 %v1409, %v1407
        %v1434 = vpack.c.bf16 %v1412, %v1410
        %v1435 = vpack.c.bf16 %v1413, %v1411
        %v1436 = vpack.c.bf16 %v1416, %v1414
        %v1437 = vpack.c.bf16 %v1417, %v1415
        %v1438 = vpack.c.bf16 %v1420, %v1418
        %v1439 = vpack.c.bf16 %v1421, %v1419
        %v1440 = vpack.c.bf16 %v1424, %v1422
        %v1441 = vpack.c.bf16 %v1425, %v1423
        %1442 = vset.pattern.permute.xlu0 7
        %1443 = vperm.xlu0 %1442, %v271
        %v1444 = vpop.permute.xlu0 %1443
        %1445 = vset.pattern.permute.xlu0 7
        %1446 = vperm.xlu0 %1445, %v272
        %v1447 = vpop.permute.xlu0 %1446
        %1448 = vset.pattern.permute.xlu0 7
        %1449 = vperm.xlu0 %1448, %v273
        %v1450 = vpop.permute.xlu0 %1449
        %1451 = vset.pattern.permute.xlu0 7
        %1452 = vperm.xlu0 %1451, %v274
        %v1453 = vpop.permute.xlu0 %1452
        %1454 = vset.pattern.permute.xlu0 7
        %1455 = vperm.xlu0 %1454, %v275
        %v1456 = vpop.permute.xlu0 %1455
        %1457 = vset.pattern.permute.xlu0 7
        %1458 = vperm.xlu0 %1457, %v276
        %v1459 = vpop.permute.xlu0 %1458
        %1460 = vset.pattern.permute.xlu0 7
        %1461 = vperm.xlu0 %1460, %v277
        %v1462 = vpop.permute.xlu0 %1461
        %1463 = vset.pattern.permute.xlu0 7
        %1464 = vperm.xlu0 %1463, %v278
        %v1465 = vpop.permute.xlu0 %1464
        %1466 = vset.pattern.permute.xlu0 7
        %1467 = vperm.xlu0 %1466, %v279
        %v1468 = vpop.permute.xlu0 %1467
        %1469 = vset.pattern.permute.xlu0 7
        %1470 = vperm.xlu0 %1469, %v280
        %v1471 = vpop.permute.xlu0 %1470
        %1472 = vset.pattern.permute.xlu0 7
        %1473 = vperm.xlu0 %1472, %v281
        %v1474 = vpop.permute.xlu0 %1473
        %1475 = vset.pattern.permute.xlu0 7
        %1476 = vperm.xlu0 %1475, %v282
        %v1477 = vpop.permute.xlu0 %1476
        %1478 = vset.pattern.permute.xlu0 7
        %1479 = vperm.xlu0 %1478, %v283
        %v1480 = vpop.permute.xlu0 %1479
        %1481 = vset.pattern.permute.xlu0 7
        %1482 = vperm.xlu0 %1481, %v284
        %v1483 = vpop.permute.xlu0 %1482
        %1484 = vset.pattern.permute.xlu0 7
        %1485 = vperm.xlu0 %1484, %v285
        %v1486 = vpop.permute.xlu0 %1485
        %1487 = vset.pattern.permute.xlu0 7
        %1488 = vperm.xlu0 %1487, %v286
        %v1489 = vpop.permute.xlu0 %1488
        %vm1490 = vcmp.eq.s32.totalorder %v320, %v1444
        %vm1491 = vcmp.eq.s32.totalorder %v321, %v1444
        %vm1492 = vcmp.eq.s32.totalorder %v320, %v1447
        %vm1493 = vcmp.eq.s32.totalorder %v321, %v1447
        %vm1494 = vcmp.eq.s32.totalorder %v320, %v1450
        %vm1495 = vcmp.eq.s32.totalorder %v321, %v1450
        %vm1496 = vcmp.eq.s32.totalorder %v320, %v1453
        %vm1497 = vcmp.eq.s32.totalorder %v321, %v1453
        %vm1498 = vcmp.eq.s32.totalorder %v320, %v1456
        %vm1499 = vcmp.eq.s32.totalorder %v321, %v1456
        %vm1500 = vcmp.eq.s32.totalorder %v320, %v1459
        %vm1501 = vcmp.eq.s32.totalorder %v321, %v1459
        %vm1502 = vcmp.eq.s32.totalorder %v320, %v1462
        %vm1503 = vcmp.eq.s32.totalorder %v321, %v1462
        %vm1504 = vcmp.eq.s32.totalorder %v320, %v1465
        %vm1505 = vcmp.eq.s32.totalorder %v321, %v1465
        %vm1506 = vcmp.eq.s32.totalorder %v320, %v1468
        %vm1507 = vcmp.eq.s32.totalorder %v321, %v1468
        %vm1508 = vcmp.eq.s32.totalorder %v320, %v1471
        %vm1509 = vcmp.eq.s32.totalorder %v321, %v1471
        %vm1510 = vcmp.eq.s32.totalorder %v320, %v1474
        %vm1511 = vcmp.eq.s32.totalorder %v321, %v1474
        %vm1512 = vcmp.eq.s32.totalorder %v320, %v1477
        %vm1513 = vcmp.eq.s32.totalorder %v321, %v1477
        %vm1514 = vcmp.eq.s32.totalorder %v320, %v1480
        %vm1515 = vcmp.eq.s32.totalorder %v321, %v1480
        %vm1516 = vcmp.eq.s32.totalorder %v320, %v1483
        %vm1517 = vcmp.eq.s32.totalorder %v321, %v1483
        %vm1518 = vcmp.eq.s32.totalorder %v320, %v1486
        %vm1519 = vcmp.eq.s32.totalorder %v321, %v1486
        %vm1520 = vcmp.eq.s32.totalorder %v320, %v1489
        %vm1521 = vcmp.eq.s32.totalorder %v321, %v1489
        %v1522 = vsel %vm1490, 1, 0
        %v1523 = vsel %vm1491, 1, 0
        %v1524 = vsel %vm1492, 1, 0
        %v1525 = vsel %vm1493, 1, 0
        %v1526 = vsel %vm1494, 1, 0
        %v1527 = vsel %vm1495, 1, 0
        %v1528 = vsel %vm1496, 1, 0
        %v1529 = vsel %vm1497, 1, 0
        %v1530 = vsel %vm1498, 1, 0
        %v1531 = vsel %vm1499, 1, 0
        %v1532 = vsel %vm1500, 1, 0
        %v1533 = vsel %vm1501, 1, 0
        %v1534 = vsel %vm1502, 1, 0
        %v1535 = vsel %vm1503, 1, 0
        %v1536 = vsel %vm1504, 1, 0
        %v1537 = vsel %vm1505, 1, 0
        %v1538 = vsel %vm1506, 1, 0
        %v1539 = vsel %vm1507, 1, 0
        %v1540 = vsel %vm1508, 1, 0
        %v1541 = vsel %vm1509, 1, 0
        %v1542 = vsel %vm1510, 1, 0
        %v1543 = vsel %vm1511, 1, 0
        %v1544 = vsel %vm1512, 1, 0
        %v1545 = vsel %vm1513, 1, 0
        %v1546 = vsel %vm1514, 1, 0
        %v1547 = vsel %vm1515, 1, 0
        %v1548 = vsel %vm1516, 1, 0
        %v1549 = vsel %vm1517, 1, 0
        %v1550 = vsel %vm1518, 1, 0
        %v1551 = vsel %vm1519, 1, 0
        %v1552 = vsel %vm1520, 1, 0
        %v1553 = vsel %vm1521, 1, 0
        %v1554 = vcvt.s32.f32 %v1522
        %v1555 = vcvt.s32.f32 %v1523
        %v1556 = vcvt.s32.f32 %v1524
        %v1557 = vcvt.s32.f32 %v1525
        %v1558 = vcvt.s32.f32 %v1526
        %v1559 = vcvt.s32.f32 %v1527
        %v1560 = vcvt.s32.f32 %v1528
        %v1561 = vcvt.s32.f32 %v1529
        %v1562 = vcvt.s32.f32 %v1530
        %v1563 = vcvt.s32.f32 %v1531
        %v1564 = vcvt.s32.f32 %v1532
        %v1565 = vcvt.s32.f32 %v1533
        %v1566 = vcvt.s32.f32 %v1534
        %v1567 = vcvt.s32.f32 %v1535
        %v1568 = vcvt.s32.f32 %v1536
        %v1569 = vcvt.s32.f32 %v1537
        %v1570 = vcvt.s32.f32 %v1538
        %v1571 = vcvt.s32.f32 %v1539
        %v1572 = vcvt.s32.f32 %v1540
        %v1573 = vcvt.s32.f32 %v1541
        %v1574 = vcvt.s32.f32 %v1542
        %v1575 = vcvt.s32.f32 %v1543
        %v1576 = vcvt.s32.f32 %v1544
        %v1577 = vcvt.s32.f32 %v1545
        %v1578 = vcvt.s32.f32 %v1546
        %v1579 = vcvt.s32.f32 %v1547
        %v1580 = vcvt.s32.f32 %v1548
        %v1581 = vcvt.s32.f32 %v1549
        %v1582 = vcvt.s32.f32 %v1550
        %v1583 = vcvt.s32.f32 %v1551
        %v1584 = vcvt.s32.f32 %v1552
        %v1585 = vcvt.s32.f32 %v1553
        %v1586 = vpack.c.bf16 %v1556, %v1554
        %v1587 = vpack.c.bf16 %v1557, %v1555
        %v1588 = vpack.c.bf16 %v1560, %v1558
        %v1589 = vpack.c.bf16 %v1561, %v1559
        %v1590 = vpack.c.bf16 %v1564, %v1562
        %v1591 = vpack.c.bf16 %v1565, %v1563
        %v1592 = vpack.c.bf16 %v1568, %v1566
        %v1593 = vpack.c.bf16 %v1569, %v1567
        %v1594 = vpack.c.bf16 %v1572, %v1570
        %v1595 = vpack.c.bf16 %v1573, %v1571
        %v1596 = vpack.c.bf16 %v1576, %v1574
        %v1597 = vpack.c.bf16 %v1577, %v1575
        %v1598 = vpack.c.bf16 %v1580, %v1578
        %v1599 = vpack.c.bf16 %v1581, %v1579
        %v1600 = vpack.c.bf16 %v1584, %v1582
        %v1601 = vpack.c.bf16 %v1585, %v1583
        %v1602 = vld [vmem:[%s0] sm:$0xff]
        %v1603 = vld [vmem:[%s0 + $0x8] sm:$0xff]
        %v1604 = vld [vmem:[%s0 + $0x10] sm:$0xff]
        %v1605 = vld [vmem:[%s0 + $0x18] sm:$0xff]
        %v1606 = vld [vmem:[%s0 + $0x20] sm:$0xff]
        %v1607 = vld [vmem:[%s0 + $0x28] sm:$0xff]
        %v1608 = vld [vmem:[%s0 + $0x30] sm:$0xff]
        %v1609 = vld [vmem:[%s0 + $0x38] sm:$0xff]
        %v1610 = vld [vmem:[%s0 + $0x40] sm:$0xff]
        %v1611 = vld [vmem:[%s0 + $0x48] sm:$0xff]
        %v1612 = vld [vmem:[%s0 + $0x50] sm:$0xff]
        %v1613 = vld [vmem:[%s0 + $0x58] sm:$0xff]
        %v1614 = vld [vmem:[%s0 + $0x60] sm:$0xff]
        %v1615 = vld [vmem:[%s0 + $0x68] sm:$0xff]
        %v1616 = vld [vmem:[%s0 + $0x70] sm:$0xff]
        %v1617 = vld [vmem:[%s0 + $0x78] sm:$0xff]
        %v1618 = vld [vmem:[%s0 + $0x80] sm:$0xff]
        %v1619 = vld [vmem:[%s0 + $0x88] sm:$0xff]
        %v1620 = vld [vmem:[%s0 + $0x90] sm:$0xff]
        %v1621 = vld [vmem:[%s0 + $0x98] sm:$0xff]
        %v1622 = vld [vmem:[%s0 + $0xa0] sm:$0xff]
        %v1623 = vld [vmem:[%s0 + $0xa8] sm:$0xff]
        %v1624 = vld [vmem:[%s0 + $0xb0] sm:$0xff]
        %v1625 = vld [vmem:[%s0 + $0xb8] sm:$0xff]
        %v1626 = vld [vmem:[%s0 + $0xc0] sm:$0xff]
        %v1627 = vld [vmem:[%s0 + $0xc8] sm:$0xff]
        %v1628 = vld [vmem:[%s0 + $0xd0] sm:$0xff]
        %v1629 = vld [vmem:[%s0 + $0xd8] sm:$0xff]
        %v1630 = vld [vmem:[%s0 + $0xe0] sm:$0xff]
        %v1631 = vld [vmem:[%s0 + $0xe8] sm:$0xff]
        %v1632 = vld [vmem:[%s0 + $0xf0] sm:$0xff]
        %v1633 = vld [vmem:[%s0 + $0xf8] sm:$0xff]
        %v1666 = vunpack.c.l.b16 %v1602
        %v1667 = vunpack.c.h.b16 %v1602
        %v1668 = vunpack.c.l.b16 %v1603
        %v1669 = vunpack.c.h.b16 %v1603
        %v1670 = vunpack.c.l.b16 %v1604
        %v1671 = vunpack.c.h.b16 %v1604
        %v1672 = vunpack.c.l.b16 %v1605
        %v1673 = vunpack.c.h.b16 %v1605
        %v1674 = vunpack.c.l.b16 %v1606
        %v1675 = vunpack.c.h.b16 %v1606
        %v1676 = vunpack.c.l.b16 %v1607
        %v1677 = vunpack.c.h.b16 %v1607
        %v1678 = vunpack.c.l.b16 %v1608
        %v1679 = vunpack.c.h.b16 %v1608
        %v1680 = vunpack.c.l.b16 %v1609
        %v1681 = vunpack.c.h.b16 %v1609
        %v1682 = vunpack.c.l.b16 %v1610
        %v1683 = vunpack.c.h.b16 %v1610
        %v1684 = vunpack.c.l.b16 %v1611
        %v1685 = vunpack.c.h.b16 %v1611
        %v1686 = vunpack.c.l.b16 %v1612
        %v1687 = vunpack.c.h.b16 %v1612
        %v1688 = vunpack.c.l.b16 %v1613
        %v1689 = vunpack.c.h.b16 %v1613
        %v1690 = vunpack.c.l.b16 %v1614
        %v1691 = vunpack.c.h.b16 %v1614
        %v1692 = vunpack.c.l.b16 %v1615
        %v1693 = vunpack.c.h.b16 %v1615
        %v1694 = vunpack.c.l.b16 %v1616
        %v1695 = vunpack.c.h.b16 %v1616
        %v1696 = vunpack.c.l.b16 %v1617
        %v1697 = vunpack.c.h.b16 %v1617
        %v1698 = vunpack.c.l.b16 %v1618
        %v1699 = vunpack.c.h.b16 %v1618
        %v1700 = vunpack.c.l.b16 %v1619
        %v1701 = vunpack.c.h.b16 %v1619
        %v1702 = vunpack.c.l.b16 %v1620
        %v1703 = vunpack.c.h.b16 %v1620
        %v1704 = vunpack.c.l.b16 %v1621
        %v1705 = vunpack.c.h.b16 %v1621
        %v1706 = vunpack.c.l.b16 %v1622
        %v1707 = vunpack.c.h.b16 %v1622
        %v1708 = vunpack.c.l.b16 %v1623
        %v1709 = vunpack.c.h.b16 %v1623
        %v1710 = vunpack.c.l.b16 %v1624
        %v1711 = vunpack.c.h.b16 %v1624
        %v1712 = vunpack.c.l.b16 %v1625
        %v1713 = vunpack.c.h.b16 %v1625
        %v1714 = vunpack.c.l.b16 %v1626
        %v1715 = vunpack.c.h.b16 %v1626
        %v1716 = vunpack.c.l.b16 %v1627
        %v1717 = vunpack.c.h.b16 %v1627
        %v1718 = vunpack.c.l.b16 %v1628
        %v1719 = vunpack.c.h.b16 %v1628
        %v1720 = vunpack.c.l.b16 %v1629
        %v1721 = vunpack.c.h.b16 %v1629
        %v1722 = vunpack.c.l.b16 %v1630
        %v1723 = vunpack.c.h.b16 %v1630
        %v1724 = vunpack.c.l.b16 %v1631
        %v1725 = vunpack.c.h.b16 %v1631
        %v1726 = vunpack.c.l.b16 %v1632
        %v1727 = vunpack.c.h.b16 %v1632
        %v1728 = vunpack.c.l.b16 %v1633
        %v1729 = vunpack.c.h.b16 %v1633
        %v1730 = vpack.c.b16 %v1668, %v1666
        %v1731 = vpack.c.b16 %v1669, %v1667
        %v1732 = vpack.c.b16 %v1672, %v1670
        %v1733 = vpack.c.b16 %v1673, %v1671
        %v1734 = vpack.c.b16 %v1676, %v1674
        %v1735 = vpack.c.b16 %v1677, %v1675
        %v1736 = vpack.c.b16 %v1680, %v1678
        %v1737 = vpack.c.b16 %v1681, %v1679
        %v1738 = vpack.c.b16 %v1684, %v1682
        %v1739 = vpack.c.b16 %v1685, %v1683
        %v1740 = vpack.c.b16 %v1688, %v1686
        %v1741 = vpack.c.b16 %v1689, %v1687
        %v1742 = vpack.c.b16 %v1692, %v1690
        %v1743 = vpack.c.b16 %v1693, %v1691
        %v1744 = vpack.c.b16 %v1696, %v1694
        %v1745 = vpack.c.b16 %v1697, %v1695
        %v1746 = vpack.c.b16 %v1700, %v1698
        %v1747 = vpack.c.b16 %v1701, %v1699
        %v1748 = vpack.c.b16 %v1704, %v1702
        %v1749 = vpack.c.b16 %v1705, %v1703
        %v1750 = vpack.c.b16 %v1708, %v1706
        %v1751 = vpack.c.b16 %v1709, %v1707
        %v1752 = vpack.c.b16 %v1712, %v1710
        %v1753 = vpack.c.b16 %v1713, %v1711
        %v1754 = vpack.c.b16 %v1716, %v1714
        %v1755 = vpack.c.b16 %v1717, %v1715
        %v1756 = vpack.c.b16 %v1720, %v1718
        %v1757 = vpack.c.b16 %v1721, %v1719
        %v1758 = vpack.c.b16 %v1724, %v1722
        %v1759 = vpack.c.b16 %v1725, %v1723
        %v1760 = vpack.c.b16 %v1728, %v1726
        %v1761 = vpack.c.b16 %v1729, %v1727
        %1794 = vmatprep.subr.bf16.mxu0 %v1731
        %1795 = vmatpush1.bf16.msra.mxu0 %v1730
        %1796 = vmatprep.subr.bf16.mxu0 %v1733
        %1797 = vmatpush1.bf16.msra.mxu0 %v1732
        %1798 = vmatprep.subr.bf16.mxu0 %v1735
        %1799 = vmatpush1.bf16.msra.mxu0 %v1734
        %1800 = vmatprep.subr.bf16.mxu0 %v1737
        %1801 = vmatpush1.bf16.msra.mxu0 %v1736
        %1802 = vmatprep.subr.bf16.mxu0 %v1739
        %1803 = vmatpush1.bf16.msra.mxu0 %v1738
        %1804 = vmatprep.subr.bf16.mxu0 %v1741
        %1805 = vmatpush1.bf16.msra.mxu0 %v1740
        %1806 = vmatprep.subr.bf16.mxu0 %v1743
        %1807 = vmatpush1.bf16.msra.mxu0 %v1742
        %1808 = vmatprep.subr.bf16.mxu0 %v1745
        %1809 = vmatpush1.bf16.msra.mxu0 %v1744
        %1810 = vmatprep.subr.bf16.mxu0 %v1747
        %1811 = vmatpush1.bf16.msra.mxu0 %v1746
        %1812 = vmatprep.subr.bf16.mxu0 %v1749
        %1813 = vmatpush1.bf16.msra.mxu0 %v1748
        %1814 = vmatprep.subr.bf16.mxu0 %v1751
        %1815 = vmatpush1.bf16.msra.mxu0 %v1750
        %1816 = vmatprep.subr.bf16.mxu0 %v1753
        %1817 = vmatpush1.bf16.msra.mxu0 %v1752
        %1818 = vmatprep.subr.bf16.mxu0 %v1755
        %1819 = vmatpush1.bf16.msra.mxu0 %v1754
        %1820 = vmatprep.subr.bf16.mxu0 %v1757
        %1821 = vmatpush1.bf16.msra.mxu0 %v1756
        %1822 = vmatprep.subr.bf16.mxu0 %v1759
        %1823 = vmatpush1.bf16.msra.mxu0 %v1758
        %1824 = vmatprep.subr.bf16.mxu0 %v1761
        %1825 = vmatpush1.bf16.msra.mxu0 %v1760
        %1826 = vmatprep.mubr.bf16.mxu0 %v467
        %1827 = vmatmul.mubr.bf16.gmra.mrb[0].mxu0 %v466
        %v1828 = vpop.f32.mrb[0].mxu0
        %v1829 = vadd.f32 0.0, %v1828
        %v1830 = vpop.f32.mrb[0].mxu0
        %v1831 = vadd.f32 0.0, %v1830
        %v1832 = vpop.f32.mrb[0].mxu0
        %v1833 = vadd.f32 0.0, %v1832
        %v1834 = vpop.f32.mrb[0].mxu0
        %v1835 = vadd.f32 0.0, %v1834
        %1836 = vmatprep.mubr.bf16.mxu0 %v469
        %1837 = vmatmul.mubr.bf16.gmra.mrb[0].mxu0 %v468
        %v1838 = vpop.f32.mrb[0].mxu0
        %v1839 = vadd.f32 0.0, %v1838
        %v1840 = vpop.f32.mrb[0].mxu0
        %v1841 = vadd.f32 0.0, %v1840
        %v1842 = vpop.f32.mrb[0].mxu0
        %v1843 = vadd.f32 0.0, %v1842
        %v1844 = vpop.f32.mrb[0].mxu0
        %v1845 = vadd.f32 0.0, %v1844
        %1846 = vmatprep.mubr.bf16.mxu0 %v471
        %1847 = vmatmul.mubr.bf16.gmra.mrb[0].mxu0 %v470
        %v1848 = vpop.f32.mrb[0].mxu0
        %v1849 = vadd.f32 0.0, %v1848
        %v1850 = vpop.f32.mrb[0].mxu0
        %v1851 = vadd.f32 0.0, %v1850
        %v1852 = vpop.f32.mrb[0].mxu0
        %v1853 = vadd.f32 0.0, %v1852
        %v1854 = vpop.f32.mrb[0].mxu0
        %v1855 = vadd.f32 0.0, %v1854
        %1856 = vmatprep.mubr.bf16.mxu0 %v473
        %1857 = vmatmul.mubr.bf16.gmra.mrb[0].mxu0 %v472
        %v1858 = vpop.f32.mrb[0].mxu0
        %v1859 = vadd.f32 0.0, %v1858
        %v1860 = vpop.f32.mrb[0].mxu0
        %v1861 = vadd.f32 0.0, %v1860
        %v1862 = vpop.f32.mrb[0].mxu0
        %v1863 = vadd.f32 0.0, %v1862
        %v1864 = vpop.f32.mrb[0].mxu0
        %v1865 = vadd.f32 0.0, %v1864
        %1866 = vmatprep.mubr.bf16.mxu0 %v475
        %1867 = vmatmul.mubr.bf16.gmra.mrb[0].mxu0 %v474
        %v1868 = vpop.f32.mrb[0].mxu0
        %v1869 = vadd.f32 0.0, %v1868
        %v1870 = vpop.f32.mrb[0].mxu0
        %v1871 = vadd.f32 0.0, %v1870
        %v1872 = vpop.f32.mrb[0].mxu0
        %v1873 = vadd.f32 0.0, %v1872
        %v1874 = vpop.f32.mrb[0].mxu0
        %v1875 = vadd.f32 0.0, %v1874
        %1876 = vmatprep.mubr.bf16.mxu0 %v477
        %1877 = vmatmul.mubr.bf16.gmra.mrb[0].mxu0 %v476
        %v1878 = vpop.f32.mrb[0].mxu0
        %v1879 = vadd.f32 0.0, %v1878
        %v1880 = vpop.f32.mrb[0].mxu0
        %v1881 = vadd.f32 0.0, %v1880
        %v1882 = vpop.f32.mrb[0].mxu0
        %v1883 = vadd.f32 0.0, %v1882
        %v1884 = vpop.f32.mrb[0].mxu0
        %v1885 = vadd.f32 0.0, %v1884
        %1886 = vmatprep.mubr.bf16.mxu0 %v479
        %1887 = vmatmul.mubr.bf16.gmra.mrb[0].mxu0 %v478
        %v1888 = vpop.f32.mrb[0].mxu0
        %v1889 = vadd.f32 0.0, %v1888
        %v1890 = vpop.f32.mrb[0].mxu0
        %v1891 = vadd.f32 0.0, %v1890
        %v1892 = vpop.f32.mrb[0].mxu0
        %v1893 = vadd.f32 0.0, %v1892
        %v1894 = vpop.f32.mrb[0].mxu0
        %v1895 = vadd.f32 0.0, %v1894
        %1896 = vmatprep.mubr.bf16.mxu0 %v481
        %1897 = vmatmul.mubr.bf16.gmra.mrb[0].mxu0 %v480
        %v1898 = vpop.f32.mrb[0].mxu0
        %v1899 = vadd.f32 0.0, %v1898
        %v1900 = vpop.f32.mrb[0].mxu0
        %v1901 = vadd.f32 0.0, %v1900
        %v1902 = vpop.f32.mrb[0].mxu0
        %v1903 = vadd.f32 0.0, %v1902
        %v1904 = vpop.f32.mrb[0].mxu0
        %v1905 = vadd.f32 0.0, %v1904
        %1906 = vmatprep.mubr.bf16.mxu0 %v627
        %1907 = vmatmul.mubr.bf16.gmra.mrb[0].mxu0 %v626
        %v1908 = vpop.f32.mrb[0].mxu0
        %v1909 = vadd.f32 0.0, %v1908
        %v1910 = vpop.f32.mrb[0].mxu0
        %v1911 = vadd.f32 0.0, %v1910
        %v1912 = vpop.f32.mrb[0].mxu0
        %v1913 = vadd.f32 0.0, %v1912
        %v1914 = vpop.f32.mrb[0].mxu0
        %v1915 = vadd.f32 0.0, %v1914
        %1916 = vmatprep.mubr.bf16.mxu0 %v629
        %1917 = vmatmul.mubr.bf16.gmra.mrb[0].mxu0 %v628
        %v1918 = vpop.f32.mrb[0].mxu0
        %v1919 = vadd.f32 0.0, %v1918
        %v1920 = vpop.f32.mrb[0].mxu0
        %v1921 = vadd.f32 0.0, %v1920
        %v1922 = vpop.f32.mrb[0].mxu0
        %v1923 = vadd.f32 0.0, %v1922
        %v1924 = vpop.f32.mrb[0].mxu0
        %v1925 = vadd.f32 0.0, %v1924
        %1926 = vmatprep.mubr.bf16.mxu0 %v631
        %1927 = vmatmul.mubr.bf16.gmra.mrb[0].mxu0 %v630
        %v1928 = vpop.f32.mrb[0].mxu0
        %v1929 = vadd.f32 0.0, %v1928
        %v1930 = vpop.f32.mrb[0].mxu0
        %v1931 = vadd.f32 0.0, %v1930
        %v1932 = vpop.f32.mrb[0].mxu0
        %v1933 = vadd.f32 0.0, %v1932
        %v1934 = vpop.f32.mrb[0].mxu0
        %v1935 = vadd.f32 0.0, %v1934
        %1936 = vmatprep.mubr.bf16.mxu0 %v633
        %1937 = vmatmul.mubr.bf16.gmra.mrb[0].mxu0 %v632
        %v1938 = vpop.f32.mrb[0].mxu0
        %v1939 = vadd.f32 0.0, %v1938
        %v1940 = vpop.f32.mrb[0].mxu0
        %v1941 = vadd.f32 0.0, %v1940
        %v1942 = vpop.f32.mrb[0].mxu0
        %v1943 = vadd.f32 0.0, %v1942
        %v1944 = vpop.f32.mrb[0].mxu0
        %v1945 = vadd.f32 0.0, %v1944
        %1946 = vmatprep.mubr.bf16.mxu0 %v635
        %1947 = vmatmul.mubr.bf16.gmra.mrb[0].mxu0 %v634
        %v1948 = vpop.f32.mrb[0].mxu0
        %v1949 = vadd.f32 0.0, %v1948
        %v1950 = vpop.f32.mrb[0].mxu0
        %v1951 = vadd.f32 0.0, %v1950
        %v1952 = vpop.f32.mrb[0].mxu0
        %v1953 = vadd.f32 0.0, %v1952
        %v1954 = vpop.f32.mrb[0].mxu0
        %v1955 = vadd.f32 0.0, %v1954
        %1956 = vmatprep.mubr.bf16.mxu0 %v637
        %1957 = vmatmul.mubr.bf16.gmra.mrb[0].mxu0 %v636
        %v1958 = vpop.f32.mrb[0].mxu0
        %v1959 = vadd.f32 0.0, %v1958
        %v1960 = vpop.f32.mrb[0].mxu0
        %v1961 = vadd.f32 0.0, %v1960
        %v1962 = vpop.f32.mrb[0].mxu0
        %v1963 = vadd.f32 0.0, %v1962
        %v1964 = vpop.f32.mrb[0].mxu0
        %v1965 = vadd.f32 0.0, %v1964
        %1966 = vmatprep.mubr.bf16.mxu0 %v639
        %1967 = vmatmul.mubr.bf16.gmra.mrb[0].mxu0 %v638
        %v1968 = vpop.f32.mrb[0].mxu0
        %v1969 = vadd.f32 0.0, %v1968
        %v1970 = vpop.f32.mrb[0].mxu0
        %v1971 = vadd.f32 0.0, %v1970
        %v1972 = vpop.f32.mrb[0].mxu0
        %v1973 = vadd.f32 0.0, %v1972
        %v1974 = vpop.f32.mrb[0].mxu0
        %v1975 = vadd.f32 0.0, %v1974
        %1976 = vmatprep.mubr.bf16.mxu0 %v641
        %1977 = vmatmul.mubr.bf16.gmra.mrb[0].mxu0 %v640
        %v1978 = vpop.f32.mrb[0].mxu0
        %v1979 = vadd.f32 0.0, %v1978
        %v1980 = vpop.f32.mrb[0].mxu0
        %v1981 = vadd.f32 0.0, %v1980
        %v1982 = vpop.f32.mrb[0].mxu0
        %v1983 = vadd.f32 0.0, %v1982
        %v1984 = vpop.f32.mrb[0].mxu0
        %v1985 = vadd.f32 0.0, %v1984
        %1986 = vmatprep.mubr.bf16.mxu0 %v787
        %1987 = vmatmul.mubr.bf16.gmra.mrb[0].mxu0 %v786
        %v1988 = vpop.f32.mrb[0].mxu0
        %v1989 = vadd.f32 0.0, %v1988
        %v1990 = vpop.f32.mrb[0].mxu0
        %v1991 = vadd.f32 0.0, %v1990
        %v1992 = vpop.f32.mrb[0].mxu0
        %v1993 = vadd.f32 0.0, %v1992
        %v1994 = vpop.f32.mrb[0].mxu0
        %v1995 = vadd.f32 0.0, %v1994
        %1996 = vmatprep.mubr.bf16.mxu0 %v789
        %1997 = vmatmul.mubr.bf16.gmra.mrb[0].mxu0 %v788
        %v1998 = vpop.f32.mrb[0].mxu0
        %v1999 = vadd.f32 0.0, %v1998
        %v2000 = vpop.f32.mrb[0].mxu0
        %v2001 = vadd.f32 0.0, %v2000
        %v2002 = vpop.f32.mrb[0].mxu0
        %v2003 = vadd.f32 0.0, %v2002
        %v2004 = vpop.f32.mrb[0].mxu0
        %v2005 = vadd.f32 0.0, %v2004
        %2006 = vmatprep.mubr.bf16.mxu0 %v791
        %2007 = vmatmul.mubr.bf16.gmra.mrb[0].mxu0 %v790
        %v2008 = vpop.f32.mrb[0].mxu0
        %v2009 = vadd.f32 0.0, %v2008
        %v2010 = vpop.f32.mrb[0].mxu0
        %v2011 = vadd.f32 0.0, %v2010
        %v2012 = vpop.f32.mrb[0].mxu0
        %v2013 = vadd.f32 0.0, %v2012
        %v2014 = vpop.f32.mrb[0].mxu0
        %v2015 = vadd.f32 0.0, %v2014
        %2016 = vmatprep.mubr.bf16.mxu0 %v793
        %2017 = vmatmul.mubr.bf16.gmra.mrb[0].mxu0 %v792
        %v2018 = vpop.f32.mrb[0].mxu0
        %v2019 = vadd.f32 0.0, %v2018
        %v2020 = vpop.f32.mrb[0].mxu0
        %v2021 = vadd.f32 0.0, %v2020
        %v2022 = vpop.f32.mrb[0].mxu0
        %v2023 = vadd.f32 0.0, %v2022
        %v2024 = vpop.f32.mrb[0].mxu0
        %v2025 = vadd.f32 0.0, %v2024
        %2026 = vmatprep.mubr.bf16.mxu0 %v795
        %2027 = vmatmul.mubr.bf16.gmra.mrb[0].mxu0 %v794
        %v2028 = vpop.f32.mrb[0].mxu0
        %v2029 = vadd.f32 0.0, %v2028
        %v2030 = vpop.f32.mrb[0].mxu0
        %v2031 = vadd.f32 0.0, %v2030
        %v2032 = vpop.f32.mrb[0].mxu0
        %v2033 = vadd.f32 0.0, %v2032
        %v2034 = vpop.f32.mrb[0].mxu0
        %v2035 = vadd.f32 0.0, %v2034
        %2036 = vmatprep.mubr.bf16.mxu0 %v797
        %2037 = vmatmul.mubr.bf16.gmra.mrb[0].mxu0 %v796
        %v2038 = vpop.f32.mrb[0].mxu0
        %v2039 = vadd.f32 0.0, %v2038
        %v2040 = vpop.f32.mrb[0].mxu0
        %v2041 = vadd.f32 0.0, %v2040
        %v2042 = vpop.f32.mrb[0].mxu0
        %v2043 = vadd.f32 0.0, %v2042
        %v2044 = vpop.f32.mrb[0].mxu0
        %v2045 = vadd.f32 0.0, %v2044
        %2046 = vmatprep.mubr.bf16.mxu0 %v799
        %2047 = vmatmul.mubr.bf16.gmra.mrb[0].mxu0 %v798
        %v2048 = vpop.f32.mrb[0].mxu0
        %v2049 = vadd.f32 0.0, %v2048
        %v2050 = vpop.f32.mrb[0].mxu0
        %v2051 = vadd.f32 0.0, %v2050
        %v2052 = vpop.f32.mrb[0].mxu0
        %v2053 = vadd.f32 0.0, %v2052
        %v2054 = vpop.f32.mrb[0].mxu0
        %v2055 = vadd.f32 0.0, %v2054
        %2056 = vmatprep.mubr.bf16.mxu0 %v801
        %2057 = vmatmul.mubr.bf16.gmra.mrb[0].mxu0 %v800
        %v2058 = vpop.f32.mrb[0].mxu0
        %v2059 = vadd.f32 0.0, %v2058
        %v2060 = vpop.f32.mrb[0].mxu0
        %v2061 = vadd.f32 0.0, %v2060
        %v2062 = vpop.f32.mrb[0].mxu0
        %v2063 = vadd.f32 0.0, %v2062
        %v2064 = vpop.f32.mrb[0].mxu0
        %v2065 = vadd.f32 0.0, %v2064
        %2066 = vmatprep.mubr.bf16.mxu0 %v947
        %2067 = vmatmul.mubr.bf16.gmra.mrb[0].mxu0 %v946
        %v2068 = vpop.f32.mrb[0].mxu0
        %v2069 = vadd.f32 0.0, %v2068
        %v2070 = vpop.f32.mrb[0].mxu0
        %v2071 = vadd.f32 0.0, %v2070
        %v2072 = vpop.f32.mrb[0].mxu0
        %v2073 = vadd.f32 0.0, %v2072
        %v2074 = vpop.f32.mrb[0].mxu0
        %v2075 = vadd.f32 0.0, %v2074
        %2076 = vmatprep.mubr.bf16.mxu0 %v949
        %2077 = vmatmul.mubr.bf16.gmra.mrb[0].mxu0 %v948
        %v2078 = vpop.f32.mrb[0].mxu0
        %v2079 = vadd.f32 0.0, %v2078
        %v2080 = vpop.f32.mrb[0].mxu0
        %v2081 = vadd.f32 0.0, %v2080
        %v2082 = vpop.f32.mrb[0].mxu0
        %v2083 = vadd.f32 0.0, %v2082
        %v2084 = vpop.f32.mrb[0].mxu0
        %v2085 = vadd.f32 0.0, %v2084
        %2086 = vmatprep.mubr.bf16.mxu0 %v951
        %2087 = vmatmul.mubr.bf16.gmra.mrb[0].mxu0 %v950
        %v2088 = vpop.f32.mrb[0].mxu0
        %v2089 = vadd.f32 0.0, %v2088
        %v2090 = vpop.f32.mrb[0].mxu0
        %v2091 = vadd.f32 0.0, %v2090
        %v2092 = vpop.f32.mrb[0].mxu0
        %v2093 = vadd.f32 0.0, %v2092
        %v2094 = vpop.f32.mrb[0].mxu0
        %v2095 = vadd.f32 0.0, %v2094
        %2096 = vmatprep.mubr.bf16.mxu0 %v953
        %2097 = vmatmul.mubr.bf16.gmra.mrb[0].mxu0 %v952
        %v2098 = vpop.f32.mrb[0].mxu0
        %v2099 = vadd.f32 0.0, %v2098
        %v2100 = vpop.f32.mrb[0].mxu0
        %v2101 = vadd.f32 0.0, %v2100
        %v2102 = vpop.f32.mrb[0].mxu0
        %v2103 = vadd.f32 0.0, %v2102
        %v2104 = vpop.f32.mrb[0].mxu0
        %v2105 = vadd.f32 0.0, %v2104
        %2106 = vmatprep.mubr.bf16.mxu0 %v955
        %2107 = vmatmul.mubr.bf16.gmra.mrb[0].mxu0 %v954
        %v2108 = vpop.f32.mrb[0].mxu0
        %v2109 = vadd.f32 0.0, %v2108
        %v2110 = vpop.f32.mrb[0].mxu0
        %v2111 = vadd.f32 0.0, %v2110
        %v2112 = vpop.f32.mrb[0].mxu0
        %v2113 = vadd.f32 0.0, %v2112
        %v2114 = vpop.f32.mrb[0].mxu0
        %v2115 = vadd.f32 0.0, %v2114
        %2116 = vmatprep.mubr.bf16.mxu0 %v957
        %2117 = vmatmul.mubr.bf16.gmra.mrb[0].mxu0 %v956
        %v2118 = vpop.f32.mrb[0].mxu0
        %v2119 = vadd.f32 0.0, %v2118
        %v2120 = vpop.f32.mrb[0].mxu0
        %v2121 = vadd.f32 0.0, %v2120
        %v2122 = vpop.f32.mrb[0].mxu0
        %v2123 = vadd.f32 0.0, %v2122
        %v2124 = vpop.f32.mrb[0].mxu0
        %v2125 = vadd.f32 0.0, %v2124
        %2126 = vmatprep.mubr.bf16.mxu0 %v959
        %2127 = vmatmul.mubr.bf16.gmra.mrb[0].mxu0 %v958
        %v2128 = vpop.f32.mrb[0].mxu0
        %v2129 = vadd.f32 0.0, %v2128
        %v2130 = vpop.f32.mrb[0].mxu0
        %v2131 = vadd.f32 0.0, %v2130
        %v2132 = vpop.f32.mrb[0].mxu0
        %v2133 = vadd.f32 0.0, %v2132
        %v2134 = vpop.f32.mrb[0].mxu0
        %v2135 = vadd.f32 0.0, %v2134
        %2136 = vmatprep.mubr.bf16.mxu0 %v961
        %2137 = vmatmul.mubr.bf16.gmra.mrb[0].mxu0 %v960
        %v2138 = vpop.f32.mrb[0].mxu0
        %v2139 = vadd.f32 0.0, %v2138
        %v2140 = vpop.f32.mrb[0].mxu0
        %v2141 = vadd.f32 0.0, %v2140
        %v2142 = vpop.f32.mrb[0].mxu0
        %v2143 = vadd.f32 0.0, %v2142
        %v2144 = vpop.f32.mrb[0].mxu0
        %v2145 = vadd.f32 0.0, %v2144
        %2146 = vmatprep.mubr.bf16.mxu0 %v1107
        %2147 = vmatmul.mubr.bf16.gmra.mrb[0].mxu0 %v1106
        %v2148 = vpop.f32.mrb[0].mxu0
        %v2149 = vadd.f32 0.0, %v2148
        %v2150 = vpop.f32.mrb[0].mxu0
        %v2151 = vadd.f32 0.0, %v2150
        %v2152 = vpop.f32.mrb[0].mxu0
        %v2153 = vadd.f32 0.0, %v2152
        %v2154 = vpop.f32.mrb[0].mxu0
        %v2155 = vadd.f32 0.0, %v2154
        %2156 = vmatprep.mubr.bf16.mxu0 %v1109
        %2157 = vmatmul.mubr.bf16.gmra.mrb[0].mxu0 %v1108
        %v2158 = vpop.f32.mrb[0].mxu0
        %v2159 = vadd.f32 0.0, %v2158
        %v2160 = vpop.f32.mrb[0].mxu0
        %v2161 = vadd.f32 0.0, %v2160
        %v2162 = vpop.f32.mrb[0].mxu0
        %v2163 = vadd.f32 0.0, %v2162
        %v2164 = vpop.f32.mrb[0].mxu0
        %v2165 = vadd.f32 0.0, %v2164
        %2166 = vmatprep.mubr.bf16.mxu0 %v1111
        %2167 = vmatmul.mubr.bf16.gmra.mrb[0].mxu0 %v1110
        %v2168 = vpop.f32.mrb[0].mxu0
        %v2169 = vadd.f32 0.0, %v2168
        %v2170 = vpop.f32.mrb[0].mxu0
        %v2171 = vadd.f32 0.0, %v2170
        %v2172 = vpop.f32.mrb[0].mxu0
        %v2173 = vadd.f32 0.0, %v2172
        %v2174 = vpop.f32.mrb[0].mxu0
        %v2175 = vadd.f32 0.0, %v2174
        %2176 = vmatprep.mubr.bf16.mxu0 %v1113
        %2177 = vmatmul.mubr.bf16.gmra.mrb[0].mxu0 %v1112
        %v2178 = vpop.f32.mrb[0].mxu0
        %v2179 = vadd.f32 0.0, %v2178
        %v2180 = vpop.f32.mrb[0].mxu0
        %v2181 = vadd.f32 0.0, %v2180
        %v2182 = vpop.f32.mrb[0].mxu0
        %v2183 = vadd.f32 0.0, %v2182
        %v2184 = vpop.f32.mrb[0].mxu0
        %v2185 = vadd.f32 0.0, %v2184
        %2186 = vmatprep.mubr.bf16.mxu0 %v1115
        %2187 = vmatmul.mubr.bf16.gmra.mrb[0].mxu0 %v1114
        %v2188 = vpop.f32.mrb[0].mxu0
        %v2189 = vadd.f32 0.0, %v2188
        %v2190 = vpop.f32.mrb[0].mxu0
        %v2191 = vadd.f32 0.0, %v2190
        %v2192 = vpop.f32.mrb[0].mxu0
        %v2193 = vadd.f32 0.0, %v2192
        %v2194 = vpop.f32.mrb[0].mxu0
        %v2195 = vadd.f32 0.0, %v2194
        %2196 = vmatprep.mubr.bf16.mxu0 %v1117
        %2197 = vmatmul.mubr.bf16.gmra.mrb[0].mxu0 %v1116
        %v2198 = vpop.f32.mrb[0].mxu0
        %v2199 = vadd.f32 0.0, %v2198
        %v2200 = vpop.f32.mrb[0].mxu0
        %v2201 = vadd.f32 0.0, %v2200
        %v2202 = vpop.f32.mrb[0].mxu0
        %v2203 = vadd.f32 0.0, %v2202
        %v2204 = vpop.f32.mrb[0].mxu0
        %v2205 = vadd.f32 0.0, %v2204
        %2206 = vmatprep.mubr.bf16.mxu0 %v1119
        %2207 = vmatmul.mubr.bf16.gmra.mrb[0].mxu0 %v1118
        %v2208 = vpop.f32.mrb[0].mxu0
        %v2209 = vadd.f32 0.0, %v2208
        %v2210 = vpop.f32.mrb[0].mxu0
        %v2211 = vadd.f32 0.0, %v2210
        %v2212 = vpop.f32.mrb[0].mxu0
        %v2213 = vadd.f32 0.0, %v2212
        %v2214 = vpop.f32.mrb[0].mxu0
        %v2215 = vadd.f32 0.0, %v2214
        %2216 = vmatprep.mubr.bf16.mxu0 %v1121
        %2217 = vmatmul.mubr.bf16.gmra.mrb[0].mxu0 %v1120
        %v2218 = vpop.f32.mrb[0].mxu0
        %v2219 = vadd.f32 0.0, %v2218
        %v2220 = vpop.f32.mrb[0].mxu0
        %v2221 = vadd.f32 0.0, %v2220
        %v2222 = vpop.f32.mrb[0].mxu0
        %v2223 = vadd.f32 0.0, %v2222
        %v2224 = vpop.f32.mrb[0].mxu0
        %v2225 = vadd.f32 0.0, %v2224
        %2226 = vmatprep.mubr.bf16.mxu0 %v1267
        %2227 = vmatmul.mubr.bf16.gmra.mrb[0].mxu0 %v1266
        %v2228 = vpop.f32.mrb[0].mxu0
        %v2229 = vadd.f32 0.0, %v2228
        %v2230 = vpop.f32.mrb[0].mxu0
        %v2231 = vadd.f32 0.0, %v2230
        %v2232 = vpop.f32.mrb[0].mxu0
        %v2233 = vadd.f32 0.0, %v2232
        %v2234 = vpop.f32.mrb[0].mxu0
        %v2235 = vadd.f32 0.0, %v2234
        %2236 = vmatprep.mubr.bf16.mxu0 %v1269
        %2237 = vmatmul.mubr.bf16.gmra.mrb[0].mxu0 %v1268
        %v2238 = vpop.f32.mrb[0].mxu0
        %v2239 = vadd.f32 0.0, %v2238
        %v2240 = vpop.f32.mrb[0].mxu0
        %v2241 = vadd.f32 0.0, %v2240
        %v2242 = vpop.f32.mrb[0].mxu0
        %v2243 = vadd.f32 0.0, %v2242
        %v2244 = vpop.f32.mrb[0].mxu0
        %v2245 = vadd.f32 0.0, %v2244
        %2246 = vmatprep.mubr.bf16.mxu0 %v1271
        %2247 = vmatmul.mubr.bf16.gmra.mrb[0].mxu0 %v1270
        %v2248 = vpop.f32.mrb[0].mxu0
        %v2249 = vadd.f32 0.0, %v2248
        %v2250 = vpop.f32.mrb[0].mxu0
        %v2251 = vadd.f32 0.0, %v2250
        %v2252 = vpop.f32.mrb[0].mxu0
        %v2253 = vadd.f32 0.0, %v2252
        %v2254 = vpop.f32.mrb[0].mxu0
        %v2255 = vadd.f32 0.0, %v2254
        %2256 = vmatprep.mubr.bf16.mxu0 %v1273
        %2257 = vmatmul.mubr.bf16.gmra.mrb[0].mxu0 %v1272
        %v2258 = vpop.f32.mrb[0].mxu0
        %v2259 = vadd.f32 0.0, %v2258
        %v2260 = vpop.f32.mrb[0].mxu0
        %v2261 = vadd.f32 0.0, %v2260
        %v2262 = vpop.f32.mrb[0].mxu0
        %v2263 = vadd.f32 0.0, %v2262
        %v2264 = vpop.f32.mrb[0].mxu0
        %v2265 = vadd.f32 0.0, %v2264
        %2266 = vmatprep.mubr.bf16.mxu0 %v1275
        %2267 = vmatmul.mubr.bf16.gmra.mrb[0].mxu0 %v1274
        %v2268 = vpop.f32.mrb[0].mxu0
        %v2269 = vadd.f32 0.0, %v2268
        %v2270 = vpop.f32.mrb[0].mxu0
        %v2271 = vadd.f32 0.0, %v2270
        %v2272 = vpop.f32.mrb[0].mxu0
        %v2273 = vadd.f32 0.0, %v2272
        %v2274 = vpop.f32.mrb[0].mxu0
        %v2275 = vadd.f32 0.0, %v2274
        %2276 = vmatprep.mubr.bf16.mxu0 %v1277
        %2277 = vmatmul.mubr.bf16.gmra.mrb[0].mxu0 %v1276
        %v2278 = vpop.f32.mrb[0].mxu0
        %v2279 = vadd.f32 0.0, %v2278
        %v2280 = vpop.f32.mrb[0].mxu0
        %v2281 = vadd.f32 0.0, %v2280
        %v2282 = vpop.f32.mrb[0].mxu0
        %v2283 = vadd.f32 0.0, %v2282
        %v2284 = vpop.f32.mrb[0].mxu0
        %v2285 = vadd.f32 0.0, %v2284
        %2286 = vmatprep.mubr.bf16.mxu0 %v1279
        %2287 = vmatmul.mubr.bf16.gmra.mrb[0].mxu0 %v1278
        %v2288 = vpop.f32.mrb[0].mxu0
        %v2289 = vadd.f32 0.0, %v2288
        %v2290 = vpop.f32.mrb[0].mxu0
        %v2291 = vadd.f32 0.0, %v2290
        %v2292 = vpop.f32.mrb[0].mxu0
        %v2293 = vadd.f32 0.0, %v2292
        %v2294 = vpop.f32.mrb[0].mxu0
        %v2295 = vadd.f32 0.0, %v2294
        %2296 = vmatprep.mubr.bf16.mxu0 %v1281
        %2297 = vmatmul.mubr.bf16.gmra.mrb[0].mxu0 %v1280
        %v2298 = vpop.f32.mrb[0].mxu0
        %v2299 = vadd.f32 0.0, %v2298
        %v2300 = vpop.f32.mrb[0].mxu0
        %v2301 = vadd.f32 0.0, %v2300
        %v2302 = vpop.f32.mrb[0].mxu0
        %v2303 = vadd.f32 0.0, %v2302
        %v2304 = vpop.f32.mrb[0].mxu0
        %v2305 = vadd.f32 0.0, %v2304
        %2306 = vmatprep.mubr.bf16.mxu0 %v1427
        %2307 = vmatmul.mubr.bf16.gmra.mrb[0].mxu0 %v1426
        %v2308 = vpop.f32.mrb[0].mxu0
        %v2309 = vadd.f32 0.0, %v2308
        %v2310 = vpop.f32.mrb[0].mxu0
        %v2311 = vadd.f32 0.0, %v2310
        %v2312 = vpop.f32.mrb[0].mxu0
        %v2313 = vadd.f32 0.0, %v2312
        %v2314 = vpop.f32.mrb[0].mxu0
        %v2315 = vadd.f32 0.0, %v2314
        %2316 = vmatprep.mubr.bf16.mxu0 %v1429
        %2317 = vmatmul.mubr.bf16.gmra.mrb[0].mxu0 %v1428
        %v2318 = vpop.f32.mrb[0].mxu0
        %v2319 = vadd.f32 0.0, %v2318
        %v2320 = vpop.f32.mrb[0].mxu0
        %v2321 = vadd.f32 0.0, %v2320
        %v2322 = vpop.f32.mrb[0].mxu0
        %v2323 = vadd.f32 0.0, %v2322
        %v2324 = vpop.f32.mrb[0].mxu0
        %v2325 = vadd.f32 0.0, %v2324
        %2326 = vmatprep.mubr.bf16.mxu0 %v1431
        %2327 = vmatmul.mubr.bf16.gmra.mrb[0].mxu0 %v1430
        %v2328 = vpop.f32.mrb[0].mxu0
        %v2329 = vadd.f32 0.0, %v2328
        %v2330 = vpop.f32.mrb[0].mxu0
        %v2331 = vadd.f32 0.0, %v2330
        %v2332 = vpop.f32.mrb[0].mxu0
        %v2333 = vadd.f32 0.0, %v2332
        %v2334 = vpop.f32.mrb[0].mxu0
        %v2335 = vadd.f32 0.0, %v2334
        %2336 = vmatprep.mubr.bf16.mxu0 %v1433
        %2337 = vmatmul.mubr.bf16.gmra.mrb[0].mxu0 %v1432
        %v2338 = vpop.f32.mrb[0].mxu0
        %v2339 = vadd.f32 0.0, %v2338
        %v2340 = vpop.f32.mrb[0].mxu0
        %v2341 = vadd.f32 0.0, %v2340
        %v2342 = vpop.f32.mrb[0].mxu0
        %v2343 = vadd.f32 0.0, %v2342
        %v2344 = vpop.f32.mrb[0].mxu0
        %v2345 = vadd.f32 0.0, %v2344
        %2346 = vmatprep.mubr.bf16.mxu0 %v1435
        %2347 = vmatmul.mubr.bf16.gmra.mrb[0].mxu0 %v1434
        %v2348 = vpop.f32.mrb[0].mxu0
        %v2349 = vadd.f32 0.0, %v2348
        %v2350 = vpop.f32.mrb[0].mxu0
        %v2351 = vadd.f32 0.0, %v2350
        %v2352 = vpop.f32.mrb[0].mxu0
        %v2353 = vadd.f32 0.0, %v2352
        %v2354 = vpop.f32.mrb[0].mxu0
        %v2355 = vadd.f32 0.0, %v2354
        %2356 = vmatprep.mubr.bf16.mxu0 %v1437
        %2357 = vmatmul.mubr.bf16.gmra.mrb[0].mxu0 %v1436
        %v2358 = vpop.f32.mrb[0].mxu0
        %v2359 = vadd.f32 0.0, %v2358
        %v2360 = vpop.f32.mrb[0].mxu0
        %v2361 = vadd.f32 0.0, %v2360
        %v2362 = vpop.f32.mrb[0].mxu0
        %v2363 = vadd.f32 0.0, %v2362
        %v2364 = vpop.f32.mrb[0].mxu0
        %v2365 = vadd.f32 0.0, %v2364
        %2366 = vmatprep.mubr.bf16.mxu0 %v1439
        %2367 = vmatmul.mubr.bf16.gmra.mrb[0].mxu0 %v1438
        %v2368 = vpop.f32.mrb[0].mxu0
        %v2369 = vadd.f32 0.0, %v2368
        %v2370 = vpop.f32.mrb[0].mxu0
        %v2371 = vadd.f32 0.0, %v2370
        %v2372 = vpop.f32.mrb[0].mxu0
        %v2373 = vadd.f32 0.0, %v2372
        %v2374 = vpop.f32.mrb[0].mxu0
        %v2375 = vadd.f32 0.0, %v2374
        %2376 = vmatprep.mubr.bf16.mxu0 %v1441
        %2377 = vmatmul.mubr.bf16.gmra.mrb[0].mxu0 %v1440
        %v2378 = vpop.f32.mrb[0].mxu0
        %v2379 = vadd.f32 0.0, %v2378
        %v2380 = vpop.f32.mrb[0].mxu0
        %v2381 = vadd.f32 0.0, %v2380
        %v2382 = vpop.f32.mrb[0].mxu0
        %v2383 = vadd.f32 0.0, %v2382
        %v2384 = vpop.f32.mrb[0].mxu0
        %v2385 = vadd.f32 0.0, %v2384
        %2386 = vmatprep.mubr.bf16.mxu0 %v1587
        %2387 = vmatmul.mubr.bf16.gmra.mrb[0].mxu0 %v1586
        %v2388 = vpop.f32.mrb[0].mxu0
        %v2389 = vadd.f32 0.0, %v2388
        %v2390 = vpop.f32.mrb[0].mxu0
        %v2391 = vadd.f32 0.0, %v2390
        %v2392 = vpop.f32.mrb[0].mxu0
        %v2393 = vadd.f32 0.0, %v2392
        %v2394 = vpop.f32.mrb[0].mxu0
        %v2395 = vadd.f32 0.0, %v2394
        %2396 = vmatprep.mubr.bf16.mxu0 %v1589
        %2397 = vmatmul.mubr.bf16.gmra.mrb[0].mxu0 %v1588
        %v2398 = vpop.f32.mrb[0].mxu0
        %v2399 = vadd.f32 0.0, %v2398
        %v2400 = vpop.f32.mrb[0].mxu0
        %v2401 = vadd.f32 0.0, %v2400
        %v2402 = vpop.f32.mrb[0].mxu0
        %v2403 = vadd.f32 0.0, %v2402
        %v2404 = vpop.f32.mrb[0].mxu0
        %v2405 = vadd.f32 0.0, %v2404
        %2406 = vmatprep.mubr.bf16.mxu0 %v1591
        %2407 = vmatmul.mubr.bf16.gmra.mrb[0].mxu0 %v1590
        %v2408 = vpop.f32.mrb[0].mxu0
        %v2409 = vadd.f32 0.0, %v2408
        %v2410 = vpop.f32.mrb[0].mxu0
        %v2411 = vadd.f32 0.0, %v2410
        %v2412 = vpop.f32.mrb[0].mxu0
        %v2413 = vadd.f32 0.0, %v2412
        %v2414 = vpop.f32.mrb[0].mxu0
        %v2415 = vadd.f32 0.0, %v2414
        %2416 = vmatprep.mubr.bf16.mxu0 %v1593
        %2417 = vmatmul.mubr.bf16.gmra.mrb[0].mxu0 %v1592
        %v2418 = vpop.f32.mrb[0].mxu0
        %v2419 = vadd.f32 0.0, %v2418
        %v2420 = vpop.f32.mrb[0].mxu0
        %v2421 = vadd.f32 0.0, %v2420
        %v2422 = vpop.f32.mrb[0].mxu0
        %v2423 = vadd.f32 0.0, %v2422
        %v2424 = vpop.f32.mrb[0].mxu0
        %v2425 = vadd.f32 0.0, %v2424
        %2426 = vmatprep.mubr.bf16.mxu0 %v1595
        %2427 = vmatmul.mubr.bf16.gmra.mrb[0].mxu0 %v1594
        %v2428 = vpop.f32.mrb[0].mxu0
        %v2429 = vadd.f32 0.0, %v2428
        %v2430 = vpop.f32.mrb[0].mxu0
        %v2431 = vadd.f32 0.0, %v2430
        %v2432 = vpop.f32.mrb[0].mxu0
        %v2433 = vadd.f32 0.0, %v2432
        %v2434 = vpop.f32.mrb[0].mxu0
        %v2435 = vadd.f32 0.0, %v2434
        %2436 = vmatprep.mubr.bf16.mxu0 %v1597
        %2437 = vmatmul.mubr.bf16.gmra.mrb[0].mxu0 %v1596
        %v2438 = vpop.f32.mrb[0].mxu0
        %v2439 = vadd.f32 0.0, %v2438
        %v2440 = vpop.f32.mrb[0].mxu0
        %v2441 = vadd.f32 0.0, %v2440
        %v2442 = vpop.f32.mrb[0].mxu0
        %v2443 = vadd.f32 0.0, %v2442
        %v2444 = vpop.f32.mrb[0].mxu0
        %v2445 = vadd.f32 0.0, %v2444
        %2446 = vmatprep.mubr.bf16.mxu0 %v1599
        %2447 = vmatmul.mubr.bf16.gmra.mrb[0].mxu0 %v1598
        %v2448 = vpop.f32.mrb[0].mxu0
        %v2449 = vadd.f32 0.0, %v2448
        %v2450 = vpop.f32.mrb[0].mxu0
        %v2451 = vadd.f32 0.0, %v2450
        %v2452 = vpop.f32.mrb[0].mxu0
        %v2453 = vadd.f32 0.0, %v2452
        %v2454 = vpop.f32.mrb[0].mxu0
        %v2455 = vadd.f32 0.0, %v2454
        %2456 = vmatprep.mubr.bf16.mxu0 %v1601
        %2457 = vmatmul.mubr.bf16.gmra.mrb[0].mxu0 %v1600
        %v2458 = vpop.f32.mrb[0].mxu0
        %v2459 = vadd.f32 0.0, %v2458
        %v2460 = vpop.f32.mrb[0].mxu0
        %v2461 = vadd.f32 0.0, %v2460
        %v2462 = vpop.f32.mrb[0].mxu0
        %v2463 = vadd.f32 0.0, %v2462
        %v2464 = vpop.f32.mrb[0].mxu0
        %v2465 = vadd.f32 0.0, %v2464
        %2466 = vdwg.mxu0
        %v2467 = vadd.f32 %v1831, %v303
        %v2468 = vadd.f32 %v1835, %v304
        %v2469 = vadd.f32 %v1841, %v305
        %v2470 = vadd.f32 %v1845, %v306
        %v2471 = vadd.f32 %v1851, %v307
        %v2472 = vadd.f32 %v1855, %v308
        %v2473 = vadd.f32 %v1861, %v309
        %v2474 = vadd.f32 %v1865, %v310
        %v2475 = vadd.f32 %v1871, %v311
        %v2476 = vadd.f32 %v1875, %v312
        %v2477 = vadd.f32 %v1881, %v313
        %v2478 = vadd.f32 %v1885, %v314
        %v2479 = vadd.f32 %v1891, %v315
        %v2480 = vadd.f32 %v1895, %v316
        %v2481 = vadd.f32 %v1901, %v317
        %v2482 = vadd.f32 %v1905, %v318
        %vm2483 = vcmp.gt.f32.partialorder %v2467, 0.0
        %vm2484 = vcmp.gt.f32.partialorder %v2468, 0.0
        %vm2485 = vcmp.gt.f32.partialorder %v2469, 0.0
        %vm2486 = vcmp.gt.f32.partialorder %v2470, 0.0
        %vm2487 = vcmp.gt.f32.partialorder %v2471, 0.0
        %vm2488 = vcmp.gt.f32.partialorder %v2472, 0.0
        %vm2489 = vcmp.gt.f32.partialorder %v2473, 0.0
        %vm2490 = vcmp.gt.f32.partialorder %v2474, 0.0
        %vm2491 = vcmp.gt.f32.partialorder %v2475, 0.0
        %vm2492 = vcmp.gt.f32.partialorder %v2476, 0.0
        %vm2493 = vcmp.gt.f32.partialorder %v2477, 0.0
        %vm2494 = vcmp.gt.f32.partialorder %v2478, 0.0
        %vm2495 = vcmp.gt.f32.partialorder %v2479, 0.0
        %vm2496 = vcmp.gt.f32.partialorder %v2480, 0.0
        %vm2497 = vcmp.gt.f32.partialorder %v2481, 0.0
        %vm2498 = vcmp.gt.f32.partialorder %v2482, 0.0
        %v2499 = vmul.f32 %v2467, 0.01
        %v2500 = vmul.f32 %v2468, 0.01
        %v2501 = vmul.f32 %v2469, 0.01
        %v2502 = vmul.f32 %v2470, 0.01
        %v2503 = vmul.f32 %v2471, 0.01
        %v2504 = vmul.f32 %v2472, 0.01
        %v2505 = vmul.f32 %v2473, 0.01
        %v2506 = vmul.f32 %v2474, 0.01
        %v2507 = vmul.f32 %v2475, 0.01
        %v2508 = vmul.f32 %v2476, 0.01
        %v2509 = vmul.f32 %v2477, 0.01
        %v2510 = vmul.f32 %v2478, 0.01
        %v2511 = vmul.f32 %v2479, 0.01
        %v2512 = vmul.f32 %v2480, 0.01
        %v2513 = vmul.f32 %v2481, 0.01
        %v2514 = vmul.f32 %v2482, 0.01
        %v2515 = vsel %vm2483, %v2467, %v2499
        %v2516 = vsel %vm2484, %v2468, %v2500
        %v2517 = vsel %vm2485, %v2469, %v2501
        %v2518 = vsel %vm2486, %v2470, %v2502
        %v2519 = vsel %vm2487, %v2471, %v2503
        %v2520 = vsel %vm2488, %v2472, %v2504
        %v2521 = vsel %vm2489, %v2473, %v2505
        %v2522 = vsel %vm2490, %v2474, %v2506
        %v2523 = vsel %vm2491, %v2475, %v2507
        %v2524 = vsel %vm2492, %v2476, %v2508
        %v2525 = vsel %vm2493, %v2477, %v2509
        %v2526 = vsel %vm2494, %v2478, %v2510
        %v2527 = vsel %vm2495, %v2479, %v2511
        %v2528 = vsel %vm2496, %v2480, %v2512
        %v2529 = vsel %vm2497, %v2481, %v2513
        %v2530 = vsel %vm2498, %v2482, %v2514
        %v2531 = vadd.f32 %v1911, %v303
        %v2532 = vadd.f32 %v1915, %v304
        %v2533 = vadd.f32 %v1921, %v305
        %v2534 = vadd.f32 %v1925, %v306
        %v2535 = vadd.f32 %v1931, %v307
        %v2536 = vadd.f32 %v1935, %v308
        %v2537 = vadd.f32 %v1941, %v309
        %v2538 = vadd.f32 %v1945, %v310
        %v2539 = vadd.f32 %v1951, %v311
        %v2540 = vadd.f32 %v1955, %v312
        %v2541 = vadd.f32 %v1961, %v313
        %v2542 = vadd.f32 %v1965, %v314
        %v2543 = vadd.f32 %v1971, %v315
        %v2544 = vadd.f32 %v1975, %v316
        %v2545 = vadd.f32 %v1981, %v317
        %v2546 = vadd.f32 %v1985, %v318
        %vm2547 = vcmp.gt.f32.partialorder %v2531, 0.0
        %vm2548 = vcmp.gt.f32.partialorder %v2532, 0.0
        %vm2549 = vcmp.gt.f32.partialorder %v2533, 0.0
        %vm2550 = vcmp.gt.f32.partialorder %v2534, 0.0
        %vm2551 = vcmp.gt.f32.partialorder %v2535, 0.0
        %vm2552 = vcmp.gt.f32.partialorder %v2536, 0.0
        %vm2553 = vcmp.gt.f32.partialorder %v2537, 0.0
        %vm2554 = vcmp.gt.f32.partialorder %v2538, 0.0
        %vm2555 = vcmp.gt.f32.partialorder %v2539, 0.0
        %vm2556 = vcmp.gt.f32.partialorder %v2540, 0.0
        %vm2557 = vcmp.gt.f32.partialorder %v2541, 0.0
        %vm2558 = vcmp.gt.f32.partialorder %v2542, 0.0
        %vm2559 = vcmp.gt.f32.partialorder %v2543, 0.0
        %vm2560 = vcmp.gt.f32.partialorder %v2544, 0.0
        %vm2561 = vcmp.gt.f32.partialorder %v2545, 0.0
        %vm2562 = vcmp.gt.f32.partialorder %v2546, 0.0
        %v2563 = vmul.f32 %v2531, 0.01
        %v2564 = vmul.f32 %v2532, 0.01
        %v2565 = vmul.f32 %v2533, 0.01
        %v2566 = vmul.f32 %v2534, 0.01
        %v2567 = vmul.f32 %v2535, 0.01
        %v2568 = vmul.f32 %v2536, 0.01
        %v2569 = vmul.f32 %v2537, 0.01
        %v2570 = vmul.f32 %v2538, 0.01
        %v2571 = vmul.f32 %v2539, 0.01
        %v2572 = vmul.f32 %v2540, 0.01
        %v2573 = vmul.f32 %v2541, 0.01
        %v2574 = vmul.f32 %v2542, 0.01
        %v2575 = vmul.f32 %v2543, 0.01
        %v2576 = vmul.f32 %v2544, 0.01
        %v2577 = vmul.f32 %v2545, 0.01
        %v2578 = vmul.f32 %v2546, 0.01
        %v2579 = vsel %vm2547, %v2531, %v2563
        %v2580 = vsel %vm2548, %v2532, %v2564
        %v2581 = vsel %vm2549, %v2533, %v2565
        %v2582 = vsel %vm2550, %v2534, %v2566
        %v2583 = vsel %vm2551, %v2535, %v2567
        %v2584 = vsel %vm2552, %v2536, %v2568
        %v2585 = vsel %vm2553, %v2537, %v2569
        %v2586 = vsel %vm2554, %v2538, %v2570
        %v2587 = vsel %vm2555, %v2539, %v2571
        %v2588 = vsel %vm2556, %v2540, %v2572
        %v2589 = vsel %vm2557, %v2541, %v2573
        %v2590 = vsel %vm2558, %v2542, %v2574
        %v2591 = vsel %vm2559, %v2543, %v2575
        %v2592 = vsel %vm2560, %v2544, %v2576
        %v2593 = vsel %vm2561, %v2545, %v2577
        %v2594 = vsel %vm2562, %v2546, %v2578
        %v2595 = vadd.f32 %v1991, %v303
        %v2596 = vadd.f32 %v1995, %v304
        %v2597 = vadd.f32 %v2001, %v305
        %v2598 = vadd.f32 %v2005, %v306
        %v2599 = vadd.f32 %v2011, %v307
        %v2600 = vadd.f32 %v2015, %v308
        %v2601 = vadd.f32 %v2021, %v309
        %v2602 = vadd.f32 %v2025, %v310
        %v2603 = vadd.f32 %v2031, %v311
        %v2604 = vadd.f32 %v2035, %v312
        %v2605 = vadd.f32 %v2041, %v313
        %v2606 = vadd.f32 %v2045, %v314
        %v2607 = vadd.f32 %v2051, %v315
        %v2608 = vadd.f32 %v2055, %v316
        %v2609 = vadd.f32 %v2061, %v317
        %v2610 = vadd.f32 %v2065, %v318
        %vm2611 = vcmp.gt.f32.partialorder %v2595, 0.0
        %vm2612 = vcmp.gt.f32.partialorder %v2596, 0.0
        %vm2613 = vcmp.gt.f32.partialorder %v2597, 0.0
        %vm2614 = vcmp.gt.f32.partialorder %v2598, 0.0
        %vm2615 = vcmp.gt.f32.partialorder %v2599, 0.0
        %vm2616 = vcmp.gt.f32.partialorder %v2600, 0.0
        %vm2617 = vcmp.gt.f32.partialorder %v2601, 0.0
        %vm2618 = vcmp.gt.f32.partialorder %v2602, 0.0
        %vm2619 = vcmp.gt.f32.partialorder %v2603, 0.0
        %vm2620 = vcmp.gt.f32.partialorder %v2604, 0.0
        %vm2621 = vcmp.gt.f32.partialorder %v2605, 0.0
        %vm2622 = vcmp.gt.f32.partialorder %v2606, 0.0
        %vm2623 = vcmp.gt.f32.partialorder %v2607, 0.0
        %vm2624 = vcmp.gt.f32.partialorder %v2608, 0.0
        %vm2625 = vcmp.gt.f32.partialorder %v2609, 0.0
        %vm2626 = vcmp.gt.f32.partialorder %v2610, 0.0
        %v2627 = vmul.f32 %v2595, 0.01
        %v2628 = vmul.f32 %v2596, 0.01
        %v2629 = vmul.f32 %v2597, 0.01
        %v2630 = vmul.f32 %v2598, 0.01
        %v2631 = vmul.f32 %v2599, 0.01
        %v2632 = vmul.f32 %v2600, 0.01
        %v2633 = vmul.f32 %v2601, 0.01
        %v2634 = vmul.f32 %v2602, 0.01
        %v2635 = vmul.f32 %v2603, 0.01
        %v2636 = vmul.f32 %v2604, 0.01
        %v2637 = vmul.f32 %v2605, 0.01
        %v2638 = vmul.f32 %v2606, 0.01
        %v2639 = vmul.f32 %v2607, 0.01
        %v2640 = vmul.f32 %v2608, 0.01
        %v2641 = vmul.f32 %v2609, 0.01
        %v2642 = vmul.f32 %v2610, 0.01
        %v2643 = vsel %vm2611, %v2595, %v2627
        %v2644 = vsel %vm2612, %v2596, %v2628
        %v2645 = vsel %vm2613, %v2597, %v2629
        %v2646 = vsel %vm2614, %v2598, %v2630
        %v2647 = vsel %vm2615, %v2599, %v2631
        %v2648 = vsel %vm2616, %v2600, %v2632
        %v2649 = vsel %vm2617, %v2601, %v2633
        %v2650 = vsel %vm2618, %v2602, %v2634
        %v2651 = vsel %vm2619, %v2603, %v2635
        %v2652 = vsel %vm2620, %v2604, %v2636
        %v2653 = vsel %vm2621, %v2605, %v2637
        %v2654 = vsel %vm2622, %v2606, %v2638
        %v2655 = vsel %vm2623, %v2607, %v2639
        %v2656 = vsel %vm2624, %v2608, %v2640
        %v2657 = vsel %vm2625, %v2609, %v2641
        %v2658 = vsel %vm2626, %v2610, %v2642
        %v2659 = vadd.f32 %v2071, %v303
        %v2660 = vadd.f32 %v2075, %v304
        %v2661 = vadd.f32 %v2081, %v305
        %v2662 = vadd.f32 %v2085, %v306
        %v2663 = vadd.f32 %v2091, %v307
        %v2664 = vadd.f32 %v2095, %v308
        %v2665 = vadd.f32 %v2101, %v309
        %v2666 = vadd.f32 %v2105, %v310
        %v2667 = vadd.f32 %v2111, %v311
        %v2668 = vadd.f32 %v2115, %v312
        %v2669 = vadd.f32 %v2121, %v313
        %v2670 = vadd.f32 %v2125, %v314
        %v2671 = vadd.f32 %v2131, %v315
        %v2672 = vadd.f32 %v2135, %v316
        %v2673 = vadd.f32 %v2141, %v317
        %v2674 = vadd.f32 %v2145, %v318
        %vm2675 = vcmp.gt.f32.partialorder %v2659, 0.0
        %vm2676 = vcmp.gt.f32.partialorder %v2660, 0.0
        %vm2677 = vcmp.gt.f32.partialorder %v2661, 0.0
        %vm2678 = vcmp.gt.f32.partialorder %v2662, 0.0
        %vm2679 = vcmp.gt.f32.partialorder %v2663, 0.0
        %vm2680 = vcmp.gt.f32.partialorder %v2664, 0.0
        %vm2681 = vcmp.gt.f32.partialorder %v2665, 0.0
        %vm2682 = vcmp.gt.f32.partialorder %v2666, 0.0
        %vm2683 = vcmp.gt.f32.partialorder %v2667, 0.0
        %vm2684 = vcmp.gt.f32.partialorder %v2668, 0.0
        %vm2685 = vcmp.gt.f32.partialorder %v2669, 0.0
        %vm2686 = vcmp.gt.f32.partialorder %v2670, 0.0
        %vm2687 = vcmp.gt.f32.partialorder %v2671, 0.0
        %vm2688 = vcmp.gt.f32.partialorder %v2672, 0.0
        %vm2689 = vcmp.gt.f32.partialorder %v2673, 0.0
        %vm2690 = vcmp.gt.f32.partialorder %v2674, 0.0
        %v2691 = vmul.f32 %v2659, 0.01
        %v2692 = vmul.f32 %v2660, 0.01
        %v2693 = vmul.f32 %v2661, 0.01
        %v2694 = vmul.f32 %v2662, 0.01
        %v2695 = vmul.f32 %v2663, 0.01
        %v2696 = vmul.f32 %v2664, 0.01
        %v2697 = vmul.f32 %v2665, 0.01
        %v2698 = vmul.f32 %v2666, 0.01
        %v2699 = vmul.f32 %v2667, 0.01
        %v2700 = vmul.f32 %v2668, 0.01
        %v2701 = vmul.f32 %v2669, 0.01
        %v2702 = vmul.f32 %v2670, 0.01
        %v2703 = vmul.f32 %v2671, 0.01
        %v2704 = vmul.f32 %v2672, 0.01
        %v2705 = vmul.f32 %v2673, 0.01
        %v2706 = vmul.f32 %v2674, 0.01
        %v2707 = vsel %vm2675, %v2659, %v2691
        %v2708 = vsel %vm2676, %v2660, %v2692
        %v2709 = vsel %vm2677, %v2661, %v2693
        %v2710 = vsel %vm2678, %v2662, %v2694
        %v2711 = vsel %vm2679, %v2663, %v2695
        %v2712 = vsel %vm2680, %v2664, %v2696
        %v2713 = vsel %vm2681, %v2665, %v2697
        %v2714 = vsel %vm2682, %v2666, %v2698
        %v2715 = vsel %vm2683, %v2667, %v2699
        %v2716 = vsel %vm2684, %v2668, %v2700
        %v2717 = vsel %vm2685, %v2669, %v2701
        %v2718 = vsel %vm2686, %v2670, %v2702
        %v2719 = vsel %vm2687, %v2671, %v2703
        %v2720 = vsel %vm2688, %v2672, %v2704
        %v2721 = vsel %vm2689, %v2673, %v2705
        %v2722 = vsel %vm2690, %v2674, %v2706
        %v2723 = vadd.f32 %v2151, %v303
        %v2724 = vadd.f32 %v2155, %v304
        %v2725 = vadd.f32 %v2161, %v305
        %v2726 = vadd.f32 %v2165, %v306
        %v2727 = vadd.f32 %v2171, %v307
        %v2728 = vadd.f32 %v2175, %v308
        %v2729 = vadd.f32 %v2181, %v309
        %v2730 = vadd.f32 %v2185, %v310
        %v2731 = vadd.f32 %v2191, %v311
        %v2732 = vadd.f32 %v2195, %v312
        %v2733 = vadd.f32 %v2201, %v313
        %v2734 = vadd.f32 %v2205, %v314
        %v2735 = vadd.f32 %v2211, %v315
        %v2736 = vadd.f32 %v2215, %v316
        %v2737 = vadd.f32 %v2221, %v317
        %v2738 = vadd.f32 %v2225, %v318
        %vm2739 = vcmp.gt.f32.partialorder %v2723, 0.0
        %vm2740 = vcmp.gt.f32.partialorder %v2724, 0.0
        %vm2741 = vcmp.gt.f32.partialorder %v2725, 0.0
        %vm2742 = vcmp.gt.f32.partialorder %v2726, 0.0
        %vm2743 = vcmp.gt.f32.partialorder %v2727, 0.0
        %vm2744 = vcmp.gt.f32.partialorder %v2728, 0.0
        %vm2745 = vcmp.gt.f32.partialorder %v2729, 0.0
        %vm2746 = vcmp.gt.f32.partialorder %v2730, 0.0
        %vm2747 = vcmp.gt.f32.partialorder %v2731, 0.0
        %vm2748 = vcmp.gt.f32.partialorder %v2732, 0.0
        %vm2749 = vcmp.gt.f32.partialorder %v2733, 0.0
        %vm2750 = vcmp.gt.f32.partialorder %v2734, 0.0
        %vm2751 = vcmp.gt.f32.partialorder %v2735, 0.0
        %vm2752 = vcmp.gt.f32.partialorder %v2736, 0.0
        %vm2753 = vcmp.gt.f32.partialorder %v2737, 0.0
        %vm2754 = vcmp.gt.f32.partialorder %v2738, 0.0
        %v2755 = vmul.f32 %v2723, 0.01
        %v2756 = vmul.f32 %v2724, 0.01
        %v2757 = vmul.f32 %v2725, 0.01
        %v2758 = vmul.f32 %v2726, 0.01
        %v2759 = vmul.f32 %v2727, 0.01
        %v2760 = vmul.f32 %v2728, 0.01
        %v2761 = vmul.f32 %v2729, 0.01
        %v2762 = vmul.f32 %v2730, 0.01
        %v2763 = vmul.f32 %v2731, 0.01
        %v2764 = vmul.f32 %v2732, 0.01
        %v2765 = vmul.f32 %v2733, 0.01
        %v2766 = vmul.f32 %v2734, 0.01
        %v2767 = vmul.f32 %v2735, 0.01
        %v2768 = vmul.f32 %v2736, 0.01
        %v2769 = vmul.f32 %v2737, 0.01
        %v2770 = vmul.f32 %v2738, 0.01
        %v2771 = vsel %vm2739, %v2723, %v2755
        %v2772 = vsel %vm2740, %v2724, %v2756
        %v2773 = vsel %vm2741, %v2725, %v2757
        %v2774 = vsel %vm2742, %v2726, %v2758
        %v2775 = vsel %vm2743, %v2727, %v2759
        %v2776 = vsel %vm2744, %v2728, %v2760
        %v2777 = vsel %vm2745, %v2729, %v2761
        %v2778 = vsel %vm2746, %v2730, %v2762
        %v2779 = vsel %vm2747, %v2731, %v2763
        %v2780 = vsel %vm2748, %v2732, %v2764
        %v2781 = vsel %vm2749, %v2733, %v2765
        %v2782 = vsel %vm2750, %v2734, %v2766
        %v2783 = vsel %vm2751, %v2735, %v2767
        %v2784 = vsel %vm2752, %v2736, %v2768
        %v2785 = vsel %vm2753, %v2737, %v2769
        %v2786 = vsel %vm2754, %v2738, %v2770
        %v2787 = vadd.f32 %v2231, %v303
        %v2788 = vadd.f32 %v2235, %v304
        %v2789 = vadd.f32 %v2241, %v305
        %v2790 = vadd.f32 %v2245, %v306
        %v2791 = vadd.f32 %v2251, %v307
        %v2792 = vadd.f32 %v2255, %v308
        %v2793 = vadd.f32 %v2261, %v309
        %v2794 = vadd.f32 %v2265, %v310
        %v2795 = vadd.f32 %v2271, %v311
        %v2796 = vadd.f32 %v2275, %v312
        %v2797 = vadd.f32 %v2281, %v313
        %v2798 = vadd.f32 %v2285, %v314
        %v2799 = vadd.f32 %v2291, %v315
        %v2800 = vadd.f32 %v2295, %v316
        %v2801 = vadd.f32 %v2301, %v317
        %v2802 = vadd.f32 %v2305, %v318
        %vm2803 = vcmp.gt.f32.partialorder %v2787, 0.0
        %vm2804 = vcmp.gt.f32.partialorder %v2788, 0.0
        %vm2805 = vcmp.gt.f32.partialorder %v2789, 0.0
        %vm2806 = vcmp.gt.f32.partialorder %v2790, 0.0
        %vm2807 = vcmp.gt.f32.partialorder %v2791, 0.0
        %vm2808 = vcmp.gt.f32.partialorder %v2792, 0.0
        %vm2809 = vcmp.gt.f32.partialorder %v2793, 0.0
        %vm2810 = vcmp.gt.f32.partialorder %v2794, 0.0
        %vm2811 = vcmp.gt.f32.partialorder %v2795, 0.0
        %vm2812 = vcmp.gt.f32.partialorder %v2796, 0.0
        %vm2813 = vcmp.gt.f32.partialorder %v2797, 0.0
        %vm2814 = vcmp.gt.f32.partialorder %v2798, 0.0
        %vm2815 = vcmp.gt.f32.partialorder %v2799, 0.0
        %vm2816 = vcmp.gt.f32.partialorder %v2800, 0.0
        %vm2817 = vcmp.gt.f32.partialorder %v2801, 0.0
        %vm2818 = vcmp.gt.f32.partialorder %v2802, 0.0
        %v2819 = vmul.f32 %v2787, 0.01
        %v2820 = vmul.f32 %v2788, 0.01
        %v2821 = vmul.f32 %v2789, 0.01
        %v2822 = vmul.f32 %v2790, 0.01
        %v2823 = vmul.f32 %v2791, 0.01
        %v2824 = vmul.f32 %v2792, 0.01
        %v2825 = vmul.f32 %v2793, 0.01
        %v2826 = vmul.f32 %v2794, 0.01
        %v2827 = vmul.f32 %v2795, 0.01
        %v2828 = vmul.f32 %v2796, 0.01
        %v2829 = vmul.f32 %v2797, 0.01
        %v2830 = vmul.f32 %v2798, 0.01
        %v2831 = vmul.f32 %v2799, 0.01
        %v2832 = vmul.f32 %v2800, 0.01
        %v2833 = vmul.f32 %v2801, 0.01
        %v2834 = vmul.f32 %v2802, 0.01
        %v2835 = vsel %vm2803, %v2787, %v2819
        %v2836 = vsel %vm2804, %v2788, %v2820
        %v2837 = vsel %vm2805, %v2789, %v2821
        %v2838 = vsel %vm2806, %v2790, %v2822
        %v2839 = vsel %vm2807, %v2791, %v2823
        %v2840 = vsel %vm2808, %v2792, %v2824
        %v2841 = vsel %vm2809, %v2793, %v2825
        %v2842 = vsel %vm2810, %v2794, %v2826
        %v2843 = vsel %vm2811, %v2795, %v2827
        %v2844 = vsel %vm2812, %v2796, %v2828
        %v2845 = vsel %vm2813, %v2797, %v2829
        %v2846 = vsel %vm2814, %v2798, %v2830
        %v2847 = vsel %vm2815, %v2799, %v2831
        %v2848 = vsel %vm2816, %v2800, %v2832
        %v2849 = vsel %vm2817, %v2801, %v2833
        %v2850 = vsel %vm2818, %v2802, %v2834
        %v2851 = vadd.f32 %v2311, %v303
        %v2852 = vadd.f32 %v2315, %v304
        %v2853 = vadd.f32 %v2321, %v305
        %v2854 = vadd.f32 %v2325, %v306
        %v2855 = vadd.f32 %v2331, %v307
        %v2856 = vadd.f32 %v2335, %v308
        %v2857 = vadd.f32 %v2341, %v309
        %v2858 = vadd.f32 %v2345, %v310
        %v2859 = vadd.f32 %v2351, %v311
        %v2860 = vadd.f32 %v2355, %v312
        %v2861 = vadd.f32 %v2361, %v313
        %v2862 = vadd.f32 %v2365, %v314
        %v2863 = vadd.f32 %v2371, %v315
        %v2864 = vadd.f32 %v2375, %v316
        %v2865 = vadd.f32 %v2381, %v317
        %v2866 = vadd.f32 %v2385, %v318
        %vm2867 = vcmp.gt.f32.partialorder %v2851, 0.0
        %vm2868 = vcmp.gt.f32.partialorder %v2852, 0.0
        %vm2869 = vcmp.gt.f32.partialorder %v2853, 0.0
        %vm2870 = vcmp.gt.f32.partialorder %v2854, 0.0
        %vm2871 = vcmp.gt.f32.partialorder %v2855, 0.0
        %vm2872 = vcmp.gt.f32.partialorder %v2856, 0.0
        %vm2873 = vcmp.gt.f32.partialorder %v2857, 0.0
        %vm2874 = vcmp.gt.f32.partialorder %v2858, 0.0
        %vm2875 = vcmp.gt.f32.partialorder %v2859, 0.0
        %vm2876 = vcmp.gt.f32.partialorder %v2860, 0.0
        %vm2877 = vcmp.gt.f32.partialorder %v2861, 0.0
        %vm2878 = vcmp.gt.f32.partialorder %v2862, 0.0
        %vm2879 = vcmp.gt.f32.partialorder %v2863, 0.0
        %vm2880 = vcmp.gt.f32.partialorder %v2864, 0.0
        %vm2881 = vcmp.gt.f32.partialorder %v2865, 0.0
        %vm2882 = vcmp.gt.f32.partialorder %v2866, 0.0
        %v2883 = vmul.f32 %v2851, 0.01
        %v2884 = vmul.f32 %v2852, 0.01
        %v2885 = vmul.f32 %v2853, 0.01
        %v2886 = vmul.f32 %v2854, 0.01
        %v2887 = vmul.f32 %v2855, 0.01
        %v2888 = vmul.f32 %v2856, 0.01
        %v2889 = vmul.f32 %v2857, 0.01
        %v2890 = vmul.f32 %v2858, 0.01
        %v2891 = vmul.f32 %v2859, 0.01
        %v2892 = vmul.f32 %v2860, 0.01
        %v2893 = vmul.f32 %v2861, 0.01
        %v2894 = vmul.f32 %v2862, 0.01
        %v2895 = vmul.f32 %v2863, 0.01
        %v2896 = vmul.f32 %v2864, 0.01
        %v2897 = vmul.f32 %v2865, 0.01
        %v2898 = vmul.f32 %v2866, 0.01
        %v2899 = vsel %vm2867, %v2851, %v2883
        %v2900 = vsel %vm2868, %v2852, %v2884
        %v2901 = vsel %vm2869, %v2853, %v2885
        %v2902 = vsel %vm2870, %v2854, %v2886
        %v2903 = vsel %vm2871, %v2855, %v2887
        %v2904 = vsel %vm2872, %v2856, %v2888
        %v2905 = vsel %vm2873, %v2857, %v2889
        %v2906 = vsel %vm2874, %v2858, %v2890
        %v2907 = vsel %vm2875, %v2859, %v2891
        %v2908 = vsel %vm2876, %v2860, %v2892
        %v2909 = vsel %vm2877, %v2861, %v2893
        %v2910 = vsel %vm2878, %v2862, %v2894
        %v2911 = vsel %vm2879, %v2863, %v2895
        %v2912 = vsel %vm2880, %v2864, %v2896
        %v2913 = vsel %vm2881, %v2865, %v2897
        %v2914 = vsel %vm2882, %v2866, %v2898
        %v2915 = vadd.f32 %v2391, %v303
        %v2916 = vadd.f32 %v2395, %v304
        %v2917 = vadd.f32 %v2401, %v305
        %v2918 = vadd.f32 %v2405, %v306
        %v2919 = vadd.f32 %v2411, %v307
        %v2920 = vadd.f32 %v2415, %v308
        %v2921 = vadd.f32 %v2421, %v309
        %v2922 = vadd.f32 %v2425, %v310
        %v2923 = vadd.f32 %v2431, %v311
        %v2924 = vadd.f32 %v2435, %v312
        %v2925 = vadd.f32 %v2441, %v313
        %v2926 = vadd.f32 %v2445, %v314
        %v2927 = vadd.f32 %v2451, %v315
        %v2928 = vadd.f32 %v2455, %v316
        %v2929 = vadd.f32 %v2461, %v317
        %v2930 = vadd.f32 %v2465, %v318
        %vm2931 = vcmp.gt.f32.partialorder %v2915, 0.0
        %vm2932 = vcmp.gt.f32.partialorder %v2916, 0.0
        %vm2933 = vcmp.gt.f32.partialorder %v2917, 0.0
        %vm2934 = vcmp.gt.f32.partialorder %v2918, 0.0
        %vm2935 = vcmp.gt.f32.partialorder %v2919, 0.0
        %vm2936 = vcmp.gt.f32.partialorder %v2920, 0.0
        %vm2937 = vcmp.gt.f32.partialorder %v2921, 0.0
        %vm2938 = vcmp.gt.f32.partialorder %v2922, 0.0
        %vm2939 = vcmp.gt.f32.partialorder %v2923, 0.0
        %vm2940 = vcmp.gt.f32.partialorder %v2924, 0.0
        %vm2941 = vcmp.gt.f32.partialorder %v2925, 0.0
        %vm2942 = vcmp.gt.f32.partialorder %v2926, 0.0
        %vm2943 = vcmp.gt.f32.partialorder %v2927, 0.0
        %vm2944 = vcmp.gt.f32.partialorder %v2928, 0.0
        %vm2945 = vcmp.gt.f32.partialorder %v2929, 0.0
        %vm2946 = vcmp.gt.f32.partialorder %v2930, 0.0
        %v2947 = vmul.f32 %v2915, 0.01
        %v2948 = vmul.f32 %v2916, 0.01
        %v2949 = vmul.f32 %v2917, 0.01
        %v2950 = vmul.f32 %v2918, 0.01
        %v2951 = vmul.f32 %v2919, 0.01
        %v2952 = vmul.f32 %v2920, 0.01
        %v2953 = vmul.f32 %v2921, 0.01
        %v2954 = vmul.f32 %v2922, 0.01
        %v2955 = vmul.f32 %v2923, 0.01
        %v2956 = vmul.f32 %v2924, 0.01
        %v2957 = vmul.f32 %v2925, 0.01
        %v2958 = vmul.f32 %v2926, 0.01
        %v2959 = vmul.f32 %v2927, 0.01
        %v2960 = vmul.f32 %v2928, 0.01
        %v2961 = vmul.f32 %v2929, 0.01
        %v2962 = vmul.f32 %v2930, 0.01
        %v2963 = vsel %vm2931, %v2915, %v2947
        %v2964 = vsel %vm2932, %v2916, %v2948
        %v2965 = vsel %vm2933, %v2917, %v2949
        %v2966 = vsel %vm2934, %v2918, %v2950
        %v2967 = vsel %vm2935, %v2919, %v2951
        %v2968 = vsel %vm2936, %v2920, %v2952
        %v2969 = vsel %vm2937, %v2921, %v2953
        %v2970 = vsel %vm2938, %v2922, %v2954
        %v2971 = vsel %vm2939, %v2923, %v2955
        %v2972 = vsel %vm2940, %v2924, %v2956
        %v2973 = vsel %vm2941, %v2925, %v2957
        %v2974 = vsel %vm2942, %v2926, %v2958
        %v2975 = vsel %vm2943, %v2927, %v2959
        %v2976 = vsel %vm2944, %v2928, %v2960
        %v2977 = vsel %vm2945, %v2929, %v2961
        %v2978 = vsel %vm2946, %v2930, %v2962
        %v2979 = vmax.f32 %v2515, %v2579
        %v2980 = vmax.f32 %v2516, %v2580
        %v2981 = vmax.f32 %v2517, %v2581
        %v2982 = vmax.f32 %v2518, %v2582
        %v2983 = vmax.f32 %v2519, %v2583
        %v2984 = vmax.f32 %v2520, %v2584
        %v2985 = vmax.f32 %v2521, %v2585
        %v2986 = vmax.f32 %v2522, %v2586
        %v2987 = vmax.f32 %v2523, %v2587
        %v2988 = vmax.f32 %v2524, %v2588
        %v2989 = vmax.f32 %v2525, %v2589
        %v2990 = vmax.f32 %v2526, %v2590
        %v2991 = vmax.f32 %v2527, %v2591
        %v2992 = vmax.f32 %v2528, %v2592
        %v2993 = vmax.f32 %v2529, %v2593
        %v2994 = vmax.f32 %v2530, %v2594
        %v2995 = vmax.f32 %v2979, %v2643
        %v2996 = vmax.f32 %v2980, %v2644
        %v2997 = vmax.f32 %v2981, %v2645
        %v2998 = vmax.f32 %v2982, %v2646
        %v2999 = vmax.f32 %v2983, %v2647
        %v3000 = vmax.f32 %v2984, %v2648
        %v3001 = vmax.f32 %v2985, %v2649
        %v3002 = vmax.f32 %v2986, %v2650
        %v3003 = vmax.f32 %v2987, %v2651
        %v3004 = vmax.f32 %v2988, %v2652
        %v3005 = vmax.f32 %v2989, %v2653
        %v3006 = vmax.f32 %v2990, %v2654
        %v3007 = vmax.f32 %v2991, %v2655
        %v3008 = vmax.f32 %v2992, %v2656
        %v3009 = vmax.f32 %v2993, %v2657
        %v3010 = vmax.f32 %v2994, %v2658
        %v3011 = vmax.f32 %v2995, %v2707
        %v3012 = vmax.f32 %v2996, %v2708
        %v3013 = vmax.f32 %v2997, %v2709
        %v3014 = vmax.f32 %v2998, %v2710
        %v3015 = vmax.f32 %v2999, %v2711
        %v3016 = vmax.f32 %v3000, %v2712
        %v3017 = vmax.f32 %v3001, %v2713
        %v3018 = vmax.f32 %v3002, %v2714
        %v3019 = vmax.f32 %v3003, %v2715
        %v3020 = vmax.f32 %v3004, %v2716
        %v3021 = vmax.f32 %v3005, %v2717
        %v3022 = vmax.f32 %v3006, %v2718
        %v3023 = vmax.f32 %v3007, %v2719
        %v3024 = vmax.f32 %v3008, %v2720
        %v3025 = vmax.f32 %v3009, %v2721
        %v3026 = vmax.f32 %v3010, %v2722
        %v3027 = vmax.f32 %v3011, %v2771
        %v3028 = vmax.f32 %v3012, %v2772
        %v3029 = vmax.f32 %v3013, %v2773
        %v3030 = vmax.f32 %v3014, %v2774
        %v3031 = vmax.f32 %v3015, %v2775
        %v3032 = vmax.f32 %v3016, %v2776
        %v3033 = vmax.f32 %v3017, %v2777
        %v3034 = vmax.f32 %v3018, %v2778
        %v3035 = vmax.f32 %v3019, %v2779
        %v3036 = vmax.f32 %v3020, %v2780
        %v3037 = vmax.f32 %v3021, %v2781
        %v3038 = vmax.f32 %v3022, %v2782
        %v3039 = vmax.f32 %v3023, %v2783
        %v3040 = vmax.f32 %v3024, %v2784
        %v3041 = vmax.f32 %v3025, %v2785
        %v3042 = vmax.f32 %v3026, %v2786
        %v3043 = vmax.f32 %v3027, %v2835
        %v3044 = vmax.f32 %v3028, %v2836
        %v3045 = vmax.f32 %v3029, %v2837
        %v3046 = vmax.f32 %v3030, %v2838
        %v3047 = vmax.f32 %v3031, %v2839
        %v3048 = vmax.f32 %v3032, %v2840
        %v3049 = vmax.f32 %v3033, %v2841
        %v3050 = vmax.f32 %v3034, %v2842
        %v3051 = vmax.f32 %v3035, %v2843
        %v3052 = vmax.f32 %v3036, %v2844
        %v3053 = vmax.f32 %v3037, %v2845
        %v3054 = vmax.f32 %v3038, %v2846
        %v3055 = vmax.f32 %v3039, %v2847
        %v3056 = vmax.f32 %v3040, %v2848
        %v3057 = vmax.f32 %v3041, %v2849
        %v3058 = vmax.f32 %v3042, %v2850
        %v3059 = vmax.f32 %v3043, %v2899
        %v3060 = vmax.f32 %v3044, %v2900
        %v3061 = vmax.f32 %v3045, %v2901
        %v3062 = vmax.f32 %v3046, %v2902
        %v3063 = vmax.f32 %v3047, %v2903
        %v3064 = vmax.f32 %v3048, %v2904
        %v3065 = vmax.f32 %v3049, %v2905
        %v3066 = vmax.f32 %v3050, %v2906
        %v3067 = vmax.f32 %v3051, %v2907
        %v3068 = vmax.f32 %v3052, %v2908
        %v3069 = vmax.f32 %v3053, %v2909
        %v3070 = vmax.f32 %v3054, %v2910
        %v3071 = vmax.f32 %v3055, %v2911
        %v3072 = vmax.f32 %v3056, %v2912
        %v3073 = vmax.f32 %v3057, %v2913
        %v3074 = vmax.f32 %v3058, %v2914
        %v3075 = vmax.f32 %v3059, %v2963
        %v3076 = vmax.f32 %v3060, %v2964
        %v3077 = vmax.f32 %v3061, %v2965
        %v3078 = vmax.f32 %v3062, %v2966
        %v3079 = vmax.f32 %v3063, %v2967
        %v3080 = vmax.f32 %v3064, %v2968
        %v3081 = vmax.f32 %v3065, %v2969
        %v3082 = vmax.f32 %v3066, %v2970
        %v3083 = vmax.f32 %v3067, %v2971
        %v3084 = vmax.f32 %v3068, %v2972
        %v3085 = vmax.f32 %v3069, %v2973
        %v3086 = vmax.f32 %v3070, %v2974
        %v3087 = vmax.f32 %v3071, %v2975
        %v3088 = vmax.f32 %v3072, %v2976
        %v3089 = vmax.f32 %v3073, %v2977
        %v3090 = vmax.f32 %v3074, %v2978
        %v3091 = vsub.f32 %v2515, %v3075
        %v3092 = vsub.f32 %v2516, %v3076
        %v3093 = vsub.f32 %v2517, %v3077
        %v3094 = vsub.f32 %v2518, %v3078
        %v3095 = vsub.f32 %v2519, %v3079
        %v3096 = vsub.f32 %v2520, %v3080
        %v3097 = vsub.f32 %v2521, %v3081
        %v3098 = vsub.f32 %v2522, %v3082
        %v3099 = vsub.f32 %v2523, %v3083
        %v3100 = vsub.f32 %v2524, %v3084
        %v3101 = vsub.f32 %v2525, %v3085
        %v3102 = vsub.f32 %v2526, %v3086
        %v3103 = vsub.f32 %v2527, %v3087
        %v3104 = vsub.f32 %v2528, %v3088
        %v3105 = vsub.f32 %v2529, %v3089
        %v3106 = vsub.f32 %v2530, %v3090
        %v3107 = vmul.f32 %v3091, 1.442695
        %v3108 = vpow.pop %v3107
        %v3109 = vmul.f32 %v3092, 1.442695
        %v3110 = vpow.pop %v3109
        %v3111 = vmul.f32 %v3093, 1.442695
        %v3112 = vpow.pop %v3111
        %v3113 = vmul.f32 %v3094, 1.442695
        %v3114 = vpow.pop %v3113
        %v3115 = vmul.f32 %v3095, 1.442695
        %v3116 = vpow.pop %v3115
        %v3117 = vmul.f32 %v3096, 1.442695
        %v3118 = vpow.pop %v3117
        %v3119 = vmul.f32 %v3097, 1.442695
        %v3120 = vpow.pop %v3119
        %v3121 = vmul.f32 %v3098, 1.442695
        %v3122 = vpow.pop %v3121
        %v3123 = vmul.f32 %v3099, 1.442695
        %v3124 = vpow.pop %v3123
        %v3125 = vmul.f32 %v3100, 1.442695
        %v3126 = vpow.pop %v3125
        %v3127 = vmul.f32 %v3101, 1.442695
        %v3128 = vpow.pop %v3127
        %v3129 = vmul.f32 %v3102, 1.442695
        %v3130 = vpow.pop %v3129
        %v3131 = vmul.f32 %v3103, 1.442695
        %v3132 = vpow.pop %v3131
        %v3133 = vmul.f32 %v3104, 1.442695
        %v3134 = vpow.pop %v3133
        %v3135 = vmul.f32 %v3105, 1.442695
        %v3136 = vpow.pop %v3135
        %v3137 = vmul.f32 %v3106, 1.442695
        %v3138 = vpow.pop %v3137
        %v3139 = vsub.f32 %v2579, %v3075
        %v3140 = vsub.f32 %v2580, %v3076
        %v3141 = vsub.f32 %v2581, %v3077
        %v3142 = vsub.f32 %v2582, %v3078
        %v3143 = vsub.f32 %v2583, %v3079
        %v3144 = vsub.f32 %v2584, %v3080
        %v3145 = vsub.f32 %v2585, %v3081
        %v3146 = vsub.f32 %v2586, %v3082
        %v3147 = vsub.f32 %v2587, %v3083
        %v3148 = vsub.f32 %v2588, %v3084
        %v3149 = vsub.f32 %v2589, %v3085
        %v3150 = vsub.f32 %v2590, %v3086
        %v3151 = vsub.f32 %v2591, %v3087
        %v3152 = vsub.f32 %v2592, %v3088
        %v3153 = vsub.f32 %v2593, %v3089
        %v3154 = vsub.f32 %v2594, %v3090
        %v3155 = vmul.f32 %v3139, 1.442695
        %v3156 = vpow.pop %v3155
        %v3157 = vmul.f32 %v3140, 1.442695
        %v3158 = vpow.pop %v3157
        %v3159 = vmul.f32 %v3141, 1.442695
        %v3160 = vpow.pop %v3159
        %v3161 = vmul.f32 %v3142, 1.442695
        %v3162 = vpow.pop %v3161
        %v3163 = vmul.f32 %v3143, 1.442695
        %v3164 = vpow.pop %v3163
        %v3165 = vmul.f32 %v3144, 1.442695
        %v3166 = vpow.pop %v3165
        %v3167 = vmul.f32 %v3145, 1.442695
        %v3168 = vpow.pop %v3167
        %v3169 = vmul.f32 %v3146, 1.442695
        %v3170 = vpow.pop %v3169
        %v3171 = vmul.f32 %v3147, 1.442695
        %v3172 = vpow.pop %v3171
        %v3173 = vmul.f32 %v3148, 1.442695
        %v3174 = vpow.pop %v3173
        %v3175 = vmul.f32 %v3149, 1.442695
        %v3176 = vpow.pop %v3175
        %v3177 = vmul.f32 %v3150, 1.442695
        %v3178 = vpow.pop %v3177
        %v3179 = vmul.f32 %v3151, 1.442695
        %v3180 = vpow.pop %v3179
        %v3181 = vmul.f32 %v3152, 1.442695
        %v3182 = vpow.pop %v3181
        %v3183 = vmul.f32 %v3153, 1.442695
        %v3184 = vpow.pop %v3183
        %v3185 = vmul.f32 %v3154, 1.442695
        %v3186 = vpow.pop %v3185
        %v3187 = vsub.f32 %v2643, %v3075
        %v3188 = vsub.f32 %v2644, %v3076
        %v3189 = vsub.f32 %v2645, %v3077
        %v3190 = vsub.f32 %v2646, %v3078
        %v3191 = vsub.f32 %v2647, %v3079
        %v3192 = vsub.f32 %v2648, %v3080
        %v3193 = vsub.f32 %v2649, %v3081
        %v3194 = vsub.f32 %v2650, %v3082
        %v3195 = vsub.f32 %v2651, %v3083
        %v3196 = vsub.f32 %v2652, %v3084
        %v3197 = vsub.f32 %v2653, %v3085
        %v3198 = vsub.f32 %v2654, %v3086
        %v3199 = vsub.f32 %v2655, %v3087
        %v3200 = vsub.f32 %v2656, %v3088
        %v3201 = vsub.f32 %v2657, %v3089
        %v3202 = vsub.f32 %v2658, %v3090
        %v3203 = vmul.f32 %v3187, 1.442695
        %v3204 = vpow.pop %v3203
        %v3205 = vmul.f32 %v3188, 1.442695
        %v3206 = vpow.pop %v3205
        %v3207 = vmul.f32 %v3189, 1.442695
        %v3208 = vpow.pop %v3207
        %v3209 = vmul.f32 %v3190, 1.442695
        %v3210 = vpow.pop %v3209
        %v3211 = vmul.f32 %v3191, 1.442695
        %v3212 = vpow.pop %v3211
        %v3213 = vmul.f32 %v3192, 1.442695
        %v3214 = vpow.pop %v3213
        %v3215 = vmul.f32 %v3193, 1.442695
        %v3216 = vpow.pop %v3215
        %v3217 = vmul.f32 %v3194, 1.442695
        %v3218 = vpow.pop %v3217
        %v3219 = vmul.f32 %v3195, 1.442695
        %v3220 = vpow.pop %v3219
        %v3221 = vmul.f32 %v3196, 1.442695
        %v3222 = vpow.pop %v3221
        %v3223 = vmul.f32 %v3197, 1.442695
        %v3224 = vpow.pop %v3223
        %v3225 = vmul.f32 %v3198, 1.442695
        %v3226 = vpow.pop %v3225
        %v3227 = vmul.f32 %v3199, 1.442695
        %v3228 = vpow.pop %v3227
        %v3229 = vmul.f32 %v3200, 1.442695
        %v3230 = vpow.pop %v3229
        %v3231 = vmul.f32 %v3201, 1.442695
        %v3232 = vpow.pop %v3231
        %v3233 = vmul.f32 %v3202, 1.442695
        %v3234 = vpow.pop %v3233
        %v3235 = vsub.f32 %v2707, %v3075
        %v3236 = vsub.f32 %v2708, %v3076
        %v3237 = vsub.f32 %v2709, %v3077
        %v3238 = vsub.f32 %v2710, %v3078
        %v3239 = vsub.f32 %v2711, %v3079
        %v3240 = vsub.f32 %v2712, %v3080
        %v3241 = vsub.f32 %v2713, %v3081
        %v3242 = vsub.f32 %v2714, %v3082
        %v3243 = vsub.f32 %v2715, %v3083
        %v3244 = vsub.f32 %v2716, %v3084
        %v3245 = vsub.f32 %v2717, %v3085
        %v3246 = vsub.f32 %v2718, %v3086
        %v3247 = vsub.f32 %v2719, %v3087
        %v3248 = vsub.f32 %v2720, %v3088
        %v3249 = vsub.f32 %v2721, %v3089
        %v3250 = vsub.f32 %v2722, %v3090
        %v3251 = vmul.f32 %v3235, 1.442695
        %v3252 = vpow.pop %v3251
        %v3253 = vmul.f32 %v3236, 1.442695
        %v3254 = vpow.pop %v3253
        %v3255 = vmul.f32 %v3237, 1.442695
        %v3256 = vpow.pop %v3255
        %v3257 = vmul.f32 %v3238, 1.442695
        %v3258 = vpow.pop %v3257
        %v3259 = vmul.f32 %v3239, 1.442695
        %v3260 = vpow.pop %v3259
        %v3261 = vmul.f32 %v3240, 1.442695
        %v3262 = vpow.pop %v3261
        %v3263 = vmul.f32 %v3241, 1.442695
        %v3264 = vpow.pop %v3263
        %v3265 = vmul.f32 %v3242, 1.442695
        %v3266 = vpow.pop %v3265
        %v3267 = vmul.f32 %v3243, 1.442695
        %v3268 = vpow.pop %v3267
        %v3269 = vmul.f32 %v3244, 1.442695
        %v3270 = vpow.pop %v3269
        %v3271 = vmul.f32 %v3245, 1.442695
        %v3272 = vpow.pop %v3271
        %v3273 = vmul.f32 %v3246, 1.442695
        %v3274 = vpow.pop %v3273
        %v3275 = vmul.f32 %v3247, 1.442695
        %v3276 = vpow.pop %v3275
        %v3277 = vmul.f32 %v3248, 1.442695
        %v3278 = vpow.pop %v3277
        %v3279 = vmul.f32 %v3249, 1.442695
        %v3280 = vpow.pop %v3279
        %v3281 = vmul.f32 %v3250, 1.442695
        %v3282 = vpow.pop %v3281
        %v3283 = vsub.f32 %v2771, %v3075
        %v3284 = vsub.f32 %v2772, %v3076
        %v3285 = vsub.f32 %v2773, %v3077
        %v3286 = vsub.f32 %v2774, %v3078
        %v3287 = vsub.f32 %v2775, %v3079
        %v3288 = vsub.f32 %v2776, %v3080
        %v3289 = vsub.f32 %v2777, %v3081
        %v3290 = vsub.f32 %v2778, %v3082
        %v3291 = vsub.f32 %v2779, %v3083
        %v3292 = vsub.f32 %v2780, %v3084
        %v3293 = vsub.f32 %v2781, %v3085
        %v3294 = vsub.f32 %v2782, %v3086
        %v3295 = vsub.f32 %v2783, %v3087
        %v3296 = vsub.f32 %v2784, %v3088
        %v3297 = vsub.f32 %v2785, %v3089
        %v3298 = vsub.f32 %v2786, %v3090
        %v3299 = vmul.f32 %v3283, 1.442695
        %v3300 = vpow.pop %v3299
        %v3301 = vmul.f32 %v3284, 1.442695
        %v3302 = vpow.pop %v3301
        %v3303 = vmul.f32 %v3285, 1.442695
        %v3304 = vpow.pop %v3303
        %v3305 = vmul.f32 %v3286, 1.442695
        %v3306 = vpow.pop %v3305
        %v3307 = vmul.f32 %v3287, 1.442695
        %v3308 = vpow.pop %v3307
        %v3309 = vmul.f32 %v3288, 1.442695
        %v3310 = vpow.pop %v3309
        %v3311 = vmul.f32 %v3289, 1.442695
        %v3312 = vpow.pop %v3311
        %v3313 = vmul.f32 %v3290, 1.442695
        %v3314 = vpow.pop %v3313
        %v3315 = vmul.f32 %v3291, 1.442695
        %v3316 = vpow.pop %v3315
        %v3317 = vmul.f32 %v3292, 1.442695
        %v3318 = vpow.pop %v3317
        %v3319 = vmul.f32 %v3293, 1.442695
        %v3320 = vpow.pop %v3319
        %v3321 = vmul.f32 %v3294, 1.442695
        %v3322 = vpow.pop %v3321
        %v3323 = vmul.f32 %v3295, 1.442695
        %v3324 = vpow.pop %v3323
        %v3325 = vmul.f32 %v3296, 1.442695
        %v3326 = vpow.pop %v3325
        %v3327 = vmul.f32 %v3297, 1.442695
        %v3328 = vpow.pop %v3327
        %v3329 = vmul.f32 %v3298, 1.442695
        %v3330 = vpow.pop %v3329
        %v3331 = vsub.f32 %v2835, %v3075
        %v3332 = vsub.f32 %v2836, %v3076
        %v3333 = vsub.f32 %v2837, %v3077
        %v3334 = vsub.f32 %v2838, %v3078
        %v3335 = vsub.f32 %v2839, %v3079
        %v3336 = vsub.f32 %v2840, %v3080
        %v3337 = vsub.f32 %v2841, %v3081
        %v3338 = vsub.f32 %v2842, %v3082
        %v3339 = vsub.f32 %v2843, %v3083
        %v3340 = vsub.f32 %v2844, %v3084
        %v3341 = vsub.f32 %v2845, %v3085
        %v3342 = vsub.f32 %v2846, %v3086
        %v3343 = vsub.f32 %v2847, %v3087
        %v3344 = vsub.f32 %v2848, %v3088
        %v3345 = vsub.f32 %v2849, %v3089
        %v3346 = vsub.f32 %v2850, %v3090
        %v3347 = vmul.f32 %v3331, 1.442695
        %v3348 = vpow.pop %v3347
        %v3349 = vmul.f32 %v3332, 1.442695
        %v3350 = vpow.pop %v3349
        %v3351 = vmul.f32 %v3333, 1.442695
        %v3352 = vpow.pop %v3351
        %v3353 = vmul.f32 %v3334, 1.442695
        %v3354 = vpow.pop %v3353
        %v3355 = vmul.f32 %v3335, 1.442695
        %v3356 = vpow.pop %v3355
        %v3357 = vmul.f32 %v3336, 1.442695
        %v3358 = vpow.pop %v3357
        %v3359 = vmul.f32 %v3337, 1.442695
        %v3360 = vpow.pop %v3359
        %v3361 = vmul.f32 %v3338, 1.442695
        %v3362 = vpow.pop %v3361
        %v3363 = vmul.f32 %v3339, 1.442695
        %v3364 = vpow.pop %v3363
        %v3365 = vmul.f32 %v3340, 1.442695
        %v3366 = vpow.pop %v3365
        %v3367 = vmul.f32 %v3341, 1.442695
        %v3368 = vpow.pop %v3367
        %v3369 = vmul.f32 %v3342, 1.442695
        %v3370 = vpow.pop %v3369
        %v3371 = vmul.f32 %v3343, 1.442695
        %v3372 = vpow.pop %v3371
        %v3373 = vmul.f32 %v3344, 1.442695
        %v3374 = vpow.pop %v3373
        %v3375 = vmul.f32 %v3345, 1.442695
        %v3376 = vpow.pop %v3375
        %v3377 = vmul.f32 %v3346, 1.442695
        %v3378 = vpow.pop %v3377
        %v3379 = vsub.f32 %v2899, %v3075
        %v3380 = vsub.f32 %v2900, %v3076
        %v3381 = vsub.f32 %v2901, %v3077
        %v3382 = vsub.f32 %v2902, %v3078
        %v3383 = vsub.f32 %v2903, %v3079
        %v3384 = vsub.f32 %v2904, %v3080
        %v3385 = vsub.f32 %v2905, %v3081
        %v3386 = vsub.f32 %v2906, %v3082
        %v3387 = vsub.f32 %v2907, %v3083
        %v3388 = vsub.f32 %v2908, %v3084
        %v3389 = vsub.f32 %v2909, %v3085
        %v3390 = vsub.f32 %v2910, %v3086
        %v3391 = vsub.f32 %v2911, %v3087
        %v3392 = vsub.f32 %v2912, %v3088
        %v3393 = vsub.f32 %v2913, %v3089
        %v3394 = vsub.f32 %v2914, %v3090
        %v3395 = vmul.f32 %v3379, 1.442695
        %v3396 = vpow.pop %v3395
        %v3397 = vmul.f32 %v3380, 1.442695
        %v3398 = vpow.pop %v3397
        %v3399 = vmul.f32 %v3381, 1.442695
        %v3400 = vpow.pop %v3399
        %v3401 = vmul.f32 %v3382, 1.442695
        %v3402 = vpow.pop %v3401
        %v3403 = vmul.f32 %v3383, 1.442695
        %v3404 = vpow.pop %v3403
        %v3405 = vmul.f32 %v3384, 1.442695
        %v3406 = vpow.pop %v3405
        %v3407 = vmul.f32 %v3385, 1.442695
        %v3408 = vpow.pop %v3407
        %v3409 = vmul.f32 %v3386, 1.442695
        %v3410 = vpow.pop %v3409
        %v3411 = vmul.f32 %v3387, 1.442695
        %v3412 = vpow.pop %v3411
        %v3413 = vmul.f32 %v3388, 1.442695
        %v3414 = vpow.pop %v3413
        %v3415 = vmul.f32 %v3389, 1.442695
        %v3416 = vpow.pop %v3415
        %v3417 = vmul.f32 %v3390, 1.442695
        %v3418 = vpow.pop %v3417
        %v3419 = vmul.f32 %v3391, 1.442695
        %v3420 = vpow.pop %v3419
        %v3421 = vmul.f32 %v3392, 1.442695
        %v3422 = vpow.pop %v3421
        %v3423 = vmul.f32 %v3393, 1.442695
        %v3424 = vpow.pop %v3423
        %v3425 = vmul.f32 %v3394, 1.442695
        %v3426 = vpow.pop %v3425
        %v3427 = vsub.f32 %v2963, %v3075
        %v3428 = vsub.f32 %v2964, %v3076
        %v3429 = vsub.f32 %v2965, %v3077
        %v3430 = vsub.f32 %v2966, %v3078
        %v3431 = vsub.f32 %v2967, %v3079
        %v3432 = vsub.f32 %v2968, %v3080
        %v3433 = vsub.f32 %v2969, %v3081
        %v3434 = vsub.f32 %v2970, %v3082
        %v3435 = vsub.f32 %v2971, %v3083
        %v3436 = vsub.f32 %v2972, %v3084
        %v3437 = vsub.f32 %v2973, %v3085
        %v3438 = vsub.f32 %v2974, %v3086
        %v3439 = vsub.f32 %v2975, %v3087
        %v3440 = vsub.f32 %v2976, %v3088
        %v3441 = vsub.f32 %v2977, %v3089
        %v3442 = vsub.f32 %v2978, %v3090
        %v3443 = vmul.f32 %v3427, 1.442695
        %v3444 = vpow.pop %v3443
        %v3445 = vmul.f32 %v3428, 1.442695
        %v3446 = vpow.pop %v3445
        %v3447 = vmul.f32 %v3429, 1.442695
        %v3448 = vpow.pop %v3447
        %v3449 = vmul.f32 %v3430, 1.442695
        %v3450 = vpow.pop %v3449
        %v3451 = vmul.f32 %v3431, 1.442695
        %v3452 = vpow.pop %v3451
        %v3453 = vmul.f32 %v3432, 1.442695
        %v3454 = vpow.pop %v3453
        %v3455 = vmul.f32 %v3433, 1.442695
        %v3456 = vpow.pop %v3455
        %v3457 = vmul.f32 %v3434, 1.442695
        %v3458 = vpow.pop %v3457
        %v3459 = vmul.f32 %v3435, 1.442695
        %v3460 = vpow.pop %v3459
        %v3461 = vmul.f32 %v3436, 1.442695
        %v3462 = vpow.pop %v3461
        %v3463 = vmul.f32 %v3437, 1.442695
        %v3464 = vpow.pop %v3463
        %v3465 = vmul.f32 %v3438, 1.442695
        %v3466 = vpow.pop %v3465
        %v3467 = vmul.f32 %v3439, 1.442695
        %v3468 = vpow.pop %v3467
        %v3469 = vmul.f32 %v3440, 1.442695
        %v3470 = vpow.pop %v3469
        %v3471 = vmul.f32 %v3441, 1.442695
        %v3472 = vpow.pop %v3471
        %v3473 = vmul.f32 %v3442, 1.442695
        %v3474 = vpow.pop %v3473
        %v3475 = vadd.f32 %v3108, %v3156
        %v3476 = vadd.f32 %v3110, %v3158
        %v3477 = vadd.f32 %v3112, %v3160
        %v3478 = vadd.f32 %v3114, %v3162
        %v3479 = vadd.f32 %v3116, %v3164
        %v3480 = vadd.f32 %v3118, %v3166
        %v3481 = vadd.f32 %v3120, %v3168
        %v3482 = vadd.f32 %v3122, %v3170
        %v3483 = vadd.f32 %v3124, %v3172
        %v3484 = vadd.f32 %v3126, %v3174
        %v3485 = vadd.f32 %v3128, %v3176
        %v3486 = vadd.f32 %v3130, %v3178
        %v3487 = vadd.f32 %v3132, %v3180
        %v3488 = vadd.f32 %v3134, %v3182
        %v3489 = vadd.f32 %v3136, %v3184
        %v3490 = vadd.f32 %v3138, %v3186
        %v3491 = vadd.f32 %v3475, %v3204
        %v3492 = vadd.f32 %v3476, %v3206
        %v3493 = vadd.f32 %v3477, %v3208
        %v3494 = vadd.f32 %v3478, %v3210
        %v3495 = vadd.f32 %v3479, %v3212
        %v3496 = vadd.f32 %v3480, %v3214
        %v3497 = vadd.f32 %v3481, %v3216
        %v3498 = vadd.f32 %v3482, %v3218
        %v3499 = vadd.f32 %v3483, %v3220
        %v3500 = vadd.f32 %v3484, %v3222
        %v3501 = vadd.f32 %v3485, %v3224
        %v3502 = vadd.f32 %v3486, %v3226
        %v3503 = vadd.f32 %v3487, %v3228
        %v3504 = vadd.f32 %v3488, %v3230
        %v3505 = vadd.f32 %v3489, %v3232
        %v3506 = vadd.f32 %v3490, %v3234
        %v3507 = vadd.f32 %v3491, %v3252
        %v3508 = vadd.f32 %v3492, %v3254
        %v3509 = vadd.f32 %v3493, %v3256
        %v3510 = vadd.f32 %v3494, %v3258
        %v3511 = vadd.f32 %v3495, %v3260
        %v3512 = vadd.f32 %v3496, %v3262
        %v3513 = vadd.f32 %v3497, %v3264
        %v3514 = vadd.f32 %v3498, %v3266
        %v3515 = vadd.f32 %v3499, %v3268
        %v3516 = vadd.f32 %v3500, %v3270
        %v3517 = vadd.f32 %v3501, %v3272
        %v3518 = vadd.f32 %v3502, %v3274
        %v3519 = vadd.f32 %v3503, %v3276
        %v3520 = vadd.f32 %v3504, %v3278
        %v3521 = vadd.f32 %v3505, %v3280
        %v3522 = vadd.f32 %v3506, %v3282
        %v3523 = vadd.f32 %v3507, %v3300
        %v3524 = vadd.f32 %v3508, %v3302
        %v3525 = vadd.f32 %v3509, %v3304
        %v3526 = vadd.f32 %v3510, %v3306
        %v3527 = vadd.f32 %v3511, %v3308
        %v3528 = vadd.f32 %v3512, %v3310
        %v3529 = vadd.f32 %v3513, %v3312
        %v3530 = vadd.f32 %v3514, %v3314
        %v3531 = vadd.f32 %v3515, %v3316
        %v3532 = vadd.f32 %v3516, %v3318
        %v3533 = vadd.f32 %v3517, %v3320
        %v3534 = vadd.f32 %v3518, %v3322
        %v3535 = vadd.f32 %v3519, %v3324
        %v3536 = vadd.f32 %v3520, %v3326
        %v3537 = vadd.f32 %v3521, %v3328
        %v3538 = vadd.f32 %v3522, %v3330
        %v3539 = vadd.f32 %v3523, %v3348
        %v3540 = vadd.f32 %v3524, %v3350
        %v3541 = vadd.f32 %v3525, %v3352
        %v3542 = vadd.f32 %v3526, %v3354
        %v3543 = vadd.f32 %v3527, %v3356
        %v3544 = vadd.f32 %v3528, %v3358
        %v3545 = vadd.f32 %v3529, %v3360
        %v3546 = vadd.f32 %v3530, %v3362
        %v3547 = vadd.f32 %v3531, %v3364
        %v3548 = vadd.f32 %v3532, %v3366
        %v3549 = vadd.f32 %v3533, %v3368
        %v3550 = vadd.f32 %v3534, %v3370
        %v3551 = vadd.f32 %v3535, %v3372
        %v3552 = vadd.f32 %v3536, %v3374
        %v3553 = vadd.f32 %v3537, %v3376
        %v3554 = vadd.f32 %v3538, %v3378
        %v3555 = vadd.f32 %v3539, %v3396
        %v3556 = vadd.f32 %v3540, %v3398
        %v3557 = vadd.f32 %v3541, %v3400
        %v3558 = vadd.f32 %v3542, %v3402
        %v3559 = vadd.f32 %v3543, %v3404
        %v3560 = vadd.f32 %v3544, %v3406
        %v3561 = vadd.f32 %v3545, %v3408
        %v3562 = vadd.f32 %v3546, %v3410
        %v3563 = vadd.f32 %v3547, %v3412
        %v3564 = vadd.f32 %v3548, %v3414
        %v3565 = vadd.f32 %v3549, %v3416
        %v3566 = vadd.f32 %v3550, %v3418
        %v3567 = vadd.f32 %v3551, %v3420
        %v3568 = vadd.f32 %v3552, %v3422
        %v3569 = vadd.f32 %v3553, %v3424
        %v3570 = vadd.f32 %v3554, %v3426
        %v3571 = vadd.f32 %v3555, %v3444
        %v3572 = vadd.f32 %v3556, %v3446
        %v3573 = vadd.f32 %v3557, %v3448
        %v3574 = vadd.f32 %v3558, %v3450
        %v3575 = vadd.f32 %v3559, %v3452
        %v3576 = vadd.f32 %v3560, %v3454
        %v3577 = vadd.f32 %v3561, %v3456
        %v3578 = vadd.f32 %v3562, %v3458
        %v3579 = vadd.f32 %v3563, %v3460
        %v3580 = vadd.f32 %v3564, %v3462
        %v3581 = vadd.f32 %v3565, %v3464
        %v3582 = vadd.f32 %v3566, %v3466
        %v3583 = vadd.f32 %v3567, %v3468
        %v3584 = vadd.f32 %v3568, %v3470
        %v3585 = vadd.f32 %v3569, %v3472
        %v3586 = vadd.f32 %v3570, %v3474
        %v3587 = vrcp.pop %v3571
        %v3588 = vrcp.pop %v3572
        %v3589 = vrcp.pop %v3573
        %v3590 = vrcp.pop %v3574
        %v3591 = vrcp.pop %v3575
        %v3592 = vrcp.pop %v3576
        %v3593 = vrcp.pop %v3577
        %v3594 = vrcp.pop %v3578
        %v3595 = vrcp.pop %v3579
        %v3596 = vrcp.pop %v3580
        %v3597 = vrcp.pop %v3581
        %v3598 = vrcp.pop %v3582
        %v3599 = vrcp.pop %v3583
        %v3600 = vrcp.pop %v3584
        %v3601 = vrcp.pop %v3585
        %v3602 = vrcp.pop %v3586
        %v3603 = vmul.f32 %v3108, %v3587
        %v3604 = vmul.f32 %v3110, %v3588
        %v3605 = vmul.f32 %v3112, %v3589
        %v3606 = vmul.f32 %v3114, %v3590
        %v3607 = vmul.f32 %v3116, %v3591
        %v3608 = vmul.f32 %v3118, %v3592
        %v3609 = vmul.f32 %v3120, %v3593
        %v3610 = vmul.f32 %v3122, %v3594
        %v3611 = vmul.f32 %v3124, %v3595
        %v3612 = vmul.f32 %v3126, %v3596
        %v3613 = vmul.f32 %v3128, %v3597
        %v3614 = vmul.f32 %v3130, %v3598
        %v3615 = vmul.f32 %v3132, %v3599
        %v3616 = vmul.f32 %v3134, %v3600
        %v3617 = vmul.f32 %v3136, %v3601
        %v3618 = vmul.f32 %v3138, %v3602
        %v3619 = vmul.f32 %v3156, %v3587
        %v3620 = vmul.f32 %v3158, %v3588
        %v3621 = vmul.f32 %v3160, %v3589
        %v3622 = vmul.f32 %v3162, %v3590
        %v3623 = vmul.f32 %v3164, %v3591
        %v3624 = vmul.f32 %v3166, %v3592
        %v3625 = vmul.f32 %v3168, %v3593
        %v3626 = vmul.f32 %v3170, %v3594
        %v3627 = vmul.f32 %v3172, %v3595
        %v3628 = vmul.f32 %v3174, %v3596
        %v3629 = vmul.f32 %v3176, %v3597
        %v3630 = vmul.f32 %v3178, %v3598
        %v3631 = vmul.f32 %v3180, %v3599
        %v3632 = vmul.f32 %v3182, %v3600
        %v3633 = vmul.f32 %v3184, %v3601
        %v3634 = vmul.f32 %v3186, %v3602
        %v3635 = vmul.f32 %v3204, %v3587
        %v3636 = vmul.f32 %v3206, %v3588
        %v3637 = vmul.f32 %v3208, %v3589
        %v3638 = vmul.f32 %v3210, %v3590
        %v3639 = vmul.f32 %v3212, %v3591
        %v3640 = vmul.f32 %v3214, %v3592
        %v3641 = vmul.f32 %v3216, %v3593
        %v3642 = vmul.f32 %v3218, %v3594
        %v3643 = vmul.f32 %v3220, %v3595
        %v3644 = vmul.f32 %v3222, %v3596
        %v3645 = vmul.f32 %v3224, %v3597
        %v3646 = vmul.f32 %v3226, %v3598
        %v3647 = vmul.f32 %v3228, %v3599
        %v3648 = vmul.f32 %v3230, %v3600
        %v3649 = vmul.f32 %v3232, %v3601
        %v3650 = vmul.f32 %v3234, %v3602
        %v3651 = vmul.f32 %v3252, %v3587
        %v3652 = vmul.f32 %v3254, %v3588
        %v3653 = vmul.f32 %v3256, %v3589
        %v3654 = vmul.f32 %v3258, %v3590
        %v3655 = vmul.f32 %v3260, %v3591
        %v3656 = vmul.f32 %v3262, %v3592
        %v3657 = vmul.f32 %v3264, %v3593
        %v3658 = vmul.f32 %v3266, %v3594
        %v3659 = vmul.f32 %v3268, %v3595
        %v3660 = vmul.f32 %v3270, %v3596
        %v3661 = vmul.f32 %v3272, %v3597
        %v3662 = vmul.f32 %v3274, %v3598
        %v3663 = vmul.f32 %v3276, %v3599
        %v3664 = vmul.f32 %v3278, %v3600
        %v3665 = vmul.f32 %v3280, %v3601
        %v3666 = vmul.f32 %v3282, %v3602
        %v3667 = vmul.f32 %v3300, %v3587
        %v3668 = vmul.f32 %v3302, %v3588
        %v3669 = vmul.f32 %v3304, %v3589
        %v3670 = vmul.f32 %v3306, %v3590
        %v3671 = vmul.f32 %v3308, %v3591
        %v3672 = vmul.f32 %v3310, %v3592
        %v3673 = vmul.f32 %v3312, %v3593
        %v3674 = vmul.f32 %v3314, %v3594
        %v3675 = vmul.f32 %v3316, %v3595
        %v3676 = vmul.f32 %v3318, %v3596
        %v3677 = vmul.f32 %v3320, %v3597
        %v3678 = vmul.f32 %v3322, %v3598
        %v3679 = vmul.f32 %v3324, %v3599
        %v3680 = vmul.f32 %v3326, %v3600
        %v3681 = vmul.f32 %v3328, %v3601
        %v3682 = vmul.f32 %v3330, %v3602
        %v3683 = vmul.f32 %v3348, %v3587
        %v3684 = vmul.f32 %v3350, %v3588
        %v3685 = vmul.f32 %v3352, %v3589
        %v3686 = vmul.f32 %v3354, %v3590
        %v3687 = vmul.f32 %v3356, %v3591
        %v3688 = vmul.f32 %v3358, %v3592
        %v3689 = vmul.f32 %v3360, %v3593
        %v3690 = vmul.f32 %v3362, %v3594
        %v3691 = vmul.f32 %v3364, %v3595
        %v3692 = vmul.f32 %v3366, %v3596
        %v3693 = vmul.f32 %v3368, %v3597
        %v3694 = vmul.f32 %v3370, %v3598
        %v3695 = vmul.f32 %v3372, %v3599
        %v3696 = vmul.f32 %v3374, %v3600
        %v3697 = vmul.f32 %v3376, %v3601
        %v3698 = vmul.f32 %v3378, %v3602
        %v3699 = vmul.f32 %v3396, %v3587
        %v3700 = vmul.f32 %v3398, %v3588
        %v3701 = vmul.f32 %v3400, %v3589
        %v3702 = vmul.f32 %v3402, %v3590
        %v3703 = vmul.f32 %v3404, %v3591
        %v3704 = vmul.f32 %v3406, %v3592
        %v3705 = vmul.f32 %v3408, %v3593
        %v3706 = vmul.f32 %v3410, %v3594
        %v3707 = vmul.f32 %v3412, %v3595
        %v3708 = vmul.f32 %v3414, %v3596
        %v3709 = vmul.f32 %v3416, %v3597
        %v3710 = vmul.f32 %v3418, %v3598
        %v3711 = vmul.f32 %v3420, %v3599
        %v3712 = vmul.f32 %v3422, %v3600
        %v3713 = vmul.f32 %v3424, %v3601
        %v3714 = vmul.f32 %v3426, %v3602
        %v3715 = vmul.f32 %v3444, %v3587
        %v3716 = vmul.f32 %v3446, %v3588
        %v3717 = vmul.f32 %v3448, %v3589
        %v3718 = vmul.f32 %v3450, %v3590
        %v3719 = vmul.f32 %v3452, %v3591
        %v3720 = vmul.f32 %v3454, %v3592
        %v3721 = vmul.f32 %v3456, %v3593
        %v3722 = vmul.f32 %v3458, %v3594
        %v3723 = vmul.f32 %v3460, %v3595
        %v3724 = vmul.f32 %v3462, %v3596
        %v3725 = vmul.f32 %v3464, %v3597
        %v3726 = vmul.f32 %v3466, %v3598
        %v3727 = vmul.f32 %v3468, %v3599
        %v3728 = vmul.f32 %v3470, %v3600
        %v3729 = vmul.f32 %v3472, %v3601
        %v3730 = vmul.f32 %v3474, %v3602
        %3732 = vset.pattern.permute.xlu0 0
        %3733 = vperm.xlu0 %3732, %v3603
        %v3734 = vpop.permute.xlu0 %3733
        %3737 = vset.pattern.permute.xlu0 0
        %3738 = vperm.xlu0 %3737, %v3604
        %v3739 = vpop.permute.xlu0 %3738
        %3742 = vset.pattern.permute.xlu0 0
        %3743 = vperm.xlu0 %3742, %v3605
        %v3744 = vpop.permute.xlu0 %3743
        %3747 = vset.pattern.permute.xlu0 0
        %3748 = vperm.xlu0 %3747, %v3606
        %v3749 = vpop.permute.xlu0 %3748
        %3752 = vset.pattern.permute.xlu0 0
        %3753 = vperm.xlu0 %3752, %v3607
        %v3754 = vpop.permute.xlu0 %3753
        %3757 = vset.pattern.permute.xlu0 0
        %3758 = vperm.xlu0 %3757, %v3608
        %v3759 = vpop.permute.xlu0 %3758
        %3762 = vset.pattern.permute.xlu0 0
        %3763 = vperm.xlu0 %3762, %v3609
        %v3764 = vpop.permute.xlu0 %3763
        %3767 = vset.pattern.permute.xlu0 0
        %3768 = vperm.xlu0 %3767, %v3610
        %v3769 = vpop.permute.xlu0 %3768
        %3772 = vset.pattern.permute.xlu0 0
        %3773 = vperm.xlu0 %3772, %v3611
        %v3774 = vpop.permute.xlu0 %3773
        %3777 = vset.pattern.permute.xlu0 0
        %3778 = vperm.xlu0 %3777, %v3612
        %v3779 = vpop.permute.xlu0 %3778
        %3782 = vset.pattern.permute.xlu0 0
        %3783 = vperm.xlu0 %3782, %v3613
        %v3784 = vpop.permute.xlu0 %3783
        %3787 = vset.pattern.permute.xlu0 0
        %3788 = vperm.xlu0 %3787, %v3614
        %v3789 = vpop.permute.xlu0 %3788
        %3792 = vset.pattern.permute.xlu0 0
        %3793 = vperm.xlu0 %3792, %v3615
        %v3794 = vpop.permute.xlu0 %3793
        %3797 = vset.pattern.permute.xlu0 0
        %3798 = vperm.xlu0 %3797, %v3616
        %v3799 = vpop.permute.xlu0 %3798
        %3802 = vset.pattern.permute.xlu0 0
        %3803 = vperm.xlu0 %3802, %v3617
        %v3804 = vpop.permute.xlu0 %3803
        %3807 = vset.pattern.permute.xlu0 0
        %3808 = vperm.xlu0 %3807, %v3618
        %v3809 = vpop.permute.xlu0 %3808
        %v3811 = vmul.f32 %v3734, %v1829
        %v3812 = vmul.f32 %v3739, %v1833
        %v3813 = vmul.f32 %v3744, %v1839
        %v3814 = vmul.f32 %v3749, %v1843
        %v3815 = vmul.f32 %v3754, %v1849
        %v3816 = vmul.f32 %v3759, %v1853
        %v3817 = vmul.f32 %v3764, %v1859
        %v3818 = vmul.f32 %v3769, %v1863
        %v3819 = vmul.f32 %v3774, %v1869
        %v3820 = vmul.f32 %v3779, %v1873
        %v3821 = vmul.f32 %v3784, %v1879
        %v3822 = vmul.f32 %v3789, %v1883
        %v3823 = vmul.f32 %v3794, %v1889
        %v3824 = vmul.f32 %v3799, %v1893
        %v3825 = vmul.f32 %v3804, %v1899
        %v3826 = vmul.f32 %v3809, %v1903
        %3827 = vset.pattern.permute.xlu0 1
        %3828 = vperm.xlu0 %3827, %v3603
        %v3829 = vpop.permute.xlu0 %3828
        %3831 = vset.pattern.permute.xlu0 1
        %3832 = vperm.xlu0 %3831, %v3604
        %v3833 = vpop.permute.xlu0 %3832
        %3835 = vset.pattern.permute.xlu0 1
        %3836 = vperm.xlu0 %3835, %v3605
        %v3837 = vpop.permute.xlu0 %3836
        %3839 = vset.pattern.permute.xlu0 1
        %3840 = vperm.xlu0 %3839, %v3606
        %v3841 = vpop.permute.xlu0 %3840
        %3843 = vset.pattern.permute.xlu0 1
        %3844 = vperm.xlu0 %3843, %v3607
        %v3845 = vpop.permute.xlu0 %3844
        %3847 = vset.pattern.permute.xlu0 1
        %3848 = vperm.xlu0 %3847, %v3608
        %v3849 = vpop.permute.xlu0 %3848
        %3851 = vset.pattern.permute.xlu0 1
        %3852 = vperm.xlu0 %3851, %v3609
        %v3853 = vpop.permute.xlu0 %3852
        %3855 = vset.pattern.permute.xlu0 1
        %3856 = vperm.xlu0 %3855, %v3610
        %v3857 = vpop.permute.xlu0 %3856
        %3859 = vset.pattern.permute.xlu0 1
        %3860 = vperm.xlu0 %3859, %v3611
        %v3861 = vpop.permute.xlu0 %3860
        %3863 = vset.pattern.permute.xlu0 1
        %3864 = vperm.xlu0 %3863, %v3612
        %v3865 = vpop.permute.xlu0 %3864
        %3867 = vset.pattern.permute.xlu0 1
        %3868 = vperm.xlu0 %3867, %v3613
        %v3869 = vpop.permute.xlu0 %3868
        %3871 = vset.pattern.permute.xlu0 1
        %3872 = vperm.xlu0 %3871, %v3614
        %v3873 = vpop.permute.xlu0 %3872
        %3875 = vset.pattern.permute.xlu0 1
        %3876 = vperm.xlu0 %3875, %v3615
        %v3877 = vpop.permute.xlu0 %3876
        %3879 = vset.pattern.permute.xlu0 1
        %3880 = vperm.xlu0 %3879, %v3616
        %v3881 = vpop.permute.xlu0 %3880
        %3883 = vset.pattern.permute.xlu0 1
        %3884 = vperm.xlu0 %3883, %v3617
        %v3885 = vpop.permute.xlu0 %3884
        %3887 = vset.pattern.permute.xlu0 1
        %3888 = vperm.xlu0 %3887, %v3618
        %v3889 = vpop.permute.xlu0 %3888
        %v3891 = vmul.f32 %v3829, %v1829
        %v3892 = vmul.f32 %v3833, %v1833
        %v3893 = vmul.f32 %v3837, %v1839
        %v3894 = vmul.f32 %v3841, %v1843
        %v3895 = vmul.f32 %v3845, %v1849
        %v3896 = vmul.f32 %v3849, %v1853
        %v3897 = vmul.f32 %v3853, %v1859
        %v3898 = vmul.f32 %v3857, %v1863
        %v3899 = vmul.f32 %v3861, %v1869
        %v3900 = vmul.f32 %v3865, %v1873
        %v3901 = vmul.f32 %v3869, %v1879
        %v3902 = vmul.f32 %v3873, %v1883
        %v3903 = vmul.f32 %v3877, %v1889
        %v3904 = vmul.f32 %v3881, %v1893
        %v3905 = vmul.f32 %v3885, %v1899
        %v3906 = vmul.f32 %v3889, %v1903
        %3907 = vset.pattern.permute.xlu0 0
        %3908 = vperm.xlu0 %3907, %v287
        %v3909 = vpop.permute.xlu0 %3908
        %3910 = vset.pattern.permute.xlu0 0
        %3911 = vperm.xlu0 %3910, %v288
        %v3912 = vpop.permute.xlu0 %3911
        %3913 = vset.pattern.permute.xlu0 0
        %3914 = vperm.xlu0 %3913, %v289
        %v3915 = vpop.permute.xlu0 %3914
        %3916 = vset.pattern.permute.xlu0 0
        %3917 = vperm.xlu0 %3916, %v290
        %v3918 = vpop.permute.xlu0 %3917
        %3919 = vset.pattern.permute.xlu0 0
        %3920 = vperm.xlu0 %3919, %v291
        %v3921 = vpop.permute.xlu0 %3920
        %3922 = vset.pattern.permute.xlu0 0
        %3923 = vperm.xlu0 %3922, %v292
        %v3924 = vpop.permute.xlu0 %3923
        %3925 = vset.pattern.permute.xlu0 0
        %3926 = vperm.xlu0 %3925, %v293
        %v3927 = vpop.permute.xlu0 %3926
        %3928 = vset.pattern.permute.xlu0 0
        %3929 = vperm.xlu0 %3928, %v294
        %v3930 = vpop.permute.xlu0 %3929
        %3931 = vset.pattern.permute.xlu0 0
        %3932 = vperm.xlu0 %3931, %v295
        %v3933 = vpop.permute.xlu0 %3932
        %3934 = vset.pattern.permute.xlu0 0
        %3935 = vperm.xlu0 %3934, %v296
        %v3936 = vpop.permute.xlu0 %3935
        %3937 = vset.pattern.permute.xlu0 0
        %3938 = vperm.xlu0 %3937, %v297
        %v3939 = vpop.permute.xlu0 %3938
        %3940 = vset.pattern.permute.xlu0 0
        %3941 = vperm.xlu0 %3940, %v298
        %v3942 = vpop.permute.xlu0 %3941
        %3943 = vset.pattern.permute.xlu0 0
        %3944 = vperm.xlu0 %3943, %v299
        %v3945 = vpop.permute.xlu0 %3944
        %3946 = vset.pattern.permute.xlu0 0
        %3947 = vperm.xlu0 %3946, %v300
        %v3948 = vpop.permute.xlu0 %3947
        %3949 = vset.pattern.permute.xlu0 0
        %3950 = vperm.xlu0 %3949, %v301
        %v3951 = vpop.permute.xlu0 %3950
        %3952 = vset.pattern.permute.xlu0 0
        %3953 = vperm.xlu0 %3952, %v302
        %v3954 = vpop.permute.xlu0 %3953
        %3956 = vset.pattern.permute.xlu0 0
        %3957 = vperm.xlu0 %3956, %v3619
        %v3958 = vpop.permute.xlu0 %3957
        %3961 = vset.pattern.permute.xlu0 0
        %3962 = vperm.xlu0 %3961, %v3620
        %v3963 = vpop.permute.xlu0 %3962
        %3966 = vset.pattern.permute.xlu0 0
        %3967 = vperm.xlu0 %3966, %v3621
        %v3968 = vpop.permute.xlu0 %3967
        %3971 = vset.pattern.permute.xlu0 0
        %3972 = vperm.xlu0 %3971, %v3622
        %v3973 = vpop.permute.xlu0 %3972
        %3976 = vset.pattern.permute.xlu0 0
        %3977 = vperm.xlu0 %3976, %v3623
        %v3978 = vpop.permute.xlu0 %3977
        %3981 = vset.pattern.permute.xlu0 0
        %3982 = vperm.xlu0 %3981, %v3624
        %v3983 = vpop.permute.xlu0 %3982
        %3986 = vset.pattern.permute.xlu0 0
        %3987 = vperm.xlu0 %3986, %v3625
        %v3988 = vpop.permute.xlu0 %3987
        %3991 = vset.pattern.permute.xlu0 0
        %3992 = vperm.xlu0 %3991, %v3626
        %v3993 = vpop.permute.xlu0 %3992
        %3996 = vset.pattern.permute.xlu0 0
        %3997 = vperm.xlu0 %3996, %v3627
        %v3998 = vpop.permute.xlu0 %3997
        %4001 = vset.pattern.permute.xlu0 0
        %4002 = vperm.xlu0 %4001, %v3628
        %v4003 = vpop.permute.xlu0 %4002
        %4006 = vset.pattern.permute.xlu0 0
        %4007 = vperm.xlu0 %4006, %v3629
        %v4008 = vpop.permute.xlu0 %4007
        %4011 = vset.pattern.permute.xlu0 0
        %4012 = vperm.xlu0 %4011, %v3630
        %v4013 = vpop.permute.xlu0 %4012
        %4016 = vset.pattern.permute.xlu0 0
        %4017 = vperm.xlu0 %4016, %v3631
        %v4018 = vpop.permute.xlu0 %4017
        %4021 = vset.pattern.permute.xlu0 0
        %4022 = vperm.xlu0 %4021, %v3632
        %v4023 = vpop.permute.xlu0 %4022
        %4026 = vset.pattern.permute.xlu0 0
        %4027 = vperm.xlu0 %4026, %v3633
        %v4028 = vpop.permute.xlu0 %4027
        %4031 = vset.pattern.permute.xlu0 0
        %4032 = vperm.xlu0 %4031, %v3634
        %v4033 = vpop.permute.xlu0 %4032
        %v4035 = vmul.f32 %v3958, %v1909
        %v4036 = vmul.f32 %v3963, %v1913
        %v4037 = vmul.f32 %v3968, %v1919
        %v4038 = vmul.f32 %v3973, %v1923
        %v4039 = vmul.f32 %v3978, %v1929
        %v4040 = vmul.f32 %v3983, %v1933
        %v4041 = vmul.f32 %v3988, %v1939
        %v4042 = vmul.f32 %v3993, %v1943
        %v4043 = vmul.f32 %v3998, %v1949
        %v4044 = vmul.f32 %v4003, %v1953
        %v4045 = vmul.f32 %v4008, %v1959
        %v4046 = vmul.f32 %v4013, %v1963
        %v4047 = vmul.f32 %v4018, %v1969
        %v4048 = vmul.f32 %v4023, %v1973
        %v4049 = vmul.f32 %v4028, %v1979
        %v4050 = vmul.f32 %v4033, %v1983
        %4051 = vset.pattern.permute.xlu0 1
        %4052 = vperm.xlu0 %4051, %v3619
        %v4053 = vpop.permute.xlu0 %4052
        %4055 = vset.pattern.permute.xlu0 1
        %4056 = vperm.xlu0 %4055, %v3620
        %v4057 = vpop.permute.xlu0 %4056
        %4059 = vset.pattern.permute.xlu0 1
        %4060 = vperm.xlu0 %4059, %v3621
        %v4061 = vpop.permute.xlu0 %4060
        %4063 = vset.pattern.permute.xlu0 1
        %4064 = vperm.xlu0 %4063, %v3622
        %v4065 = vpop.permute.xlu0 %4064
        %4067 = vset.pattern.permute.xlu0 1
        %4068 = vperm.xlu0 %4067, %v3623
        %v4069 = vpop.permute.xlu0 %4068
        %4071 = vset.pattern.permute.xlu0 1
        %4072 = vperm.xlu0 %4071, %v3624
        %v4073 = vpop.permute.xlu0 %4072
        %4075 = vset.pattern.permute.xlu0 1
        %4076 = vperm.xlu0 %4075, %v3625
        %v4077 = vpop.permute.xlu0 %4076
        %4079 = vset.pattern.permute.xlu0 1
        %4080 = vperm.xlu0 %4079, %v3626
        %v4081 = vpop.permute.xlu0 %4080
        %4083 = vset.pattern.permute.xlu0 1
        %4084 = vperm.xlu0 %4083, %v3627
        %v4085 = vpop.permute.xlu0 %4084
        %4087 = vset.pattern.permute.xlu0 1
        %4088 = vperm.xlu0 %4087, %v3628
        %v4089 = vpop.permute.xlu0 %4088
        %4091 = vset.pattern.permute.xlu0 1
        %4092 = vperm.xlu0 %4091, %v3629
        %v4093 = vpop.permute.xlu0 %4092
        %4095 = vset.pattern.permute.xlu0 1
        %4096 = vperm.xlu0 %4095, %v3630
        %v4097 = vpop.permute.xlu0 %4096
        %4099 = vset.pattern.permute.xlu0 1
        %4100 = vperm.xlu0 %4099, %v3631
        %v4101 = vpop.permute.xlu0 %4100
        %4103 = vset.pattern.permute.xlu0 1
        %4104 = vperm.xlu0 %4103, %v3632
        %v4105 = vpop.permute.xlu0 %4104
        %4107 = vset.pattern.permute.xlu0 1
        %4108 = vperm.xlu0 %4107, %v3633
        %v4109 = vpop.permute.xlu0 %4108
        %4111 = vset.pattern.permute.xlu0 1
        %4112 = vperm.xlu0 %4111, %v3634
        %v4113 = vpop.permute.xlu0 %4112
        %v4115 = vmul.f32 %v4053, %v1909
        %v4116 = vmul.f32 %v4057, %v1913
        %v4117 = vmul.f32 %v4061, %v1919
        %v4118 = vmul.f32 %v4065, %v1923
        %v4119 = vmul.f32 %v4069, %v1929
        %v4120 = vmul.f32 %v4073, %v1933
        %v4121 = vmul.f32 %v4077, %v1939
        %v4122 = vmul.f32 %v4081, %v1943
        %v4123 = vmul.f32 %v4085, %v1949
        %v4124 = vmul.f32 %v4089, %v1953
        %v4125 = vmul.f32 %v4093, %v1959
        %v4126 = vmul.f32 %v4097, %v1963
        %v4127 = vmul.f32 %v4101, %v1969
        %v4128 = vmul.f32 %v4105, %v1973
        %v4129 = vmul.f32 %v4109, %v1979
        %v4130 = vmul.f32 %v4113, %v1983
        %4131 = vset.pattern.permute.xlu0 1
        %4132 = vperm.xlu0 %4131, %v287
        %v4133 = vpop.permute.xlu0 %4132
        %4134 = vset.pattern.permute.xlu0 1
        %4135 = vperm.xlu0 %4134, %v288
        %v4136 = vpop.permute.xlu0 %4135
        %4137 = vset.pattern.permute.xlu0 1
        %4138 = vperm.xlu0 %4137, %v289
        %v4139 = vpop.permute.xlu0 %4138
        %4140 = vset.pattern.permute.xlu0 1
        %4141 = vperm.xlu0 %4140, %v290
        %v4142 = vpop.permute.xlu0 %4141
        %4143 = vset.pattern.permute.xlu0 1
        %4144 = vperm.xlu0 %4143, %v291
        %v4145 = vpop.permute.xlu0 %4144
        %4146 = vset.pattern.permute.xlu0 1
        %4147 = vperm.xlu0 %4146, %v292
        %v4148 = vpop.permute.xlu0 %4147
        %4149 = vset.pattern.permute.xlu0 1
        %4150 = vperm.xlu0 %4149, %v293
        %v4151 = vpop.permute.xlu0 %4150
        %4152 = vset.pattern.permute.xlu0 1
        %4153 = vperm.xlu0 %4152, %v294
        %v4154 = vpop.permute.xlu0 %4153
        %4155 = vset.pattern.permute.xlu0 1
        %4156 = vperm.xlu0 %4155, %v295
        %v4157 = vpop.permute.xlu0 %4156
        %4158 = vset.pattern.permute.xlu0 1
        %4159 = vperm.xlu0 %4158, %v296
        %v4160 = vpop.permute.xlu0 %4159
        %4161 = vset.pattern.permute.xlu0 1
        %4162 = vperm.xlu0 %4161, %v297
        %v4163 = vpop.permute.xlu0 %4162
        %4164 = vset.pattern.permute.xlu0 1
        %4165 = vperm.xlu0 %4164, %v298
        %v4166 = vpop.permute.xlu0 %4165
        %4167 = vset.pattern.permute.xlu0 1
        %4168 = vperm.xlu0 %4167, %v299
        %v4169 = vpop.permute.xlu0 %4168
        %4170 = vset.pattern.permute.xlu0 1
        %4171 = vperm.xlu0 %4170, %v300
        %v4172 = vpop.permute.xlu0 %4171
        %4173 = vset.pattern.permute.xlu0 1
        %4174 = vperm.xlu0 %4173, %v301
        %v4175 = vpop.permute.xlu0 %4174
        %4176 = vset.pattern.permute.xlu0 1
        %4177 = vperm.xlu0 %4176, %v302
        %v4178 = vpop.permute.xlu0 %4177
        %4180 = vset.pattern.permute.xlu0 0
        %4181 = vperm.xlu0 %4180, %v3635
        %v4182 = vpop.permute.xlu0 %4181
        %4185 = vset.pattern.permute.xlu0 0
        %4186 = vperm.xlu0 %4185, %v3636
        %v4187 = vpop.permute.xlu0 %4186
        %4190 = vset.pattern.permute.xlu0 0
        %4191 = vperm.xlu0 %4190, %v3637
        %v4192 = vpop.permute.xlu0 %4191
        %4195 = vset.pattern.permute.xlu0 0
        %4196 = vperm.xlu0 %4195, %v3638
        %v4197 = vpop.permute.xlu0 %4196
        %4200 = vset.pattern.permute.xlu0 0
        %4201 = vperm.xlu0 %4200, %v3639
        %v4202 = vpop.permute.xlu0 %4201
        %4205 = vset.pattern.permute.xlu0 0
        %4206 = vperm.xlu0 %4205, %v3640
        %v4207 = vpop.permute.xlu0 %4206
        %4210 = vset.pattern.permute.xlu0 0
        %4211 = vperm.xlu0 %4210, %v3641
        %v4212 = vpop.permute.xlu0 %4211
        %4215 = vset.pattern.permute.xlu0 0
        %4216 = vperm.xlu0 %4215, %v3642
        %v4217 = vpop.permute.xlu0 %4216
        %4220 = vset.pattern.permute.xlu0 0
        %4221 = vperm.xlu0 %4220, %v3643
        %v4222 = vpop.permute.xlu0 %4221
        %4225 = vset.pattern.permute.xlu0 0
        %4226 = vperm.xlu0 %4225, %v3644
        %v4227 = vpop.permute.xlu0 %4226
        %4230 = vset.pattern.permute.xlu0 0
        %4231 = vperm.xlu0 %4230, %v3645
        %v4232 = vpop.permute.xlu0 %4231
        %4235 = vset.pattern.permute.xlu0 0
        %4236 = vperm.xlu0 %4235, %v3646
        %v4237 = vpop.permute.xlu0 %4236
        %4240 = vset.pattern.permute.xlu0 0
        %4241 = vperm.xlu0 %4240, %v3647
        %v4242 = vpop.permute.xlu0 %4241
        %4245 = vset.pattern.permute.xlu0 0
        %4246 = vperm.xlu0 %4245, %v3648
        %v4247 = vpop.permute.xlu0 %4246
        %4250 = vset.pattern.permute.xlu0 0
        %4251 = vperm.xlu0 %4250, %v3649
        %v4252 = vpop.permute.xlu0 %4251
        %4255 = vset.pattern.permute.xlu0 0
        %4256 = vperm.xlu0 %4255, %v3650
        %v4257 = vpop.permute.xlu0 %4256
        %v4259 = vmul.f32 %v4182, %v1989
        %v4260 = vmul.f32 %v4187, %v1993
        %v4261 = vmul.f32 %v4192, %v1999
        %v4262 = vmul.f32 %v4197, %v2003
        %v4263 = vmul.f32 %v4202, %v2009
        %v4264 = vmul.f32 %v4207, %v2013
        %v4265 = vmul.f32 %v4212, %v2019
        %v4266 = vmul.f32 %v4217, %v2023
        %v4267 = vmul.f32 %v4222, %v2029
        %v4268 = vmul.f32 %v4227, %v2033
        %v4269 = vmul.f32 %v4232, %v2039
        %v4270 = vmul.f32 %v4237, %v2043
        %v4271 = vmul.f32 %v4242, %v2049
        %v4272 = vmul.f32 %v4247, %v2053
        %v4273 = vmul.f32 %v4252, %v2059
        %v4274 = vmul.f32 %v4257, %v2063
        %4275 = vset.pattern.permute.xlu0 1
        %4276 = vperm.xlu0 %4275, %v3635
        %v4277 = vpop.permute.xlu0 %4276
        %4279 = vset.pattern.permute.xlu0 1
        %4280 = vperm.xlu0 %4279, %v3636
        %v4281 = vpop.permute.xlu0 %4280
        %4283 = vset.pattern.permute.xlu0 1
        %4284 = vperm.xlu0 %4283, %v3637
        %v4285 = vpop.permute.xlu0 %4284
        %4287 = vset.pattern.permute.xlu0 1
        %4288 = vperm.xlu0 %4287, %v3638
        %v4289 = vpop.permute.xlu0 %4288
        %4291 = vset.pattern.permute.xlu0 1
        %4292 = vperm.xlu0 %4291, %v3639
        %v4293 = vpop.permute.xlu0 %4292
        %4295 = vset.pattern.permute.xlu0 1
        %4296 = vperm.xlu0 %4295, %v3640
        %v4297 = vpop.permute.xlu0 %4296
        %4299 = vset.pattern.permute.xlu0 1
        %4300 = vperm.xlu0 %4299, %v3641
        %v4301 = vpop.permute.xlu0 %4300
        %4303 = vset.pattern.permute.xlu0 1
        %4304 = vperm.xlu0 %4303, %v3642
        %v4305 = vpop.permute.xlu0 %4304
        %4307 = vset.pattern.permute.xlu0 1
        %4308 = vperm.xlu0 %4307, %v3643
        %v4309 = vpop.permute.xlu0 %4308
        %4311 = vset.pattern.permute.xlu0 1
        %4312 = vperm.xlu0 %4311, %v3644
        %v4313 = vpop.permute.xlu0 %4312
        %4315 = vset.pattern.permute.xlu0 1
        %4316 = vperm.xlu0 %4315, %v3645
        %v4317 = vpop.permute.xlu0 %4316
        %4319 = vset.pattern.permute.xlu0 1
        %4320 = vperm.xlu0 %4319, %v3646
        %v4321 = vpop.permute.xlu0 %4320
        %4323 = vset.pattern.permute.xlu0 1
        %4324 = vperm.xlu0 %4323, %v3647
        %v4325 = vpop.permute.xlu0 %4324
        %4327 = vset.pattern.permute.xlu0 1
        %4328 = vperm.xlu0 %4327, %v3648
        %v4329 = vpop.permute.xlu0 %4328
        %4331 = vset.pattern.permute.xlu0 1
        %4332 = vperm.xlu0 %4331, %v3649
        %v4333 = vpop.permute.xlu0 %4332
        %4335 = vset.pattern.permute.xlu0 1
        %4336 = vperm.xlu0 %4335, %v3650
        %v4337 = vpop.permute.xlu0 %4336
        %v4339 = vmul.f32 %v4277, %v1989
        %v4340 = vmul.f32 %v4281, %v1993
        %v4341 = vmul.f32 %v4285, %v1999
        %v4342 = vmul.f32 %v4289, %v2003
        %v4343 = vmul.f32 %v4293, %v2009
        %v4344 = vmul.f32 %v4297, %v2013
        %v4345 = vmul.f32 %v4301, %v2019
        %v4346 = vmul.f32 %v4305, %v2023
        %v4347 = vmul.f32 %v4309, %v2029
        %v4348 = vmul.f32 %v4313, %v2033
        %v4349 = vmul.f32 %v4317, %v2039
        %v4350 = vmul.f32 %v4321, %v2043
        %v4351 = vmul.f32 %v4325, %v2049
        %v4352 = vmul.f32 %v4329, %v2053
        %v4353 = vmul.f32 %v4333, %v2059
        %v4354 = vmul.f32 %v4337, %v2063
        %4355 = vset.pattern.permute.xlu0 2
        %4356 = vperm.xlu0 %4355, %v287
        %v4357 = vpop.permute.xlu0 %4356
        %4358 = vset.pattern.permute.xlu0 2
        %4359 = vperm.xlu0 %4358, %v288
        %v4360 = vpop.permute.xlu0 %4359
        %4361 = vset.pattern.permute.xlu0 2
        %4362 = vperm.xlu0 %4361, %v289
        %v4363 = vpop.permute.xlu0 %4362
        %4364 = vset.pattern.permute.xlu0 2
        %4365 = vperm.xlu0 %4364, %v290
        %v4366 = vpop.permute.xlu0 %4365
        %4367 = vset.pattern.permute.xlu0 2
        %4368 = vperm.xlu0 %4367, %v291
        %v4369 = vpop.permute.xlu0 %4368
        %4370 = vset.pattern.permute.xlu0 2
        %4371 = vperm.xlu0 %4370, %v292
        %v4372 = vpop.permute.xlu0 %4371
        %4373 = vset.pattern.permute.xlu0 2
        %4374 = vperm.xlu0 %4373, %v293
        %v4375 = vpop.permute.xlu0 %4374
        %4376 = vset.pattern.permute.xlu0 2
        %4377 = vperm.xlu0 %4376, %v294
        %v4378 = vpop.permute.xlu0 %4377
        %4379 = vset.pattern.permute.xlu0 2
        %4380 = vperm.xlu0 %4379, %v295
        %v4381 = vpop.permute.xlu0 %4380
        %4382 = vset.pattern.permute.xlu0 2
        %4383 = vperm.xlu0 %4382, %v296
        %v4384 = vpop.permute.xlu0 %4383
        %4385 = vset.pattern.permute.xlu0 2
        %4386 = vperm.xlu0 %4385, %v297
        %v4387 = vpop.permute.xlu0 %4386
        %4388 = vset.pattern.permute.xlu0 2
        %4389 = vperm.xlu0 %4388, %v298
        %v4390 = vpop.permute.xlu0 %4389
        %4391 = vset.pattern.permute.xlu0 2
        %4392 = vperm.xlu0 %4391, %v299
        %v4393 = vpop.permute.xlu0 %4392
        %4394 = vset.pattern.permute.xlu0 2
        %4395 = vperm.xlu0 %4394, %v300
        %v4396 = vpop.permute.xlu0 %4395
        %4397 = vset.pattern.permute.xlu0 2
        %4398 = vperm.xlu0 %4397, %v301
        %v4399 = vpop.permute.xlu0 %4398
        %4400 = vset.pattern.permute.xlu0 2
        %4401 = vperm.xlu0 %4400, %v302
        %v4402 = vpop.permute.xlu0 %4401
        %4404 = vset.pattern.permute.xlu0 0
        %4405 = vperm.xlu0 %4404, %v3651
        %v4406 = vpop.permute.xlu0 %4405
        %4409 = vset.pattern.permute.xlu0 0
        %4410 = vperm.xlu0 %4409, %v3652
        %v4411 = vpop.permute.xlu0 %4410
        %4414 = vset.pattern.permute.xlu0 0
        %4415 = vperm.xlu0 %4414, %v3653
        %v4416 = vpop.permute.xlu0 %4415
        %4419 = vset.pattern.permute.xlu0 0
        %4420 = vperm.xlu0 %4419, %v3654
        %v4421 = vpop.permute.xlu0 %4420
        %4424 = vset.pattern.permute.xlu0 0
        %4425 = vperm.xlu0 %4424, %v3655
        %v4426 = vpop.permute.xlu0 %4425
        %4429 = vset.pattern.permute.xlu0 0
        %4430 = vperm.xlu0 %4429, %v3656
        %v4431 = vpop.permute.xlu0 %4430
        %4434 = vset.pattern.permute.xlu0 0
        %4435 = vperm.xlu0 %4434, %v3657
        %v4436 = vpop.permute.xlu0 %4435
        %4439 = vset.pattern.permute.xlu0 0
        %4440 = vperm.xlu0 %4439, %v3658
        %v4441 = vpop.permute.xlu0 %4440
        %4444 = vset.pattern.permute.xlu0 0
        %4445 = vperm.xlu0 %4444, %v3659
        %v4446 = vpop.permute.xlu0 %4445
        %4449 = vset.pattern.permute.xlu0 0
        %4450 = vperm.xlu0 %4449, %v3660
        %v4451 = vpop.permute.xlu0 %4450
        %4454 = vset.pattern.permute.xlu0 0
        %4455 = vperm.xlu0 %4454, %v3661
        %v4456 = vpop.permute.xlu0 %4455
        %4459 = vset.pattern.permute.xlu0 0
        %4460 = vperm.xlu0 %4459, %v3662
        %v4461 = vpop.permute.xlu0 %4460
        %4464 = vset.pattern.permute.xlu0 0
        %4465 = vperm.xlu0 %4464, %v3663
        %v4466 = vpop.permute.xlu0 %4465
        %4469 = vset.pattern.permute.xlu0 0
        %4470 = vperm.xlu0 %4469, %v3664
        %v4471 = vpop.permute.xlu0 %4470
        %4474 = vset.pattern.permute.xlu0 0
        %4475 = vperm.xlu0 %4474, %v3665
        %v4476 = vpop.permute.xlu0 %4475
        %4479 = vset.pattern.permute.xlu0 0
        %4480 = vperm.xlu0 %4479, %v3666
        %v4481 = vpop.permute.xlu0 %4480
        %v4483 = vmul.f32 %v4406, %v2069
        %v4484 = vmul.f32 %v4411, %v2073
        %v4485 = vmul.f32 %v4416, %v2079
        %v4486 = vmul.f32 %v4421, %v2083
        %v4487 = vmul.f32 %v4426, %v2089
        %v4488 = vmul.f32 %v4431, %v2093
        %v4489 = vmul.f32 %v4436, %v2099
        %v4490 = vmul.f32 %v4441, %v2103
        %v4491 = vmul.f32 %v4446, %v2109
        %v4492 = vmul.f32 %v4451, %v2113
        %v4493 = vmul.f32 %v4456, %v2119
        %v4494 = vmul.f32 %v4461, %v2123
        %v4495 = vmul.f32 %v4466, %v2129
        %v4496 = vmul.f32 %v4471, %v2133
        %v4497 = vmul.f32 %v4476, %v2139
        %v4498 = vmul.f32 %v4481, %v2143
        %4499 = vset.pattern.permute.xlu0 1
        %4500 = vperm.xlu0 %4499, %v3651
        %v4501 = vpop.permute.xlu0 %4500
        %4503 = vset.pattern.permute.xlu0 1
        %4504 = vperm.xlu0 %4503, %v3652
        %v4505 = vpop.permute.xlu0 %4504
        %4507 = vset.pattern.permute.xlu0 1
        %4508 = vperm.xlu0 %4507, %v3653
        %v4509 = vpop.permute.xlu0 %4508
        %4511 = vset.pattern.permute.xlu0 1
        %4512 = vperm.xlu0 %4511, %v3654
        %v4513 = vpop.permute.xlu0 %4512
        %4515 = vset.pattern.permute.xlu0 1
        %4516 = vperm.xlu0 %4515, %v3655
        %v4517 = vpop.permute.xlu0 %4516
        %4519 = vset.pattern.permute.xlu0 1
        %4520 = vperm.xlu0 %4519, %v3656
        %v4521 = vpop.permute.xlu0 %4520
        %4523 = vset.pattern.permute.xlu0 1
        %4524 = vperm.xlu0 %4523, %v3657
        %v4525 = vpop.permute.xlu0 %4524
        %4527 = vset.pattern.permute.xlu0 1
        %4528 = vperm.xlu0 %4527, %v3658
        %v4529 = vpop.permute.xlu0 %4528
        %4531 = vset.pattern.permute.xlu0 1
        %4532 = vperm.xlu0 %4531, %v3659
        %v4533 = vpop.permute.xlu0 %4532
        %4535 = vset.pattern.permute.xlu0 1
        %4536 = vperm.xlu0 %4535, %v3660
        %v4537 = vpop.permute.xlu0 %4536
        %4539 = vset.pattern.permute.xlu0 1
        %4540 = vperm.xlu0 %4539, %v3661
        %v4541 = vpop.permute.xlu0 %4540
        %4543 = vset.pattern.permute.xlu0 1
        %4544 = vperm.xlu0 %4543, %v3662
        %v4545 = vpop.permute.xlu0 %4544
        %4547 = vset.pattern.permute.xlu0 1
        %4548 = vperm.xlu0 %4547, %v3663
        %v4549 = vpop.permute.xlu0 %4548
        %4551 = vset.pattern.permute.xlu0 1
        %4552 = vperm.xlu0 %4551, %v3664
        %v4553 = vpop.permute.xlu0 %4552
        %4555 = vset.pattern.permute.xlu0 1
        %4556 = vperm.xlu0 %4555, %v3665
        %v4557 = vpop.permute.xlu0 %4556
        %4559 = vset.pattern.permute.xlu0 1
        %4560 = vperm.xlu0 %4559, %v3666
        %v4561 = vpop.permute.xlu0 %4560
        %v4563 = vmul.f32 %v4501, %v2069
        %v4564 = vmul.f32 %v4505, %v2073
        %v4565 = vmul.f32 %v4509, %v2079
        %v4566 = vmul.f32 %v4513, %v2083
        %v4567 = vmul.f32 %v4517, %v2089
        %v4568 = vmul.f32 %v4521, %v2093
        %v4569 = vmul.f32 %v4525, %v2099
        %v4570 = vmul.f32 %v4529, %v2103
        %v4571 = vmul.f32 %v4533, %v2109
        %v4572 = vmul.f32 %v4537, %v2113
        %v4573 = vmul.f32 %v4541, %v2119
        %v4574 = vmul.f32 %v4545, %v2123
        %v4575 = vmul.f32 %v4549, %v2129
        %v4576 = vmul.f32 %v4553, %v2133
        %v4577 = vmul.f32 %v4557, %v2139
        %v4578 = vmul.f32 %v4561, %v2143
        %4579 = vset.pattern.permute.xlu0 3
        %4580 = vperm.xlu0 %4579, %v287
        %v4581 = vpop.permute.xlu0 %4580
        %4582 = vset.pattern.permute.xlu0 3
        %4583 = vperm.xlu0 %4582, %v288
        %v4584 = vpop.permute.xlu0 %4583
        %4585 = vset.pattern.permute.xlu0 3
        %4586 = vperm.xlu0 %4585, %v289
        %v4587 = vpop.permute.xlu0 %4586
        %4588 = vset.pattern.permute.xlu0 3
        %4589 = vperm.xlu0 %4588, %v290
        %v4590 = vpop.permute.xlu0 %4589
        %4591 = vset.pattern.permute.xlu0 3
        %4592 = vperm.xlu0 %4591, %v291
        %v4593 = vpop.permute.xlu0 %4592
        %4594 = vset.pattern.permute.xlu0 3
        %4595 = vperm.xlu0 %4594, %v292
        %v4596 = vpop.permute.xlu0 %4595
        %4597 = vset.pattern.permute.xlu0 3
        %4598 = vperm.xlu0 %4597, %v293
        %v4599 = vpop.permute.xlu0 %4598
        %4600 = vset.pattern.permute.xlu0 3
        %4601 = vperm.xlu0 %4600, %v294
        %v4602 = vpop.permute.xlu0 %4601
        %4603 = vset.pattern.permute.xlu0 3
        %4604 = vperm.xlu0 %4603, %v295
        %v4605 = vpop.permute.xlu0 %4604
        %4606 = vset.pattern.permute.xlu0 3
        %4607 = vperm.xlu0 %4606, %v296
        %v4608 = vpop.permute.xlu0 %4607
        %4609 = vset.pattern.permute.xlu0 3
        %4610 = vperm.xlu0 %4609, %v297
        %v4611 = vpop.permute.xlu0 %4610
        %4612 = vset.pattern.permute.xlu0 3
        %4613 = vperm.xlu0 %4612, %v298
        %v4614 = vpop.permute.xlu0 %4613
        %4615 = vset.pattern.permute.xlu0 3
        %4616 = vperm.xlu0 %4615, %v299
        %v4617 = vpop.permute.xlu0 %4616
        %4618 = vset.pattern.permute.xlu0 3
        %4619 = vperm.xlu0 %4618, %v300
        %v4620 = vpop.permute.xlu0 %4619
        %4621 = vset.pattern.permute.xlu0 3
        %4622 = vperm.xlu0 %4621, %v301
        %v4623 = vpop.permute.xlu0 %4622
        %4624 = vset.pattern.permute.xlu0 3
        %4625 = vperm.xlu0 %4624, %v302
        %v4626 = vpop.permute.xlu0 %4625
        %4628 = vset.pattern.permute.xlu0 0
        %4629 = vperm.xlu0 %4628, %v3667
        %v4630 = vpop.permute.xlu0 %4629
        %4633 = vset.pattern.permute.xlu0 0
        %4634 = vperm.xlu0 %4633, %v3668
        %v4635 = vpop.permute.xlu0 %4634
        %4638 = vset.pattern.permute.xlu0 0
        %4639 = vperm.xlu0 %4638, %v3669
        %v4640 = vpop.permute.xlu0 %4639
        %4643 = vset.pattern.permute.xlu0 0
        %4644 = vperm.xlu0 %4643, %v3670
        %v4645 = vpop.permute.xlu0 %4644
        %4648 = vset.pattern.permute.xlu0 0
        %4649 = vperm.xlu0 %4648, %v3671
        %v4650 = vpop.permute.xlu0 %4649
        %4653 = vset.pattern.permute.xlu0 0
        %4654 = vperm.xlu0 %4653, %v3672
        %v4655 = vpop.permute.xlu0 %4654
        %4658 = vset.pattern.permute.xlu0 0
        %4659 = vperm.xlu0 %4658, %v3673
        %v4660 = vpop.permute.xlu0 %4659
        %4663 = vset.pattern.permute.xlu0 0
        %4664 = vperm.xlu0 %4663, %v3674
        %v4665 = vpop.permute.xlu0 %4664
        %4668 = vset.pattern.permute.xlu0 0
        %4669 = vperm.xlu0 %4668, %v3675
        %v4670 = vpop.permute.xlu0 %4669
        %4673 = vset.pattern.permute.xlu0 0
        %4674 = vperm.xlu0 %4673, %v3676
        %v4675 = vpop.permute.xlu0 %4674
        %4678 = vset.pattern.permute.xlu0 0
        %4679 = vperm.xlu0 %4678, %v3677
        %v4680 = vpop.permute.xlu0 %4679
        %4683 = vset.pattern.permute.xlu0 0
        %4684 = vperm.xlu0 %4683, %v3678
        %v4685 = vpop.permute.xlu0 %4684
        %4688 = vset.pattern.permute.xlu0 0
        %4689 = vperm.xlu0 %4688, %v3679
        %v4690 = vpop.permute.xlu0 %4689
        %4693 = vset.pattern.permute.xlu0 0
        %4694 = vperm.xlu0 %4693, %v3680
        %v4695 = vpop.permute.xlu0 %4694
        %4698 = vset.pattern.permute.xlu0 0
        %4699 = vperm.xlu0 %4698, %v3681
        %v4700 = vpop.permute.xlu0 %4699
        %4703 = vset.pattern.permute.xlu0 0
        %4704 = vperm.xlu0 %4703, %v3682
        %v4705 = vpop.permute.xlu0 %4704
        %v4707 = vmul.f32 %v4630, %v2149
        %v4708 = vmul.f32 %v4635, %v2153
        %v4709 = vmul.f32 %v4640, %v2159
        %v4710 = vmul.f32 %v4645, %v2163
        %v4711 = vmul.f32 %v4650, %v2169
        %v4712 = vmul.f32 %v4655, %v2173
        %v4713 = vmul.f32 %v4660, %v2179
        %v4714 = vmul.f32 %v4665, %v2183
        %v4715 = vmul.f32 %v4670, %v2189
        %v4716 = vmul.f32 %v4675, %v2193
        %v4717 = vmul.f32 %v4680, %v2199
        %v4718 = vmul.f32 %v4685, %v2203
        %v4719 = vmul.f32 %v4690, %v2209
        %v4720 = vmul.f32 %v4695, %v2213
        %v4721 = vmul.f32 %v4700, %v2219
        %v4722 = vmul.f32 %v4705, %v2223
        %4723 = vset.pattern.permute.xlu0 1
        %4724 = vperm.xlu0 %4723, %v3667
        %v4725 = vpop.permute.xlu0 %4724
        %4727 = vset.pattern.permute.xlu0 1
        %4728 = vperm.xlu0 %4727, %v3668
        %v4729 = vpop.permute.xlu0 %4728
        %4731 = vset.pattern.permute.xlu0 1
        %4732 = vperm.xlu0 %4731, %v3669
        %v4733 = vpop.permute.xlu0 %4732
        %4735 = vset.pattern.permute.xlu0 1
        %4736 = vperm.xlu0 %4735, %v3670
        %v4737 = vpop.permute.xlu0 %4736
        %4739 = vset.pattern.permute.xlu0 1
        %4740 = vperm.xlu0 %4739, %v3671
        %v4741 = vpop.permute.xlu0 %4740
        %4743 = vset.pattern.permute.xlu0 1
        %4744 = vperm.xlu0 %4743, %v3672
        %v4745 = vpop.permute.xlu0 %4744
        %4747 = vset.pattern.permute.xlu0 1
        %4748 = vperm.xlu0 %4747, %v3673
        %v4749 = vpop.permute.xlu0 %4748
        %4751 = vset.pattern.permute.xlu0 1
        %4752 = vperm.xlu0 %4751, %v3674
        %v4753 = vpop.permute.xlu0 %4752
        %4755 = vset.pattern.permute.xlu0 1
        %4756 = vperm.xlu0 %4755, %v3675
        %v4757 = vpop.permute.xlu0 %4756
        %4759 = vset.pattern.permute.xlu0 1
        %4760 = vperm.xlu0 %4759, %v3676
        %v4761 = vpop.permute.xlu0 %4760
        %4763 = vset.pattern.permute.xlu0 1
        %4764 = vperm.xlu0 %4763, %v3677
        %v4765 = vpop.permute.xlu0 %4764
        %4767 = vset.pattern.permute.xlu0 1
        %4768 = vperm.xlu0 %4767, %v3678
        %v4769 = vpop.permute.xlu0 %4768
        %4771 = vset.pattern.permute.xlu0 1
        %4772 = vperm.xlu0 %4771, %v3679
        %v4773 = vpop.permute.xlu0 %4772
        %4775 = vset.pattern.permute.xlu0 1
        %4776 = vperm.xlu0 %4775, %v3680
        %v4777 = vpop.permute.xlu0 %4776
        %4779 = vset.pattern.permute.xlu0 1
        %4780 = vperm.xlu0 %4779, %v3681
        %v4781 = vpop.permute.xlu0 %4780
        %4783 = vset.pattern.permute.xlu0 1
        %4784 = vperm.xlu0 %4783, %v3682
        %v4785 = vpop.permute.xlu0 %4784
        %v4787 = vmul.f32 %v4725, %v2149
        %v4788 = vmul.f32 %v4729, %v2153
        %v4789 = vmul.f32 %v4733, %v2159
        %v4790 = vmul.f32 %v4737, %v2163
        %v4791 = vmul.f32 %v4741, %v2169
        %v4792 = vmul.f32 %v4745, %v2173
        %v4793 = vmul.f32 %v4749, %v2179
        %v4794 = vmul.f32 %v4753, %v2183
        %v4795 = vmul.f32 %v4757, %v2189
        %v4796 = vmul.f32 %v4761, %v2193
        %v4797 = vmul.f32 %v4765, %v2199
        %v4798 = vmul.f32 %v4769, %v2203
        %v4799 = vmul.f32 %v4773, %v2209
        %v4800 = vmul.f32 %v4777, %v2213
        %v4801 = vmul.f32 %v4781, %v2219
        %v4802 = vmul.f32 %v4785, %v2223
        %4803 = vset.pattern.permute.xlu0 4
        %4804 = vperm.xlu0 %4803, %v287
        %v4805 = vpop.permute.xlu0 %4804
        %4806 = vset.pattern.permute.xlu0 4
        %4807 = vperm.xlu0 %4806, %v288
        %v4808 = vpop.permute.xlu0 %4807
        %4809 = vset.pattern.permute.xlu0 4
        %4810 = vperm.xlu0 %4809, %v289
        %v4811 = vpop.permute.xlu0 %4810
        %4812 = vset.pattern.permute.xlu0 4
        %4813 = vperm.xlu0 %4812, %v290
        %v4814 = vpop.permute.xlu0 %4813
        %4815 = vset.pattern.permute.xlu0 4
        %4816 = vperm.xlu0 %4815, %v291
        %v4817 = vpop.permute.xlu0 %4816
        %4818 = vset.pattern.permute.xlu0 4
        %4819 = vperm.xlu0 %4818, %v292
        %v4820 = vpop.permute.xlu0 %4819
        %4821 = vset.pattern.permute.xlu0 4
        %4822 = vperm.xlu0 %4821, %v293
        %v4823 = vpop.permute.xlu0 %4822
        %4824 = vset.pattern.permute.xlu0 4
        %4825 = vperm.xlu0 %4824, %v294
        %v4826 = vpop.permute.xlu0 %4825
        %4827 = vset.pattern.permute.xlu0 4
        %4828 = vperm.xlu0 %4827, %v295
        %v4829 = vpop.permute.xlu0 %4828
        %4830 = vset.pattern.permute.xlu0 4
        %4831 = vperm.xlu0 %4830, %v296
        %v4832 = vpop.permute.xlu0 %4831
        %4833 = vset.pattern.permute.xlu0 4
        %4834 = vperm.xlu0 %4833, %v297
        %v4835 = vpop.permute.xlu0 %4834
        %4836 = vset.pattern.permute.xlu0 4
        %4837 = vperm.xlu0 %4836, %v298
        %v4838 = vpop.permute.xlu0 %4837
        %4839 = vset.pattern.permute.xlu0 4
        %4840 = vperm.xlu0 %4839, %v299
        %v4841 = vpop.permute.xlu0 %4840
        %4842 = vset.pattern.permute.xlu0 4
        %4843 = vperm.xlu0 %4842, %v300
        %v4844 = vpop.permute.xlu0 %4843
        %4845 = vset.pattern.permute.xlu0 4
        %4846 = vperm.xlu0 %4845, %v301
        %v4847 = vpop.permute.xlu0 %4846
        %4848 = vset.pattern.permute.xlu0 4
        %4849 = vperm.xlu0 %4848, %v302
        %v4850 = vpop.permute.xlu0 %4849
        %4852 = vset.pattern.permute.xlu0 0
        %4853 = vperm.xlu0 %4852, %v3683
        %v4854 = vpop.permute.xlu0 %4853
        %4857 = vset.pattern.permute.xlu0 0
        %4858 = vperm.xlu0 %4857, %v3684
        %v4859 = vpop.permute.xlu0 %4858
        %4862 = vset.pattern.permute.xlu0 0
        %4863 = vperm.xlu0 %4862, %v3685
        %v4864 = vpop.permute.xlu0 %4863
        %4867 = vset.pattern.permute.xlu0 0
        %4868 = vperm.xlu0 %4867, %v3686
        %v4869 = vpop.permute.xlu0 %4868
        %4872 = vset.pattern.permute.xlu0 0
        %4873 = vperm.xlu0 %4872, %v3687
        %v4874 = vpop.permute.xlu0 %4873
        %4877 = vset.pattern.permute.xlu0 0
        %4878 = vperm.xlu0 %4877, %v3688
        %v4879 = vpop.permute.xlu0 %4878
        %4882 = vset.pattern.permute.xlu0 0
        %4883 = vperm.xlu0 %4882, %v3689
        %v4884 = vpop.permute.xlu0 %4883
        %4887 = vset.pattern.permute.xlu0 0
        %4888 = vperm.xlu0 %4887, %v3690
        %v4889 = vpop.permute.xlu0 %4888
        %4892 = vset.pattern.permute.xlu0 0
        %4893 = vperm.xlu0 %4892, %v3691
        %v4894 = vpop.permute.xlu0 %4893
        %4897 = vset.pattern.permute.xlu0 0
        %4898 = vperm.xlu0 %4897, %v3692
        %v4899 = vpop.permute.xlu0 %4898
        %4902 = vset.pattern.permute.xlu0 0
        %4903 = vperm.xlu0 %4902, %v3693
        %v4904 = vpop.permute.xlu0 %4903
        %4907 = vset.pattern.permute.xlu0 0
        %4908 = vperm.xlu0 %4907, %v3694
        %v4909 = vpop.permute.xlu0 %4908
        %4912 = vset.pattern.permute.xlu0 0
        %4913 = vperm.xlu0 %4912, %v3695
        %v4914 = vpop.permute.xlu0 %4913
        %4917 = vset.pattern.permute.xlu0 0
        %4918 = vperm.xlu0 %4917, %v3696
        %v4919 = vpop.permute.xlu0 %4918
        %4922 = vset.pattern.permute.xlu0 0
        %4923 = vperm.xlu0 %4922, %v3697
        %v4924 = vpop.permute.xlu0 %4923
        %4927 = vset.pattern.permute.xlu0 0
        %4928 = vperm.xlu0 %4927, %v3698
        %v4929 = vpop.permute.xlu0 %4928
        %v4931 = vmul.f32 %v4854, %v2229
        %v4932 = vmul.f32 %v4859, %v2233
        %v4933 = vmul.f32 %v4864, %v2239
        %v4934 = vmul.f32 %v4869, %v2243
        %v4935 = vmul.f32 %v4874, %v2249
        %v4936 = vmul.f32 %v4879, %v2253
        %v4937 = vmul.f32 %v4884, %v2259
        %v4938 = vmul.f32 %v4889, %v2263
        %v4939 = vmul.f32 %v4894, %v2269
        %v4940 = vmul.f32 %v4899, %v2273
        %v4941 = vmul.f32 %v4904, %v2279
        %v4942 = vmul.f32 %v4909, %v2283
        %v4943 = vmul.f32 %v4914, %v2289
        %v4944 = vmul.f32 %v4919, %v2293
        %v4945 = vmul.f32 %v4924, %v2299
        %v4946 = vmul.f32 %v4929, %v2303
        %4947 = vset.pattern.permute.xlu0 1
        %4948 = vperm.xlu0 %4947, %v3683
        %v4949 = vpop.permute.xlu0 %4948
        %4951 = vset.pattern.permute.xlu0 1
        %4952 = vperm.xlu0 %4951, %v3684
        %v4953 = vpop.permute.xlu0 %4952
        %4955 = vset.pattern.permute.xlu0 1
        %4956 = vperm.xlu0 %4955, %v3685
        %v4957 = vpop.permute.xlu0 %4956
        %4959 = vset.pattern.permute.xlu0 1
        %4960 = vperm.xlu0 %4959, %v3686
        %v4961 = vpop.permute.xlu0 %4960
        %4963 = vset.pattern.permute.xlu0 1
        %4964 = vperm.xlu0 %4963, %v3687
        %v4965 = vpop.permute.xlu0 %4964
        %4967 = vset.pattern.permute.xlu0 1
        %4968 = vperm.xlu0 %4967, %v3688
        %v4969 = vpop.permute.xlu0 %4968
        %4971 = vset.pattern.permute.xlu0 1
        %4972 = vperm.xlu0 %4971, %v3689
        %v4973 = vpop.permute.xlu0 %4972
        %4975 = vset.pattern.permute.xlu0 1
        %4976 = vperm.xlu0 %4975, %v3690
        %v4977 = vpop.permute.xlu0 %4976
        %4979 = vset.pattern.permute.xlu0 1
        %4980 = vperm.xlu0 %4979, %v3691
        %v4981 = vpop.permute.xlu0 %4980
        %4983 = vset.pattern.permute.xlu0 1
        %4984 = vperm.xlu0 %4983, %v3692
        %v4985 = vpop.permute.xlu0 %4984
        %4987 = vset.pattern.permute.xlu0 1
        %4988 = vperm.xlu0 %4987, %v3693
        %v4989 = vpop.permute.xlu0 %4988
        %4991 = vset.pattern.permute.xlu0 1
        %4992 = vperm.xlu0 %4991, %v3694
        %v4993 = vpop.permute.xlu0 %4992
        %4995 = vset.pattern.permute.xlu0 1
        %4996 = vperm.xlu0 %4995, %v3695
        %v4997 = vpop.permute.xlu0 %4996
        %4999 = vset.pattern.permute.xlu0 1
        %5000 = vperm.xlu0 %4999, %v3696
        %v5001 = vpop.permute.xlu0 %5000
        %5003 = vset.pattern.permute.xlu0 1
        %5004 = vperm.xlu0 %5003, %v3697
        %v5005 = vpop.permute.xlu0 %5004
        %5007 = vset.pattern.permute.xlu0 1
        %5008 = vperm.xlu0 %5007, %v3698
        %v5009 = vpop.permute.xlu0 %5008
        %v5011 = vmul.f32 %v4949, %v2229
        %v5012 = vmul.f32 %v4953, %v2233
        %v5013 = vmul.f32 %v4957, %v2239
        %v5014 = vmul.f32 %v4961, %v2243
        %v5015 = vmul.f32 %v4965, %v2249
        %v5016 = vmul.f32 %v4969, %v2253
        %v5017 = vmul.f32 %v4973, %v2259
        %v5018 = vmul.f32 %v4977, %v2263
        %v5019 = vmul.f32 %v4981, %v2269
        %v5020 = vmul.f32 %v4985, %v2273
        %v5021 = vmul.f32 %v4989, %v2279
        %v5022 = vmul.f32 %v4993, %v2283
        %v5023 = vmul.f32 %v4997, %v2289
        %v5024 = vmul.f32 %v5001, %v2293
        %v5025 = vmul.f32 %v5005, %v2299
        %v5026 = vmul.f32 %v5009, %v2303
        %5027 = vset.pattern.permute.xlu0 5
        %5028 = vperm.xlu0 %5027, %v287
        %v5029 = vpop.permute.xlu0 %5028
        %5030 = vset.pattern.permute.xlu0 5
        %5031 = vperm.xlu0 %5030, %v288
        %v5032 = vpop.permute.xlu0 %5031
        %5033 = vset.pattern.permute.xlu0 5
        %5034 = vperm.xlu0 %5033, %v289
        %v5035 = vpop.permute.xlu0 %5034
        %5036 = vset.pattern.permute.xlu0 5
        %5037 = vperm.xlu0 %5036, %v290
        %v5038 = vpop.permute.xlu0 %5037
        %5039 = vset.pattern.permute.xlu0 5
        %5040 = vperm.xlu0 %5039, %v291
        %v5041 = vpop.permute.xlu0 %5040
        %5042 = vset.pattern.permute.xlu0 5
        %5043 = vperm.xlu0 %5042, %v292
        %v5044 = vpop.permute.xlu0 %5043
        %5045 = vset.pattern.permute.xlu0 5
        %5046 = vperm.xlu0 %5045, %v293
        %v5047 = vpop.permute.xlu0 %5046
        %5048 = vset.pattern.permute.xlu0 5
        %5049 = vperm.xlu0 %5048, %v294
        %v5050 = vpop.permute.xlu0 %5049
        %5051 = vset.pattern.permute.xlu0 5
        %5052 = vperm.xlu0 %5051, %v295
        %v5053 = vpop.permute.xlu0 %5052
        %5054 = vset.pattern.permute.xlu0 5
        %5055 = vperm.xlu0 %5054, %v296
        %v5056 = vpop.permute.xlu0 %5055
        %5057 = vset.pattern.permute.xlu0 5
        %5058 = vperm.xlu0 %5057, %v297
        %v5059 = vpop.permute.xlu0 %5058
        %5060 = vset.pattern.permute.xlu0 5
        %5061 = vperm.xlu0 %5060, %v298
        %v5062 = vpop.permute.xlu0 %5061
        %5063 = vset.pattern.permute.xlu0 5
        %5064 = vperm.xlu0 %5063, %v299
        %v5065 = vpop.permute.xlu0 %5064
        %5066 = vset.pattern.permute.xlu0 5
        %5067 = vperm.xlu0 %5066, %v300
        %v5068 = vpop.permute.xlu0 %5067
        %5069 = vset.pattern.permute.xlu0 5
        %5070 = vperm.xlu0 %5069, %v301
        %v5071 = vpop.permute.xlu0 %5070
        %5072 = vset.pattern.permute.xlu0 5
        %5073 = vperm.xlu0 %5072, %v302
        %v5074 = vpop.permute.xlu0 %5073
        %5076 = vset.pattern.permute.xlu0 0
        %5077 = vperm.xlu0 %5076, %v3699
        %v5078 = vpop.permute.xlu0 %5077
        %5081 = vset.pattern.permute.xlu0 0
        %5082 = vperm.xlu0 %5081, %v3700
        %v5083 = vpop.permute.xlu0 %5082
        %5086 = vset.pattern.permute.xlu0 0
        %5087 = vperm.xlu0 %5086, %v3701
        %v5088 = vpop.permute.xlu0 %5087
        %5091 = vset.pattern.permute.xlu0 0
        %5092 = vperm.xlu0 %5091, %v3702
        %v5093 = vpop.permute.xlu0 %5092
        %5096 = vset.pattern.permute.xlu0 0
        %5097 = vperm.xlu0 %5096, %v3703
        %v5098 = vpop.permute.xlu0 %5097
        %5101 = vset.pattern.permute.xlu0 0
        %5102 = vperm.xlu0 %5101, %v3704
        %v5103 = vpop.permute.xlu0 %5102
        %5106 = vset.pattern.permute.xlu0 0
        %5107 = vperm.xlu0 %5106, %v3705
        %v5108 = vpop.permute.xlu0 %5107
        %5111 = vset.pattern.permute.xlu0 0
        %5112 = vperm.xlu0 %5111, %v3706
        %v5113 = vpop.permute.xlu0 %5112
        %5116 = vset.pattern.permute.xlu0 0
        %5117 = vperm.xlu0 %5116, %v3707
        %v5118 = vpop.permute.xlu0 %5117
        %5121 = vset.pattern.permute.xlu0 0
        %5122 = vperm.xlu0 %5121, %v3708
        %v5123 = vpop.permute.xlu0 %5122
        %5126 = vset.pattern.permute.xlu0 0
        %5127 = vperm.xlu0 %5126, %v3709
        %v5128 = vpop.permute.xlu0 %5127
        %5131 = vset.pattern.permute.xlu0 0
        %5132 = vperm.xlu0 %5131, %v3710
        %v5133 = vpop.permute.xlu0 %5132
        %5136 = vset.pattern.permute.xlu0 0
        %5137 = vperm.xlu0 %5136, %v3711
        %v5138 = vpop.permute.xlu0 %5137
        %5141 = vset.pattern.permute.xlu0 0
        %5142 = vperm.xlu0 %5141, %v3712
        %v5143 = vpop.permute.xlu0 %5142
        %5146 = vset.pattern.permute.xlu0 0
        %5147 = vperm.xlu0 %5146, %v3713
        %v5148 = vpop.permute.xlu0 %5147
        %5151 = vset.pattern.permute.xlu0 0
        %5152 = vperm.xlu0 %5151, %v3714
        %v5153 = vpop.permute.xlu0 %5152
        %v5155 = vmul.f32 %v5078, %v2309
        %v5156 = vmul.f32 %v5083, %v2313
        %v5157 = vmul.f32 %v5088, %v2319
        %v5158 = vmul.f32 %v5093, %v2323
        %v5159 = vmul.f32 %v5098, %v2329
        %v5160 = vmul.f32 %v5103, %v2333
        %v5161 = vmul.f32 %v5108, %v2339
        %v5162 = vmul.f32 %v5113, %v2343
        %v5163 = vmul.f32 %v5118, %v2349
        %v5164 = vmul.f32 %v5123, %v2353
        %v5165 = vmul.f32 %v5128, %v2359
        %v5166 = vmul.f32 %v5133, %v2363
        %v5167 = vmul.f32 %v5138, %v2369
        %v5168 = vmul.f32 %v5143, %v2373
        %v5169 = vmul.f32 %v5148, %v2379
        %v5170 = vmul.f32 %v5153, %v2383
        %5171 = vset.pattern.permute.xlu0 1
        %5172 = vperm.xlu0 %5171, %v3699
        %v5173 = vpop.permute.xlu0 %5172
        %5175 = vset.pattern.permute.xlu0 1
        %5176 = vperm.xlu0 %5175, %v3700
        %v5177 = vpop.permute.xlu0 %5176
        %5179 = vset.pattern.permute.xlu0 1
        %5180 = vperm.xlu0 %5179, %v3701
        %v5181 = vpop.permute.xlu0 %5180
        %5183 = vset.pattern.permute.xlu0 1
        %5184 = vperm.xlu0 %5183, %v3702
        %v5185 = vpop.permute.xlu0 %5184
        %5187 = vset.pattern.permute.xlu0 1
        %5188 = vperm.xlu0 %5187, %v3703
        %v5189 = vpop.permute.xlu0 %5188
        %5191 = vset.pattern.permute.xlu0 1
        %5192 = vperm.xlu0 %5191, %v3704
        %v5193 = vpop.permute.xlu0 %5192
        %5195 = vset.pattern.permute.xlu0 1
        %5196 = vperm.xlu0 %5195, %v3705
        %v5197 = vpop.permute.xlu0 %5196
        %5199 = vset.pattern.permute.xlu0 1
        %5200 = vperm.xlu0 %5199, %v3706
        %v5201 = vpop.permute.xlu0 %5200
        %5203 = vset.pattern.permute.xlu0 1
        %5204 = vperm.xlu0 %5203, %v3707
        %v5205 = vpop.permute.xlu0 %5204
        %5207 = vset.pattern.permute.xlu0 1
        %5208 = vperm.xlu0 %5207, %v3708
        %v5209 = vpop.permute.xlu0 %5208
        %5211 = vset.pattern.permute.xlu0 1
        %5212 = vperm.xlu0 %5211, %v3709
        %v5213 = vpop.permute.xlu0 %5212
        %5215 = vset.pattern.permute.xlu0 1
        %5216 = vperm.xlu0 %5215, %v3710
        %v5217 = vpop.permute.xlu0 %5216
        %5219 = vset.pattern.permute.xlu0 1
        %5220 = vperm.xlu0 %5219, %v3711
        %v5221 = vpop.permute.xlu0 %5220
        %5223 = vset.pattern.permute.xlu0 1
        %5224 = vperm.xlu0 %5223, %v3712
        %v5225 = vpop.permute.xlu0 %5224
        %5227 = vset.pattern.permute.xlu0 1
        %5228 = vperm.xlu0 %5227, %v3713
        %v5229 = vpop.permute.xlu0 %5228
        %5231 = vset.pattern.permute.xlu0 1
        %5232 = vperm.xlu0 %5231, %v3714
        %v5233 = vpop.permute.xlu0 %5232
        %v5235 = vmul.f32 %v5173, %v2309
        %v5236 = vmul.f32 %v5177, %v2313
        %v5237 = vmul.f32 %v5181, %v2319
        %v5238 = vmul.f32 %v5185, %v2323
        %v5239 = vmul.f32 %v5189, %v2329
        %v5240 = vmul.f32 %v5193, %v2333
        %v5241 = vmul.f32 %v5197, %v2339
        %v5242 = vmul.f32 %v5201, %v2343
        %v5243 = vmul.f32 %v5205, %v2349
        %v5244 = vmul.f32 %v5209, %v2353
        %v5245 = vmul.f32 %v5213, %v2359
        %v5246 = vmul.f32 %v5217, %v2363
        %v5247 = vmul.f32 %v5221, %v2369
        %v5248 = vmul.f32 %v5225, %v2373
        %v5249 = vmul.f32 %v5229, %v2379
        %v5250 = vmul.f32 %v5233, %v2383
        %5251 = vset.pattern.permute.xlu0 6
        %5252 = vperm.xlu0 %5251, %v287
        %v5253 = vpop.permute.xlu0 %5252
        %5254 = vset.pattern.permute.xlu0 6
        %5255 = vperm.xlu0 %5254, %v288
        %v5256 = vpop.permute.xlu0 %5255
        %5257 = vset.pattern.permute.xlu0 6
        %5258 = vperm.xlu0 %5257, %v289
        %v5259 = vpop.permute.xlu0 %5258
        %5260 = vset.pattern.permute.xlu0 6
        %5261 = vperm.xlu0 %5260, %v290
        %v5262 = vpop.permute.xlu0 %5261
        %5263 = vset.pattern.permute.xlu0 6
        %5264 = vperm.xlu0 %5263, %v291
        %v5265 = vpop.permute.xlu0 %5264
        %5266 = vset.pattern.permute.xlu0 6
        %5267 = vperm.xlu0 %5266, %v292
        %v5268 = vpop.permute.xlu0 %5267
        %5269 = vset.pattern.permute.xlu0 6
        %5270 = vperm.xlu0 %5269, %v293
        %v5271 = vpop.permute.xlu0 %5270
        %5272 = vset.pattern.permute.xlu0 6
        %5273 = vperm.xlu0 %5272, %v294
        %v5274 = vpop.permute.xlu0 %5273
        %5275 = vset.pattern.permute.xlu0 6
        %5276 = vperm.xlu0 %5275, %v295
        %v5277 = vpop.permute.xlu0 %5276
        %5278 = vset.pattern.permute.xlu0 6
        %5279 = vperm.xlu0 %5278, %v296
        %v5280 = vpop.permute.xlu0 %5279
        %5281 = vset.pattern.permute.xlu0 6
        %5282 = vperm.xlu0 %5281, %v297
        %v5283 = vpop.permute.xlu0 %5282
        %5284 = vset.pattern.permute.xlu0 6
        %5285 = vperm.xlu0 %5284, %v298
        %v5286 = vpop.permute.xlu0 %5285
        %5287 = vset.pattern.permute.xlu0 6
        %5288 = vperm.xlu0 %5287, %v299
        %v5289 = vpop.permute.xlu0 %5288
        %5290 = vset.pattern.permute.xlu0 6
        %5291 = vperm.xlu0 %5290, %v300
        %v5292 = vpop.permute.xlu0 %5291
        %5293 = vset.pattern.permute.xlu0 6
        %5294 = vperm.xlu0 %5293, %v301
        %v5295 = vpop.permute.xlu0 %5294
        %5296 = vset.pattern.permute.xlu0 6
        %5297 = vperm.xlu0 %5296, %v302
        %v5298 = vpop.permute.xlu0 %5297
        %5300 = vset.pattern.permute.xlu0 0
        %5301 = vperm.xlu0 %5300, %v3715
        %v5302 = vpop.permute.xlu0 %5301
        %5305 = vset.pattern.permute.xlu0 0
        %5306 = vperm.xlu0 %5305, %v3716
        %v5307 = vpop.permute.xlu0 %5306
        %5310 = vset.pattern.permute.xlu0 0
        %5311 = vperm.xlu0 %5310, %v3717
        %v5312 = vpop.permute.xlu0 %5311
        %5315 = vset.pattern.permute.xlu0 0
        %5316 = vperm.xlu0 %5315, %v3718
        %v5317 = vpop.permute.xlu0 %5316
        %5320 = vset.pattern.permute.xlu0 0
        %5321 = vperm.xlu0 %5320, %v3719
        %v5322 = vpop.permute.xlu0 %5321
        %5325 = vset.pattern.permute.xlu0 0
        %5326 = vperm.xlu0 %5325, %v3720
        %v5327 = vpop.permute.xlu0 %5326
        %5330 = vset.pattern.permute.xlu0 0
        %5331 = vperm.xlu0 %5330, %v3721
        %v5332 = vpop.permute.xlu0 %5331
        %5335 = vset.pattern.permute.xlu0 0
        %5336 = vperm.xlu0 %5335, %v3722
        %v5337 = vpop.permute.xlu0 %5336
        %5340 = vset.pattern.permute.xlu0 0
        %5341 = vperm.xlu0 %5340, %v3723
        %v5342 = vpop.permute.xlu0 %5341
        %5345 = vset.pattern.permute.xlu0 0
        %5346 = vperm.xlu0 %5345, %v3724
        %v5347 = vpop.permute.xlu0 %5346
        %5350 = vset.pattern.permute.xlu0 0
        %5351 = vperm.xlu0 %5350, %v3725
        %v5352 = vpop.permute.xlu0 %5351
        %5355 = vset.pattern.permute.xlu0 0
        %5356 = vperm.xlu0 %5355, %v3726
        %v5357 = vpop.permute.xlu0 %5356
        %5360 = vset.pattern.permute.xlu0 0
        %5361 = vperm.xlu0 %5360, %v3727
        %v5362 = vpop.permute.xlu0 %5361
        %5365 = vset.pattern.permute.xlu0 0
        %5366 = vperm.xlu0 %5365, %v3728
        %v5367 = vpop.permute.xlu0 %5366
        %5370 = vset.pattern.permute.xlu0 0
        %5371 = vperm.xlu0 %5370, %v3729
        %v5372 = vpop.permute.xlu0 %5371
        %5375 = vset.pattern.permute.xlu0 0
        %5376 = vperm.xlu0 %5375, %v3730
        %v5377 = vpop.permute.xlu0 %5376
        %v5379 = vmul.f32 %v5302, %v2389
        %v5380 = vmul.f32 %v5307, %v2393
        %v5381 = vmul.f32 %v5312, %v2399
        %v5382 = vmul.f32 %v5317, %v2403
        %v5383 = vmul.f32 %v5322, %v2409
        %v5384 = vmul.f32 %v5327, %v2413
        %v5385 = vmul.f32 %v5332, %v2419
        %v5386 = vmul.f32 %v5337, %v2423
        %v5387 = vmul.f32 %v5342, %v2429
        %v5388 = vmul.f32 %v5347, %v2433
        %v5389 = vmul.f32 %v5352, %v2439
        %v5390 = vmul.f32 %v5357, %v2443
        %v5391 = vmul.f32 %v5362, %v2449
        %v5392 = vmul.f32 %v5367, %v2453
        %v5393 = vmul.f32 %v5372, %v2459
        %v5394 = vmul.f32 %v5377, %v2463
        %5395 = vset.pattern.permute.xlu0 1
        %5396 = vperm.xlu0 %5395, %v3715
        %v5397 = vpop.permute.xlu0 %5396
        %5399 = vset.pattern.permute.xlu0 1
        %5400 = vperm.xlu0 %5399, %v3716
        %v5401 = vpop.permute.xlu0 %5400
        %5403 = vset.pattern.permute.xlu0 1
        %5404 = vperm.xlu0 %5403, %v3717
        %v5405 = vpop.permute.xlu0 %5404
        %5407 = vset.pattern.permute.xlu0 1
        %5408 = vperm.xlu0 %5407, %v3718
        %v5409 = vpop.permute.xlu0 %5408
        %5411 = vset.pattern.permute.xlu0 1
        %5412 = vperm.xlu0 %5411, %v3719
        %v5413 = vpop.permute.xlu0 %5412
        %5415 = vset.pattern.permute.xlu0 1
        %5416 = vperm.xlu0 %5415, %v3720
        %v5417 = vpop.permute.xlu0 %5416
        %5419 = vset.pattern.permute.xlu0 1
        %5420 = vperm.xlu0 %5419, %v3721
        %v5421 = vpop.permute.xlu0 %5420
        %5423 = vset.pattern.permute.xlu0 1
        %5424 = vperm.xlu0 %5423, %v3722
        %v5425 = vpop.permute.xlu0 %5424
        %5427 = vset.pattern.permute.xlu0 1
        %5428 = vperm.xlu0 %5427, %v3723
        %v5429 = vpop.permute.xlu0 %5428
        %5431 = vset.pattern.permute.xlu0 1
        %5432 = vperm.xlu0 %5431, %v3724
        %v5433 = vpop.permute.xlu0 %5432
        %5435 = vset.pattern.permute.xlu0 1
        %5436 = vperm.xlu0 %5435, %v3725
        %v5437 = vpop.permute.xlu0 %5436
        %5439 = vset.pattern.permute.xlu0 1
        %5440 = vperm.xlu0 %5439, %v3726
        %v5441 = vpop.permute.xlu0 %5440
        %5443 = vset.pattern.permute.xlu0 1
        %5444 = vperm.xlu0 %5443, %v3727
        %v5445 = vpop.permute.xlu0 %5444
        %5447 = vset.pattern.permute.xlu0 1
        %5448 = vperm.xlu0 %5447, %v3728
        %v5449 = vpop.permute.xlu0 %5448
        %5451 = vset.pattern.permute.xlu0 1
        %5452 = vperm.xlu0 %5451, %v3729
        %v5453 = vpop.permute.xlu0 %5452
        %5455 = vset.pattern.permute.xlu0 1
        %5456 = vperm.xlu0 %5455, %v3730
        %v5457 = vpop.permute.xlu0 %5456
        %v5459 = vmul.f32 %v5397, %v2389
        %v5460 = vmul.f32 %v5401, %v2393
        %v5461 = vmul.f32 %v5405, %v2399
        %v5462 = vmul.f32 %v5409, %v2403
        %v5463 = vmul.f32 %v5413, %v2409
        %v5464 = vmul.f32 %v5417, %v2413
        %v5465 = vmul.f32 %v5421, %v2419
        %v5466 = vmul.f32 %v5425, %v2423
        %v5467 = vmul.f32 %v5429, %v2429
        %v5468 = vmul.f32 %v5433, %v2433
        %v5469 = vmul.f32 %v5437, %v2439
        %v5470 = vmul.f32 %v5441, %v2443
        %v5471 = vmul.f32 %v5445, %v2449
        %v5472 = vmul.f32 %v5449, %v2453
        %v5473 = vmul.f32 %v5453, %v2459
        %v5474 = vmul.f32 %v5457, %v2463
        %5475 = vset.pattern.permute.xlu0 7
        %5476 = vperm.xlu0 %5475, %v287
        %v5477 = vpop.permute.xlu0 %5476
        %5478 = vset.pattern.permute.xlu0 7
        %5479 = vperm.xlu0 %5478, %v288
        %v5480 = vpop.permute.xlu0 %5479
        %5481 = vset.pattern.permute.xlu0 7
        %5482 = vperm.xlu0 %5481, %v289
        %v5483 = vpop.permute.xlu0 %5482
        %5484 = vset.pattern.permute.xlu0 7
        %5485 = vperm.xlu0 %5484, %v290
        %v5486 = vpop.permute.xlu0 %5485
        %5487 = vset.pattern.permute.xlu0 7
        %5488 = vperm.xlu0 %5487, %v291
        %v5489 = vpop.permute.xlu0 %5488
        %5490 = vset.pattern.permute.xlu0 7
        %5491 = vperm.xlu0 %5490, %v292
        %v5492 = vpop.permute.xlu0 %5491
        %5493 = vset.pattern.permute.xlu0 7
        %5494 = vperm.xlu0 %5493, %v293
        %v5495 = vpop.permute.xlu0 %5494
        %5496 = vset.pattern.permute.xlu0 7
        %5497 = vperm.xlu0 %5496, %v294
        %v5498 = vpop.permute.xlu0 %5497
        %5499 = vset.pattern.permute.xlu0 7
        %5500 = vperm.xlu0 %5499, %v295
        %v5501 = vpop.permute.xlu0 %5500
        %5502 = vset.pattern.permute.xlu0 7
        %5503 = vperm.xlu0 %5502, %v296
        %v5504 = vpop.permute.xlu0 %5503
        %5505 = vset.pattern.permute.xlu0 7
        %5506 = vperm.xlu0 %5505, %v297
        %v5507 = vpop.permute.xlu0 %5506
        %5508 = vset.pattern.permute.xlu0 7
        %5509 = vperm.xlu0 %5508, %v298
        %v5510 = vpop.permute.xlu0 %5509
        %5511 = vset.pattern.permute.xlu0 7
        %5512 = vperm.xlu0 %5511, %v299
        %v5513 = vpop.permute.xlu0 %5512
        %5514 = vset.pattern.permute.xlu0 7
        %5515 = vperm.xlu0 %5514, %v300
        %v5516 = vpop.permute.xlu0 %5515
        %5517 = vset.pattern.permute.xlu0 7
        %5518 = vperm.xlu0 %5517, %v301
        %v5519 = vpop.permute.xlu0 %5518
        %5520 = vset.pattern.permute.xlu0 7
        %5521 = vperm.xlu0 %5520, %v302
        %v5522 = vpop.permute.xlu0 %5521
        %vm5523 = vcmp.eq.s32.totalorder %v3909, 0
        %vm5524 = vcmp.eq.s32.totalorder %v3912, 0
        %vm5525 = vcmp.eq.s32.totalorder %v3915, 0
        %vm5526 = vcmp.eq.s32.totalorder %v3918, 0
        %vm5527 = vcmp.eq.s32.totalorder %v3921, 0
        %vm5528 = vcmp.eq.s32.totalorder %v3924, 0
        %vm5529 = vcmp.eq.s32.totalorder %v3927, 0
        %vm5530 = vcmp.eq.s32.totalorder %v3930, 0
        %vm5531 = vcmp.eq.s32.totalorder %v3933, 0
        %vm5532 = vcmp.eq.s32.totalorder %v3936, 0
        %vm5533 = vcmp.eq.s32.totalorder %v3939, 0
        %vm5534 = vcmp.eq.s32.totalorder %v3942, 0
        %vm5535 = vcmp.eq.s32.totalorder %v3945, 0
        %vm5536 = vcmp.eq.s32.totalorder %v3948, 0
        %vm5537 = vcmp.eq.s32.totalorder %v3951, 0
        %vm5538 = vcmp.eq.s32.totalorder %v3954, 0
        %v5539 = vsel %vm5523, %v3811, 0.0
        %v5540 = vsel %vm5524, %v3812, 0.0
        %v5541 = vsel %vm5525, %v3813, 0.0
        %v5542 = vsel %vm5526, %v3814, 0.0
        %v5543 = vsel %vm5527, %v3815, 0.0
        %v5544 = vsel %vm5528, %v3816, 0.0
        %v5545 = vsel %vm5529, %v3817, 0.0
        %v5546 = vsel %vm5530, %v3818, 0.0
        %v5547 = vsel %vm5531, %v3819, 0.0
        %v5548 = vsel %vm5532, %v3820, 0.0
        %v5549 = vsel %vm5533, %v3821, 0.0
        %v5550 = vsel %vm5534, %v3822, 0.0
        %v5551 = vsel %vm5535, %v3823, 0.0
        %v5552 = vsel %vm5536, %v3824, 0.0
        %v5553 = vsel %vm5537, %v3825, 0.0
        %v5554 = vsel %vm5538, %v3826, 0.0
        %v5555 = vadd.f32 %v5539, 0.0
        %v5556 = vadd.f32 %v5540, 0.0
        %v5557 = vadd.f32 %v5541, 0.0
        %v5558 = vadd.f32 %v5542, 0.0
        %v5559 = vadd.f32 %v5543, 0.0
        %v5560 = vadd.f32 %v5544, 0.0
        %v5561 = vadd.f32 %v5545, 0.0
        %v5562 = vadd.f32 %v5546, 0.0
        %v5563 = vadd.f32 %v5547, 0.0
        %v5564 = vadd.f32 %v5548, 0.0
        %v5565 = vadd.f32 %v5549, 0.0
        %v5566 = vadd.f32 %v5550, 0.0
        %v5567 = vadd.f32 %v5551, 0.0
        %v5568 = vadd.f32 %v5552, 0.0
        %v5569 = vadd.f32 %v5553, 0.0
        %v5570 = vadd.f32 %v5554, 0.0
        %v5571 = vsel %vm5523, %v3891, 0.0
        %v5572 = vsel %vm5524, %v3892, 0.0
        %v5573 = vsel %vm5525, %v3893, 0.0
        %v5574 = vsel %vm5526, %v3894, 0.0
        %v5575 = vsel %vm5527, %v3895, 0.0
        %v5576 = vsel %vm5528, %v3896, 0.0
        %v5577 = vsel %vm5529, %v3897, 0.0
        %v5578 = vsel %vm5530, %v3898, 0.0
        %v5579 = vsel %vm5531, %v3899, 0.0
        %v5580 = vsel %vm5532, %v3900, 0.0
        %v5581 = vsel %vm5533, %v3901, 0.0
        %v5582 = vsel %vm5534, %v3902, 0.0
        %v5583 = vsel %vm5535, %v3903, 0.0
        %v5584 = vsel %vm5536, %v3904, 0.0
        %v5585 = vsel %vm5537, %v3905, 0.0
        %v5586 = vsel %vm5538, %v3906, 0.0
        %v5587 = vadd.f32 %v5571, 0.0
        %v5588 = vadd.f32 %v5572, 0.0
        %v5589 = vadd.f32 %v5573, 0.0
        %v5590 = vadd.f32 %v5574, 0.0
        %v5591 = vadd.f32 %v5575, 0.0
        %v5592 = vadd.f32 %v5576, 0.0
        %v5593 = vadd.f32 %v5577, 0.0
        %v5594 = vadd.f32 %v5578, 0.0
        %v5595 = vadd.f32 %v5579, 0.0
        %v5596 = vadd.f32 %v5580, 0.0
        %v5597 = vadd.f32 %v5581, 0.0
        %v5598 = vadd.f32 %v5582, 0.0
        %v5599 = vadd.f32 %v5583, 0.0
        %v5600 = vadd.f32 %v5584, 0.0
        %v5601 = vadd.f32 %v5585, 0.0
        %v5602 = vadd.f32 %v5586, 0.0
        %vm5603 = vcmp.eq.s32.totalorder %v4133, 0
        %vm5604 = vcmp.eq.s32.totalorder %v4136, 0
        %vm5605 = vcmp.eq.s32.totalorder %v4139, 0
        %vm5606 = vcmp.eq.s32.totalorder %v4142, 0
        %vm5607 = vcmp.eq.s32.totalorder %v4145, 0
        %vm5608 = vcmp.eq.s32.totalorder %v4148, 0
        %vm5609 = vcmp.eq.s32.totalorder %v4151, 0
        %vm5610 = vcmp.eq.s32.totalorder %v4154, 0
        %vm5611 = vcmp.eq.s32.totalorder %v4157, 0
        %vm5612 = vcmp.eq.s32.totalorder %v4160, 0
        %vm5613 = vcmp.eq.s32.totalorder %v4163, 0
        %vm5614 = vcmp.eq.s32.totalorder %v4166, 0
        %vm5615 = vcmp.eq.s32.totalorder %v4169, 0
        %vm5616 = vcmp.eq.s32.totalorder %v4172, 0
        %vm5617 = vcmp.eq.s32.totalorder %v4175, 0
        %vm5618 = vcmp.eq.s32.totalorder %v4178, 0
        %v5619 = vsel %vm5603, %v4035, 0.0
        %v5620 = vsel %vm5604, %v4036, 0.0
        %v5621 = vsel %vm5605, %v4037, 0.0
        %v5622 = vsel %vm5606, %v4038, 0.0
        %v5623 = vsel %vm5607, %v4039, 0.0
        %v5624 = vsel %vm5608, %v4040, 0.0
        %v5625 = vsel %vm5609, %v4041, 0.0
        %v5626 = vsel %vm5610, %v4042, 0.0
        %v5627 = vsel %vm5611, %v4043, 0.0
        %v5628 = vsel %vm5612, %v4044, 0.0
        %v5629 = vsel %vm5613, %v4045, 0.0
        %v5630 = vsel %vm5614, %v4046, 0.0
        %v5631 = vsel %vm5615, %v4047, 0.0
        %v5632 = vsel %vm5616, %v4048, 0.0
        %v5633 = vsel %vm5617, %v4049, 0.0
        %v5634 = vsel %vm5618, %v4050, 0.0
        %v5635 = vadd.f32 %v5555, %v5619
        %v5636 = vadd.f32 %v5556, %v5620
        %v5637 = vadd.f32 %v5557, %v5621
        %v5638 = vadd.f32 %v5558, %v5622
        %v5639 = vadd.f32 %v5559, %v5623
        %v5640 = vadd.f32 %v5560, %v5624
        %v5641 = vadd.f32 %v5561, %v5625
        %v5642 = vadd.f32 %v5562, %v5626
        %v5643 = vadd.f32 %v5563, %v5627
        %v5644 = vadd.f32 %v5564, %v5628
        %v5645 = vadd.f32 %v5565, %v5629
        %v5646 = vadd.f32 %v5566, %v5630
        %v5647 = vadd.f32 %v5567, %v5631
        %v5648 = vadd.f32 %v5568, %v5632
        %v5649 = vadd.f32 %v5569, %v5633
        %v5650 = vadd.f32 %v5570, %v5634
        %v5651 = vsel %vm5603, %v4115, 0.0
        %v5652 = vsel %vm5604, %v4116, 0.0
        %v5653 = vsel %vm5605, %v4117, 0.0
        %v5654 = vsel %vm5606, %v4118, 0.0
        %v5655 = vsel %vm5607, %v4119, 0.0
        %v5656 = vsel %vm5608, %v4120, 0.0
        %v5657 = vsel %vm5609, %v4121, 0.0
        %v5658 = vsel %vm5610, %v4122, 0.0
        %v5659 = vsel %vm5611, %v4123, 0.0
        %v5660 = vsel %vm5612, %v4124, 0.0
        %v5661 = vsel %vm5613, %v4125, 0.0
        %v5662 = vsel %vm5614, %v4126, 0.0
        %v5663 = vsel %vm5615, %v4127, 0.0
        %v5664 = vsel %vm5616, %v4128, 0.0
        %v5665 = vsel %vm5617, %v4129, 0.0
        %v5666 = vsel %vm5618, %v4130, 0.0
        %v5667 = vadd.f32 %v5587, %v5651
        %v5668 = vadd.f32 %v5588, %v5652
        %v5669 = vadd.f32 %v5589, %v5653
        %v5670 = vadd.f32 %v5590, %v5654
        %v5671 = vadd.f32 %v5591, %v5655
        %v5672 = vadd.f32 %v5592, %v5656
        %v5673 = vadd.f32 %v5593, %v5657
        %v5674 = vadd.f32 %v5594, %v5658
        %v5675 = vadd.f32 %v5595, %v5659
        %v5676 = vadd.f32 %v5596, %v5660
        %v5677 = vadd.f32 %v5597, %v5661
        %v5678 = vadd.f32 %v5598, %v5662
        %v5679 = vadd.f32 %v5599, %v5663
        %v5680 = vadd.f32 %v5600, %v5664
        %v5681 = vadd.f32 %v5601, %v5665
        %v5682 = vadd.f32 %v5602, %v5666
        %vm5683 = vcmp.eq.s32.totalorder %v4357, 0
        %vm5684 = vcmp.eq.s32.totalorder %v4360, 0
        %vm5685 = vcmp.eq.s32.totalorder %v4363, 0
        %vm5686 = vcmp.eq.s32.totalorder %v4366, 0
        %vm5687 = vcmp.eq.s32.totalorder %v4369, 0
        %vm5688 = vcmp.eq.s32.totalorder %v4372, 0
        %vm5689 = vcmp.eq.s32.totalorder %v4375, 0
        %vm5690 = vcmp.eq.s32.totalorder %v4378, 0
        %vm5691 = vcmp.eq.s32.totalorder %v4381, 0
        %vm5692 = vcmp.eq.s32.totalorder %v4384, 0
        %vm5693 = vcmp.eq.s32.totalorder %v4387, 0
        %vm5694 = vcmp.eq.s32.totalorder %v4390, 0
        %vm5695 = vcmp.eq.s32.totalorder %v4393, 0
        %vm5696 = vcmp.eq.s32.totalorder %v4396, 0
        %vm5697 = vcmp.eq.s32.totalorder %v4399, 0
        %vm5698 = vcmp.eq.s32.totalorder %v4402, 0
        %v5699 = vsel %vm5683, %v4259, 0.0
        %v5700 = vsel %vm5684, %v4260, 0.0
        %v5701 = vsel %vm5685, %v4261, 0.0
        %v5702 = vsel %vm5686, %v4262, 0.0
        %v5703 = vsel %vm5687, %v4263, 0.0
        %v5704 = vsel %vm5688, %v4264, 0.0
        %v5705 = vsel %vm5689, %v4265, 0.0
        %v5706 = vsel %vm5690, %v4266, 0.0
        %v5707 = vsel %vm5691, %v4267, 0.0
        %v5708 = vsel %vm5692, %v4268, 0.0
        %v5709 = vsel %vm5693, %v4269, 0.0
        %v5710 = vsel %vm5694, %v4270, 0.0
        %v5711 = vsel %vm5695, %v4271, 0.0
        %v5712 = vsel %vm5696, %v4272, 0.0
        %v5713 = vsel %vm5697, %v4273, 0.0
        %v5714 = vsel %vm5698, %v4274, 0.0
        %v5715 = vadd.f32 %v5635, %v5699
        %v5716 = vadd.f32 %v5636, %v5700
        %v5717 = vadd.f32 %v5637, %v5701
        %v5718 = vadd.f32 %v5638, %v5702
        %v5719 = vadd.f32 %v5639, %v5703
        %v5720 = vadd.f32 %v5640, %v5704
        %v5721 = vadd.f32 %v5641, %v5705
        %v5722 = vadd.f32 %v5642, %v5706
        %v5723 = vadd.f32 %v5643, %v5707
        %v5724 = vadd.f32 %v5644, %v5708
        %v5725 = vadd.f32 %v5645, %v5709
        %v5726 = vadd.f32 %v5646, %v5710
        %v5727 = vadd.f32 %v5647, %v5711
        %v5728 = vadd.f32 %v5648, %v5712
        %v5729 = vadd.f32 %v5649, %v5713
        %v5730 = vadd.f32 %v5650, %v5714
        %v5731 = vsel %vm5683, %v4339, 0.0
        %v5732 = vsel %vm5684, %v4340, 0.0
        %v5733 = vsel %vm5685, %v4341, 0.0
        %v5734 = vsel %vm5686, %v4342, 0.0
        %v5735 = vsel %vm5687, %v4343, 0.0
        %v5736 = vsel %vm5688, %v4344, 0.0
        %v5737 = vsel %vm5689, %v4345, 0.0
        %v5738 = vsel %vm5690, %v4346, 0.0
        %v5739 = vsel %vm5691, %v4347, 0.0
        %v5740 = vsel %vm5692, %v4348, 0.0
        %v5741 = vsel %vm5693, %v4349, 0.0
        %v5742 = vsel %vm5694, %v4350, 0.0
        %v5743 = vsel %vm5695, %v4351, 0.0
        %v5744 = vsel %vm5696, %v4352, 0.0
        %v5745 = vsel %vm5697, %v4353, 0.0
        %v5746 = vsel %vm5698, %v4354, 0.0
        %v5747 = vadd.f32 %v5667, %v5731
        %v5748 = vadd.f32 %v5668, %v5732
        %v5749 = vadd.f32 %v5669, %v5733
        %v5750 = vadd.f32 %v5670, %v5734
        %v5751 = vadd.f32 %v5671, %v5735
        %v5752 = vadd.f32 %v5672, %v5736
        %v5753 = vadd.f32 %v5673, %v5737
        %v5754 = vadd.f32 %v5674, %v5738
        %v5755 = vadd.f32 %v5675, %v5739
        %v5756 = vadd.f32 %v5676, %v5740
        %v5757 = vadd.f32 %v5677, %v5741
        %v5758 = vadd.f32 %v5678, %v5742
        %v5759 = vadd.f32 %v5679, %v5743
        %v5760 = vadd.f32 %v5680, %v5744
        %v5761 = vadd.f32 %v5681, %v5745
        %v5762 = vadd.f32 %v5682, %v5746
        %vm5763 = vcmp.eq.s32.totalorder %v4581, 0
        %vm5764 = vcmp.eq.s32.totalorder %v4584, 0
        %vm5765 = vcmp.eq.s32.totalorder %v4587, 0
        %vm5766 = vcmp.eq.s32.totalorder %v4590, 0
        %vm5767 = vcmp.eq.s32.totalorder %v4593, 0
        %vm5768 = vcmp.eq.s32.totalorder %v4596, 0
        %vm5769 = vcmp.eq.s32.totalorder %v4599, 0
        %vm5770 = vcmp.eq.s32.totalorder %v4602, 0
        %vm5771 = vcmp.eq.s32.totalorder %v4605, 0
        %vm5772 = vcmp.eq.s32.totalorder %v4608, 0
        %vm5773 = vcmp.eq.s32.totalorder %v4611, 0
        %vm5774 = vcmp.eq.s32.totalorder %v4614, 0
        %vm5775 = vcmp.eq.s32.totalorder %v4617, 0
        %vm5776 = vcmp.eq.s32.totalorder %v4620, 0
        %vm5777 = vcmp.eq.s32.totalorder %v4623, 0
        %vm5778 = vcmp.eq.s32.totalorder %v4626, 0
        %v5779 = vsel %vm5763, %v4483, 0.0
        %v5780 = vsel %vm5764, %v4484, 0.0
        %v5781 = vsel %vm5765, %v4485, 0.0
        %v5782 = vsel %vm5766, %v4486, 0.0
        %v5783 = vsel %vm5767, %v4487, 0.0
        %v5784 = vsel %vm5768, %v4488, 0.0
        %v5785 = vsel %vm5769, %v4489, 0.0
        %v5786 = vsel %vm5770, %v4490, 0.0
        %v5787 = vsel %vm5771, %v4491, 0.0
        %v5788 = vsel %vm5772, %v4492, 0.0
        %v5789 = vsel %vm5773, %v4493, 0.0
        %v5790 = vsel %vm5774, %v4494, 0.0
        %v5791 = vsel %vm5775, %v4495, 0.0
        %v5792 = vsel %vm5776, %v4496, 0.0
        %v5793 = vsel %vm5777, %v4497, 0.0
        %v5794 = vsel %vm5778, %v4498, 0.0
        %v5795 = vadd.f32 %v5715, %v5779
        %v5796 = vadd.f32 %v5716, %v5780
        %v5797 = vadd.f32 %v5717, %v5781
        %v5798 = vadd.f32 %v5718, %v5782
        %v5799 = vadd.f32 %v5719, %v5783
        %v5800 = vadd.f32 %v5720, %v5784
        %v5801 = vadd.f32 %v5721, %v5785
        %v5802 = vadd.f32 %v5722, %v5786
        %v5803 = vadd.f32 %v5723, %v5787
        %v5804 = vadd.f32 %v5724, %v5788
        %v5805 = vadd.f32 %v5725, %v5789
        %v5806 = vadd.f32 %v5726, %v5790
        %v5807 = vadd.f32 %v5727, %v5791
        %v5808 = vadd.f32 %v5728, %v5792
        %v5809 = vadd.f32 %v5729, %v5793
        %v5810 = vadd.f32 %v5730, %v5794
        %v5811 = vsel %vm5763, %v4563, 0.0
        %v5812 = vsel %vm5764, %v4564, 0.0
        %v5813 = vsel %vm5765, %v4565, 0.0
        %v5814 = vsel %vm5766, %v4566, 0.0
        %v5815 = vsel %vm5767, %v4567, 0.0
        %v5816 = vsel %vm5768, %v4568, 0.0
        %v5817 = vsel %vm5769, %v4569, 0.0
        %v5818 = vsel %vm5770, %v4570, 0.0
        %v5819 = vsel %vm5771, %v4571, 0.0
        %v5820 = vsel %vm5772, %v4572, 0.0
        %v5821 = vsel %vm5773, %v4573, 0.0
        %v5822 = vsel %vm5774, %v4574, 0.0
        %v5823 = vsel %vm5775, %v4575, 0.0
        %v5824 = vsel %vm5776, %v4576, 0.0
        %v5825 = vsel %vm5777, %v4577, 0.0
        %v5826 = vsel %vm5778, %v4578, 0.0
        %v5827 = vadd.f32 %v5747, %v5811
        %v5828 = vadd.f32 %v5748, %v5812
        %v5829 = vadd.f32 %v5749, %v5813
        %v5830 = vadd.f32 %v5750, %v5814
        %v5831 = vadd.f32 %v5751, %v5815
        %v5832 = vadd.f32 %v5752, %v5816
        %v5833 = vadd.f32 %v5753, %v5817
        %v5834 = vadd.f32 %v5754, %v5818
        %v5835 = vadd.f32 %v5755, %v5819
        %v5836 = vadd.f32 %v5756, %v5820
        %v5837 = vadd.f32 %v5757, %v5821
        %v5838 = vadd.f32 %v5758, %v5822
        %v5839 = vadd.f32 %v5759, %v5823
        %v5840 = vadd.f32 %v5760, %v5824
        %v5841 = vadd.f32 %v5761, %v5825
        %v5842 = vadd.f32 %v5762, %v5826
        %vm5843 = vcmp.eq.s32.totalorder %v4805, 0
        %vm5844 = vcmp.eq.s32.totalorder %v4808, 0
        %vm5845 = vcmp.eq.s32.totalorder %v4811, 0
        %vm5846 = vcmp.eq.s32.totalorder %v4814, 0
        %vm5847 = vcmp.eq.s32.totalorder %v4817, 0
        %vm5848 = vcmp.eq.s32.totalorder %v4820, 0
        %vm5849 = vcmp.eq.s32.totalorder %v4823, 0
        %vm5850 = vcmp.eq.s32.totalorder %v4826, 0
        %vm5851 = vcmp.eq.s32.totalorder %v4829, 0
        %vm5852 = vcmp.eq.s32.totalorder %v4832, 0
        %vm5853 = vcmp.eq.s32.totalorder %v4835, 0
        %vm5854 = vcmp.eq.s32.totalorder %v4838, 0
        %vm5855 = vcmp.eq.s32.totalorder %v4841, 0
        %vm5856 = vcmp.eq.s32.totalorder %v4844, 0
        %vm5857 = vcmp.eq.s32.totalorder %v4847, 0
        %vm5858 = vcmp.eq.s32.totalorder %v4850, 0
        %v5859 = vsel %vm5843, %v4707, 0.0
        %v5860 = vsel %vm5844, %v4708, 0.0
        %v5861 = vsel %vm5845, %v4709, 0.0
        %v5862 = vsel %vm5846, %v4710, 0.0
        %v5863 = vsel %vm5847, %v4711, 0.0
        %v5864 = vsel %vm5848, %v4712, 0.0
        %v5865 = vsel %vm5849, %v4713, 0.0
        %v5866 = vsel %vm5850, %v4714, 0.0
        %v5867 = vsel %vm5851, %v4715, 0.0
        %v5868 = vsel %vm5852, %v4716, 0.0
        %v5869 = vsel %vm5853, %v4717, 0.0
        %v5870 = vsel %vm5854, %v4718, 0.0
        %v5871 = vsel %vm5855, %v4719, 0.0
        %v5872 = vsel %vm5856, %v4720, 0.0
        %v5873 = vsel %vm5857, %v4721, 0.0
        %v5874 = vsel %vm5858, %v4722, 0.0
        %v5875 = vadd.f32 %v5795, %v5859
        %v5876 = vadd.f32 %v5796, %v5860
        %v5877 = vadd.f32 %v5797, %v5861
        %v5878 = vadd.f32 %v5798, %v5862
        %v5879 = vadd.f32 %v5799, %v5863
        %v5880 = vadd.f32 %v5800, %v5864
        %v5881 = vadd.f32 %v5801, %v5865
        %v5882 = vadd.f32 %v5802, %v5866
        %v5883 = vadd.f32 %v5803, %v5867
        %v5884 = vadd.f32 %v5804, %v5868
        %v5885 = vadd.f32 %v5805, %v5869
        %v5886 = vadd.f32 %v5806, %v5870
        %v5887 = vadd.f32 %v5807, %v5871
        %v5888 = vadd.f32 %v5808, %v5872
        %v5889 = vadd.f32 %v5809, %v5873
        %v5890 = vadd.f32 %v5810, %v5874
        %v5891 = vsel %vm5843, %v4787, 0.0
        %v5892 = vsel %vm5844, %v4788, 0.0
        %v5893 = vsel %vm5845, %v4789, 0.0
        %v5894 = vsel %vm5846, %v4790, 0.0
        %v5895 = vsel %vm5847, %v4791, 0.0
        %v5896 = vsel %vm5848, %v4792, 0.0
        %v5897 = vsel %vm5849, %v4793, 0.0
        %v5898 = vsel %vm5850, %v4794, 0.0
        %v5899 = vsel %vm5851, %v4795, 0.0
        %v5900 = vsel %vm5852, %v4796, 0.0
        %v5901 = vsel %vm5853, %v4797, 0.0
        %v5902 = vsel %vm5854, %v4798, 0.0
        %v5903 = vsel %vm5855, %v4799, 0.0
        %v5904 = vsel %vm5856, %v4800, 0.0
        %v5905 = vsel %vm5857, %v4801, 0.0
        %v5906 = vsel %vm5858, %v4802, 0.0
        %v5907 = vadd.f32 %v5827, %v5891
        %v5908 = vadd.f32 %v5828, %v5892
        %v5909 = vadd.f32 %v5829, %v5893
        %v5910 = vadd.f32 %v5830, %v5894
        %v5911 = vadd.f32 %v5831, %v5895
        %v5912 = vadd.f32 %v5832, %v5896
        %v5913 = vadd.f32 %v5833, %v5897
        %v5914 = vadd.f32 %v5834, %v5898
        %v5915 = vadd.f32 %v5835, %v5899
        %v5916 = vadd.f32 %v5836, %v5900
        %v5917 = vadd.f32 %v5837, %v5901
        %v5918 = vadd.f32 %v5838, %v5902
        %v5919 = vadd.f32 %v5839, %v5903
        %v5920 = vadd.f32 %v5840, %v5904
        %v5921 = vadd.f32 %v5841, %v5905
        %v5922 = vadd.f32 %v5842, %v5906
        %vm5923 = vcmp.eq.s32.totalorder %v5029, 0
        %vm5924 = vcmp.eq.s32.totalorder %v5032, 0
        %vm5925 = vcmp.eq.s32.totalorder %v5035, 0
        %vm5926 = vcmp.eq.s32.totalorder %v5038, 0
        %vm5927 = vcmp.eq.s32.totalorder %v5041, 0
        %vm5928 = vcmp.eq.s32.totalorder %v5044, 0
        %vm5929 = vcmp.eq.s32.totalorder %v5047, 0
        %vm5930 = vcmp.eq.s32.totalorder %v5050, 0
        %vm5931 = vcmp.eq.s32.totalorder %v5053, 0
        %vm5932 = vcmp.eq.s32.totalorder %v5056, 0
        %vm5933 = vcmp.eq.s32.totalorder %v5059, 0
        %vm5934 = vcmp.eq.s32.totalorder %v5062, 0
        %vm5935 = vcmp.eq.s32.totalorder %v5065, 0
        %vm5936 = vcmp.eq.s32.totalorder %v5068, 0
        %vm5937 = vcmp.eq.s32.totalorder %v5071, 0
        %vm5938 = vcmp.eq.s32.totalorder %v5074, 0
        %v5939 = vsel %vm5923, %v4931, 0.0
        %v5940 = vsel %vm5924, %v4932, 0.0
        %v5941 = vsel %vm5925, %v4933, 0.0
        %v5942 = vsel %vm5926, %v4934, 0.0
        %v5943 = vsel %vm5927, %v4935, 0.0
        %v5944 = vsel %vm5928, %v4936, 0.0
        %v5945 = vsel %vm5929, %v4937, 0.0
        %v5946 = vsel %vm5930, %v4938, 0.0
        %v5947 = vsel %vm5931, %v4939, 0.0
        %v5948 = vsel %vm5932, %v4940, 0.0
        %v5949 = vsel %vm5933, %v4941, 0.0
        %v5950 = vsel %vm5934, %v4942, 0.0
        %v5951 = vsel %vm5935, %v4943, 0.0
        %v5952 = vsel %vm5936, %v4944, 0.0
        %v5953 = vsel %vm5937, %v4945, 0.0
        %v5954 = vsel %vm5938, %v4946, 0.0
        %v5955 = vadd.f32 %v5875, %v5939
        %v5956 = vadd.f32 %v5876, %v5940
        %v5957 = vadd.f32 %v5877, %v5941
        %v5958 = vadd.f32 %v5878, %v5942
        %v5959 = vadd.f32 %v5879, %v5943
        %v5960 = vadd.f32 %v5880, %v5944
        %v5961 = vadd.f32 %v5881, %v5945
        %v5962 = vadd.f32 %v5882, %v5946
        %v5963 = vadd.f32 %v5883, %v5947
        %v5964 = vadd.f32 %v5884, %v5948
        %v5965 = vadd.f32 %v5885, %v5949
        %v5966 = vadd.f32 %v5886, %v5950
        %v5967 = vadd.f32 %v5887, %v5951
        %v5968 = vadd.f32 %v5888, %v5952
        %v5969 = vadd.f32 %v5889, %v5953
        %v5970 = vadd.f32 %v5890, %v5954
        %v5971 = vsel %vm5923, %v5011, 0.0
        %v5972 = vsel %vm5924, %v5012, 0.0
        %v5973 = vsel %vm5925, %v5013, 0.0
        %v5974 = vsel %vm5926, %v5014, 0.0
        %v5975 = vsel %vm5927, %v5015, 0.0
        %v5976 = vsel %vm5928, %v5016, 0.0
        %v5977 = vsel %vm5929, %v5017, 0.0
        %v5978 = vsel %vm5930, %v5018, 0.0
        %v5979 = vsel %vm5931, %v5019, 0.0
        %v5980 = vsel %vm5932, %v5020, 0.0
        %v5981 = vsel %vm5933, %v5021, 0.0
        %v5982 = vsel %vm5934, %v5022, 0.0
        %v5983 = vsel %vm5935, %v5023, 0.0
        %v5984 = vsel %vm5936, %v5024, 0.0
        %v5985 = vsel %vm5937, %v5025, 0.0
        %v5986 = vsel %vm5938, %v5026, 0.0
        %v5987 = vadd.f32 %v5907, %v5971
        %v5988 = vadd.f32 %v5908, %v5972
        %v5989 = vadd.f32 %v5909, %v5973
        %v5990 = vadd.f32 %v5910, %v5974
        %v5991 = vadd.f32 %v5911, %v5975
        %v5992 = vadd.f32 %v5912, %v5976
        %v5993 = vadd.f32 %v5913, %v5977
        %v5994 = vadd.f32 %v5914, %v5978
        %v5995 = vadd.f32 %v5915, %v5979
        %v5996 = vadd.f32 %v5916, %v5980
        %v5997 = vadd.f32 %v5917, %v5981
        %v5998 = vadd.f32 %v5918, %v5982
        %v5999 = vadd.f32 %v5919, %v5983
        %v6000 = vadd.f32 %v5920, %v5984
        %v6001 = vadd.f32 %v5921, %v5985
        %v6002 = vadd.f32 %v5922, %v5986
        %vm6003 = vcmp.eq.s32.totalorder %v5253, 0
        %vm6004 = vcmp.eq.s32.totalorder %v5256, 0
        %vm6005 = vcmp.eq.s32.totalorder %v5259, 0
        %vm6006 = vcmp.eq.s32.totalorder %v5262, 0
        %vm6007 = vcmp.eq.s32.totalorder %v5265, 0
        %vm6008 = vcmp.eq.s32.totalorder %v5268, 0
        %vm6009 = vcmp.eq.s32.totalorder %v5271, 0
        %vm6010 = vcmp.eq.s32.totalorder %v5274, 0
        %vm6011 = vcmp.eq.s32.totalorder %v5277, 0
        %vm6012 = vcmp.eq.s32.totalorder %v5280, 0
        %vm6013 = vcmp.eq.s32.totalorder %v5283, 0
        %vm6014 = vcmp.eq.s32.totalorder %v5286, 0
        %vm6015 = vcmp.eq.s32.totalorder %v5289, 0
        %vm6016 = vcmp.eq.s32.totalorder %v5292, 0
        %vm6017 = vcmp.eq.s32.totalorder %v5295, 0
        %vm6018 = vcmp.eq.s32.totalorder %v5298, 0
        %v6019 = vsel %vm6003, %v5155, 0.0
        %v6020 = vsel %vm6004, %v5156, 0.0
        %v6021 = vsel %vm6005, %v5157, 0.0
        %v6022 = vsel %vm6006, %v5158, 0.0
        %v6023 = vsel %vm6007, %v5159, 0.0
        %v6024 = vsel %vm6008, %v5160, 0.0
        %v6025 = vsel %vm6009, %v5161, 0.0
        %v6026 = vsel %vm6010, %v5162, 0.0
        %v6027 = vsel %vm6011, %v5163, 0.0
        %v6028 = vsel %vm6012, %v5164, 0.0
        %v6029 = vsel %vm6013, %v5165, 0.0
        %v6030 = vsel %vm6014, %v5166, 0.0
        %v6031 = vsel %vm6015, %v5167, 0.0
        %v6032 = vsel %vm6016, %v5168, 0.0
        %v6033 = vsel %vm6017, %v5169, 0.0
        %v6034 = vsel %vm6018, %v5170, 0.0
        %v6035 = vadd.f32 %v5955, %v6019
        %v6036 = vadd.f32 %v5956, %v6020
        %v6037 = vadd.f32 %v5957, %v6021
        %v6038 = vadd.f32 %v5958, %v6022
        %v6039 = vadd.f32 %v5959, %v6023
        %v6040 = vadd.f32 %v5960, %v6024
        %v6041 = vadd.f32 %v5961, %v6025
        %v6042 = vadd.f32 %v5962, %v6026
        %v6043 = vadd.f32 %v5963, %v6027
        %v6044 = vadd.f32 %v5964, %v6028
        %v6045 = vadd.f32 %v5965, %v6029
        %v6046 = vadd.f32 %v5966, %v6030
        %v6047 = vadd.f32 %v5967, %v6031
        %v6048 = vadd.f32 %v5968, %v6032
        %v6049 = vadd.f32 %v5969, %v6033
        %v6050 = vadd.f32 %v5970, %v6034
        %v6051 = vsel %vm6003, %v5235, 0.0
        %v6052 = vsel %vm6004, %v5236, 0.0
        %v6053 = vsel %vm6005, %v5237, 0.0
        %v6054 = vsel %vm6006, %v5238, 0.0
        %v6055 = vsel %vm6007, %v5239, 0.0
        %v6056 = vsel %vm6008, %v5240, 0.0
        %v6057 = vsel %vm6009, %v5241, 0.0
        %v6058 = vsel %vm6010, %v5242, 0.0
        %v6059 = vsel %vm6011, %v5243, 0.0
        %v6060 = vsel %vm6012, %v5244, 0.0
        %v6061 = vsel %vm6013, %v5245, 0.0
        %v6062 = vsel %vm6014, %v5246, 0.0
        %v6063 = vsel %vm6015, %v5247, 0.0
        %v6064 = vsel %vm6016, %v5248, 0.0
        %v6065 = vsel %vm6017, %v5249, 0.0
        %v6066 = vsel %vm6018, %v5250, 0.0
        %v6067 = vadd.f32 %v5987, %v6051
        %v6068 = vadd.f32 %v5988, %v6052
        %v6069 = vadd.f32 %v5989, %v6053
        %v6070 = vadd.f32 %v5990, %v6054
        %v6071 = vadd.f32 %v5991, %v6055
        %v6072 = vadd.f32 %v5992, %v6056
        %v6073 = vadd.f32 %v5993, %v6057
        %v6074 = vadd.f32 %v5994, %v6058
        %v6075 = vadd.f32 %v5995, %v6059
        %v6076 = vadd.f32 %v5996, %v6060
        %v6077 = vadd.f32 %v5997, %v6061
        %v6078 = vadd.f32 %v5998, %v6062
        %v6079 = vadd.f32 %v5999, %v6063
        %v6080 = vadd.f32 %v6000, %v6064
        %v6081 = vadd.f32 %v6001, %v6065
        %v6082 = vadd.f32 %v6002, %v6066
        %vm6083 = vcmp.eq.s32.totalorder %v5477, 0
        %vm6084 = vcmp.eq.s32.totalorder %v5480, 0
        %vm6085 = vcmp.eq.s32.totalorder %v5483, 0
        %vm6086 = vcmp.eq.s32.totalorder %v5486, 0
        %vm6087 = vcmp.eq.s32.totalorder %v5489, 0
        %vm6088 = vcmp.eq.s32.totalorder %v5492, 0
        %vm6089 = vcmp.eq.s32.totalorder %v5495, 0
        %vm6090 = vcmp.eq.s32.totalorder %v5498, 0
        %vm6091 = vcmp.eq.s32.totalorder %v5501, 0
        %vm6092 = vcmp.eq.s32.totalorder %v5504, 0
        %vm6093 = vcmp.eq.s32.totalorder %v5507, 0
        %vm6094 = vcmp.eq.s32.totalorder %v5510, 0
        %vm6095 = vcmp.eq.s32.totalorder %v5513, 0
        %vm6096 = vcmp.eq.s32.totalorder %v5516, 0
        %vm6097 = vcmp.eq.s32.totalorder %v5519, 0
        %vm6098 = vcmp.eq.s32.totalorder %v5522, 0
        %v6099 = vsel %vm6083, %v5379, 0.0
        %v6100 = vsel %vm6084, %v5380, 0.0
        %v6101 = vsel %vm6085, %v5381, 0.0
        %v6102 = vsel %vm6086, %v5382, 0.0
        %v6103 = vsel %vm6087, %v5383, 0.0
        %v6104 = vsel %vm6088, %v5384, 0.0
        %v6105 = vsel %vm6089, %v5385, 0.0
        %v6106 = vsel %vm6090, %v5386, 0.0
        %v6107 = vsel %vm6091, %v5387, 0.0
        %v6108 = vsel %vm6092, %v5388, 0.0
        %v6109 = vsel %vm6093, %v5389, 0.0
        %v6110 = vsel %vm6094, %v5390, 0.0
        %v6111 = vsel %vm6095, %v5391, 0.0
        %v6112 = vsel %vm6096, %v5392, 0.0
        %v6113 = vsel %vm6097, %v5393, 0.0
        %v6114 = vsel %vm6098, %v5394, 0.0
        %v6115 = vadd.f32 %v6035, %v6099
        %v6116 = vadd.f32 %v6036, %v6100
        %v6117 = vadd.f32 %v6037, %v6101
        %v6118 = vadd.f32 %v6038, %v6102
        %v6119 = vadd.f32 %v6039, %v6103
        %v6120 = vadd.f32 %v6040, %v6104
        %v6121 = vadd.f32 %v6041, %v6105
        %v6122 = vadd.f32 %v6042, %v6106
        %v6123 = vadd.f32 %v6043, %v6107
        %v6124 = vadd.f32 %v6044, %v6108
        %v6125 = vadd.f32 %v6045, %v6109
        %v6126 = vadd.f32 %v6046, %v6110
        %v6127 = vadd.f32 %v6047, %v6111
        %v6128 = vadd.f32 %v6048, %v6112
        %v6129 = vadd.f32 %v6049, %v6113
        %v6130 = vadd.f32 %v6050, %v6114
        %v6131 = vsel %vm6083, %v5459, 0.0
        %v6132 = vsel %vm6084, %v5460, 0.0
        %v6133 = vsel %vm6085, %v5461, 0.0
        %v6134 = vsel %vm6086, %v5462, 0.0
        %v6135 = vsel %vm6087, %v5463, 0.0
        %v6136 = vsel %vm6088, %v5464, 0.0
        %v6137 = vsel %vm6089, %v5465, 0.0
        %v6138 = vsel %vm6090, %v5466, 0.0
        %v6139 = vsel %vm6091, %v5467, 0.0
        %v6140 = vsel %vm6092, %v5468, 0.0
        %v6141 = vsel %vm6093, %v5469, 0.0
        %v6142 = vsel %vm6094, %v5470, 0.0
        %v6143 = vsel %vm6095, %v5471, 0.0
        %v6144 = vsel %vm6096, %v5472, 0.0
        %v6145 = vsel %vm6097, %v5473, 0.0
        %v6146 = vsel %vm6098, %v5474, 0.0
        %v6147 = vadd.f32 %v6067, %v6131
        %v6148 = vadd.f32 %v6068, %v6132
        %v6149 = vadd.f32 %v6069, %v6133
        %v6150 = vadd.f32 %v6070, %v6134
        %v6151 = vadd.f32 %v6071, %v6135
        %v6152 = vadd.f32 %v6072, %v6136
        %v6153 = vadd.f32 %v6073, %v6137
        %v6154 = vadd.f32 %v6074, %v6138
        %v6155 = vadd.f32 %v6075, %v6139
        %v6156 = vadd.f32 %v6076, %v6140
        %v6157 = vadd.f32 %v6077, %v6141
        %v6158 = vadd.f32 %v6078, %v6142
        %v6159 = vadd.f32 %v6079, %v6143
        %v6160 = vadd.f32 %v6080, %v6144
        %v6161 = vadd.f32 %v6081, %v6145
        %v6162 = vadd.f32 %v6082, %v6146
        %v6163 = vpack.c.bf16 %v6116, %v6115
        %v6164 = vpack.c.bf16 %v6118, %v6117
        %v6165 = vpack.c.bf16 %v6120, %v6119
        %v6166 = vpack.c.bf16 %v6122, %v6121
        %v6167 = vpack.c.bf16 %v6124, %v6123
        %v6168 = vpack.c.bf16 %v6126, %v6125
        %v6169 = vpack.c.bf16 %v6128, %v6127
        %v6170 = vpack.c.bf16 %v6130, %v6129
        %v6171 = vld [vmem:[%s4] sm:$0xf]
        %v6172 = vld [vmem:[%s4 + $0x4] sm:$0xf]
        %v6173 = vld [vmem:[%s4 + $0x8] sm:$0xf]
        %v6174 = vld [vmem:[%s4 + $0xc] sm:$0xf]
        %v6175 = vld [vmem:[%s4 + $0x10] sm:$0xf]
        %v6176 = vld [vmem:[%s4 + $0x14] sm:$0xf]
        %v6177 = vld [vmem:[%s4 + $0x18] sm:$0xf]
        %v6178 = vld [vmem:[%s4 + $0x1c] sm:$0xf]
        %v6179 = vld [vmem:[%s4 + $0x20] sm:$0xf]
        %v6180 = vld [vmem:[%s4 + $0x24] sm:$0xf]
        %v6181 = vld [vmem:[%s4 + $0x28] sm:$0xf]
        %v6182 = vld [vmem:[%s4 + $0x2c] sm:$0xf]
        %v6183 = vld [vmem:[%s4 + $0x30] sm:$0xf]
        %v6184 = vld [vmem:[%s4 + $0x34] sm:$0xf]
        %v6185 = vld [vmem:[%s4 + $0x38] sm:$0xf]
        %v6186 = vld [vmem:[%s4 + $0x3c] sm:$0xf]
        %v6187 = vpack.c.bf16 %v6148, %v6147
        %v6188 = vpack.c.bf16 %v6150, %v6149
        %v6189 = vpack.c.bf16 %v6152, %v6151
        %v6190 = vpack.c.bf16 %v6154, %v6153
        %v6191 = vpack.c.bf16 %v6156, %v6155
        %v6192 = vpack.c.bf16 %v6158, %v6157
        %v6193 = vpack.c.bf16 %v6160, %v6159
        %v6194 = vpack.c.bf16 %v6162, %v6161
        %s6195 = scalar_lea.vmem %s4, 256
        %v6196 = vld [vmem:[%s6195] sm:$0xf]
        %v6197 = vld [vmem:[%s6195 + $0x4] sm:$0xf]
        %v6198 = vld [vmem:[%s6195 + $0x8] sm:$0xf]
        %v6199 = vld [vmem:[%s6195 + $0xc] sm:$0xf]
        %v6200 = vld [vmem:[%s6195 + $0x10] sm:$0xf]
        %v6201 = vld [vmem:[%s6195 + $0x14] sm:$0xf]
        %v6202 = vld [vmem:[%s6195 + $0x18] sm:$0xf]
        %v6203 = vld [vmem:[%s6195 + $0x1c] sm:$0xf]
        %v6204 = vld [vmem:[%s6195 + $0x20] sm:$0xf]
        %v6205 = vld [vmem:[%s6195 + $0x24] sm:$0xf]
        %v6206 = vld [vmem:[%s6195 + $0x28] sm:$0xf]
        %v6207 = vld [vmem:[%s6195 + $0x2c] sm:$0xf]
        %v6208 = vld [vmem:[%s6195 + $0x30] sm:$0xf]
        %v6209 = vld [vmem:[%s6195 + $0x34] sm:$0xf]
        %v6210 = vld [vmem:[%s6195 + $0x38] sm:$0xf]
        %v6211 = vld [vmem:[%s6195 + $0x3c] sm:$0xf]
        %vm6212 = vcmp.eq.s32.totalorder %v3909, 1
        %vm6213 = vcmp.eq.s32.totalorder %v3912, 1
        %vm6214 = vcmp.eq.s32.totalorder %v3915, 1
        %vm6215 = vcmp.eq.s32.totalorder %v3918, 1
        %vm6216 = vcmp.eq.s32.totalorder %v3921, 1
        %vm6217 = vcmp.eq.s32.totalorder %v3924, 1
        %vm6218 = vcmp.eq.s32.totalorder %v3927, 1
        %vm6219 = vcmp.eq.s32.totalorder %v3930, 1
        %vm6220 = vcmp.eq.s32.totalorder %v3933, 1
        %vm6221 = vcmp.eq.s32.totalorder %v3936, 1
        %vm6222 = vcmp.eq.s32.totalorder %v3939, 1
        %vm6223 = vcmp.eq.s32.totalorder %v3942, 1
        %vm6224 = vcmp.eq.s32.totalorder %v3945, 1
        %vm6225 = vcmp.eq.s32.totalorder %v3948, 1
        %vm6226 = vcmp.eq.s32.totalorder %v3951, 1
        %vm6227 = vcmp.eq.s32.totalorder %v3954, 1
        %v6228 = vsel %vm6212, %v3811, 0.0
        %v6229 = vsel %vm6213, %v3812, 0.0
        %v6230 = vsel %vm6214, %v3813, 0.0
        %v6231 = vsel %vm6215, %v3814, 0.0
        %v6232 = vsel %vm6216, %v3815, 0.0
        %v6233 = vsel %vm6217, %v3816, 0.0
        %v6234 = vsel %vm6218, %v3817, 0.0
        %v6235 = vsel %vm6219, %v3818, 0.0
        %v6236 = vsel %vm6220, %v3819, 0.0
        %v6237 = vsel %vm6221, %v3820, 0.0
        %v6238 = vsel %vm6222, %v3821, 0.0
        %v6239 = vsel %vm6223, %v3822, 0.0
        %v6240 = vsel %vm6224, %v3823, 0.0
        %v6241 = vsel %vm6225, %v3824, 0.0
        %v6242 = vsel %vm6226, %v3825, 0.0
        %v6243 = vsel %vm6227, %v3826, 0.0
        %v6244 = vadd.f32 %v6228, 0.0
        %v6245 = vadd.f32 %v6229, 0.0
        %v6246 = vadd.f32 %v6230, 0.0
        %v6247 = vadd.f32 %v6231, 0.0
        %v6248 = vadd.f32 %v6232, 0.0
        %v6249 = vadd.f32 %v6233, 0.0
        %v6250 = vadd.f32 %v6234, 0.0
        %v6251 = vadd.f32 %v6235, 0.0
        %v6252 = vadd.f32 %v6236, 0.0
        %v6253 = vadd.f32 %v6237, 0.0
        %v6254 = vadd.f32 %v6238, 0.0
        %v6255 = vadd.f32 %v6239, 0.0
        %v6256 = vadd.f32 %v6240, 0.0
        %v6257 = vadd.f32 %v6241, 0.0
        %v6258 = vadd.f32 %v6242, 0.0
        %v6259 = vadd.f32 %v6243, 0.0
        %v6260 = vsel %vm6212, %v3891, 0.0
        %v6261 = vsel %vm6213, %v3892, 0.0
        %v6262 = vsel %vm6214, %v3893, 0.0
        %v6263 = vsel %vm6215, %v3894, 0.0
        %v6264 = vsel %vm6216, %v3895, 0.0
        %v6265 = vsel %vm6217, %v3896, 0.0
        %v6266 = vsel %vm6218, %v3897, 0.0
        %v6267 = vsel %vm6219, %v3898, 0.0
        %v6268 = vsel %vm6220, %v3899, 0.0
        %v6269 = vsel %vm6221, %v3900, 0.0
        %v6270 = vsel %vm6222, %v3901, 0.0
        %v6271 = vsel %vm6223, %v3902, 0.0
        %v6272 = vsel %vm6224, %v3903, 0.0
        %v6273 = vsel %vm6225, %v3904, 0.0
        %v6274 = vsel %vm6226, %v3905, 0.0
        %v6275 = vsel %vm6227, %v3906, 0.0
        %v6276 = vadd.f32 %v6260, 0.0
        %v6277 = vadd.f32 %v6261, 0.0
        %v6278 = vadd.f32 %v6262, 0.0
        %v6279 = vadd.f32 %v6263, 0.0
        %v6280 = vadd.f32 %v6264, 0.0
        %v6281 = vadd.f32 %v6265, 0.0
        %v6282 = vadd.f32 %v6266, 0.0
        %v6283 = vadd.f32 %v6267, 0.0
        %v6284 = vadd.f32 %v6268, 0.0
        %v6285 = vadd.f32 %v6269, 0.0
        %v6286 = vadd.f32 %v6270, 0.0
        %v6287 = vadd.f32 %v6271, 0.0
        %v6288 = vadd.f32 %v6272, 0.0
        %v6289 = vadd.f32 %v6273, 0.0
        %v6290 = vadd.f32 %v6274, 0.0
        %v6291 = vadd.f32 %v6275, 0.0
        %vm6292 = vcmp.eq.s32.totalorder %v4133, 1
        %vm6293 = vcmp.eq.s32.totalorder %v4136, 1
        %vm6294 = vcmp.eq.s32.totalorder %v4139, 1
        %vm6295 = vcmp.eq.s32.totalorder %v4142, 1
        %vm6296 = vcmp.eq.s32.totalorder %v4145, 1
        %vm6297 = vcmp.eq.s32.totalorder %v4148, 1
        %vm6298 = vcmp.eq.s32.totalorder %v4151, 1
        %vm6299 = vcmp.eq.s32.totalorder %v4154, 1
        %vm6300 = vcmp.eq.s32.totalorder %v4157, 1
        %vm6301 = vcmp.eq.s32.totalorder %v4160, 1
        %vm6302 = vcmp.eq.s32.totalorder %v4163, 1
        %vm6303 = vcmp.eq.s32.totalorder %v4166, 1
        %vm6304 = vcmp.eq.s32.totalorder %v4169, 1
        %vm6305 = vcmp.eq.s32.totalorder %v4172, 1
        %vm6306 = vcmp.eq.s32.totalorder %v4175, 1
        %vm6307 = vcmp.eq.s32.totalorder %v4178, 1
        %v6308 = vsel %vm6292, %v4035, 0.0
        %v6309 = vsel %vm6293, %v4036, 0.0
        %v6310 = vsel %vm6294, %v4037, 0.0
        %v6311 = vsel %vm6295, %v4038, 0.0
        %v6312 = vsel %vm6296, %v4039, 0.0
        %v6313 = vsel %vm6297, %v4040, 0.0
        %v6314 = vsel %vm6298, %v4041, 0.0
        %v6315 = vsel %vm6299, %v4042, 0.0
        %v6316 = vsel %vm6300, %v4043, 0.0
        %v6317 = vsel %vm6301, %v4044, 0.0
        %v6318 = vsel %vm6302, %v4045, 0.0
        %v6319 = vsel %vm6303, %v4046, 0.0
        %v6320 = vsel %vm6304, %v4047, 0.0
        %v6321 = vsel %vm6305, %v4048, 0.0
        %v6322 = vsel %vm6306, %v4049, 0.0
        %v6323 = vsel %vm6307, %v4050, 0.0
        %v6324 = vadd.f32 %v6244, %v6308
        %v6325 = vadd.f32 %v6245, %v6309
        %v6326 = vadd.f32 %v6246, %v6310
        %v6327 = vadd.f32 %v6247, %v6311
        %v6328 = vadd.f32 %v6248, %v6312
        %v6329 = vadd.f32 %v6249, %v6313
        %v6330 = vadd.f32 %v6250, %v6314
        %v6331 = vadd.f32 %v6251, %v6315
        %v6332 = vadd.f32 %v6252, %v6316
        %v6333 = vadd.f32 %v6253, %v6317
        %v6334 = vadd.f32 %v6254, %v6318
        %v6335 = vadd.f32 %v6255, %v6319
        %v6336 = vadd.f32 %v6256, %v6320
        %v6337 = vadd.f32 %v6257, %v6321
        %v6338 = vadd.f32 %v6258, %v6322
        %v6339 = vadd.f32 %v6259, %v6323
        %v6340 = vsel %vm6292, %v4115, 0.0
        %v6341 = vsel %vm6293, %v4116, 0.0
        %v6342 = vsel %vm6294, %v4117, 0.0
        %v6343 = vsel %vm6295, %v4118, 0.0
        %v6344 = vsel %vm6296, %v4119, 0.0
        %v6345 = vsel %vm6297, %v4120, 0.0
        %v6346 = vsel %vm6298, %v4121, 0.0
        %v6347 = vsel %vm6299, %v4122, 0.0
        %v6348 = vsel %vm6300, %v4123, 0.0
        %v6349 = vsel %vm6301, %v4124, 0.0
        %v6350 = vsel %vm6302, %v4125, 0.0
        %v6351 = vsel %vm6303, %v4126, 0.0
        %v6352 = vsel %vm6304, %v4127, 0.0
        %v6353 = vsel %vm6305, %v4128, 0.0
        %v6354 = vsel %vm6306, %v4129, 0.0
        %v6355 = vsel %vm6307, %v4130, 0.0
        %v6356 = vadd.f32 %v6276, %v6340
        %v6357 = vadd.f32 %v6277, %v6341
        %v6358 = vadd.f32 %v6278, %v6342
        %v6359 = vadd.f32 %v6279, %v6343
        %v6360 = vadd.f32 %v6280, %v6344
        %v6361 = vadd.f32 %v6281, %v6345
        %v6362 = vadd.f32 %v6282, %v6346
        %v6363 = vadd.f32 %v6283, %v6347
        %v6364 = vadd.f32 %v6284, %v6348
        %v6365 = vadd.f32 %v6285, %v6349
        %v6366 = vadd.f32 %v6286, %v6350
        %v6367 = vadd.f32 %v6287, %v6351
        %v6368 = vadd.f32 %v6288, %v6352
        %v6369 = vadd.f32 %v6289, %v6353
        %v6370 = vadd.f32 %v6290, %v6354
        %v6371 = vadd.f32 %v6291, %v6355
        %vm6372 = vcmp.eq.s32.totalorder %v4357, 1
        %vm6373 = vcmp.eq.s32.totalorder %v4360, 1
        %vm6374 = vcmp.eq.s32.totalorder %v4363, 1
        %vm6375 = vcmp.eq.s32.totalorder %v4366, 1
        %vm6376 = vcmp.eq.s32.totalorder %v4369, 1
        %vm6377 = vcmp.eq.s32.totalorder %v4372, 1
        %vm6378 = vcmp.eq.s32.totalorder %v4375, 1
        %vm6379 = vcmp.eq.s32.totalorder %v4378, 1
        %vm6380 = vcmp.eq.s32.totalorder %v4381, 1
        %vm6381 = vcmp.eq.s32.totalorder %v4384, 1
        %vm6382 = vcmp.eq.s32.totalorder %v4387, 1
        %vm6383 = vcmp.eq.s32.totalorder %v4390, 1
        %vm6384 = vcmp.eq.s32.totalorder %v4393, 1
        %vm6385 = vcmp.eq.s32.totalorder %v4396, 1
        %vm6386 = vcmp.eq.s32.totalorder %v4399, 1
        %vm6387 = vcmp.eq.s32.totalorder %v4402, 1
        %v6388 = vsel %vm6372, %v4259, 0.0
        %v6389 = vsel %vm6373, %v4260, 0.0
        %v6390 = vsel %vm6374, %v4261, 0.0
        %v6391 = vsel %vm6375, %v4262, 0.0
        %v6392 = vsel %vm6376, %v4263, 0.0
        %v6393 = vsel %vm6377, %v4264, 0.0
        %v6394 = vsel %vm6378, %v4265, 0.0
        %v6395 = vsel %vm6379, %v4266, 0.0
        %v6396 = vsel %vm6380, %v4267, 0.0
        %v6397 = vsel %vm6381, %v4268, 0.0
        %v6398 = vsel %vm6382, %v4269, 0.0
        %v6399 = vsel %vm6383, %v4270, 0.0
        %v6400 = vsel %vm6384, %v4271, 0.0
        %v6401 = vsel %vm6385, %v4272, 0.0
        %v6402 = vsel %vm6386, %v4273, 0.0
        %v6403 = vsel %vm6387, %v4274, 0.0
        %v6404 = vadd.f32 %v6324, %v6388
        %v6405 = vadd.f32 %v6325, %v6389
        %v6406 = vadd.f32 %v6326, %v6390
        %v6407 = vadd.f32 %v6327, %v6391
        %v6408 = vadd.f32 %v6328, %v6392
        %v6409 = vadd.f32 %v6329, %v6393
        %v6410 = vadd.f32 %v6330, %v6394
        %v6411 = vadd.f32 %v6331, %v6395
        %v6412 = vadd.f32 %v6332, %v6396
        %v6413 = vadd.f32 %v6333, %v6397
        %v6414 = vadd.f32 %v6334, %v6398
        %v6415 = vadd.f32 %v6335, %v6399
        %v6416 = vadd.f32 %v6336, %v6400
        %v6417 = vadd.f32 %v6337, %v6401
        %v6418 = vadd.f32 %v6338, %v6402
        %v6419 = vadd.f32 %v6339, %v6403
        %v6420 = vsel %vm6372, %v4339, 0.0
        %v6421 = vsel %vm6373, %v4340, 0.0
        %v6422 = vsel %vm6374, %v4341, 0.0
        %v6423 = vsel %vm6375, %v4342, 0.0
        %v6424 = vsel %vm6376, %v4343, 0.0
        %v6425 = vsel %vm6377, %v4344, 0.0
        %v6426 = vsel %vm6378, %v4345, 0.0
        %v6427 = vsel %vm6379, %v4346, 0.0
        %v6428 = vsel %vm6380, %v4347, 0.0
        %v6429 = vsel %vm6381, %v4348, 0.0
        %v6430 = vsel %vm6382, %v4349, 0.0
        %v6431 = vsel %vm6383, %v4350, 0.0
        %v6432 = vsel %vm6384, %v4351, 0.0
        %v6433 = vsel %vm6385, %v4352, 0.0
        %v6434 = vsel %vm6386, %v4353, 0.0
        %v6435 = vsel %vm6387, %v4354, 0.0
        %v6436 = vadd.f32 %v6356, %v6420
        %v6437 = vadd.f32 %v6357, %v6421
        %v6438 = vadd.f32 %v6358, %v6422
        %v6439 = vadd.f32 %v6359, %v6423
        %v6440 = vadd.f32 %v6360, %v6424
        %v6441 = vadd.f32 %v6361, %v6425
        %v6442 = vadd.f32 %v6362, %v6426
        %v6443 = vadd.f32 %v6363, %v6427
        %v6444 = vadd.f32 %v6364, %v6428
        %v6445 = vadd.f32 %v6365, %v6429
        %v6446 = vadd.f32 %v6366, %v6430
        %v6447 = vadd.f32 %v6367, %v6431
        %v6448 = vadd.f32 %v6368, %v6432
        %v6449 = vadd.f32 %v6369, %v6433
        %v6450 = vadd.f32 %v6370, %v6434
        %v6451 = vadd.f32 %v6371, %v6435
        %vm6452 = vcmp.eq.s32.totalorder %v4581, 1
        %vm6453 = vcmp.eq.s32.totalorder %v4584, 1
        %vm6454 = vcmp.eq.s32.totalorder %v4587, 1
        %vm6455 = vcmp.eq.s32.totalorder %v4590, 1
        %vm6456 = vcmp.eq.s32.totalorder %v4593, 1
        %vm6457 = vcmp.eq.s32.totalorder %v4596, 1
        %vm6458 = vcmp.eq.s32.totalorder %v4599, 1
        %vm6459 = vcmp.eq.s32.totalorder %v4602, 1
        %vm6460 = vcmp.eq.s32.totalorder %v4605, 1
        %vm6461 = vcmp.eq.s32.totalorder %v4608, 1
        %vm6462 = vcmp.eq.s32.totalorder %v4611, 1
        %vm6463 = vcmp.eq.s32.totalorder %v4614, 1
        %vm6464 = vcmp.eq.s32.totalorder %v4617, 1
        %vm6465 = vcmp.eq.s32.totalorder %v4620, 1
        %vm6466 = vcmp.eq.s32.totalorder %v4623, 1
        %vm6467 = vcmp.eq.s32.totalorder %v4626, 1
        %v6468 = vsel %vm6452, %v4483, 0.0
        %v6469 = vsel %vm6453, %v4484, 0.0
        %v6470 = vsel %vm6454, %v4485, 0.0
        %v6471 = vsel %vm6455, %v4486, 0.0
        %v6472 = vsel %vm6456, %v4487, 0.0
        %v6473 = vsel %vm6457, %v4488, 0.0
        %v6474 = vsel %vm6458, %v4489, 0.0
        %v6475 = vsel %vm6459, %v4490, 0.0
        %v6476 = vsel %vm6460, %v4491, 0.0
        %v6477 = vsel %vm6461, %v4492, 0.0
        %v6478 = vsel %vm6462, %v4493, 0.0
        %v6479 = vsel %vm6463, %v4494, 0.0
        %v6480 = vsel %vm6464, %v4495, 0.0
        %v6481 = vsel %vm6465, %v4496, 0.0
        %v6482 = vsel %vm6466, %v4497, 0.0
        %v6483 = vsel %vm6467, %v4498, 0.0
        %v6484 = vadd.f32 %v6404, %v6468
        %v6485 = vadd.f32 %v6405, %v6469
        %v6486 = vadd.f32 %v6406, %v6470
        %v6487 = vadd.f32 %v6407, %v6471
        %v6488 = vadd.f32 %v6408, %v6472
        %v6489 = vadd.f32 %v6409, %v6473
        %v6490 = vadd.f32 %v6410, %v6474
        %v6491 = vadd.f32 %v6411, %v6475
        %v6492 = vadd.f32 %v6412, %v6476
        %v6493 = vadd.f32 %v6413, %v6477
        %v6494 = vadd.f32 %v6414, %v6478
        %v6495 = vadd.f32 %v6415, %v6479
        %v6496 = vadd.f32 %v6416, %v6480
        %v6497 = vadd.f32 %v6417, %v6481
        %v6498 = vadd.f32 %v6418, %v6482
        %v6499 = vadd.f32 %v6419, %v6483
        %v6500 = vsel %vm6452, %v4563, 0.0
        %v6501 = vsel %vm6453, %v4564, 0.0
        %v6502 = vsel %vm6454, %v4565, 0.0
        %v6503 = vsel %vm6455, %v4566, 0.0
        %v6504 = vsel %vm6456, %v4567, 0.0
        %v6505 = vsel %vm6457, %v4568, 0.0
        %v6506 = vsel %vm6458, %v4569, 0.0
        %v6507 = vsel %vm6459, %v4570, 0.0
        %v6508 = vsel %vm6460, %v4571, 0.0
        %v6509 = vsel %vm6461, %v4572, 0.0
        %v6510 = vsel %vm6462, %v4573, 0.0
        %v6511 = vsel %vm6463, %v4574, 0.0
        %v6512 = vsel %vm6464, %v4575, 0.0
        %v6513 = vsel %vm6465, %v4576, 0.0
        %v6514 = vsel %vm6466, %v4577, 0.0
        %v6515 = vsel %vm6467, %v4578, 0.0
        %v6516 = vadd.f32 %v6436, %v6500
        %v6517 = vadd.f32 %v6437, %v6501
        %v6518 = vadd.f32 %v6438, %v6502
        %v6519 = vadd.f32 %v6439, %v6503
        %v6520 = vadd.f32 %v6440, %v6504
        %v6521 = vadd.f32 %v6441, %v6505
        %v6522 = vadd.f32 %v6442, %v6506
        %v6523 = vadd.f32 %v6443, %v6507
        %v6524 = vadd.f32 %v6444, %v6508
        %v6525 = vadd.f32 %v6445, %v6509
        %v6526 = vadd.f32 %v6446, %v6510
        %v6527 = vadd.f32 %v6447, %v6511
        %v6528 = vadd.f32 %v6448, %v6512
        %v6529 = vadd.f32 %v6449, %v6513
        %v6530 = vadd.f32 %v6450, %v6514
        %v6531 = vadd.f32 %v6451, %v6515
        %vm6532 = vcmp.eq.s32.totalorder %v4805, 1
        %vm6533 = vcmp.eq.s32.totalorder %v4808, 1
        %vm6534 = vcmp.eq.s32.totalorder %v4811, 1
        %vm6535 = vcmp.eq.s32.totalorder %v4814, 1
        %vm6536 = vcmp.eq.s32.totalorder %v4817, 1
        %vm6537 = vcmp.eq.s32.totalorder %v4820, 1
        %vm6538 = vcmp.eq.s32.totalorder %v4823, 1
        %vm6539 = vcmp.eq.s32.totalorder %v4826, 1
        %vm6540 = vcmp.eq.s32.totalorder %v4829, 1
        %vm6541 = vcmp.eq.s32.totalorder %v4832, 1
        %vm6542 = vcmp.eq.s32.totalorder %v4835, 1
        %vm6543 = vcmp.eq.s32.totalorder %v4838, 1
        %vm6544 = vcmp.eq.s32.totalorder %v4841, 1
        %vm6545 = vcmp.eq.s32.totalorder %v4844, 1
        %vm6546 = vcmp.eq.s32.totalorder %v4847, 1
        %vm6547 = vcmp.eq.s32.totalorder %v4850, 1
        %v6548 = vsel %vm6532, %v4707, 0.0
        %v6549 = vsel %vm6533, %v4708, 0.0
        %v6550 = vsel %vm6534, %v4709, 0.0
        %v6551 = vsel %vm6535, %v4710, 0.0
        %v6552 = vsel %vm6536, %v4711, 0.0
        %v6553 = vsel %vm6537, %v4712, 0.0
        %v6554 = vsel %vm6538, %v4713, 0.0
        %v6555 = vsel %vm6539, %v4714, 0.0
        %v6556 = vsel %vm6540, %v4715, 0.0
        %v6557 = vsel %vm6541, %v4716, 0.0
        %v6558 = vsel %vm6542, %v4717, 0.0
        %v6559 = vsel %vm6543, %v4718, 0.0
        %v6560 = vsel %vm6544, %v4719, 0.0
        %v6561 = vsel %vm6545, %v4720, 0.0
        %v6562 = vsel %vm6546, %v4721, 0.0
        %v6563 = vsel %vm6547, %v4722, 0.0
        %v6564 = vadd.f32 %v6484, %v6548
        %v6565 = vadd.f32 %v6485, %v6549
        %v6566 = vadd.f32 %v6486, %v6550
        %v6567 = vadd.f32 %v6487, %v6551
        %v6568 = vadd.f32 %v6488, %v6552
        %v6569 = vadd.f32 %v6489, %v6553
        %v6570 = vadd.f32 %v6490, %v6554
        %v6571 = vadd.f32 %v6491, %v6555
        %v6572 = vadd.f32 %v6492, %v6556
        %v6573 = vadd.f32 %v6493, %v6557
        %v6574 = vadd.f32 %v6494, %v6558
        %v6575 = vadd.f32 %v6495, %v6559
        %v6576 = vadd.f32 %v6496, %v6560
        %v6577 = vadd.f32 %v6497, %v6561
        %v6578 = vadd.f32 %v6498, %v6562
        %v6579 = vadd.f32 %v6499, %v6563
        %v6580 = vsel %vm6532, %v4787, 0.0
        %v6581 = vsel %vm6533, %v4788, 0.0
        %v6582 = vsel %vm6534, %v4789, 0.0
        %v6583 = vsel %vm6535, %v4790, 0.0
        %v6584 = vsel %vm6536, %v4791, 0.0
        %v6585 = vsel %vm6537, %v4792, 0.0
        %v6586 = vsel %vm6538, %v4793, 0.0
        %v6587 = vsel %vm6539, %v4794, 0.0
        %v6588 = vsel %vm6540, %v4795, 0.0
        %v6589 = vsel %vm6541, %v4796, 0.0
        %v6590 = vsel %vm6542, %v4797, 0.0
        %v6591 = vsel %vm6543, %v4798, 0.0
        %v6592 = vsel %vm6544, %v4799, 0.0
        %v6593 = vsel %vm6545, %v4800, 0.0
        %v6594 = vsel %vm6546, %v4801, 0.0
        %v6595 = vsel %vm6547, %v4802, 0.0
        %v6596 = vadd.f32 %v6516, %v6580
        %v6597 = vadd.f32 %v6517, %v6581
        %v6598 = vadd.f32 %v6518, %v6582
        %v6599 = vadd.f32 %v6519, %v6583
        %v6600 = vadd.f32 %v6520, %v6584
        %v6601 = vadd.f32 %v6521, %v6585
        %v6602 = vadd.f32 %v6522, %v6586
        %v6603 = vadd.f32 %v6523, %v6587
        %v6604 = vadd.f32 %v6524, %v6588
        %v6605 = vadd.f32 %v6525, %v6589
        %v6606 = vadd.f32 %v6526, %v6590
        %v6607 = vadd.f32 %v6527, %v6591
        %v6608 = vadd.f32 %v6528, %v6592
        %v6609 = vadd.f32 %v6529, %v6593
        %v6610 = vadd.f32 %v6530, %v6594
        %v6611 = vadd.f32 %v6531, %v6595
        %vm6612 = vcmp.eq.s32.totalorder %v5029, 1
        %vm6613 = vcmp.eq.s32.totalorder %v5032, 1
        %vm6614 = vcmp.eq.s32.totalorder %v5035, 1
        %vm6615 = vcmp.eq.s32.totalorder %v5038, 1
        %vm6616 = vcmp.eq.s32.totalorder %v5041, 1
        %vm6617 = vcmp.eq.s32.totalorder %v5044, 1
        %vm6618 = vcmp.eq.s32.totalorder %v5047, 1
        %vm6619 = vcmp.eq.s32.totalorder %v5050, 1
        %vm6620 = vcmp.eq.s32.totalorder %v5053, 1
        %vm6621 = vcmp.eq.s32.totalorder %v5056, 1
        %vm6622 = vcmp.eq.s32.totalorder %v5059, 1
        %vm6623 = vcmp.eq.s32.totalorder %v5062, 1
        %vm6624 = vcmp.eq.s32.totalorder %v5065, 1
        %vm6625 = vcmp.eq.s32.totalorder %v5068, 1
        %vm6626 = vcmp.eq.s32.totalorder %v5071, 1
        %vm6627 = vcmp.eq.s32.totalorder %v5074, 1
        %v6628 = vsel %vm6612, %v4931, 0.0
        %v6629 = vsel %vm6613, %v4932, 0.0
        %v6630 = vsel %vm6614, %v4933, 0.0
        %v6631 = vsel %vm6615, %v4934, 0.0
        %v6632 = vsel %vm6616, %v4935, 0.0
        %v6633 = vsel %vm6617, %v4936, 0.0
        %v6634 = vsel %vm6618, %v4937, 0.0
        %v6635 = vsel %vm6619, %v4938, 0.0
        %v6636 = vsel %vm6620, %v4939, 0.0
        %v6637 = vsel %vm6621, %v4940, 0.0
        %v6638 = vsel %vm6622, %v4941, 0.0
        %v6639 = vsel %vm6623, %v4942, 0.0
        %v6640 = vsel %vm6624, %v4943, 0.0
        %v6641 = vsel %vm6625, %v4944, 0.0
        %v6642 = vsel %vm6626, %v4945, 0.0
        %v6643 = vsel %vm6627, %v4946, 0.0
        %v6644 = vadd.f32 %v6564, %v6628
        %v6645 = vadd.f32 %v6565, %v6629
        %v6646 = vadd.f32 %v6566, %v6630
        %v6647 = vadd.f32 %v6567, %v6631
        %v6648 = vadd.f32 %v6568, %v6632
        %v6649 = vadd.f32 %v6569, %v6633
        %v6650 = vadd.f32 %v6570, %v6634
        %v6651 = vadd.f32 %v6571, %v6635
        %v6652 = vadd.f32 %v6572, %v6636
        %v6653 = vadd.f32 %v6573, %v6637
        %v6654 = vadd.f32 %v6574, %v6638
        %v6655 = vadd.f32 %v6575, %v6639
        %v6656 = vadd.f32 %v6576, %v6640
        %v6657 = vadd.f32 %v6577, %v6641
        %v6658 = vadd.f32 %v6578, %v6642
        %v6659 = vadd.f32 %v6579, %v6643
        %v6660 = vsel %vm6612, %v5011, 0.0
        %v6661 = vsel %vm6613, %v5012, 0.0
        %v6662 = vsel %vm6614, %v5013, 0.0
        %v6663 = vsel %vm6615, %v5014, 0.0
        %v6664 = vsel %vm6616, %v5015, 0.0
        %v6665 = vsel %vm6617, %v5016, 0.0
        %v6666 = vsel %vm6618, %v5017, 0.0
        %v6667 = vsel %vm6619, %v5018, 0.0
        %v6668 = vsel %vm6620, %v5019, 0.0
        %v6669 = vsel %vm6621, %v5020, 0.0
        %v6670 = vsel %vm6622, %v5021, 0.0
        %v6671 = vsel %vm6623, %v5022, 0.0
        %v6672 = vsel %vm6624, %v5023, 0.0
        %v6673 = vsel %vm6625, %v5024, 0.0
        %v6674 = vsel %vm6626, %v5025, 0.0
        %v6675 = vsel %vm6627, %v5026, 0.0
        %v6676 = vadd.f32 %v6596, %v6660
        %v6677 = vadd.f32 %v6597, %v6661
        %v6678 = vadd.f32 %v6598, %v6662
        %v6679 = vadd.f32 %v6599, %v6663
        %v6680 = vadd.f32 %v6600, %v6664
        %v6681 = vadd.f32 %v6601, %v6665
        %v6682 = vadd.f32 %v6602, %v6666
        %v6683 = vadd.f32 %v6603, %v6667
        %v6684 = vadd.f32 %v6604, %v6668
        %v6685 = vadd.f32 %v6605, %v6669
        %v6686 = vadd.f32 %v6606, %v6670
        %v6687 = vadd.f32 %v6607, %v6671
        %v6688 = vadd.f32 %v6608, %v6672
        %v6689 = vadd.f32 %v6609, %v6673
        %v6690 = vadd.f32 %v6610, %v6674
        %v6691 = vadd.f32 %v6611, %v6675
        %vm6692 = vcmp.eq.s32.totalorder %v5253, 1
        %vm6693 = vcmp.eq.s32.totalorder %v5256, 1
        %vm6694 = vcmp.eq.s32.totalorder %v5259, 1
        %vm6695 = vcmp.eq.s32.totalorder %v5262, 1
        %vm6696 = vcmp.eq.s32.totalorder %v5265, 1
        %vm6697 = vcmp.eq.s32.totalorder %v5268, 1
        %vm6698 = vcmp.eq.s32.totalorder %v5271, 1
        %vm6699 = vcmp.eq.s32.totalorder %v5274, 1
        %vm6700 = vcmp.eq.s32.totalorder %v5277, 1
        %vm6701 = vcmp.eq.s32.totalorder %v5280, 1
        %vm6702 = vcmp.eq.s32.totalorder %v5283, 1
        %vm6703 = vcmp.eq.s32.totalorder %v5286, 1
        %vm6704 = vcmp.eq.s32.totalorder %v5289, 1
        %vm6705 = vcmp.eq.s32.totalorder %v5292, 1
        %vm6706 = vcmp.eq.s32.totalorder %v5295, 1
        %vm6707 = vcmp.eq.s32.totalorder %v5298, 1
        %v6708 = vsel %vm6692, %v5155, 0.0
        %v6709 = vsel %vm6693, %v5156, 0.0
        %v6710 = vsel %vm6694, %v5157, 0.0
        %v6711 = vsel %vm6695, %v5158, 0.0
        %v6712 = vsel %vm6696, %v5159, 0.0
        %v6713 = vsel %vm6697, %v5160, 0.0
        %v6714 = vsel %vm6698, %v5161, 0.0
        %v6715 = vsel %vm6699, %v5162, 0.0
        %v6716 = vsel %vm6700, %v5163, 0.0
        %v6717 = vsel %vm6701, %v5164, 0.0
        %v6718 = vsel %vm6702, %v5165, 0.0
        %v6719 = vsel %vm6703, %v5166, 0.0
        %v6720 = vsel %vm6704, %v5167, 0.0
        %v6721 = vsel %vm6705, %v5168, 0.0
        %v6722 = vsel %vm6706, %v5169, 0.0
        %v6723 = vsel %vm6707, %v5170, 0.0
        %v6724 = vadd.f32 %v6644, %v6708
        %v6725 = vadd.f32 %v6645, %v6709
        %v6726 = vadd.f32 %v6646, %v6710
        %v6727 = vadd.f32 %v6647, %v6711
        %v6728 = vadd.f32 %v6648, %v6712
        %v6729 = vadd.f32 %v6649, %v6713
        %v6730 = vadd.f32 %v6650, %v6714
        %v6731 = vadd.f32 %v6651, %v6715
        %v6732 = vadd.f32 %v6652, %v6716
        %v6733 = vadd.f32 %v6653, %v6717
        %v6734 = vadd.f32 %v6654, %v6718
        %v6735 = vadd.f32 %v6655, %v6719
        %v6736 = vadd.f32 %v6656, %v6720
        %v6737 = vadd.f32 %v6657, %v6721
        %v6738 = vadd.f32 %v6658, %v6722
        %v6739 = vadd.f32 %v6659, %v6723
        %v6740 = vsel %vm6692, %v5235, 0.0
        %v6741 = vsel %vm6693, %v5236, 0.0
        %v6742 = vsel %vm6694, %v5237, 0.0
        %v6743 = vsel %vm6695, %v5238, 0.0
        %v6744 = vsel %vm6696, %v5239, 0.0
        %v6745 = vsel %vm6697, %v5240, 0.0
        %v6746 = vsel %vm6698, %v5241, 0.0
        %v6747 = vsel %vm6699, %v5242, 0.0
        %v6748 = vsel %vm6700, %v5243, 0.0
        %v6749 = vsel %vm6701, %v5244, 0.0
        %v6750 = vsel %vm6702, %v5245, 0.0
        %v6751 = vsel %vm6703, %v5246, 0.0
        %v6752 = vsel %vm6704, %v5247, 0.0
        %v6753 = vsel %vm6705, %v5248, 0.0
        %v6754 = vsel %vm6706, %v5249, 0.0
        %v6755 = vsel %vm6707, %v5250, 0.0
        %v6756 = vadd.f32 %v6676, %v6740
        %v6757 = vadd.f32 %v6677, %v6741
        %v6758 = vadd.f32 %v6678, %v6742
        %v6759 = vadd.f32 %v6679, %v6743
        %v6760 = vadd.f32 %v6680, %v6744
        %v6761 = vadd.f32 %v6681, %v6745
        %v6762 = vadd.f32 %v6682, %v6746
        %v6763 = vadd.f32 %v6683, %v6747
        %v6764 = vadd.f32 %v6684, %v6748
        %v6765 = vadd.f32 %v6685, %v6749
        %v6766 = vadd.f32 %v6686, %v6750
        %v6767 = vadd.f32 %v6687, %v6751
        %v6768 = vadd.f32 %v6688, %v6752
        %v6769 = vadd.f32 %v6689, %v6753
        %v6770 = vadd.f32 %v6690, %v6754
        %v6771 = vadd.f32 %v6691, %v6755
        %vm6772 = vcmp.eq.s32.totalorder %v5477, 1
        %vm6773 = vcmp.eq.s32.totalorder %v5480, 1
        %vm6774 = vcmp.eq.s32.totalorder %v5483, 1
        %vm6775 = vcmp.eq.s32.totalorder %v5486, 1
        %vm6776 = vcmp.eq.s32.totalorder %v5489, 1
        %vm6777 = vcmp.eq.s32.totalorder %v5492, 1
        %vm6778 = vcmp.eq.s32.totalorder %v5495, 1
        %vm6779 = vcmp.eq.s32.totalorder %v5498, 1
        %vm6780 = vcmp.eq.s32.totalorder %v5501, 1
        %vm6781 = vcmp.eq.s32.totalorder %v5504, 1
        %vm6782 = vcmp.eq.s32.totalorder %v5507, 1
        %vm6783 = vcmp.eq.s32.totalorder %v5510, 1
        %vm6784 = vcmp.eq.s32.totalorder %v5513, 1
        %vm6785 = vcmp.eq.s32.totalorder %v5516, 1
        %vm6786 = vcmp.eq.s32.totalorder %v5519, 1
        %vm6787 = vcmp.eq.s32.totalorder %v5522, 1
        %v6788 = vsel %vm6772, %v5379, 0.0
        %v6789 = vsel %vm6773, %v5380, 0.0
        %v6790 = vsel %vm6774, %v5381, 0.0
        %v6791 = vsel %vm6775, %v5382, 0.0
        %v6792 = vsel %vm6776, %v5383, 0.0
        %v6793 = vsel %vm6777, %v5384, 0.0
        %v6794 = vsel %vm6778, %v5385, 0.0
        %v6795 = vsel %vm6779, %v5386, 0.0
        %v6796 = vsel %vm6780, %v5387, 0.0
        %v6797 = vsel %vm6781, %v5388, 0.0
        %v6798 = vsel %vm6782, %v5389, 0.0
        %v6799 = vsel %vm6783, %v5390, 0.0
        %v6800 = vsel %vm6784, %v5391, 0.0
        %v6801 = vsel %vm6785, %v5392, 0.0
        %v6802 = vsel %vm6786, %v5393, 0.0
        %v6803 = vsel %vm6787, %v5394, 0.0
        %v6804 = vadd.f32 %v6724, %v6788
        %v6805 = vadd.f32 %v6725, %v6789
        %v6806 = vadd.f32 %v6726, %v6790
        %v6807 = vadd.f32 %v6727, %v6791
        %v6808 = vadd.f32 %v6728, %v6792
        %v6809 = vadd.f32 %v6729, %v6793
        %v6810 = vadd.f32 %v6730, %v6794
        %v6811 = vadd.f32 %v6731, %v6795
        %v6812 = vadd.f32 %v6732, %v6796
        %v6813 = vadd.f32 %v6733, %v6797
        %v6814 = vadd.f32 %v6734, %v6798
        %v6815 = vadd.f32 %v6735, %v6799
        %v6816 = vadd.f32 %v6736, %v6800
        %v6817 = vadd.f32 %v6737, %v6801
        %v6818 = vadd.f32 %v6738, %v6802
        %v6819 = vadd.f32 %v6739, %v6803
        %v6820 = vsel %vm6772, %v5459, 0.0
        %v6821 = vsel %vm6773, %v5460, 0.0
        %v6822 = vsel %vm6774, %v5461, 0.0
        %v6823 = vsel %vm6775, %v5462, 0.0
        %v6824 = vsel %vm6776, %v5463, 0.0
        %v6825 = vsel %vm6777, %v5464, 0.0
        %v6826 = vsel %vm6778, %v5465, 0.0
        %v6827 = vsel %vm6779, %v5466, 0.0
        %v6828 = vsel %vm6780, %v5467, 0.0
        %v6829 = vsel %vm6781, %v5468, 0.0
        %v6830 = vsel %vm6782, %v5469, 0.0
        %v6831 = vsel %vm6783, %v5470, 0.0
        %v6832 = vsel %vm6784, %v5471, 0.0
        %v6833 = vsel %vm6785, %v5472, 0.0
        %v6834 = vsel %vm6786, %v5473, 0.0
        %v6835 = vsel %vm6787, %v5474, 0.0
        %v6836 = vadd.f32 %v6756, %v6820
        %v6837 = vadd.f32 %v6757, %v6821
        %v6838 = vadd.f32 %v6758, %v6822
        %v6839 = vadd.f32 %v6759, %v6823
        %v6840 = vadd.f32 %v6760, %v6824
        %v6841 = vadd.f32 %v6761, %v6825
        %v6842 = vadd.f32 %v6762, %v6826
        %v6843 = vadd.f32 %v6763, %v6827
        %v6844 = vadd.f32 %v6764, %v6828
        %v6845 = vadd.f32 %v6765, %v6829
        %v6846 = vadd.f32 %v6766, %v6830
        %v6847 = vadd.f32 %v6767, %v6831
        %v6848 = vadd.f32 %v6768, %v6832
        %v6849 = vadd.f32 %v6769, %v6833
        %v6850 = vadd.f32 %v6770, %v6834
        %v6851 = vadd.f32 %v6771, %v6835
        %v6852 = vpack.c.bf16 %v6805, %v6804
        %v6853 = vpack.c.bf16 %v6807, %v6806
        %v6854 = vpack.c.bf16 %v6809, %v6808
        %v6855 = vpack.c.bf16 %v6811, %v6810
        %v6856 = vpack.c.bf16 %v6813, %v6812
        %v6857 = vpack.c.bf16 %v6815, %v6814
        %v6858 = vpack.c.bf16 %v6817, %v6816
        %v6859 = vpack.c.bf16 %v6819, %v6818
        %v6860 = vld [vmem:[%s4 + $0x40] sm:$0xf]
        %v6861 = vld [vmem:[%s4 + $0x44] sm:$0xf]
        %v6862 = vld [vmem:[%s4 + $0x48] sm:$0xf]
        %v6863 = vld [vmem:[%s4 + $0x4c] sm:$0xf]
        %v6864 = vld [vmem:[%s4 + $0x50] sm:$0xf]
        %v6865 = vld [vmem:[%s4 + $0x54] sm:$0xf]
        %v6866 = vld [vmem:[%s4 + $0x58] sm:$0xf]
        %v6867 = vld [vmem:[%s4 + $0x5c] sm:$0xf]
        %v6868 = vld [vmem:[%s4 + $0x60] sm:$0xf]
        %v6869 = vld [vmem:[%s4 + $0x64] sm:$0xf]
        %v6870 = vld [vmem:[%s4 + $0x68] sm:$0xf]
        %v6871 = vld [vmem:[%s4 + $0x6c] sm:$0xf]
        %v6872 = vld [vmem:[%s4 + $0x70] sm:$0xf]
        %v6873 = vld [vmem:[%s4 + $0x74] sm:$0xf]
        %v6874 = vld [vmem:[%s4 + $0x78] sm:$0xf]
        %v6875 = vld [vmem:[%s4 + $0x7c] sm:$0xf]
        %v6892 = vunpack.c.l.b16 %v6860
        %v6893 = vunpack.c.l.b16 %v6861
        %v6894 = vunpack.c.l.b16 %v6862
        %v6895 = vunpack.c.l.b16 %v6863
        %v6896 = vunpack.c.l.b16 %v6864
        %v6897 = vunpack.c.l.b16 %v6865
        %v6898 = vunpack.c.l.b16 %v6866
        %v6899 = vunpack.c.l.b16 %v6867
        %v6900 = vunpack.c.l.b16 %v6868
        %v6901 = vunpack.c.l.b16 %v6869
        %v6902 = vunpack.c.l.b16 %v6870
        %v6903 = vunpack.c.l.b16 %v6871
        %v6904 = vunpack.c.l.b16 %v6872
        %v6905 = vunpack.c.l.b16 %v6873
        %v6906 = vunpack.c.l.b16 %v6874
        %v6907 = vunpack.c.l.b16 %v6875
        %v6908 = vpack.c.b16 %v6893, %v6892
        %v6909 = vpack.c.b16 %v6895, %v6894
        %v6910 = vpack.c.b16 %v6897, %v6896
        %v6911 = vpack.c.b16 %v6899, %v6898
        %v6912 = vpack.c.b16 %v6901, %v6900
        %v6913 = vpack.c.b16 %v6903, %v6902
        %v6914 = vpack.c.b16 %v6905, %v6904
        %v6915 = vpack.c.b16 %v6907, %v6906
        %6924 = vmatprep.subr.bf16.mxu0 0
        %6925 = vmatpush1.bf16.msra.mxu0 %v6908
        %6926 = vmatprep.subr.bf16.mxu0 0
        %6927 = vmatpush1.bf16.msra.mxu0 %v6909
        %6928 = vmatprep.subr.bf16.mxu0 0
        %6929 = vmatpush1.bf16.msra.mxu0 %v6910
        %6930 = vmatprep.subr.bf16.mxu0 0
        %6931 = vmatpush1.bf16.msra.mxu0 %v6911
        %6932 = vmatprep.subr.bf16.mxu0 0
        %6933 = vmatpush1.bf16.msra.mxu0 %v6912
        %6934 = vmatprep.subr.bf16.mxu0 0
        %6935 = vmatpush1.bf16.msra.mxu0 %v6913
        %6936 = vmatprep.subr.bf16.mxu0 0
        %6937 = vmatpush1.bf16.msra.mxu0 %v6914
        %6938 = vmatprep.subr.bf16.mxu0 0
        %6939 = vmatpush1.bf16.msra.mxu0 %v6915
        %6940 = vmatprep.subr.bf16.mxu0 0
        %6941 = vmatpush1.bf16.msra.mxu0 0
        %6942 = vmatprep.subr.bf16.mxu0 0
        %6943 = vmatpush1.bf16.msra.mxu0 0
        %6944 = vmatprep.subr.bf16.mxu0 0
        %6945 = vmatpush1.bf16.msra.mxu0 0
        %6946 = vmatprep.subr.bf16.mxu0 0
        %6947 = vmatpush1.bf16.msra.mxu0 0
        %6948 = vmatprep.subr.bf16.mxu0 0
        %6949 = vmatpush1.bf16.msra.mxu0 0
        %6950 = vmatprep.subr.bf16.mxu0 0
        %6951 = vmatpush1.bf16.msra.mxu0 0
        %6952 = vmatprep.subr.bf16.mxu0 0
        %6953 = vmatpush1.bf16.msra.mxu0 0
        %6954 = vmatprep.subr.bf16.mxu0 0
        %6955 = vmatpush1.bf16.msra.mxu0 0
        %6956 = vmatprep.mubr.bf16.mxu0 0
        %6957 = vmatmul.mubr.bf16.gmra.mrb[0].mxu0 %v6852
        %v6958 = vpop.f32.mrb[0].mxu0
        %v6959 = vadd.f32 0.0, %v6958
        %v6960 = vpop.f32.mrb[0].mxu0
        %v6961 = vpop.f32.mrb[0].mxu0
        %v6962 = vadd.f32 0.0, %v6961
        %v6963 = vpop.f32.mrb[0].mxu0
        %6964 = vmatprep.mubr.bf16.mxu0 0
        %6965 = vmatmul.mubr.bf16.gmra.mrb[0].mxu0 %v6853
        %v6966 = vpop.f32.mrb[0].mxu0
        %v6967 = vadd.f32 0.0, %v6966
        %v6968 = vpop.f32.mrb[0].mxu0
        %v6969 = vpop.f32.mrb[0].mxu0
        %v6970 = vadd.f32 0.0, %v6969
        %v6971 = vpop.f32.mrb[0].mxu0
        %6972 = vmatprep.mubr.bf16.mxu0 0
        %6973 = vmatmul.mubr.bf16.gmra.mrb[0].mxu0 %v6854
        %v6974 = vpop.f32.mrb[0].mxu0
        %v6975 = vadd.f32 0.0, %v6974
        %v6976 = vpop.f32.mrb[0].mxu0
        %v6977 = vpop.f32.mrb[0].mxu0
        %v6978 = vadd.f32 0.0, %v6977
        %v6979 = vpop.f32.mrb[0].mxu0
        %6980 = vmatprep.mubr.bf16.mxu0 0
        %6981 = vmatmul.mubr.bf16.gmra.mrb[0].mxu0 %v6855
        %v6982 = vpop.f32.mrb[0].mxu0
        %v6983 = vadd.f32 0.0, %v6982
        %v6984 = vpop.f32.mrb[0].mxu0
        %v6985 = vpop.f32.mrb[0].mxu0
        %v6986 = vadd.f32 0.0, %v6985
        %v6987 = vpop.f32.mrb[0].mxu0
        %6988 = vmatprep.mubr.bf16.mxu0 0
        %6989 = vmatmul.mubr.bf16.gmra.mrb[0].mxu0 %v6856
        %v6990 = vpop.f32.mrb[0].mxu0
        %v6991 = vadd.f32 0.0, %v6990
        %v6992 = vpop.f32.mrb[0].mxu0
        %v6993 = vpop.f32.mrb[0].mxu0
        %v6994 = vadd.f32 0.0, %v6993
        %v6995 = vpop.f32.mrb[0].mxu0
        %6996 = vmatprep.mubr.bf16.mxu0 0
        %6997 = vmatmul.mubr.bf16.gmra.mrb[0].mxu0 %v6857
        %v6998 = vpop.f32.mrb[0].mxu0
        %v6999 = vadd.f32 0.0, %v6998
        %v7000 = vpop.f32.mrb[0].mxu0
        %v7001 = vpop.f32.mrb[0].mxu0
        %v7002 = vadd.f32 0.0, %v7001
        %v7003 = vpop.f32.mrb[0].mxu0
        %7004 = vmatprep.mubr.bf16.mxu0 0
        %7005 = vmatmul.mubr.bf16.gmra.mrb[0].mxu0 %v6858
        %v7006 = vpop.f32.mrb[0].mxu0
        %v7007 = vadd.f32 0.0, %v7006
        %v7008 = vpop.f32.mrb[0].mxu0
        %v7009 = vpop.f32.mrb[0].mxu0
        %v7010 = vadd.f32 0.0, %v7009
        %v7011 = vpop.f32.mrb[0].mxu0
        %7012 = vmatprep.mubr.bf16.mxu0 0
        %7013 = vmatmul.mubr.bf16.gmra.mrb[0].mxu0 %v6859
        %v7014 = vpop.f32.mrb[0].mxu0
        %v7015 = vadd.f32 0.0, %v7014
        %v7016 = vpop.f32.mrb[0].mxu0
        %v7017 = vpop.f32.mrb[0].mxu0
        %v7018 = vadd.f32 0.0, %v7017
        %v7019 = vpop.f32.mrb[0].mxu0
        %7020 = vdwg.mxu0
        %v7037 = vunpack.c.l.b16 %v6171
        %v7038 = vunpack.c.l.b16 %v6172
        %v7039 = vunpack.c.l.b16 %v6173
        %v7040 = vunpack.c.l.b16 %v6174
        %v7041 = vunpack.c.l.b16 %v6175
        %v7042 = vunpack.c.l.b16 %v6176
        %v7043 = vunpack.c.l.b16 %v6177
        %v7044 = vunpack.c.l.b16 %v6178
        %v7045 = vunpack.c.l.b16 %v6179
        %v7046 = vunpack.c.l.b16 %v6180
        %v7047 = vunpack.c.l.b16 %v6181
        %v7048 = vunpack.c.l.b16 %v6182
        %v7049 = vunpack.c.l.b16 %v6183
        %v7050 = vunpack.c.l.b16 %v6184
        %v7051 = vunpack.c.l.b16 %v6185
        %v7052 = vunpack.c.l.b16 %v6186
        %v7053 = vpack.c.b16 %v7038, %v7037
        %v7054 = vpack.c.b16 %v7040, %v7039
        %v7055 = vpack.c.b16 %v7042, %v7041
        %v7056 = vpack.c.b16 %v7044, %v7043
        %v7057 = vpack.c.b16 %v7046, %v7045
        %v7058 = vpack.c.b16 %v7048, %v7047
        %v7059 = vpack.c.b16 %v7050, %v7049
        %v7060 = vpack.c.b16 %v7052, %v7051
        %7069 = vmatprep.subr.bf16.mxu0 0
        %7070 = vmatpush1.bf16.msra.mxu0 %v7053
        %7071 = vmatprep.subr.bf16.mxu0 0
        %7072 = vmatpush1.bf16.msra.mxu0 %v7054
        %7073 = vmatprep.subr.bf16.mxu0 0
        %7074 = vmatpush1.bf16.msra.mxu0 %v7055
        %7075 = vmatprep.subr.bf16.mxu0 0
        %7076 = vmatpush1.bf16.msra.mxu0 %v7056
        %7077 = vmatprep.subr.bf16.mxu0 0
        %7078 = vmatpush1.bf16.msra.mxu0 %v7057
        %7079 = vmatprep.subr.bf16.mxu0 0
        %7080 = vmatpush1.bf16.msra.mxu0 %v7058
        %7081 = vmatprep.subr.bf16.mxu0 0
        %7082 = vmatpush1.bf16.msra.mxu0 %v7059
        %7083 = vmatprep.subr.bf16.mxu0 0
        %7084 = vmatpush1.bf16.msra.mxu0 %v7060
        %7085 = vmatprep.subr.bf16.mxu0 0
        %7086 = vmatpush1.bf16.msra.mxu0 0
        %7087 = vmatprep.subr.bf16.mxu0 0
        %7088 = vmatpush1.bf16.msra.mxu0 0
        %7089 = vmatprep.subr.bf16.mxu0 0
        %7090 = vmatpush1.bf16.msra.mxu0 0
        %7091 = vmatprep.subr.bf16.mxu0 0
        %7092 = vmatpush1.bf16.msra.mxu0 0
        %7093 = vmatprep.subr.bf16.mxu0 0
        %7094 = vmatpush1.bf16.msra.mxu0 0
        %7095 = vmatprep.subr.bf16.mxu0 0
        %7096 = vmatpush1.bf16.msra.mxu0 0
        %7097 = vmatprep.subr.bf16.mxu0 0
        %7098 = vmatpush1.bf16.msra.mxu0 0
        %7099 = vmatprep.subr.bf16.mxu0 0
        %7100 = vmatpush1.bf16.msra.mxu0 0
        %7101 = vmatprep.mubr.bf16.mxu0 0
        %7102 = vmatmul.mubr.bf16.gmra.mrb[0].mxu0 %v6163
        %v7103 = vpop.f32.mrb[0].mxu0
        %v7104 = vadd.f32 %v6959, %v7103
        %v7105 = vpop.f32.mrb[0].mxu0
        %v7106 = vpop.f32.mrb[0].mxu0
        %v7107 = vadd.f32 %v6962, %v7106
        %v7108 = vpop.f32.mrb[0].mxu0
        %7109 = vmatprep.mubr.bf16.mxu0 0
        %7110 = vmatmul.mubr.bf16.gmra.mrb[0].mxu0 %v6164
        %v7111 = vpop.f32.mrb[0].mxu0
        %v7112 = vadd.f32 %v6967, %v7111
        %v7113 = vpop.f32.mrb[0].mxu0
        %v7114 = vpop.f32.mrb[0].mxu0
        %v7115 = vadd.f32 %v6970, %v7114
        %v7116 = vpop.f32.mrb[0].mxu0
        %7117 = vmatprep.mubr.bf16.mxu0 0
        %7118 = vmatmul.mubr.bf16.gmra.mrb[0].mxu0 %v6165
        %v7119 = vpop.f32.mrb[0].mxu0
        %v7120 = vadd.f32 %v6975, %v7119
        %v7121 = vpop.f32.mrb[0].mxu0
        %v7122 = vpop.f32.mrb[0].mxu0
        %v7123 = vadd.f32 %v6978, %v7122
        %v7124 = vpop.f32.mrb[0].mxu0
        %7125 = vmatprep.mubr.bf16.mxu0 0
        %7126 = vmatmul.mubr.bf16.gmra.mrb[0].mxu0 %v6166
        %v7127 = vpop.f32.mrb[0].mxu0
        %v7128 = vadd.f32 %v6983, %v7127
        %v7129 = vpop.f32.mrb[0].mxu0
        %v7130 = vpop.f32.mrb[0].mxu0
        %v7131 = vadd.f32 %v6986, %v7130
        %v7132 = vpop.f32.mrb[0].mxu0
        %7133 = vmatprep.mubr.bf16.mxu0 0
        %7134 = vmatmul.mubr.bf16.gmra.mrb[0].mxu0 %v6167
        %v7135 = vpop.f32.mrb[0].mxu0
        %v7136 = vadd.f32 %v6991, %v7135
        %v7137 = vpop.f32.mrb[0].mxu0
        %v7138 = vpop.f32.mrb[0].mxu0
        %v7139 = vadd.f32 %v6994, %v7138
        %v7140 = vpop.f32.mrb[0].mxu0
        %7141 = vmatprep.mubr.bf16.mxu0 0
        %7142 = vmatmul.mubr.bf16.gmra.mrb[0].mxu0 %v6168
        %v7143 = vpop.f32.mrb[0].mxu0
        %v7144 = vadd.f32 %v6999, %v7143
        %v7145 = vpop.f32.mrb[0].mxu0
        %v7146 = vpop.f32.mrb[0].mxu0
        %v7147 = vadd.f32 %v7002, %v7146
        %v7148 = vpop.f32.mrb[0].mxu0
        %7149 = vmatprep.mubr.bf16.mxu0 0
        %7150 = vmatmul.mubr.bf16.gmra.mrb[0].mxu0 %v6169
        %v7151 = vpop.f32.mrb[0].mxu0
        %v7152 = vadd.f32 %v7007, %v7151
        %v7153 = vpop.f32.mrb[0].mxu0
        %v7154 = vpop.f32.mrb[0].mxu0
        %v7155 = vadd.f32 %v7010, %v7154
        %v7156 = vpop.f32.mrb[0].mxu0
        %7157 = vmatprep.mubr.bf16.mxu0 0
        %7158 = vmatmul.mubr.bf16.gmra.mrb[0].mxu0 %v6170
        %v7159 = vpop.f32.mrb[0].mxu0
        %v7160 = vadd.f32 %v7015, %v7159
        %v7161 = vpop.f32.mrb[0].mxu0
        %v7162 = vpop.f32.mrb[0].mxu0
        %v7163 = vadd.f32 %v7018, %v7162
        %v7164 = vpop.f32.mrb[0].mxu0
        %7165 = vdwg.mxu0
        %v7166 = vpack.c.bf16 %v6837, %v6836
        %v7167 = vpack.c.bf16 %v6839, %v6838
        %v7168 = vpack.c.bf16 %v6841, %v6840
        %v7169 = vpack.c.bf16 %v6843, %v6842
        %v7170 = vpack.c.bf16 %v6845, %v6844
        %v7171 = vpack.c.bf16 %v6847, %v6846
        %v7172 = vpack.c.bf16 %v6849, %v6848
        %v7173 = vpack.c.bf16 %v6851, %v6850
        %v7174 = vld [vmem:[%s6195 + $0x40] sm:$0xf]
        %v7175 = vld [vmem:[%s6195 + $0x44] sm:$0xf]
        %v7176 = vld [vmem:[%s6195 + $0x48] sm:$0xf]
        %v7177 = vld [vmem:[%s6195 + $0x4c] sm:$0xf]
        %v7178 = vld [vmem:[%s6195 + $0x50] sm:$0xf]
        %v7179 = vld [vmem:[%s6195 + $0x54] sm:$0xf]
        %v7180 = vld [vmem:[%s6195 + $0x58] sm:$0xf]
        %v7181 = vld [vmem:[%s6195 + $0x5c] sm:$0xf]
        %v7182 = vld [vmem:[%s6195 + $0x60] sm:$0xf]
        %v7183 = vld [vmem:[%s6195 + $0x64] sm:$0xf]
        %v7184 = vld [vmem:[%s6195 + $0x68] sm:$0xf]
        %v7185 = vld [vmem:[%s6195 + $0x6c] sm:$0xf]
        %v7186 = vld [vmem:[%s6195 + $0x70] sm:$0xf]
        %v7187 = vld [vmem:[%s6195 + $0x74] sm:$0xf]
        %v7188 = vld [vmem:[%s6195 + $0x78] sm:$0xf]
        %v7189 = vld [vmem:[%s6195 + $0x7c] sm:$0xf]
        %v7206 = vunpack.c.l.b16 %v7174
        %v7207 = vunpack.c.l.b16 %v7175
        %v7208 = vunpack.c.l.b16 %v7176
        %v7209 = vunpack.c.l.b16 %v7177
        %v7210 = vunpack.c.l.b16 %v7178
        %v7211 = vunpack.c.l.b16 %v7179
        %v7212 = vunpack.c.l.b16 %v7180
        %v7213 = vunpack.c.l.b16 %v7181
        %v7214 = vunpack.c.l.b16 %v7182
        %v7215 = vunpack.c.l.b16 %v7183
        %v7216 = vunpack.c.l.b16 %v7184
        %v7217 = vunpack.c.l.b16 %v7185
        %v7218 = vunpack.c.l.b16 %v7186
        %v7219 = vunpack.c.l.b16 %v7187
        %v7220 = vunpack.c.l.b16 %v7188
        %v7221 = vunpack.c.l.b16 %v7189
        %v7222 = vpack.c.b16 %v7207, %v7206
        %v7223 = vpack.c.b16 %v7209, %v7208
        %v7224 = vpack.c.b16 %v7211, %v7210
        %v7225 = vpack.c.b16 %v7213, %v7212
        %v7226 = vpack.c.b16 %v7215, %v7214
        %v7227 = vpack.c.b16 %v7217, %v7216
        %v7228 = vpack.c.b16 %v7219, %v7218
        %v7229 = vpack.c.b16 %v7221, %v7220
        %7238 = vmatprep.subr.bf16.mxu0 0
        %7239 = vmatpush1.bf16.msra.mxu0 %v7222
        %7240 = vmatprep.subr.bf16.mxu0 0
        %7241 = vmatpush1.bf16.msra.mxu0 %v7223
        %7242 = vmatprep.subr.bf16.mxu0 0
        %7243 = vmatpush1.bf16.msra.mxu0 %v7224
        %7244 = vmatprep.subr.bf16.mxu0 0
        %7245 = vmatpush1.bf16.msra.mxu0 %v7225
        %7246 = vmatprep.subr.bf16.mxu0 0
        %7247 = vmatpush1.bf16.msra.mxu0 %v7226
        %7248 = vmatprep.subr.bf16.mxu0 0
        %7249 = vmatpush1.bf16.msra.mxu0 %v7227
        %7250 = vmatprep.subr.bf16.mxu0 0
        %7251 = vmatpush1.bf16.msra.mxu0 %v7228
        %7252 = vmatprep.subr.bf16.mxu0 0
        %7253 = vmatpush1.bf16.msra.mxu0 %v7229
        %7254 = vmatprep.subr.bf16.mxu0 0
        %7255 = vmatpush1.bf16.msra.mxu0 0
        %7256 = vmatprep.subr.bf16.mxu0 0
        %7257 = vmatpush1.bf16.msra.mxu0 0
        %7258 = vmatprep.subr.bf16.mxu0 0
        %7259 = vmatpush1.bf16.msra.mxu0 0
        %7260 = vmatprep.subr.bf16.mxu0 0
        %7261 = vmatpush1.bf16.msra.mxu0 0
        %7262 = vmatprep.subr.bf16.mxu0 0
        %7263 = vmatpush1.bf16.msra.mxu0 0
        %7264 = vmatprep.subr.bf16.mxu0 0
        %7265 = vmatpush1.bf16.msra.mxu0 0
        %7266 = vmatprep.subr.bf16.mxu0 0
        %7267 = vmatpush1.bf16.msra.mxu0 0
        %7268 = vmatprep.subr.bf16.mxu0 0
        %7269 = vmatpush1.bf16.msra.mxu0 0
        %7270 = vmatprep.mubr.bf16.mxu0 0
        %7271 = vmatmul.mubr.bf16.gmra.mrb[0].mxu0 %v7166
        %v7272 = vpop.f32.mrb[0].mxu0
        %v7273 = vadd.f32 0.0, %v7272
        %v7274 = vpop.f32.mrb[0].mxu0
        %v7275 = vpop.f32.mrb[0].mxu0
        %v7276 = vadd.f32 0.0, %v7275
        %v7277 = vpop.f32.mrb[0].mxu0
        %7278 = vmatprep.mubr.bf16.mxu0 0
        %7279 = vmatmul.mubr.bf16.gmra.mrb[0].mxu0 %v7167
        %v7280 = vpop.f32.mrb[0].mxu0
        %v7281 = vadd.f32 0.0, %v7280
        %v7282 = vpop.f32.mrb[0].mxu0
        %v7283 = vpop.f32.mrb[0].mxu0
        %v7284 = vadd.f32 0.0, %v7283
        %v7285 = vpop.f32.mrb[0].mxu0
        %7286 = vmatprep.mubr.bf16.mxu0 0
        %7287 = vmatmul.mubr.bf16.gmra.mrb[0].mxu0 %v7168
        %v7288 = vpop.f32.mrb[0].mxu0
        %v7289 = vadd.f32 0.0, %v7288
        %v7290 = vpop.f32.mrb[0].mxu0
        %v7291 = vpop.f32.mrb[0].mxu0
        %v7292 = vadd.f32 0.0, %v7291
        %v7293 = vpop.f32.mrb[0].mxu0
        %7294 = vmatprep.mubr.bf16.mxu0 0
        %7295 = vmatmul.mubr.bf16.gmra.mrb[0].mxu0 %v7169
        %v7296 = vpop.f32.mrb[0].mxu0
        %v7297 = vadd.f32 0.0, %v7296
        %v7298 = vpop.f32.mrb[0].mxu0
        %v7299 = vpop.f32.mrb[0].mxu0
        %v7300 = vadd.f32 0.0, %v7299
        %v7301 = vpop.f32.mrb[0].mxu0
        %7302 = vmatprep.mubr.bf16.mxu0 0
        %7303 = vmatmul.mubr.bf16.gmra.mrb[0].mxu0 %v7170
        %v7304 = vpop.f32.mrb[0].mxu0
        %v7305 = vadd.f32 0.0, %v7304
        %v7306 = vpop.f32.mrb[0].mxu0
        %v7307 = vpop.f32.mrb[0].mxu0
        %v7308 = vadd.f32 0.0, %v7307
        %v7309 = vpop.f32.mrb[0].mxu0
        %7310 = vmatprep.mubr.bf16.mxu0 0
        %7311 = vmatmul.mubr.bf16.gmra.mrb[0].mxu0 %v7171
        %v7312 = vpop.f32.mrb[0].mxu0
        %v7313 = vadd.f32 0.0, %v7312
        %v7314 = vpop.f32.mrb[0].mxu0
        %v7315 = vpop.f32.mrb[0].mxu0
        %v7316 = vadd.f32 0.0, %v7315
        %v7317 = vpop.f32.mrb[0].mxu0
        %7318 = vmatprep.mubr.bf16.mxu0 0
        %7319 = vmatmul.mubr.bf16.gmra.mrb[0].mxu0 %v7172
        %v7320 = vpop.f32.mrb[0].mxu0
        %v7321 = vadd.f32 0.0, %v7320
        %v7322 = vpop.f32.mrb[0].mxu0
        %v7323 = vpop.f32.mrb[0].mxu0
        %v7324 = vadd.f32 0.0, %v7323
        %v7325 = vpop.f32.mrb[0].mxu0
        %7326 = vmatprep.mubr.bf16.mxu0 0
        %7327 = vmatmul.mubr.bf16.gmra.mrb[0].mxu0 %v7173
        %v7328 = vpop.f32.mrb[0].mxu0
        %v7329 = vadd.f32 0.0, %v7328
        %v7330 = vpop.f32.mrb[0].mxu0
        %v7331 = vpop.f32.mrb[0].mxu0
        %v7332 = vadd.f32 0.0, %v7331
        %v7333 = vpop.f32.mrb[0].mxu0
        %7334 = vdwg.mxu0
        %v7351 = vunpack.c.l.b16 %v6196
        %v7352 = vunpack.c.l.b16 %v6197
        %v7353 = vunpack.c.l.b16 %v6198
        %v7354 = vunpack.c.l.b16 %v6199
        %v7355 = vunpack.c.l.b16 %v6200
        %v7356 = vunpack.c.l.b16 %v6201
        %v7357 = vunpack.c.l.b16 %v6202
        %v7358 = vunpack.c.l.b16 %v6203
        %v7359 = vunpack.c.l.b16 %v6204
        %v7360 = vunpack.c.l.b16 %v6205
        %v7361 = vunpack.c.l.b16 %v6206
        %v7362 = vunpack.c.l.b16 %v6207
        %v7363 = vunpack.c.l.b16 %v6208
        %v7364 = vunpack.c.l.b16 %v6209
        %v7365 = vunpack.c.l.b16 %v6210
        %v7366 = vunpack.c.l.b16 %v6211
        %v7367 = vpack.c.b16 %v7352, %v7351
        %v7368 = vpack.c.b16 %v7354, %v7353
        %v7369 = vpack.c.b16 %v7356, %v7355
        %v7370 = vpack.c.b16 %v7358, %v7357
        %v7371 = vpack.c.b16 %v7360, %v7359
        %v7372 = vpack.c.b16 %v7362, %v7361
        %v7373 = vpack.c.b16 %v7364, %v7363
        %v7374 = vpack.c.b16 %v7366, %v7365
        %7383 = vmatprep.subr.bf16.mxu0 0
        %7384 = vmatpush1.bf16.msra.mxu0 %v7367
        %7385 = vmatprep.subr.bf16.mxu0 0
        %7386 = vmatpush1.bf16.msra.mxu0 %v7368
        %7387 = vmatprep.subr.bf16.mxu0 0
        %7388 = vmatpush1.bf16.msra.mxu0 %v7369
        %7389 = vmatprep.subr.bf16.mxu0 0
        %7390 = vmatpush1.bf16.msra.mxu0 %v7370
        %7391 = vmatprep.subr.bf16.mxu0 0
        %7392 = vmatpush1.bf16.msra.mxu0 %v7371
        %7393 = vmatprep.subr.bf16.mxu0 0
        %7394 = vmatpush1.bf16.msra.mxu0 %v7372
        %7395 = vmatprep.subr.bf16.mxu0 0
        %7396 = vmatpush1.bf16.msra.mxu0 %v7373
        %7397 = vmatprep.subr.bf16.mxu0 0
        %7398 = vmatpush1.bf16.msra.mxu0 %v7374
        %7399 = vmatprep.subr.bf16.mxu0 0
        %7400 = vmatpush1.bf16.msra.mxu0 0
        %7401 = vmatprep.subr.bf16.mxu0 0
        %7402 = vmatpush1.bf16.msra.mxu0 0
        %7403 = vmatprep.subr.bf16.mxu0 0
        %7404 = vmatpush1.bf16.msra.mxu0 0
        %7405 = vmatprep.subr.bf16.mxu0 0
        %7406 = vmatpush1.bf16.msra.mxu0 0
        %7407 = vmatprep.subr.bf16.mxu0 0
        %7408 = vmatpush1.bf16.msra.mxu0 0
        %7409 = vmatprep.subr.bf16.mxu0 0
        %7410 = vmatpush1.bf16.msra.mxu0 0
        %7411 = vmatprep.subr.bf16.mxu0 0
        %7412 = vmatpush1.bf16.msra.mxu0 0
        %7413 = vmatprep.subr.bf16.mxu0 0
        %7414 = vmatpush1.bf16.msra.mxu0 0
        %7415 = vmatprep.mubr.bf16.mxu0 0
        %7416 = vmatmul.mubr.bf16.gmra.mrb[0].mxu0 %v6187
        %v7417 = vpop.f32.mrb[0].mxu0
        %v7418 = vadd.f32 %v7273, %v7417
        %v7419 = vpop.f32.mrb[0].mxu0
        %v7420 = vpop.f32.mrb[0].mxu0
        %v7421 = vadd.f32 %v7276, %v7420
        %v7422 = vpop.f32.mrb[0].mxu0
        %7423 = vmatprep.mubr.bf16.mxu0 0
        %7424 = vmatmul.mubr.bf16.gmra.mrb[0].mxu0 %v6188
        %v7425 = vpop.f32.mrb[0].mxu0
        %v7426 = vadd.f32 %v7281, %v7425
        %v7427 = vpop.f32.mrb[0].mxu0
        %v7428 = vpop.f32.mrb[0].mxu0
        %v7429 = vadd.f32 %v7284, %v7428
        %v7430 = vpop.f32.mrb[0].mxu0
        %7431 = vmatprep.mubr.bf16.mxu0 0
        %7432 = vmatmul.mubr.bf16.gmra.mrb[0].mxu0 %v6189
        %v7433 = vpop.f32.mrb[0].mxu0
        %v7434 = vadd.f32 %v7289, %v7433
        %v7435 = vpop.f32.mrb[0].mxu0
        %v7436 = vpop.f32.mrb[0].mxu0
        %v7437 = vadd.f32 %v7292, %v7436
        %v7438 = vpop.f32.mrb[0].mxu0
        %7439 = vmatprep.mubr.bf16.mxu0 0
        %7440 = vmatmul.mubr.bf16.gmra.mrb[0].mxu0 %v6190
        %v7441 = vpop.f32.mrb[0].mxu0
        %v7442 = vadd.f32 %v7297, %v7441
        %v7443 = vpop.f32.mrb[0].mxu0
        %v7444 = vpop.f32.mrb[0].mxu0
        %v7445 = vadd.f32 %v7300, %v7444
        %v7446 = vpop.f32.mrb[0].mxu0
        %7447 = vmatprep.mubr.bf16.mxu0 0
        %7448 = vmatmul.mubr.bf16.gmra.mrb[0].mxu0 %v6191
        %v7449 = vpop.f32.mrb[0].mxu0
        %v7450 = vadd.f32 %v7305, %v7449
        %v7451 = vpop.f32.mrb[0].mxu0
        %v7452 = vpop.f32.mrb[0].mxu0
        %v7453 = vadd.f32 %v7308, %v7452
        %v7454 = vpop.f32.mrb[0].mxu0
        %7455 = vmatprep.mubr.bf16.mxu0 0
        %7456 = vmatmul.mubr.bf16.gmra.mrb[0].mxu0 %v6192
        %v7457 = vpop.f32.mrb[0].mxu0
        %v7458 = vadd.f32 %v7313, %v7457
        %v7459 = vpop.f32.mrb[0].mxu0
        %v7460 = vpop.f32.mrb[0].mxu0
        %v7461 = vadd.f32 %v7316, %v7460
        %v7462 = vpop.f32.mrb[0].mxu0
        %7463 = vmatprep.mubr.bf16.mxu0 0
        %7464 = vmatmul.mubr.bf16.gmra.mrb[0].mxu0 %v6193
        %v7465 = vpop.f32.mrb[0].mxu0
        %v7466 = vadd.f32 %v7321, %v7465
        %v7467 = vpop.f32.mrb[0].mxu0
        %v7468 = vpop.f32.mrb[0].mxu0
        %v7469 = vadd.f32 %v7324, %v7468
        %v7470 = vpop.f32.mrb[0].mxu0
        %7471 = vmatprep.mubr.bf16.mxu0 0
        %7472 = vmatmul.mubr.bf16.gmra.mrb[0].mxu0 %v6194
        %v7473 = vpop.f32.mrb[0].mxu0
        %v7474 = vadd.f32 %v7329, %v7473
        %v7475 = vpop.f32.mrb[0].mxu0
        %v7476 = vpop.f32.mrb[0].mxu0
        %v7477 = vadd.f32 %v7332, %v7476
        %v7478 = vpop.f32.mrb[0].mxu0
        %7479 = vdwg.mxu0
        %vm7480 = vcmp.eq.s32.totalorder %v3909, 2
        %vm7481 = vcmp.eq.s32.totalorder %v3912, 2
        %vm7482 = vcmp.eq.s32.totalorder %v3915, 2
        %vm7483 = vcmp.eq.s32.totalorder %v3918, 2
        %vm7484 = vcmp.eq.s32.totalorder %v3921, 2
        %vm7485 = vcmp.eq.s32.totalorder %v3924, 2
        %vm7486 = vcmp.eq.s32.totalorder %v3927, 2
        %vm7487 = vcmp.eq.s32.totalorder %v3930, 2
        %vm7488 = vcmp.eq.s32.totalorder %v3933, 2
        %vm7489 = vcmp.eq.s32.totalorder %v3936, 2
        %vm7490 = vcmp.eq.s32.totalorder %v3939, 2
        %vm7491 = vcmp.eq.s32.totalorder %v3942, 2
        %vm7492 = vcmp.eq.s32.totalorder %v3945, 2
        %vm7493 = vcmp.eq.s32.totalorder %v3948, 2
        %vm7494 = vcmp.eq.s32.totalorder %v3951, 2
        %vm7495 = vcmp.eq.s32.totalorder %v3954, 2
        %v7496 = vsel %vm7480, %v3811, 0.0
        %v7497 = vsel %vm7481, %v3812, 0.0
        %v7498 = vsel %vm7482, %v3813, 0.0
        %v7499 = vsel %vm7483, %v3814, 0.0
        %v7500 = vsel %vm7484, %v3815, 0.0
        %v7501 = vsel %vm7485, %v3816, 0.0
        %v7502 = vsel %vm7486, %v3817, 0.0
        %v7503 = vsel %vm7487, %v3818, 0.0
        %v7504 = vsel %vm7488, %v3819, 0.0
        %v7505 = vsel %vm7489, %v3820, 0.0
        %v7506 = vsel %vm7490, %v3821, 0.0
        %v7507 = vsel %vm7491, %v3822, 0.0
        %v7508 = vsel %vm7492, %v3823, 0.0
        %v7509 = vsel %vm7493, %v3824, 0.0
        %v7510 = vsel %vm7494, %v3825, 0.0
        %v7511 = vsel %vm7495, %v3826, 0.0
        %v7512 = vadd.f32 %v7496, 0.0
        %v7513 = vadd.f32 %v7497, 0.0
        %v7514 = vadd.f32 %v7498, 0.0
        %v7515 = vadd.f32 %v7499, 0.0
        %v7516 = vadd.f32 %v7500, 0.0
        %v7517 = vadd.f32 %v7501, 0.0
        %v7518 = vadd.f32 %v7502, 0.0
        %v7519 = vadd.f32 %v7503, 0.0
        %v7520 = vadd.f32 %v7504, 0.0
        %v7521 = vadd.f32 %v7505, 0.0
        %v7522 = vadd.f32 %v7506, 0.0
        %v7523 = vadd.f32 %v7507, 0.0
        %v7524 = vadd.f32 %v7508, 0.0
        %v7525 = vadd.f32 %v7509, 0.0
        %v7526 = vadd.f32 %v7510, 0.0
        %v7527 = vadd.f32 %v7511, 0.0
        %v7528 = vsel %vm7480, %v3891, 0.0
        %v7529 = vsel %vm7481, %v3892, 0.0
        %v7530 = vsel %vm7482, %v3893, 0.0
        %v7531 = vsel %vm7483, %v3894, 0.0
        %v7532 = vsel %vm7484, %v3895, 0.0
        %v7533 = vsel %vm7485, %v3896, 0.0
        %v7534 = vsel %vm7486, %v3897, 0.0
        %v7535 = vsel %vm7487, %v3898, 0.0
        %v7536 = vsel %vm7488, %v3899, 0.0
        %v7537 = vsel %vm7489, %v3900, 0.0
        %v7538 = vsel %vm7490, %v3901, 0.0
        %v7539 = vsel %vm7491, %v3902, 0.0
        %v7540 = vsel %vm7492, %v3903, 0.0
        %v7541 = vsel %vm7493, %v3904, 0.0
        %v7542 = vsel %vm7494, %v3905, 0.0
        %v7543 = vsel %vm7495, %v3906, 0.0
        %v7544 = vadd.f32 %v7528, 0.0
        %v7545 = vadd.f32 %v7529, 0.0
        %v7546 = vadd.f32 %v7530, 0.0
        %v7547 = vadd.f32 %v7531, 0.0
        %v7548 = vadd.f32 %v7532, 0.0
        %v7549 = vadd.f32 %v7533, 0.0
        %v7550 = vadd.f32 %v7534, 0.0
        %v7551 = vadd.f32 %v7535, 0.0
        %v7552 = vadd.f32 %v7536, 0.0
        %v7553 = vadd.f32 %v7537, 0.0
        %v7554 = vadd.f32 %v7538, 0.0
        %v7555 = vadd.f32 %v7539, 0.0
        %v7556 = vadd.f32 %v7540, 0.0
        %v7557 = vadd.f32 %v7541, 0.0
        %v7558 = vadd.f32 %v7542, 0.0
        %v7559 = vadd.f32 %v7543, 0.0
        %vm7560 = vcmp.eq.s32.totalorder %v4133, 2
        %vm7561 = vcmp.eq.s32.totalorder %v4136, 2
        %vm7562 = vcmp.eq.s32.totalorder %v4139, 2
        %vm7563 = vcmp.eq.s32.totalorder %v4142, 2
        %vm7564 = vcmp.eq.s32.totalorder %v4145, 2
        %vm7565 = vcmp.eq.s32.totalorder %v4148, 2
        %vm7566 = vcmp.eq.s32.totalorder %v4151, 2
        %vm7567 = vcmp.eq.s32.totalorder %v4154, 2
        %vm7568 = vcmp.eq.s32.totalorder %v4157, 2
        %vm7569 = vcmp.eq.s32.totalorder %v4160, 2
        %vm7570 = vcmp.eq.s32.totalorder %v4163, 2
        %vm7571 = vcmp.eq.s32.totalorder %v4166, 2
        %vm7572 = vcmp.eq.s32.totalorder %v4169, 2
        %vm7573 = vcmp.eq.s32.totalorder %v4172, 2
        %vm7574 = vcmp.eq.s32.totalorder %v4175, 2
        %vm7575 = vcmp.eq.s32.totalorder %v4178, 2
        %v7576 = vsel %vm7560, %v4035, 0.0
        %v7577 = vsel %vm7561, %v4036, 0.0
        %v7578 = vsel %vm7562, %v4037, 0.0
        %v7579 = vsel %vm7563, %v4038, 0.0
        %v7580 = vsel %vm7564, %v4039, 0.0
        %v7581 = vsel %vm7565, %v4040, 0.0
        %v7582 = vsel %vm7566, %v4041, 0.0
        %v7583 = vsel %vm7567, %v4042, 0.0
        %v7584 = vsel %vm7568, %v4043, 0.0
        %v7585 = vsel %vm7569, %v4044, 0.0
        %v7586 = vsel %vm7570, %v4045, 0.0
        %v7587 = vsel %vm7571, %v4046, 0.0
        %v7588 = vsel %vm7572, %v4047, 0.0
        %v7589 = vsel %vm7573, %v4048, 0.0
        %v7590 = vsel %vm7574, %v4049, 0.0
        %v7591 = vsel %vm7575, %v4050, 0.0
        %v7592 = vadd.f32 %v7512, %v7576
        %v7593 = vadd.f32 %v7513, %v7577
        %v7594 = vadd.f32 %v7514, %v7578
        %v7595 = vadd.f32 %v7515, %v7579
        %v7596 = vadd.f32 %v7516, %v7580
        %v7597 = vadd.f32 %v7517, %v7581
        %v7598 = vadd.f32 %v7518, %v7582
        %v7599 = vadd.f32 %v7519, %v7583
        %v7600 = vadd.f32 %v7520, %v7584
        %v7601 = vadd.f32 %v7521, %v7585
        %v7602 = vadd.f32 %v7522, %v7586
        %v7603 = vadd.f32 %v7523, %v7587
        %v7604 = vadd.f32 %v7524, %v7588
        %v7605 = vadd.f32 %v7525, %v7589
        %v7606 = vadd.f32 %v7526, %v7590
        %v7607 = vadd.f32 %v7527, %v7591
        %v7608 = vsel %vm7560, %v4115, 0.0
        %v7609 = vsel %vm7561, %v4116, 0.0
        %v7610 = vsel %vm7562, %v4117, 0.0
        %v7611 = vsel %vm7563, %v4118, 0.0
        %v7612 = vsel %vm7564, %v4119, 0.0
        %v7613 = vsel %vm7565, %v4120, 0.0
        %v7614 = vsel %vm7566, %v4121, 0.0
        %v7615 = vsel %vm7567, %v4122, 0.0
        %v7616 = vsel %vm7568, %v4123, 0.0
        %v7617 = vsel %vm7569, %v4124, 0.0
        %v7618 = vsel %vm7570, %v4125, 0.0
        %v7619 = vsel %vm7571, %v4126, 0.0
        %v7620 = vsel %vm7572, %v4127, 0.0
        %v7621 = vsel %vm7573, %v4128, 0.0
        %v7622 = vsel %vm7574, %v4129, 0.0
        %v7623 = vsel %vm7575, %v4130, 0.0
        %v7624 = vadd.f32 %v7544, %v7608
        %v7625 = vadd.f32 %v7545, %v7609
        %v7626 = vadd.f32 %v7546, %v7610
        %v7627 = vadd.f32 %v7547, %v7611
        %v7628 = vadd.f32 %v7548, %v7612
        %v7629 = vadd.f32 %v7549, %v7613
        %v7630 = vadd.f32 %v7550, %v7614
        %v7631 = vadd.f32 %v7551, %v7615
        %v7632 = vadd.f32 %v7552, %v7616
        %v7633 = vadd.f32 %v7553, %v7617
        %v7634 = vadd.f32 %v7554, %v7618
        %v7635 = vadd.f32 %v7555, %v7619
        %v7636 = vadd.f32 %v7556, %v7620
        %v7637 = vadd.f32 %v7557, %v7621
        %v7638 = vadd.f32 %v7558, %v7622
        %v7639 = vadd.f32 %v7559, %v7623
        %vm7640 = vcmp.eq.s32.totalorder %v4357, 2
        %vm7641 = vcmp.eq.s32.totalorder %v4360, 2
        %vm7642 = vcmp.eq.s32.totalorder %v4363, 2
        %vm7643 = vcmp.eq.s32.totalorder %v4366, 2
        %vm7644 = vcmp.eq.s32.totalorder %v4369, 2
        %vm7645 = vcmp.eq.s32.totalorder %v4372, 2
        %vm7646 = vcmp.eq.s32.totalorder %v4375, 2
        %vm7647 = vcmp.eq.s32.totalorder %v4378, 2
        %vm7648 = vcmp.eq.s32.totalorder %v4381, 2
        %vm7649 = vcmp.eq.s32.totalorder %v4384, 2
        %vm7650 = vcmp.eq.s32.totalorder %v4387, 2
        %vm7651 = vcmp.eq.s32.totalorder %v4390, 2
        %vm7652 = vcmp.eq.s32.totalorder %v4393, 2
        %vm7653 = vcmp.eq.s32.totalorder %v4396, 2
        %vm7654 = vcmp.eq.s32.totalorder %v4399, 2
        %vm7655 = vcmp.eq.s32.totalorder %v4402, 2
        %v7656 = vsel %vm7640, %v4259, 0.0
        %v7657 = vsel %vm7641, %v4260, 0.0
        %v7658 = vsel %vm7642, %v4261, 0.0
        %v7659 = vsel %vm7643, %v4262, 0.0
        %v7660 = vsel %vm7644, %v4263, 0.0
        %v7661 = vsel %vm7645, %v4264, 0.0
        %v7662 = vsel %vm7646, %v4265, 0.0
        %v7663 = vsel %vm7647, %v4266, 0.0
        %v7664 = vsel %vm7648, %v4267, 0.0
        %v7665 = vsel %vm7649, %v4268, 0.0
        %v7666 = vsel %vm7650, %v4269, 0.0
        %v7667 = vsel %vm7651, %v4270, 0.0
        %v7668 = vsel %vm7652, %v4271, 0.0
        %v7669 = vsel %vm7653, %v4272, 0.0
        %v7670 = vsel %vm7654, %v4273, 0.0
        %v7671 = vsel %vm7655, %v4274, 0.0
        %v7672 = vadd.f32 %v7592, %v7656
        %v7673 = vadd.f32 %v7593, %v7657
        %v7674 = vadd.f32 %v7594, %v7658
        %v7675 = vadd.f32 %v7595, %v7659
        %v7676 = vadd.f32 %v7596, %v7660
        %v7677 = vadd.f32 %v7597, %v7661
        %v7678 = vadd.f32 %v7598, %v7662
        %v7679 = vadd.f32 %v7599, %v7663
        %v7680 = vadd.f32 %v7600, %v7664
        %v7681 = vadd.f32 %v7601, %v7665
        %v7682 = vadd.f32 %v7602, %v7666
        %v7683 = vadd.f32 %v7603, %v7667
        %v7684 = vadd.f32 %v7604, %v7668
        %v7685 = vadd.f32 %v7605, %v7669
        %v7686 = vadd.f32 %v7606, %v7670
        %v7687 = vadd.f32 %v7607, %v7671
        %v7688 = vsel %vm7640, %v4339, 0.0
        %v7689 = vsel %vm7641, %v4340, 0.0
        %v7690 = vsel %vm7642, %v4341, 0.0
        %v7691 = vsel %vm7643, %v4342, 0.0
        %v7692 = vsel %vm7644, %v4343, 0.0
        %v7693 = vsel %vm7645, %v4344, 0.0
        %v7694 = vsel %vm7646, %v4345, 0.0
        %v7695 = vsel %vm7647, %v4346, 0.0
        %v7696 = vsel %vm7648, %v4347, 0.0
        %v7697 = vsel %vm7649, %v4348, 0.0
        %v7698 = vsel %vm7650, %v4349, 0.0
        %v7699 = vsel %vm7651, %v4350, 0.0
        %v7700 = vsel %vm7652, %v4351, 0.0
        %v7701 = vsel %vm7653, %v4352, 0.0
        %v7702 = vsel %vm7654, %v4353, 0.0
        %v7703 = vsel %vm7655, %v4354, 0.0
        %v7704 = vadd.f32 %v7624, %v7688
        %v7705 = vadd.f32 %v7625, %v7689
        %v7706 = vadd.f32 %v7626, %v7690
        %v7707 = vadd.f32 %v7627, %v7691
        %v7708 = vadd.f32 %v7628, %v7692
        %v7709 = vadd.f32 %v7629, %v7693
        %v7710 = vadd.f32 %v7630, %v7694
        %v7711 = vadd.f32 %v7631, %v7695
        %v7712 = vadd.f32 %v7632, %v7696
        %v7713 = vadd.f32 %v7633, %v7697
        %v7714 = vadd.f32 %v7634, %v7698
        %v7715 = vadd.f32 %v7635, %v7699
        %v7716 = vadd.f32 %v7636, %v7700
        %v7717 = vadd.f32 %v7637, %v7701
        %v7718 = vadd.f32 %v7638, %v7702
        %v7719 = vadd.f32 %v7639, %v7703
        %vm7720 = vcmp.eq.s32.totalorder %v4581, 2
        %vm7721 = vcmp.eq.s32.totalorder %v4584, 2
        %vm7722 = vcmp.eq.s32.totalorder %v4587, 2
        %vm7723 = vcmp.eq.s32.totalorder %v4590, 2
        %vm7724 = vcmp.eq.s32.totalorder %v4593, 2
        %vm7725 = vcmp.eq.s32.totalorder %v4596, 2
        %vm7726 = vcmp.eq.s32.totalorder %v4599, 2
        %vm7727 = vcmp.eq.s32.totalorder %v4602, 2
        %vm7728 = vcmp.eq.s32.totalorder %v4605, 2
        %vm7729 = vcmp.eq.s32.totalorder %v4608, 2
        %vm7730 = vcmp.eq.s32.totalorder %v4611, 2
        %vm7731 = vcmp.eq.s32.totalorder %v4614, 2
        %vm7732 = vcmp.eq.s32.totalorder %v4617, 2
        %vm7733 = vcmp.eq.s32.totalorder %v4620, 2
        %vm7734 = vcmp.eq.s32.totalorder %v4623, 2
        %vm7735 = vcmp.eq.s32.totalorder %v4626, 2
        %v7736 = vsel %vm7720, %v4483, 0.0
        %v7737 = vsel %vm7721, %v4484, 0.0
        %v7738 = vsel %vm7722, %v4485, 0.0
        %v7739 = vsel %vm7723, %v4486, 0.0
        %v7740 = vsel %vm7724, %v4487, 0.0
        %v7741 = vsel %vm7725, %v4488, 0.0
        %v7742 = vsel %vm7726, %v4489, 0.0
        %v7743 = vsel %vm7727, %v4490, 0.0
        %v7744 = vsel %vm7728, %v4491, 0.0
        %v7745 = vsel %vm7729, %v4492, 0.0
        %v7746 = vsel %vm7730, %v4493, 0.0
        %v7747 = vsel %vm7731, %v4494, 0.0
        %v7748 = vsel %vm7732, %v4495, 0.0
        %v7749 = vsel %vm7733, %v4496, 0.0
        %v7750 = vsel %vm7734, %v4497, 0.0
        %v7751 = vsel %vm7735, %v4498, 0.0
        %v7752 = vadd.f32 %v7672, %v7736
        %v7753 = vadd.f32 %v7673, %v7737
        %v7754 = vadd.f32 %v7674, %v7738
        %v7755 = vadd.f32 %v7675, %v7739
        %v7756 = vadd.f32 %v7676, %v7740
        %v7757 = vadd.f32 %v7677, %v7741
        %v7758 = vadd.f32 %v7678, %v7742
        %v7759 = vadd.f32 %v7679, %v7743
        %v7760 = vadd.f32 %v7680, %v7744
        %v7761 = vadd.f32 %v7681, %v7745
        %v7762 = vadd.f32 %v7682, %v7746
        %v7763 = vadd.f32 %v7683, %v7747
        %v7764 = vadd.f32 %v7684, %v7748
        %v7765 = vadd.f32 %v7685, %v7749
        %v7766 = vadd.f32 %v7686, %v7750
        %v7767 = vadd.f32 %v7687, %v7751
        %v7768 = vsel %vm7720, %v4563, 0.0
        %v7769 = vsel %vm7721, %v4564, 0.0
        %v7770 = vsel %vm7722, %v4565, 0.0
        %v7771 = vsel %vm7723, %v4566, 0.0
        %v7772 = vsel %vm7724, %v4567, 0.0
        %v7773 = vsel %vm7725, %v4568, 0.0
        %v7774 = vsel %vm7726, %v4569, 0.0
        %v7775 = vsel %vm7727, %v4570, 0.0
        %v7776 = vsel %vm7728, %v4571, 0.0
        %v7777 = vsel %vm7729, %v4572, 0.0
        %v7778 = vsel %vm7730, %v4573, 0.0
        %v7779 = vsel %vm7731, %v4574, 0.0
        %v7780 = vsel %vm7732, %v4575, 0.0
        %v7781 = vsel %vm7733, %v4576, 0.0
        %v7782 = vsel %vm7734, %v4577, 0.0
        %v7783 = vsel %vm7735, %v4578, 0.0
        %v7784 = vadd.f32 %v7704, %v7768
        %v7785 = vadd.f32 %v7705, %v7769
        %v7786 = vadd.f32 %v7706, %v7770
        %v7787 = vadd.f32 %v7707, %v7771
        %v7788 = vadd.f32 %v7708, %v7772
        %v7789 = vadd.f32 %v7709, %v7773
        %v7790 = vadd.f32 %v7710, %v7774
        %v7791 = vadd.f32 %v7711, %v7775
        %v7792 = vadd.f32 %v7712, %v7776
        %v7793 = vadd.f32 %v7713, %v7777
        %v7794 = vadd.f32 %v7714, %v7778
        %v7795 = vadd.f32 %v7715, %v7779
        %v7796 = vadd.f32 %v7716, %v7780
        %v7797 = vadd.f32 %v7717, %v7781
        %v7798 = vadd.f32 %v7718, %v7782
        %v7799 = vadd.f32 %v7719, %v7783
        %vm7800 = vcmp.eq.s32.totalorder %v4805, 2
        %vm7801 = vcmp.eq.s32.totalorder %v4808, 2
        %vm7802 = vcmp.eq.s32.totalorder %v4811, 2
        %vm7803 = vcmp.eq.s32.totalorder %v4814, 2
        %vm7804 = vcmp.eq.s32.totalorder %v4817, 2
        %vm7805 = vcmp.eq.s32.totalorder %v4820, 2
        %vm7806 = vcmp.eq.s32.totalorder %v4823, 2
        %vm7807 = vcmp.eq.s32.totalorder %v4826, 2
        %vm7808 = vcmp.eq.s32.totalorder %v4829, 2
        %vm7809 = vcmp.eq.s32.totalorder %v4832, 2
        %vm7810 = vcmp.eq.s32.totalorder %v4835, 2
        %vm7811 = vcmp.eq.s32.totalorder %v4838, 2
        %vm7812 = vcmp.eq.s32.totalorder %v4841, 2
        %vm7813 = vcmp.eq.s32.totalorder %v4844, 2
        %vm7814 = vcmp.eq.s32.totalorder %v4847, 2
        %vm7815 = vcmp.eq.s32.totalorder %v4850, 2
        %v7816 = vsel %vm7800, %v4707, 0.0
        %v7817 = vsel %vm7801, %v4708, 0.0
        %v7818 = vsel %vm7802, %v4709, 0.0
        %v7819 = vsel %vm7803, %v4710, 0.0
        %v7820 = vsel %vm7804, %v4711, 0.0
        %v7821 = vsel %vm7805, %v4712, 0.0
        %v7822 = vsel %vm7806, %v4713, 0.0
        %v7823 = vsel %vm7807, %v4714, 0.0
        %v7824 = vsel %vm7808, %v4715, 0.0
        %v7825 = vsel %vm7809, %v4716, 0.0
        %v7826 = vsel %vm7810, %v4717, 0.0
        %v7827 = vsel %vm7811, %v4718, 0.0
        %v7828 = vsel %vm7812, %v4719, 0.0
        %v7829 = vsel %vm7813, %v4720, 0.0
        %v7830 = vsel %vm7814, %v4721, 0.0
        %v7831 = vsel %vm7815, %v4722, 0.0
        %v7832 = vadd.f32 %v7752, %v7816
        %v7833 = vadd.f32 %v7753, %v7817
        %v7834 = vadd.f32 %v7754, %v7818
        %v7835 = vadd.f32 %v7755, %v7819
        %v7836 = vadd.f32 %v7756, %v7820
        %v7837 = vadd.f32 %v7757, %v7821
        %v7838 = vadd.f32 %v7758, %v7822
        %v7839 = vadd.f32 %v7759, %v7823
        %v7840 = vadd.f32 %v7760, %v7824
        %v7841 = vadd.f32 %v7761, %v7825
        %v7842 = vadd.f32 %v7762, %v7826
        %v7843 = vadd.f32 %v7763, %v7827
        %v7844 = vadd.f32 %v7764, %v7828
        %v7845 = vadd.f32 %v7765, %v7829
        %v7846 = vadd.f32 %v7766, %v7830
        %v7847 = vadd.f32 %v7767, %v7831
        %v7848 = vsel %vm7800, %v4787, 0.0
        %v7849 = vsel %vm7801, %v4788, 0.0
        %v7850 = vsel %vm7802, %v4789, 0.0
        %v7851 = vsel %vm7803, %v4790, 0.0
        %v7852 = vsel %vm7804, %v4791, 0.0
        %v7853 = vsel %vm7805, %v4792, 0.0
        %v7854 = vsel %vm7806, %v4793, 0.0
        %v7855 = vsel %vm7807, %v4794, 0.0
        %v7856 = vsel %vm7808, %v4795, 0.0
        %v7857 = vsel %vm7809, %v4796, 0.0
        %v7858 = vsel %vm7810, %v4797, 0.0
        %v7859 = vsel %vm7811, %v4798, 0.0
        %v7860 = vsel %vm7812, %v4799, 0.0
        %v7861 = vsel %vm7813, %v4800, 0.0
        %v7862 = vsel %vm7814, %v4801, 0.0
        %v7863 = vsel %vm7815, %v4802, 0.0
        %v7864 = vadd.f32 %v7784, %v7848
        %v7865 = vadd.f32 %v7785, %v7849
        %v7866 = vadd.f32 %v7786, %v7850
        %v7867 = vadd.f32 %v7787, %v7851
        %v7868 = vadd.f32 %v7788, %v7852
        %v7869 = vadd.f32 %v7789, %v7853
        %v7870 = vadd.f32 %v7790, %v7854
        %v7871 = vadd.f32 %v7791, %v7855
        %v7872 = vadd.f32 %v7792, %v7856
        %v7873 = vadd.f32 %v7793, %v7857
        %v7874 = vadd.f32 %v7794, %v7858
        %v7875 = vadd.f32 %v7795, %v7859
        %v7876 = vadd.f32 %v7796, %v7860
        %v7877 = vadd.f32 %v7797, %v7861
        %v7878 = vadd.f32 %v7798, %v7862
        %v7879 = vadd.f32 %v7799, %v7863
        %vm7880 = vcmp.eq.s32.totalorder %v5029, 2
        %vm7881 = vcmp.eq.s32.totalorder %v5032, 2
        %vm7882 = vcmp.eq.s32.totalorder %v5035, 2
        %vm7883 = vcmp.eq.s32.totalorder %v5038, 2
        %vm7884 = vcmp.eq.s32.totalorder %v5041, 2
        %vm7885 = vcmp.eq.s32.totalorder %v5044, 2
        %vm7886 = vcmp.eq.s32.totalorder %v5047, 2
        %vm7887 = vcmp.eq.s32.totalorder %v5050, 2
        %vm7888 = vcmp.eq.s32.totalorder %v5053, 2
        %vm7889 = vcmp.eq.s32.totalorder %v5056, 2
        %vm7890 = vcmp.eq.s32.totalorder %v5059, 2
        %vm7891 = vcmp.eq.s32.totalorder %v5062, 2
        %vm7892 = vcmp.eq.s32.totalorder %v5065, 2
        %vm7893 = vcmp.eq.s32.totalorder %v5068, 2
        %vm7894 = vcmp.eq.s32.totalorder %v5071, 2
        %vm7895 = vcmp.eq.s32.totalorder %v5074, 2
        %v7896 = vsel %vm7880, %v4931, 0.0
        %v7897 = vsel %vm7881, %v4932, 0.0
        %v7898 = vsel %vm7882, %v4933, 0.0
        %v7899 = vsel %vm7883, %v4934, 0.0
        %v7900 = vsel %vm7884, %v4935, 0.0
        %v7901 = vsel %vm7885, %v4936, 0.0
        %v7902 = vsel %vm7886, %v4937, 0.0
        %v7903 = vsel %vm7887, %v4938, 0.0
        %v7904 = vsel %vm7888, %v4939, 0.0
        %v7905 = vsel %vm7889, %v4940, 0.0
        %v7906 = vsel %vm7890, %v4941, 0.0
        %v7907 = vsel %vm7891, %v4942, 0.0
        %v7908 = vsel %vm7892, %v4943, 0.0
        %v7909 = vsel %vm7893, %v4944, 0.0
        %v7910 = vsel %vm7894, %v4945, 0.0
        %v7911 = vsel %vm7895, %v4946, 0.0
        %v7912 = vadd.f32 %v7832, %v7896
        %v7913 = vadd.f32 %v7833, %v7897
        %v7914 = vadd.f32 %v7834, %v7898
        %v7915 = vadd.f32 %v7835, %v7899
        %v7916 = vadd.f32 %v7836, %v7900
        %v7917 = vadd.f32 %v7837, %v7901
        %v7918 = vadd.f32 %v7838, %v7902
        %v7919 = vadd.f32 %v7839, %v7903
        %v7920 = vadd.f32 %v7840, %v7904
        %v7921 = vadd.f32 %v7841, %v7905
        %v7922 = vadd.f32 %v7842, %v7906
        %v7923 = vadd.f32 %v7843, %v7907
        %v7924 = vadd.f32 %v7844, %v7908
        %v7925 = vadd.f32 %v7845, %v7909
        %v7926 = vadd.f32 %v7846, %v7910
        %v7927 = vadd.f32 %v7847, %v7911
        %v7928 = vsel %vm7880, %v5011, 0.0
        %v7929 = vsel %vm7881, %v5012, 0.0
        %v7930 = vsel %vm7882, %v5013, 0.0
        %v7931 = vsel %vm7883, %v5014, 0.0
        %v7932 = vsel %vm7884, %v5015, 0.0
        %v7933 = vsel %vm7885, %v5016, 0.0
        %v7934 = vsel %vm7886, %v5017, 0.0
        %v7935 = vsel %vm7887, %v5018, 0.0
        %v7936 = vsel %vm7888, %v5019, 0.0
        %v7937 = vsel %vm7889, %v5020, 0.0
        %v7938 = vsel %vm7890, %v5021, 0.0
        %v7939 = vsel %vm7891, %v5022, 0.0
        %v7940 = vsel %vm7892, %v5023, 0.0
        %v7941 = vsel %vm7893, %v5024, 0.0
        %v7942 = vsel %vm7894, %v5025, 0.0
        %v7943 = vsel %vm7895, %v5026, 0.0
        %v7944 = vadd.f32 %v7864, %v7928
        %v7945 = vadd.f32 %v7865, %v7929
        %v7946 = vadd.f32 %v7866, %v7930
        %v7947 = vadd.f32 %v7867, %v7931
        %v7948 = vadd.f32 %v7868, %v7932
        %v7949 = vadd.f32 %v7869, %v7933
        %v7950 = vadd.f32 %v7870, %v7934
        %v7951 = vadd.f32 %v7871, %v7935
        %v7952 = vadd.f32 %v7872, %v7936
        %v7953 = vadd.f32 %v7873, %v7937
        %v7954 = vadd.f32 %v7874, %v7938
        %v7955 = vadd.f32 %v7875, %v7939
        %v7956 = vadd.f32 %v7876, %v7940
        %v7957 = vadd.f32 %v7877, %v7941
        %v7958 = vadd.f32 %v7878, %v7942
        %v7959 = vadd.f32 %v7879, %v7943
        %vm7960 = vcmp.eq.s32.totalorder %v5253, 2
        %vm7961 = vcmp.eq.s32.totalorder %v5256, 2
        %vm7962 = vcmp.eq.s32.totalorder %v5259, 2
        %vm7963 = vcmp.eq.s32.totalorder %v5262, 2
        %vm7964 = vcmp.eq.s32.totalorder %v5265, 2
        %vm7965 = vcmp.eq.s32.totalorder %v5268, 2
        %vm7966 = vcmp.eq.s32.totalorder %v5271, 2
        %vm7967 = vcmp.eq.s32.totalorder %v5274, 2
        %vm7968 = vcmp.eq.s32.totalorder %v5277, 2
        %vm7969 = vcmp.eq.s32.totalorder %v5280, 2
        %vm7970 = vcmp.eq.s32.totalorder %v5283, 2
        %vm7971 = vcmp.eq.s32.totalorder %v5286, 2
        %vm7972 = vcmp.eq.s32.totalorder %v5289, 2
        %vm7973 = vcmp.eq.s32.totalorder %v5292, 2
        %vm7974 = vcmp.eq.s32.totalorder %v5295, 2
        %vm7975 = vcmp.eq.s32.totalorder %v5298, 2
        %v7976 = vsel %vm7960, %v5155, 0.0
        %v7977 = vsel %vm7961, %v5156, 0.0
        %v7978 = vsel %vm7962, %v5157, 0.0
        %v7979 = vsel %vm7963, %v5158, 0.0
        %v7980 = vsel %vm7964, %v5159, 0.0
        %v7981 = vsel %vm7965, %v5160, 0.0
        %v7982 = vsel %vm7966, %v5161, 0.0
        %v7983 = vsel %vm7967, %v5162, 0.0
        %v7984 = vsel %vm7968, %v5163, 0.0
        %v7985 = vsel %vm7969, %v5164, 0.0
        %v7986 = vsel %vm7970, %v5165, 0.0
        %v7987 = vsel %vm7971, %v5166, 0.0
        %v7988 = vsel %vm7972, %v5167, 0.0
        %v7989 = vsel %vm7973, %v5168, 0.0
        %v7990 = vsel %vm7974, %v5169, 0.0
        %v7991 = vsel %vm7975, %v5170, 0.0
        %v7992 = vadd.f32 %v7912, %v7976
        %v7993 = vadd.f32 %v7913, %v7977
        %v7994 = vadd.f32 %v7914, %v7978
        %v7995 = vadd.f32 %v7915, %v7979
        %v7996 = vadd.f32 %v7916, %v7980
        %v7997 = vadd.f32 %v7917, %v7981
        %v7998 = vadd.f32 %v7918, %v7982
        %v7999 = vadd.f32 %v7919, %v7983
        %v8000 = vadd.f32 %v7920, %v7984
        %v8001 = vadd.f32 %v7921, %v7985
        %v8002 = vadd.f32 %v7922, %v7986
        %v8003 = vadd.f32 %v7923, %v7987
        %v8004 = vadd.f32 %v7924, %v7988
        %v8005 = vadd.f32 %v7925, %v7989
        %v8006 = vadd.f32 %v7926, %v7990
        %v8007 = vadd.f32 %v7927, %v7991
        %v8008 = vsel %vm7960, %v5235, 0.0
        %v8009 = vsel %vm7961, %v5236, 0.0
        %v8010 = vsel %vm7962, %v5237, 0.0
        %v8011 = vsel %vm7963, %v5238, 0.0
        %v8012 = vsel %vm7964, %v5239, 0.0
        %v8013 = vsel %vm7965, %v5240, 0.0
        %v8014 = vsel %vm7966, %v5241, 0.0
        %v8015 = vsel %vm7967, %v5242, 0.0
        %v8016 = vsel %vm7968, %v5243, 0.0
        %v8017 = vsel %vm7969, %v5244, 0.0
        %v8018 = vsel %vm7970, %v5245, 0.0
        %v8019 = vsel %vm7971, %v5246, 0.0
        %v8020 = vsel %vm7972, %v5247, 0.0
        %v8021 = vsel %vm7973, %v5248, 0.0
        %v8022 = vsel %vm7974, %v5249, 0.0
        %v8023 = vsel %vm7975, %v5250, 0.0
        %v8024 = vadd.f32 %v7944, %v8008
        %v8025 = vadd.f32 %v7945, %v8009
        %v8026 = vadd.f32 %v7946, %v8010
        %v8027 = vadd.f32 %v7947, %v8011
        %v8028 = vadd.f32 %v7948, %v8012
        %v8029 = vadd.f32 %v7949, %v8013
        %v8030 = vadd.f32 %v7950, %v8014
        %v8031 = vadd.f32 %v7951, %v8015
        %v8032 = vadd.f32 %v7952, %v8016
        %v8033 = vadd.f32 %v7953, %v8017
        %v8034 = vadd.f32 %v7954, %v8018
        %v8035 = vadd.f32 %v7955, %v8019
        %v8036 = vadd.f32 %v7956, %v8020
        %v8037 = vadd.f32 %v7957, %v8021
        %v8038 = vadd.f32 %v7958, %v8022
        %v8039 = vadd.f32 %v7959, %v8023
        %vm8040 = vcmp.eq.s32.totalorder %v5477, 2
        %vm8041 = vcmp.eq.s32.totalorder %v5480, 2
        %vm8042 = vcmp.eq.s32.totalorder %v5483, 2
        %vm8043 = vcmp.eq.s32.totalorder %v5486, 2
        %vm8044 = vcmp.eq.s32.totalorder %v5489, 2
        %vm8045 = vcmp.eq.s32.totalorder %v5492, 2
        %vm8046 = vcmp.eq.s32.totalorder %v5495, 2
        %vm8047 = vcmp.eq.s32.totalorder %v5498, 2
        %vm8048 = vcmp.eq.s32.totalorder %v5501, 2
        %vm8049 = vcmp.eq.s32.totalorder %v5504, 2
        %vm8050 = vcmp.eq.s32.totalorder %v5507, 2
        %vm8051 = vcmp.eq.s32.totalorder %v5510, 2
        %vm8052 = vcmp.eq.s32.totalorder %v5513, 2
        %vm8053 = vcmp.eq.s32.totalorder %v5516, 2
        %vm8054 = vcmp.eq.s32.totalorder %v5519, 2
        %vm8055 = vcmp.eq.s32.totalorder %v5522, 2
        %v8056 = vsel %vm8040, %v5379, 0.0
        %v8057 = vsel %vm8041, %v5380, 0.0
        %v8058 = vsel %vm8042, %v5381, 0.0
        %v8059 = vsel %vm8043, %v5382, 0.0
        %v8060 = vsel %vm8044, %v5383, 0.0
        %v8061 = vsel %vm8045, %v5384, 0.0
        %v8062 = vsel %vm8046, %v5385, 0.0
        %v8063 = vsel %vm8047, %v5386, 0.0
        %v8064 = vsel %vm8048, %v5387, 0.0
        %v8065 = vsel %vm8049, %v5388, 0.0
        %v8066 = vsel %vm8050, %v5389, 0.0
        %v8067 = vsel %vm8051, %v5390, 0.0
        %v8068 = vsel %vm8052, %v5391, 0.0
        %v8069 = vsel %vm8053, %v5392, 0.0
        %v8070 = vsel %vm8054, %v5393, 0.0
        %v8071 = vsel %vm8055, %v5394, 0.0
        %v8072 = vadd.f32 %v7992, %v8056
        %v8073 = vadd.f32 %v7993, %v8057
        %v8074 = vadd.f32 %v7994, %v8058
        %v8075 = vadd.f32 %v7995, %v8059
        %v8076 = vadd.f32 %v7996, %v8060
        %v8077 = vadd.f32 %v7997, %v8061
        %v8078 = vadd.f32 %v7998, %v8062
        %v8079 = vadd.f32 %v7999, %v8063
        %v8080 = vadd.f32 %v8000, %v8064
        %v8081 = vadd.f32 %v8001, %v8065
        %v8082 = vadd.f32 %v8002, %v8066
        %v8083 = vadd.f32 %v8003, %v8067
        %v8084 = vadd.f32 %v8004, %v8068
        %v8085 = vadd.f32 %v8005, %v8069
        %v8086 = vadd.f32 %v8006, %v8070
        %v8087 = vadd.f32 %v8007, %v8071
        %v8088 = vsel %vm8040, %v5459, 0.0
        %v8089 = vsel %vm8041, %v5460, 0.0
        %v8090 = vsel %vm8042, %v5461, 0.0
        %v8091 = vsel %vm8043, %v5462, 0.0
        %v8092 = vsel %vm8044, %v5463, 0.0
        %v8093 = vsel %vm8045, %v5464, 0.0
        %v8094 = vsel %vm8046, %v5465, 0.0
        %v8095 = vsel %vm8047, %v5466, 0.0
        %v8096 = vsel %vm8048, %v5467, 0.0
        %v8097 = vsel %vm8049, %v5468, 0.0
        %v8098 = vsel %vm8050, %v5469, 0.0
        %v8099 = vsel %vm8051, %v5470, 0.0
        %v8100 = vsel %vm8052, %v5471, 0.0
        %v8101 = vsel %vm8053, %v5472, 0.0
        %v8102 = vsel %vm8054, %v5473, 0.0
        %v8103 = vsel %vm8055, %v5474, 0.0
        %v8104 = vadd.f32 %v8024, %v8088
        %v8105 = vadd.f32 %v8025, %v8089
        %v8106 = vadd.f32 %v8026, %v8090
        %v8107 = vadd.f32 %v8027, %v8091
        %v8108 = vadd.f32 %v8028, %v8092
        %v8109 = vadd.f32 %v8029, %v8093
        %v8110 = vadd.f32 %v8030, %v8094
        %v8111 = vadd.f32 %v8031, %v8095
        %v8112 = vadd.f32 %v8032, %v8096
        %v8113 = vadd.f32 %v8033, %v8097
        %v8114 = vadd.f32 %v8034, %v8098
        %v8115 = vadd.f32 %v8035, %v8099
        %v8116 = vadd.f32 %v8036, %v8100
        %v8117 = vadd.f32 %v8037, %v8101
        %v8118 = vadd.f32 %v8038, %v8102
        %v8119 = vadd.f32 %v8039, %v8103
        %v8120 = vpack.c.bf16 %v8073, %v8072
        %v8121 = vpack.c.bf16 %v8075, %v8074
        %v8122 = vpack.c.bf16 %v8077, %v8076
        %v8123 = vpack.c.bf16 %v8079, %v8078
        %v8124 = vpack.c.bf16 %v8081, %v8080
        %v8125 = vpack.c.bf16 %v8083, %v8082
        %v8126 = vpack.c.bf16 %v8085, %v8084
        %v8127 = vpack.c.bf16 %v8087, %v8086
        %v8128 = vld [vmem:[%s4 + $0x80] sm:$0xf]
        %v8129 = vld [vmem:[%s4 + $0x84] sm:$0xf]
        %v8130 = vld [vmem:[%s4 + $0x88] sm:$0xf]
        %v8131 = vld [vmem:[%s4 + $0x8c] sm:$0xf]
        %v8132 = vld [vmem:[%s4 + $0x90] sm:$0xf]
        %v8133 = vld [vmem:[%s4 + $0x94] sm:$0xf]
        %v8134 = vld [vmem:[%s4 + $0x98] sm:$0xf]
        %v8135 = vld [vmem:[%s4 + $0x9c] sm:$0xf]
        %v8136 = vld [vmem:[%s4 + $0xa0] sm:$0xf]
        %v8137 = vld [vmem:[%s4 + $0xa4] sm:$0xf]
        %v8138 = vld [vmem:[%s4 + $0xa8] sm:$0xf]
        %v8139 = vld [vmem:[%s4 + $0xac] sm:$0xf]
        %v8140 = vld [vmem:[%s4 + $0xb0] sm:$0xf]
        %v8141 = vld [vmem:[%s4 + $0xb4] sm:$0xf]
        %v8142 = vld [vmem:[%s4 + $0xb8] sm:$0xf]
        %v8143 = vld [vmem:[%s4 + $0xbc] sm:$0xf]
        %v8160 = vunpack.c.l.b16 %v8128
        %v8161 = vunpack.c.l.b16 %v8129
        %v8162 = vunpack.c.l.b16 %v8130
        %v8163 = vunpack.c.l.b16 %v8131
        %v8164 = vunpack.c.l.b16 %v8132
        %v8165 = vunpack.c.l.b16 %v8133
        %v8166 = vunpack.c.l.b16 %v8134
        %v8167 = vunpack.c.l.b16 %v8135
        %v8168 = vunpack.c.l.b16 %v8136
        %v8169 = vunpack.c.l.b16 %v8137
        %v8170 = vunpack.c.l.b16 %v8138
        %v8171 = vunpack.c.l.b16 %v8139
        %v8172 = vunpack.c.l.b16 %v8140
        %v8173 = vunpack.c.l.b16 %v8141
        %v8174 = vunpack.c.l.b16 %v8142
        %v8175 = vunpack.c.l.b16 %v8143
        %v8176 = vpack.c.b16 %v8161, %v8160
        %v8177 = vpack.c.b16 %v8163, %v8162
        %v8178 = vpack.c.b16 %v8165, %v8164
        %v8179 = vpack.c.b16 %v8167, %v8166
        %v8180 = vpack.c.b16 %v8169, %v8168
        %v8181 = vpack.c.b16 %v8171, %v8170
        %v8182 = vpack.c.b16 %v8173, %v8172
        %v8183 = vpack.c.b16 %v8175, %v8174
        %8192 = vmatprep.subr.bf16.mxu0 0
        %8193 = vmatpush1.bf16.msra.mxu0 %v8176
        %8194 = vmatprep.subr.bf16.mxu0 0
        %8195 = vmatpush1.bf16.msra.mxu0 %v8177
        %8196 = vmatprep.subr.bf16.mxu0 0
        %8197 = vmatpush1.bf16.msra.mxu0 %v8178
        %8198 = vmatprep.subr.bf16.mxu0 0
        %8199 = vmatpush1.bf16.msra.mxu0 %v8179
        %8200 = vmatprep.subr.bf16.mxu0 0
        %8201 = vmatpush1.bf16.msra.mxu0 %v8180
        %8202 = vmatprep.subr.bf16.mxu0 0
        %8203 = vmatpush1.bf16.msra.mxu0 %v8181
        %8204 = vmatprep.subr.bf16.mxu0 0
        %8205 = vmatpush1.bf16.msra.mxu0 %v8182
        %8206 = vmatprep.subr.bf16.mxu0 0
        %8207 = vmatpush1.bf16.msra.mxu0 %v8183
        %8208 = vmatprep.subr.bf16.mxu0 0
        %8209 = vmatpush1.bf16.msra.mxu0 0
        %8210 = vmatprep.subr.bf16.mxu0 0
        %8211 = vmatpush1.bf16.msra.mxu0 0
        %8212 = vmatprep.subr.bf16.mxu0 0
        %8213 = vmatpush1.bf16.msra.mxu0 0
        %8214 = vmatprep.subr.bf16.mxu0 0
        %8215 = vmatpush1.bf16.msra.mxu0 0
        %8216 = vmatprep.subr.bf16.mxu0 0
        %8217 = vmatpush1.bf16.msra.mxu0 0
        %8218 = vmatprep.subr.bf16.mxu0 0
        %8219 = vmatpush1.bf16.msra.mxu0 0
        %8220 = vmatprep.subr.bf16.mxu0 0
        %8221 = vmatpush1.bf16.msra.mxu0 0
        %8222 = vmatprep.subr.bf16.mxu0 0
        %8223 = vmatpush1.bf16.msra.mxu0 0
        %8224 = vmatprep.mubr.bf16.mxu0 0
        %8225 = vmatmul.mubr.bf16.gmra.mrb[0].mxu0 %v8120
        %v8226 = vpop.f32.mrb[0].mxu0
        %v8227 = vadd.f32 0.0, %v8226
        %v8228 = vpop.f32.mrb[0].mxu0
        %v8229 = vpop.f32.mrb[0].mxu0
        %v8230 = vadd.f32 0.0, %v8229
        %v8231 = vpop.f32.mrb[0].mxu0
        %8232 = vmatprep.mubr.bf16.mxu0 0
        %8233 = vmatmul.mubr.bf16.gmra.mrb[0].mxu0 %v8121
        %v8234 = vpop.f32.mrb[0].mxu0
        %v8235 = vadd.f32 0.0, %v8234
        %v8236 = vpop.f32.mrb[0].mxu0
        %v8237 = vpop.f32.mrb[0].mxu0
        %v8238 = vadd.f32 0.0, %v8237
        %v8239 = vpop.f32.mrb[0].mxu0
        %8240 = vmatprep.mubr.bf16.mxu0 0
        %8241 = vmatmul.mubr.bf16.gmra.mrb[0].mxu0 %v8122
        %v8242 = vpop.f32.mrb[0].mxu0
        %v8243 = vadd.f32 0.0, %v8242
        %v8244 = vpop.f32.mrb[0].mxu0
        %v8245 = vpop.f32.mrb[0].mxu0
        %v8246 = vadd.f32 0.0, %v8245
        %v8247 = vpop.f32.mrb[0].mxu0
        %8248 = vmatprep.mubr.bf16.mxu0 0
        %8249 = vmatmul.mubr.bf16.gmra.mrb[0].mxu0 %v8123
        %v8250 = vpop.f32.mrb[0].mxu0
        %v8251 = vadd.f32 0.0, %v8250
        %v8252 = vpop.f32.mrb[0].mxu0
        %v8253 = vpop.f32.mrb[0].mxu0
        %v8254 = vadd.f32 0.0, %v8253
        %v8255 = vpop.f32.mrb[0].mxu0
        %8256 = vmatprep.mubr.bf16.mxu0 0
        %8257 = vmatmul.mubr.bf16.gmra.mrb[0].mxu0 %v8124
        %v8258 = vpop.f32.mrb[0].mxu0
        %v8259 = vadd.f32 0.0, %v8258
        %v8260 = vpop.f32.mrb[0].mxu0
        %v8261 = vpop.f32.mrb[0].mxu0
        %v8262 = vadd.f32 0.0, %v8261
        %v8263 = vpop.f32.mrb[0].mxu0
        %8264 = vmatprep.mubr.bf16.mxu0 0
        %8265 = vmatmul.mubr.bf16.gmra.mrb[0].mxu0 %v8125
        %v8266 = vpop.f32.mrb[0].mxu0
        %v8267 = vadd.f32 0.0, %v8266
        %v8268 = vpop.f32.mrb[0].mxu0
        %v8269 = vpop.f32.mrb[0].mxu0
        %v8270 = vadd.f32 0.0, %v8269
        %v8271 = vpop.f32.mrb[0].mxu0
        %8272 = vmatprep.mubr.bf16.mxu0 0
        %8273 = vmatmul.mubr.bf16.gmra.mrb[0].mxu0 %v8126
        %v8274 = vpop.f32.mrb[0].mxu0
        %v8275 = vadd.f32 0.0, %v8274
        %v8276 = vpop.f32.mrb[0].mxu0
        %v8277 = vpop.f32.mrb[0].mxu0
        %v8278 = vadd.f32 0.0, %v8277
        %v8279 = vpop.f32.mrb[0].mxu0
        %8280 = vmatprep.mubr.bf16.mxu0 0
        %8281 = vmatmul.mubr.bf16.gmra.mrb[0].mxu0 %v8127
        %v8282 = vpop.f32.mrb[0].mxu0
        %v8283 = vadd.f32 0.0, %v8282
        %v8284 = vpop.f32.mrb[0].mxu0
        %v8285 = vpop.f32.mrb[0].mxu0
        %v8286 = vadd.f32 0.0, %v8285
        %v8287 = vpop.f32.mrb[0].mxu0
        %8288 = vdwg.mxu0
        %v8289 = vadd.f32 %v7104, %v8227
        %v8290 = vadd.f32 %v7107, %v8230
        %v8291 = vadd.f32 %v7112, %v8235
        %v8292 = vadd.f32 %v7115, %v8238
        %v8293 = vadd.f32 %v7120, %v8243
        %v8294 = vadd.f32 %v7123, %v8246
        %v8295 = vadd.f32 %v7128, %v8251
        %v8296 = vadd.f32 %v7131, %v8254
        %v8297 = vadd.f32 %v7136, %v8259
        %v8298 = vadd.f32 %v7139, %v8262
        %v8299 = vadd.f32 %v7144, %v8267
        %v8300 = vadd.f32 %v7147, %v8270
        %v8301 = vadd.f32 %v7152, %v8275
        %v8302 = vadd.f32 %v7155, %v8278
        %v8303 = vadd.f32 %v7160, %v8283
        %v8304 = vadd.f32 %v7163, %v8286
        %v8305 = vpack.c.bf16 %v8105, %v8104
        %v8306 = vpack.c.bf16 %v8107, %v8106
        %v8307 = vpack.c.bf16 %v8109, %v8108
        %v8308 = vpack.c.bf16 %v8111, %v8110
        %v8309 = vpack.c.bf16 %v8113, %v8112
        %v8310 = vpack.c.bf16 %v8115, %v8114
        %v8311 = vpack.c.bf16 %v8117, %v8116
        %v8312 = vpack.c.bf16 %v8119, %v8118
        %v8313 = vld [vmem:[%s6195 + $0x80] sm:$0xf]
        %v8314 = vld [vmem:[%s6195 + $0x84] sm:$0xf]
        %v8315 = vld [vmem:[%s6195 + $0x88] sm:$0xf]
        %v8316 = vld [vmem:[%s6195 + $0x8c] sm:$0xf]
        %v8317 = vld [vmem:[%s6195 + $0x90] sm:$0xf]
        %v8318 = vld [vmem:[%s6195 + $0x94] sm:$0xf]
        %v8319 = vld [vmem:[%s6195 + $0x98] sm:$0xf]
        %v8320 = vld [vmem:[%s6195 + $0x9c] sm:$0xf]
        %v8321 = vld [vmem:[%s6195 + $0xa0] sm:$0xf]
        %v8322 = vld [vmem:[%s6195 + $0xa4] sm:$0xf]
        %v8323 = vld [vmem:[%s6195 + $0xa8] sm:$0xf]
        %v8324 = vld [vmem:[%s6195 + $0xac] sm:$0xf]
        %v8325 = vld [vmem:[%s6195 + $0xb0] sm:$0xf]
        %v8326 = vld [vmem:[%s6195 + $0xb4] sm:$0xf]
        %v8327 = vld [vmem:[%s6195 + $0xb8] sm:$0xf]
        %v8328 = vld [vmem:[%s6195 + $0xbc] sm:$0xf]
        %v8345 = vunpack.c.l.b16 %v8313
        %v8346 = vunpack.c.l.b16 %v8314
        %v8347 = vunpack.c.l.b16 %v8315
        %v8348 = vunpack.c.l.b16 %v8316
        %v8349 = vunpack.c.l.b16 %v8317
        %v8350 = vunpack.c.l.b16 %v8318
        %v8351 = vunpack.c.l.b16 %v8319
        %v8352 = vunpack.c.l.b16 %v8320
        %v8353 = vunpack.c.l.b16 %v8321
        %v8354 = vunpack.c.l.b16 %v8322
        %v8355 = vunpack.c.l.b16 %v8323
        %v8356 = vunpack.c.l.b16 %v8324
        %v8357 = vunpack.c.l.b16 %v8325
        %v8358 = vunpack.c.l.b16 %v8326
        %v8359 = vunpack.c.l.b16 %v8327
        %v8360 = vunpack.c.l.b16 %v8328
        %v8361 = vpack.c.b16 %v8346, %v8345
        %v8362 = vpack.c.b16 %v8348, %v8347
        %v8363 = vpack.c.b16 %v8350, %v8349
        %v8364 = vpack.c.b16 %v8352, %v8351
        %v8365 = vpack.c.b16 %v8354, %v8353
        %v8366 = vpack.c.b16 %v8356, %v8355
        %v8367 = vpack.c.b16 %v8358, %v8357
        %v8368 = vpack.c.b16 %v8360, %v8359
        %8377 = vmatprep.subr.bf16.mxu0 0
        %8378 = vmatpush1.bf16.msra.mxu0 %v8361
        %8379 = vmatprep.subr.bf16.mxu0 0
        %8380 = vmatpush1.bf16.msra.mxu0 %v8362
        %8381 = vmatprep.subr.bf16.mxu0 0
        %8382 = vmatpush1.bf16.msra.mxu0 %v8363
        %8383 = vmatprep.subr.bf16.mxu0 0
        %8384 = vmatpush1.bf16.msra.mxu0 %v8364
        %8385 = vmatprep.subr.bf16.mxu0 0
        %8386 = vmatpush1.bf16.msra.mxu0 %v8365
        %8387 = vmatprep.subr.bf16.mxu0 0
        %8388 = vmatpush1.bf16.msra.mxu0 %v8366
        %8389 = vmatprep.subr.bf16.mxu0 0
        %8390 = vmatpush1.bf16.msra.mxu0 %v8367
        %8391 = vmatprep.subr.bf16.mxu0 0
        %8392 = vmatpush1.bf16.msra.mxu0 %v8368
        %8393 = vmatprep.subr.bf16.mxu0 0
        %8394 = vmatpush1.bf16.msra.mxu0 0
        %8395 = vmatprep.subr.bf16.mxu0 0
        %8396 = vmatpush1.bf16.msra.mxu0 0
        %8397 = vmatprep.subr.bf16.mxu0 0
        %8398 = vmatpush1.bf16.msra.mxu0 0
        %8399 = vmatprep.subr.bf16.mxu0 0
        %8400 = vmatpush1.bf16.msra.mxu0 0
        %8401 = vmatprep.subr.bf16.mxu0 0
        %8402 = vmatpush1.bf16.msra.mxu0 0
        %8403 = vmatprep.subr.bf16.mxu0 0
        %8404 = vmatpush1.bf16.msra.mxu0 0
        %8405 = vmatprep.subr.bf16.mxu0 0
        %8406 = vmatpush1.bf16.msra.mxu0 0
        %8407 = vmatprep.subr.bf16.mxu0 0
        %8408 = vmatpush1.bf16.msra.mxu0 0
        %8409 = vmatprep.mubr.bf16.mxu0 0
        %8410 = vmatmul.mubr.bf16.gmra.mrb[0].mxu0 %v8305
        %v8411 = vpop.f32.mrb[0].mxu0
        %v8412 = vadd.f32 0.0, %v8411
        %v8413 = vpop.f32.mrb[0].mxu0
        %v8414 = vpop.f32.mrb[0].mxu0
        %v8415 = vadd.f32 0.0, %v8414
        %v8416 = vpop.f32.mrb[0].mxu0
        %8417 = vmatprep.mubr.bf16.mxu0 0
        %8418 = vmatmul.mubr.bf16.gmra.mrb[0].mxu0 %v8306
        %v8419 = vpop.f32.mrb[0].mxu0
        %v8420 = vadd.f32 0.0, %v8419
        %v8421 = vpop.f32.mrb[0].mxu0
        %v8422 = vpop.f32.mrb[0].mxu0
        %v8423 = vadd.f32 0.0, %v8422
        %v8424 = vpop.f32.mrb[0].mxu0
        %8425 = vmatprep.mubr.bf16.mxu0 0
        %8426 = vmatmul.mubr.bf16.gmra.mrb[0].mxu0 %v8307
        %v8427 = vpop.f32.mrb[0].mxu0
        %v8428 = vadd.f32 0.0, %v8427
        %v8429 = vpop.f32.mrb[0].mxu0
        %v8430 = vpop.f32.mrb[0].mxu0
        %v8431 = vadd.f32 0.0, %v8430
        %v8432 = vpop.f32.mrb[0].mxu0
        %8433 = vmatprep.mubr.bf16.mxu0 0
        %8434 = vmatmul.mubr.bf16.gmra.mrb[0].mxu0 %v8308
        %v8435 = vpop.f32.mrb[0].mxu0
        %v8436 = vadd.f32 0.0, %v8435
        %v8437 = vpop.f32.mrb[0].mxu0
        %v8438 = vpop.f32.mrb[0].mxu0
        %v8439 = vadd.f32 0.0, %v8438
        %v8440 = vpop.f32.mrb[0].mxu0
        %8441 = vmatprep.mubr.bf16.mxu0 0
        %8442 = vmatmul.mubr.bf16.gmra.mrb[0].mxu0 %v8309
        %v8443 = vpop.f32.mrb[0].mxu0
        %v8444 = vadd.f32 0.0, %v8443
        %v8445 = vpop.f32.mrb[0].mxu0
        %v8446 = vpop.f32.mrb[0].mxu0
        %v8447 = vadd.f32 0.0, %v8446
        %v8448 = vpop.f32.mrb[0].mxu0
        %8449 = vmatprep.mubr.bf16.mxu0 0
        %8450 = vmatmul.mubr.bf16.gmra.mrb[0].mxu0 %v8310
        %v8451 = vpop.f32.mrb[0].mxu0
        %v8452 = vadd.f32 0.0, %v8451
        %v8453 = vpop.f32.mrb[0].mxu0
        %v8454 = vpop.f32.mrb[0].mxu0
        %v8455 = vadd.f32 0.0, %v8454
        %v8456 = vpop.f32.mrb[0].mxu0
        %8457 = vmatprep.mubr.bf16.mxu0 0
        %8458 = vmatmul.mubr.bf16.gmra.mrb[0].mxu0 %v8311
        %v8459 = vpop.f32.mrb[0].mxu0
        %v8460 = vadd.f32 0.0, %v8459
        %v8461 = vpop.f32.mrb[0].mxu0
        %v8462 = vpop.f32.mrb[0].mxu0
        %v8463 = vadd.f32 0.0, %v8462
        %v8464 = vpop.f32.mrb[0].mxu0
        %8465 = vmatprep.mubr.bf16.mxu0 0
        %8466 = vmatmul.mubr.bf16.gmra.mrb[0].mxu0 %v8312
        %v8467 = vpop.f32.mrb[0].mxu0
        %v8468 = vadd.f32 0.0, %v8467
        %v8469 = vpop.f32.mrb[0].mxu0
        %v8470 = vpop.f32.mrb[0].mxu0
        %v8471 = vadd.f32 0.0, %v8470
        %v8472 = vpop.f32.mrb[0].mxu0
        %8473 = vdwg.mxu0
        %v8474 = vadd.f32 %v7418, %v8412
        %v8475 = vadd.f32 %v7421, %v8415
        %v8476 = vadd.f32 %v7426, %v8420
        %v8477 = vadd.f32 %v7429, %v8423
        %v8478 = vadd.f32 %v7434, %v8428
        %v8479 = vadd.f32 %v7437, %v8431
        %v8480 = vadd.f32 %v7442, %v8436
        %v8481 = vadd.f32 %v7445, %v8439
        %v8482 = vadd.f32 %v7450, %v8444
        %v8483 = vadd.f32 %v7453, %v8447
        %v8484 = vadd.f32 %v7458, %v8452
        %v8485 = vadd.f32 %v7461, %v8455
        %v8486 = vadd.f32 %v7466, %v8460
        %v8487 = vadd.f32 %v7469, %v8463
        %v8488 = vadd.f32 %v7474, %v8468
        %v8489 = vadd.f32 %v7477, %v8471
        %vm8490 = vcmp.eq.s32.totalorder %v3909, 3
        %vm8491 = vcmp.eq.s32.totalorder %v3912, 3
        %vm8492 = vcmp.eq.s32.totalorder %v3915, 3
        %vm8493 = vcmp.eq.s32.totalorder %v3918, 3
        %vm8494 = vcmp.eq.s32.totalorder %v3921, 3
        %vm8495 = vcmp.eq.s32.totalorder %v3924, 3
        %vm8496 = vcmp.eq.s32.totalorder %v3927, 3
        %vm8497 = vcmp.eq.s32.totalorder %v3930, 3
        %vm8498 = vcmp.eq.s32.totalorder %v3933, 3
        %vm8499 = vcmp.eq.s32.totalorder %v3936, 3
        %vm8500 = vcmp.eq.s32.totalorder %v3939, 3
        %vm8501 = vcmp.eq.s32.totalorder %v3942, 3
        %vm8502 = vcmp.eq.s32.totalorder %v3945, 3
        %vm8503 = vcmp.eq.s32.totalorder %v3948, 3
        %vm8504 = vcmp.eq.s32.totalorder %v3951, 3
        %vm8505 = vcmp.eq.s32.totalorder %v3954, 3
        %v8506 = vsel %vm8490, %v3811, 0.0
        %v8507 = vsel %vm8491, %v3812, 0.0
        %v8508 = vsel %vm8492, %v3813, 0.0
        %v8509 = vsel %vm8493, %v3814, 0.0
        %v8510 = vsel %vm8494, %v3815, 0.0
        %v8511 = vsel %vm8495, %v3816, 0.0
        %v8512 = vsel %vm8496, %v3817, 0.0
        %v8513 = vsel %vm8497, %v3818, 0.0
        %v8514 = vsel %vm8498, %v3819, 0.0
        %v8515 = vsel %vm8499, %v3820, 0.0
        %v8516 = vsel %vm8500, %v3821, 0.0
        %v8517 = vsel %vm8501, %v3822, 0.0
        %v8518 = vsel %vm8502, %v3823, 0.0
        %v8519 = vsel %vm8503, %v3824, 0.0
        %v8520 = vsel %vm8504, %v3825, 0.0
        %v8521 = vsel %vm8505, %v3826, 0.0
        %v8522 = vadd.f32 %v8506, 0.0
        %v8523 = vadd.f32 %v8507, 0.0
        %v8524 = vadd.f32 %v8508, 0.0
        %v8525 = vadd.f32 %v8509, 0.0
        %v8526 = vadd.f32 %v8510, 0.0
        %v8527 = vadd.f32 %v8511, 0.0
        %v8528 = vadd.f32 %v8512, 0.0
        %v8529 = vadd.f32 %v8513, 0.0
        %v8530 = vadd.f32 %v8514, 0.0
        %v8531 = vadd.f32 %v8515, 0.0
        %v8532 = vadd.f32 %v8516, 0.0
        %v8533 = vadd.f32 %v8517, 0.0
        %v8534 = vadd.f32 %v8518, 0.0
        %v8535 = vadd.f32 %v8519, 0.0
        %v8536 = vadd.f32 %v8520, 0.0
        %v8537 = vadd.f32 %v8521, 0.0
        %v8538 = vsel %vm8490, %v3891, 0.0
        %v8539 = vsel %vm8491, %v3892, 0.0
        %v8540 = vsel %vm8492, %v3893, 0.0
        %v8541 = vsel %vm8493, %v3894, 0.0
        %v8542 = vsel %vm8494, %v3895, 0.0
        %v8543 = vsel %vm8495, %v3896, 0.0
        %v8544 = vsel %vm8496, %v3897, 0.0
        %v8545 = vsel %vm8497, %v3898, 0.0
        %v8546 = vsel %vm8498, %v3899, 0.0
        %v8547 = vsel %vm8499, %v3900, 0.0
        %v8548 = vsel %vm8500, %v3901, 0.0
        %v8549 = vsel %vm8501, %v3902, 0.0
        %v8550 = vsel %vm8502, %v3903, 0.0
        %v8551 = vsel %vm8503, %v3904, 0.0
        %v8552 = vsel %vm8504, %v3905, 0.0
        %v8553 = vsel %vm8505, %v3906, 0.0
        %v8554 = vadd.f32 %v8538, 0.0
        %v8555 = vadd.f32 %v8539, 0.0
        %v8556 = vadd.f32 %v8540, 0.0
        %v8557 = vadd.f32 %v8541, 0.0
        %v8558 = vadd.f32 %v8542, 0.0
        %v8559 = vadd.f32 %v8543, 0.0
        %v8560 = vadd.f32 %v8544, 0.0
        %v8561 = vadd.f32 %v8545, 0.0
        %v8562 = vadd.f32 %v8546, 0.0
        %v8563 = vadd.f32 %v8547, 0.0
        %v8564 = vadd.f32 %v8548, 0.0
        %v8565 = vadd.f32 %v8549, 0.0
        %v8566 = vadd.f32 %v8550, 0.0
        %v8567 = vadd.f32 %v8551, 0.0
        %v8568 = vadd.f32 %v8552, 0.0
        %v8569 = vadd.f32 %v8553, 0.0
        %vm8570 = vcmp.eq.s32.totalorder %v4133, 3
        %vm8571 = vcmp.eq.s32.totalorder %v4136, 3
        %vm8572 = vcmp.eq.s32.totalorder %v4139, 3
        %vm8573 = vcmp.eq.s32.totalorder %v4142, 3
        %vm8574 = vcmp.eq.s32.totalorder %v4145, 3
        %vm8575 = vcmp.eq.s32.totalorder %v4148, 3
        %vm8576 = vcmp.eq.s32.totalorder %v4151, 3
        %vm8577 = vcmp.eq.s32.totalorder %v4154, 3
        %vm8578 = vcmp.eq.s32.totalorder %v4157, 3
        %vm8579 = vcmp.eq.s32.totalorder %v4160, 3
        %vm8580 = vcmp.eq.s32.totalorder %v4163, 3
        %vm8581 = vcmp.eq.s32.totalorder %v4166, 3
        %vm8582 = vcmp.eq.s32.totalorder %v4169, 3
        %vm8583 = vcmp.eq.s32.totalorder %v4172, 3
        %vm8584 = vcmp.eq.s32.totalorder %v4175, 3
        %vm8585 = vcmp.eq.s32.totalorder %v4178, 3
        %v8586 = vsel %vm8570, %v4035, 0.0
        %v8587 = vsel %vm8571, %v4036, 0.0
        %v8588 = vsel %vm8572, %v4037, 0.0
        %v8589 = vsel %vm8573, %v4038, 0.0
        %v8590 = vsel %vm8574, %v4039, 0.0
        %v8591 = vsel %vm8575, %v4040, 0.0
        %v8592 = vsel %vm8576, %v4041, 0.0
        %v8593 = vsel %vm8577, %v4042, 0.0
        %v8594 = vsel %vm8578, %v4043, 0.0
        %v8595 = vsel %vm8579, %v4044, 0.0
        %v8596 = vsel %vm8580, %v4045, 0.0
        %v8597 = vsel %vm8581, %v4046, 0.0
        %v8598 = vsel %vm8582, %v4047, 0.0
        %v8599 = vsel %vm8583, %v4048, 0.0
        %v8600 = vsel %vm8584, %v4049, 0.0
        %v8601 = vsel %vm8585, %v4050, 0.0
        %v8602 = vadd.f32 %v8522, %v8586
        %v8603 = vadd.f32 %v8523, %v8587
        %v8604 = vadd.f32 %v8524, %v8588
        %v8605 = vadd.f32 %v8525, %v8589
        %v8606 = vadd.f32 %v8526, %v8590
        %v8607 = vadd.f32 %v8527, %v8591
        %v8608 = vadd.f32 %v8528, %v8592
        %v8609 = vadd.f32 %v8529, %v8593
        %v8610 = vadd.f32 %v8530, %v8594
        %v8611 = vadd.f32 %v8531, %v8595
        %v8612 = vadd.f32 %v8532, %v8596
        %v8613 = vadd.f32 %v8533, %v8597
        %v8614 = vadd.f32 %v8534, %v8598
        %v8615 = vadd.f32 %v8535, %v8599
        %v8616 = vadd.f32 %v8536, %v8600
        %v8617 = vadd.f32 %v8537, %v8601
        %v8618 = vsel %vm8570, %v4115, 0.0
        %v8619 = vsel %vm8571, %v4116, 0.0
        %v8620 = vsel %vm8572, %v4117, 0.0
        %v8621 = vsel %vm8573, %v4118, 0.0
        %v8622 = vsel %vm8574, %v4119, 0.0
        %v8623 = vsel %vm8575, %v4120, 0.0
        %v8624 = vsel %vm8576, %v4121, 0.0
        %v8625 = vsel %vm8577, %v4122, 0.0
        %v8626 = vsel %vm8578, %v4123, 0.0
        %v8627 = vsel %vm8579, %v4124, 0.0
        %v8628 = vsel %vm8580, %v4125, 0.0
        %v8629 = vsel %vm8581, %v4126, 0.0
        %v8630 = vsel %vm8582, %v4127, 0.0
        %v8631 = vsel %vm8583, %v4128, 0.0
        %v8632 = vsel %vm8584, %v4129, 0.0
        %v8633 = vsel %vm8585, %v4130, 0.0
        %v8634 = vadd.f32 %v8554, %v8618
        %v8635 = vadd.f32 %v8555, %v8619
        %v8636 = vadd.f32 %v8556, %v8620
        %v8637 = vadd.f32 %v8557, %v8621
        %v8638 = vadd.f32 %v8558, %v8622
        %v8639 = vadd.f32 %v8559, %v8623
        %v8640 = vadd.f32 %v8560, %v8624
        %v8641 = vadd.f32 %v8561, %v8625
        %v8642 = vadd.f32 %v8562, %v8626
        %v8643 = vadd.f32 %v8563, %v8627
        %v8644 = vadd.f32 %v8564, %v8628
        %v8645 = vadd.f32 %v8565, %v8629
        %v8646 = vadd.f32 %v8566, %v8630
        %v8647 = vadd.f32 %v8567, %v8631
        %v8648 = vadd.f32 %v8568, %v8632
        %v8649 = vadd.f32 %v8569, %v8633
        %vm8650 = vcmp.eq.s32.totalorder %v4357, 3
        %vm8651 = vcmp.eq.s32.totalorder %v4360, 3
        %vm8652 = vcmp.eq.s32.totalorder %v4363, 3
        %vm8653 = vcmp.eq.s32.totalorder %v4366, 3
        %vm8654 = vcmp.eq.s32.totalorder %v4369, 3
        %vm8655 = vcmp.eq.s32.totalorder %v4372, 3
        %vm8656 = vcmp.eq.s32.totalorder %v4375, 3
        %vm8657 = vcmp.eq.s32.totalorder %v4378, 3
        %vm8658 = vcmp.eq.s32.totalorder %v4381, 3
        %vm8659 = vcmp.eq.s32.totalorder %v4384, 3
        %vm8660 = vcmp.eq.s32.totalorder %v4387, 3
        %vm8661 = vcmp.eq.s32.totalorder %v4390, 3
        %vm8662 = vcmp.eq.s32.totalorder %v4393, 3
        %vm8663 = vcmp.eq.s32.totalorder %v4396, 3
        %vm8664 = vcmp.eq.s32.totalorder %v4399, 3
        %vm8665 = vcmp.eq.s32.totalorder %v4402, 3
        %v8666 = vsel %vm8650, %v4259, 0.0
        %v8667 = vsel %vm8651, %v4260, 0.0
        %v8668 = vsel %vm8652, %v4261, 0.0
        %v8669 = vsel %vm8653, %v4262, 0.0
        %v8670 = vsel %vm8654, %v4263, 0.0
        %v8671 = vsel %vm8655, %v4264, 0.0
        %v8672 = vsel %vm8656, %v4265, 0.0
        %v8673 = vsel %vm8657, %v4266, 0.0
        %v8674 = vsel %vm8658, %v4267, 0.0
        %v8675 = vsel %vm8659, %v4268, 0.0
        %v8676 = vsel %vm8660, %v4269, 0.0
        %v8677 = vsel %vm8661, %v4270, 0.0
        %v8678 = vsel %vm8662, %v4271, 0.0
        %v8679 = vsel %vm8663, %v4272, 0.0
        %v8680 = vsel %vm8664, %v4273, 0.0
        %v8681 = vsel %vm8665, %v4274, 0.0
        %v8682 = vadd.f32 %v8602, %v8666
        %v8683 = vadd.f32 %v8603, %v8667
        %v8684 = vadd.f32 %v8604, %v8668
        %v8685 = vadd.f32 %v8605, %v8669
        %v8686 = vadd.f32 %v8606, %v8670
        %v8687 = vadd.f32 %v8607, %v8671
        %v8688 = vadd.f32 %v8608, %v8672
        %v8689 = vadd.f32 %v8609, %v8673
        %v8690 = vadd.f32 %v8610, %v8674
        %v8691 = vadd.f32 %v8611, %v8675
        %v8692 = vadd.f32 %v8612, %v8676
        %v8693 = vadd.f32 %v8613, %v8677
        %v8694 = vadd.f32 %v8614, %v8678
        %v8695 = vadd.f32 %v8615, %v8679
        %v8696 = vadd.f32 %v8616, %v8680
        %v8697 = vadd.f32 %v8617, %v8681
        %v8698 = vsel %vm8650, %v4339, 0.0
        %v8699 = vsel %vm8651, %v4340, 0.0
        %v8700 = vsel %vm8652, %v4341, 0.0
        %v8701 = vsel %vm8653, %v4342, 0.0
        %v8702 = vsel %vm8654, %v4343, 0.0
        %v8703 = vsel %vm8655, %v4344, 0.0
        %v8704 = vsel %vm8656, %v4345, 0.0
        %v8705 = vsel %vm8657, %v4346, 0.0
        %v8706 = vsel %vm8658, %v4347, 0.0
        %v8707 = vsel %vm8659, %v4348, 0.0
        %v8708 = vsel %vm8660, %v4349, 0.0
        %v8709 = vsel %vm8661, %v4350, 0.0
        %v8710 = vsel %vm8662, %v4351, 0.0
        %v8711 = vsel %vm8663, %v4352, 0.0
        %v8712 = vsel %vm8664, %v4353, 0.0
        %v8713 = vsel %vm8665, %v4354, 0.0
        %v8714 = vadd.f32 %v8634, %v8698
        %v8715 = vadd.f32 %v8635, %v8699
        %v8716 = vadd.f32 %v8636, %v8700
        %v8717 = vadd.f32 %v8637, %v8701
        %v8718 = vadd.f32 %v8638, %v8702
        %v8719 = vadd.f32 %v8639, %v8703
        %v8720 = vadd.f32 %v8640, %v8704
        %v8721 = vadd.f32 %v8641, %v8705
        %v8722 = vadd.f32 %v8642, %v8706
        %v8723 = vadd.f32 %v8643, %v8707
        %v8724 = vadd.f32 %v8644, %v8708
        %v8725 = vadd.f32 %v8645, %v8709
        %v8726 = vadd.f32 %v8646, %v8710
        %v8727 = vadd.f32 %v8647, %v8711
        %v8728 = vadd.f32 %v8648, %v8712
        %v8729 = vadd.f32 %v8649, %v8713
        %vm8730 = vcmp.eq.s32.totalorder %v4581, 3
        %vm8731 = vcmp.eq.s32.totalorder %v4584, 3
        %vm8732 = vcmp.eq.s32.totalorder %v4587, 3
        %vm8733 = vcmp.eq.s32.totalorder %v4590, 3
        %vm8734 = vcmp.eq.s32.totalorder %v4593, 3
        %vm8735 = vcmp.eq.s32.totalorder %v4596, 3
        %vm8736 = vcmp.eq.s32.totalorder %v4599, 3
        %vm8737 = vcmp.eq.s32.totalorder %v4602, 3
        %vm8738 = vcmp.eq.s32.totalorder %v4605, 3
        %vm8739 = vcmp.eq.s32.totalorder %v4608, 3
        %vm8740 = vcmp.eq.s32.totalorder %v4611, 3
        %vm8741 = vcmp.eq.s32.totalorder %v4614, 3
        %vm8742 = vcmp.eq.s32.totalorder %v4617, 3
        %vm8743 = vcmp.eq.s32.totalorder %v4620, 3
        %vm8744 = vcmp.eq.s32.totalorder %v4623, 3
        %vm8745 = vcmp.eq.s32.totalorder %v4626, 3
        %v8746 = vsel %vm8730, %v4483, 0.0
        %v8747 = vsel %vm8731, %v4484, 0.0
        %v8748 = vsel %vm8732, %v4485, 0.0
        %v8749 = vsel %vm8733, %v4486, 0.0
        %v8750 = vsel %vm8734, %v4487, 0.0
        %v8751 = vsel %vm8735, %v4488, 0.0
        %v8752 = vsel %vm8736, %v4489, 0.0
        %v8753 = vsel %vm8737, %v4490, 0.0
        %v8754 = vsel %vm8738, %v4491, 0.0
        %v8755 = vsel %vm8739, %v4492, 0.0
        %v8756 = vsel %vm8740, %v4493, 0.0
        %v8757 = vsel %vm8741, %v4494, 0.0
        %v8758 = vsel %vm8742, %v4495, 0.0
        %v8759 = vsel %vm8743, %v4496, 0.0
        %v8760 = vsel %vm8744, %v4497, 0.0
        %v8761 = vsel %vm8745, %v4498, 0.0
        %v8762 = vadd.f32 %v8682, %v8746
        %v8763 = vadd.f32 %v8683, %v8747
        %v8764 = vadd.f32 %v8684, %v8748
        %v8765 = vadd.f32 %v8685, %v8749
        %v8766 = vadd.f32 %v8686, %v8750
        %v8767 = vadd.f32 %v8687, %v8751
        %v8768 = vadd.f32 %v8688, %v8752
        %v8769 = vadd.f32 %v8689, %v8753
        %v8770 = vadd.f32 %v8690, %v8754
        %v8771 = vadd.f32 %v8691, %v8755
        %v8772 = vadd.f32 %v8692, %v8756
        %v8773 = vadd.f32 %v8693, %v8757
        %v8774 = vadd.f32 %v8694, %v8758
        %v8775 = vadd.f32 %v8695, %v8759
        %v8776 = vadd.f32 %v8696, %v8760
        %v8777 = vadd.f32 %v8697, %v8761
        %v8778 = vsel %vm8730, %v4563, 0.0
        %v8779 = vsel %vm8731, %v4564, 0.0
        %v8780 = vsel %vm8732, %v4565, 0.0
        %v8781 = vsel %vm8733, %v4566, 0.0
        %v8782 = vsel %vm8734, %v4567, 0.0
        %v8783 = vsel %vm8735, %v4568, 0.0
        %v8784 = vsel %vm8736, %v4569, 0.0
        %v8785 = vsel %vm8737, %v4570, 0.0
        %v8786 = vsel %vm8738, %v4571, 0.0
        %v8787 = vsel %vm8739, %v4572, 0.0
        %v8788 = vsel %vm8740, %v4573, 0.0
        %v8789 = vsel %vm8741, %v4574, 0.0
        %v8790 = vsel %vm8742, %v4575, 0.0
        %v8791 = vsel %vm8743, %v4576, 0.0
        %v8792 = vsel %vm8744, %v4577, 0.0
        %v8793 = vsel %vm8745, %v4578, 0.0
        %v8794 = vadd.f32 %v8714, %v8778
        %v8795 = vadd.f32 %v8715, %v8779
        %v8796 = vadd.f32 %v8716, %v8780
        %v8797 = vadd.f32 %v8717, %v8781
        %v8798 = vadd.f32 %v8718, %v8782
        %v8799 = vadd.f32 %v8719, %v8783
        %v8800 = vadd.f32 %v8720, %v8784
        %v8801 = vadd.f32 %v8721, %v8785
        %v8802 = vadd.f32 %v8722, %v8786
        %v8803 = vadd.f32 %v8723, %v8787
        %v8804 = vadd.f32 %v8724, %v8788
        %v8805 = vadd.f32 %v8725, %v8789
        %v8806 = vadd.f32 %v8726, %v8790
        %v8807 = vadd.f32 %v8727, %v8791
        %v8808 = vadd.f32 %v8728, %v8792
        %v8809 = vadd.f32 %v8729, %v8793
        %vm8810 = vcmp.eq.s32.totalorder %v4805, 3
        %vm8811 = vcmp.eq.s32.totalorder %v4808, 3
        %vm8812 = vcmp.eq.s32.totalorder %v4811, 3
        %vm8813 = vcmp.eq.s32.totalorder %v4814, 3
        %vm8814 = vcmp.eq.s32.totalorder %v4817, 3
        %vm8815 = vcmp.eq.s32.totalorder %v4820, 3
        %vm8816 = vcmp.eq.s32.totalorder %v4823, 3
        %vm8817 = vcmp.eq.s32.totalorder %v4826, 3
        %vm8818 = vcmp.eq.s32.totalorder %v4829, 3
        %vm8819 = vcmp.eq.s32.totalorder %v4832, 3
        %vm8820 = vcmp.eq.s32.totalorder %v4835, 3
        %vm8821 = vcmp.eq.s32.totalorder %v4838, 3
        %vm8822 = vcmp.eq.s32.totalorder %v4841, 3
        %vm8823 = vcmp.eq.s32.totalorder %v4844, 3
        %vm8824 = vcmp.eq.s32.totalorder %v4847, 3
        %vm8825 = vcmp.eq.s32.totalorder %v4850, 3
        %v8826 = vsel %vm8810, %v4707, 0.0
        %v8827 = vsel %vm8811, %v4708, 0.0
        %v8828 = vsel %vm8812, %v4709, 0.0
        %v8829 = vsel %vm8813, %v4710, 0.0
        %v8830 = vsel %vm8814, %v4711, 0.0
        %v8831 = vsel %vm8815, %v4712, 0.0
        %v8832 = vsel %vm8816, %v4713, 0.0
        %v8833 = vsel %vm8817, %v4714, 0.0
        %v8834 = vsel %vm8818, %v4715, 0.0
        %v8835 = vsel %vm8819, %v4716, 0.0
        %v8836 = vsel %vm8820, %v4717, 0.0
        %v8837 = vsel %vm8821, %v4718, 0.0
        %v8838 = vsel %vm8822, %v4719, 0.0
        %v8839 = vsel %vm8823, %v4720, 0.0
        %v8840 = vsel %vm8824, %v4721, 0.0
        %v8841 = vsel %vm8825, %v4722, 0.0
        %v8842 = vadd.f32 %v8762, %v8826
        %v8843 = vadd.f32 %v8763, %v8827
        %v8844 = vadd.f32 %v8764, %v8828
        %v8845 = vadd.f32 %v8765, %v8829
        %v8846 = vadd.f32 %v8766, %v8830
        %v8847 = vadd.f32 %v8767, %v8831
        %v8848 = vadd.f32 %v8768, %v8832
        %v8849 = vadd.f32 %v8769, %v8833
        %v8850 = vadd.f32 %v8770, %v8834
        %v8851 = vadd.f32 %v8771, %v8835
        %v8852 = vadd.f32 %v8772, %v8836
        %v8853 = vadd.f32 %v8773, %v8837
        %v8854 = vadd.f32 %v8774, %v8838
        %v8855 = vadd.f32 %v8775, %v8839
        %v8856 = vadd.f32 %v8776, %v8840
        %v8857 = vadd.f32 %v8777, %v8841
        %v8858 = vsel %vm8810, %v4787, 0.0
        %v8859 = vsel %vm8811, %v4788, 0.0
        %v8860 = vsel %vm8812, %v4789, 0.0
        %v8861 = vsel %vm8813, %v4790, 0.0
        %v8862 = vsel %vm8814, %v4791, 0.0
        %v8863 = vsel %vm8815, %v4792, 0.0
        %v8864 = vsel %vm8816, %v4793, 0.0
        %v8865 = vsel %vm8817, %v4794, 0.0
        %v8866 = vsel %vm8818, %v4795, 0.0
        %v8867 = vsel %vm8819, %v4796, 0.0
        %v8868 = vsel %vm8820, %v4797, 0.0
        %v8869 = vsel %vm8821, %v4798, 0.0
        %v8870 = vsel %vm8822, %v4799, 0.0
        %v8871 = vsel %vm8823, %v4800, 0.0
        %v8872 = vsel %vm8824, %v4801, 0.0
        %v8873 = vsel %vm8825, %v4802, 0.0
        %v8874 = vadd.f32 %v8794, %v8858
        %v8875 = vadd.f32 %v8795, %v8859
        %v8876 = vadd.f32 %v8796, %v8860
        %v8877 = vadd.f32 %v8797, %v8861
        %v8878 = vadd.f32 %v8798, %v8862
        %v8879 = vadd.f32 %v8799, %v8863
        %v8880 = vadd.f32 %v8800, %v8864
        %v8881 = vadd.f32 %v8801, %v8865
        %v8882 = vadd.f32 %v8802, %v8866
        %v8883 = vadd.f32 %v8803, %v8867
        %v8884 = vadd.f32 %v8804, %v8868
        %v8885 = vadd.f32 %v8805, %v8869
        %v8886 = vadd.f32 %v8806, %v8870
        %v8887 = vadd.f32 %v8807, %v8871
        %v8888 = vadd.f32 %v8808, %v8872
        %v8889 = vadd.f32 %v8809, %v8873
        %vm8890 = vcmp.eq.s32.totalorder %v5029, 3
        %vm8891 = vcmp.eq.s32.totalorder %v5032, 3
        %vm8892 = vcmp.eq.s32.totalorder %v5035, 3
        %vm8893 = vcmp.eq.s32.totalorder %v5038, 3
        %vm8894 = vcmp.eq.s32.totalorder %v5041, 3
        %vm8895 = vcmp.eq.s32.totalorder %v5044, 3
        %vm8896 = vcmp.eq.s32.totalorder %v5047, 3
        %vm8897 = vcmp.eq.s32.totalorder %v5050, 3
        %vm8898 = vcmp.eq.s32.totalorder %v5053, 3
        %vm8899 = vcmp.eq.s32.totalorder %v5056, 3
        %vm8900 = vcmp.eq.s32.totalorder %v5059, 3
        %vm8901 = vcmp.eq.s32.totalorder %v5062, 3
        %vm8902 = vcmp.eq.s32.totalorder %v5065, 3
        %vm8903 = vcmp.eq.s32.totalorder %v5068, 3
        %vm8904 = vcmp.eq.s32.totalorder %v5071, 3
        %vm8905 = vcmp.eq.s32.totalorder %v5074, 3
        %v8906 = vsel %vm8890, %v4931, 0.0
        %v8907 = vsel %vm8891, %v4932, 0.0
        %v8908 = vsel %vm8892, %v4933, 0.0
        %v8909 = vsel %vm8893, %v4934, 0.0
        %v8910 = vsel %vm8894, %v4935, 0.0
        %v8911 = vsel %vm8895, %v4936, 0.0
        %v8912 = vsel %vm8896, %v4937, 0.0
        %v8913 = vsel %vm8897, %v4938, 0.0
        %v8914 = vsel %vm8898, %v4939, 0.0
        %v8915 = vsel %vm8899, %v4940, 0.0
        %v8916 = vsel %vm8900, %v4941, 0.0
        %v8917 = vsel %vm8901, %v4942, 0.0
        %v8918 = vsel %vm8902, %v4943, 0.0
        %v8919 = vsel %vm8903, %v4944, 0.0
        %v8920 = vsel %vm8904, %v4945, 0.0
        %v8921 = vsel %vm8905, %v4946, 0.0
        %v8922 = vadd.f32 %v8842, %v8906
        %v8923 = vadd.f32 %v8843, %v8907
        %v8924 = vadd.f32 %v8844, %v8908
        %v8925 = vadd.f32 %v8845, %v8909
        %v8926 = vadd.f32 %v8846, %v8910
        %v8927 = vadd.f32 %v8847, %v8911
        %v8928 = vadd.f32 %v8848, %v8912
        %v8929 = vadd.f32 %v8849, %v8913
        %v8930 = vadd.f32 %v8850, %v8914
        %v8931 = vadd.f32 %v8851, %v8915
        %v8932 = vadd.f32 %v8852, %v8916
        %v8933 = vadd.f32 %v8853, %v8917
        %v8934 = vadd.f32 %v8854, %v8918
        %v8935 = vadd.f32 %v8855, %v8919
        %v8936 = vadd.f32 %v8856, %v8920
        %v8937 = vadd.f32 %v8857, %v8921
        %v8938 = vsel %vm8890, %v5011, 0.0
        %v8939 = vsel %vm8891, %v5012, 0.0
        %v8940 = vsel %vm8892, %v5013, 0.0
        %v8941 = vsel %vm8893, %v5014, 0.0
        %v8942 = vsel %vm8894, %v5015, 0.0
        %v8943 = vsel %vm8895, %v5016, 0.0
        %v8944 = vsel %vm8896, %v5017, 0.0
        %v8945 = vsel %vm8897, %v5018, 0.0
        %v8946 = vsel %vm8898, %v5019, 0.0
        %v8947 = vsel %vm8899, %v5020, 0.0
        %v8948 = vsel %vm8900, %v5021, 0.0
        %v8949 = vsel %vm8901, %v5022, 0.0
        %v8950 = vsel %vm8902, %v5023, 0.0
        %v8951 = vsel %vm8903, %v5024, 0.0
        %v8952 = vsel %vm8904, %v5025, 0.0
        %v8953 = vsel %vm8905, %v5026, 0.0
        %v8954 = vadd.f32 %v8874, %v8938
        %v8955 = vadd.f32 %v8875, %v8939
        %v8956 = vadd.f32 %v8876, %v8940
        %v8957 = vadd.f32 %v8877, %v8941
        %v8958 = vadd.f32 %v8878, %v8942
        %v8959 = vadd.f32 %v8879, %v8943
        %v8960 = vadd.f32 %v8880, %v8944
        %v8961 = vadd.f32 %v8881, %v8945
        %v8962 = vadd.f32 %v8882, %v8946
        %v8963 = vadd.f32 %v8883, %v8947
        %v8964 = vadd.f32 %v8884, %v8948
        %v8965 = vadd.f32 %v8885, %v8949
        %v8966 = vadd.f32 %v8886, %v8950
        %v8967 = vadd.f32 %v8887, %v8951
        %v8968 = vadd.f32 %v8888, %v8952
        %v8969 = vadd.f32 %v8889, %v8953
        %vm8970 = vcmp.eq.s32.totalorder %v5253, 3
        %vm8971 = vcmp.eq.s32.totalorder %v5256, 3
        %vm8972 = vcmp.eq.s32.totalorder %v5259, 3
        %vm8973 = vcmp.eq.s32.totalorder %v5262, 3
        %vm8974 = vcmp.eq.s32.totalorder %v5265, 3
        %vm8975 = vcmp.eq.s32.totalorder %v5268, 3
        %vm8976 = vcmp.eq.s32.totalorder %v5271, 3
        %vm8977 = vcmp.eq.s32.totalorder %v5274, 3
        %vm8978 = vcmp.eq.s32.totalorder %v5277, 3
        %vm8979 = vcmp.eq.s32.totalorder %v5280, 3
        %vm8980 = vcmp.eq.s32.totalorder %v5283, 3
        %vm8981 = vcmp.eq.s32.totalorder %v5286, 3
        %vm8982 = vcmp.eq.s32.totalorder %v5289, 3
        %vm8983 = vcmp.eq.s32.totalorder %v5292, 3
        %vm8984 = vcmp.eq.s32.totalorder %v5295, 3
        %vm8985 = vcmp.eq.s32.totalorder %v5298, 3
        %v8986 = vsel %vm8970, %v5155, 0.0
        %v8987 = vsel %vm8971, %v5156, 0.0
        %v8988 = vsel %vm8972, %v5157, 0.0
        %v8989 = vsel %vm8973, %v5158, 0.0
        %v8990 = vsel %vm8974, %v5159, 0.0
        %v8991 = vsel %vm8975, %v5160, 0.0
        %v8992 = vsel %vm8976, %v5161, 0.0
        %v8993 = vsel %vm8977, %v5162, 0.0
        %v8994 = vsel %vm8978, %v5163, 0.0
        %v8995 = vsel %vm8979, %v5164, 0.0
        %v8996 = vsel %vm8980, %v5165, 0.0
        %v8997 = vsel %vm8981, %v5166, 0.0
        %v8998 = vsel %vm8982, %v5167, 0.0
        %v8999 = vsel %vm8983, %v5168, 0.0
        %v9000 = vsel %vm8984, %v5169, 0.0
        %v9001 = vsel %vm8985, %v5170, 0.0
        %v9002 = vadd.f32 %v8922, %v8986
        %v9003 = vadd.f32 %v8923, %v8987
        %v9004 = vadd.f32 %v8924, %v8988
        %v9005 = vadd.f32 %v8925, %v8989
        %v9006 = vadd.f32 %v8926, %v8990
        %v9007 = vadd.f32 %v8927, %v8991
        %v9008 = vadd.f32 %v8928, %v8992
        %v9009 = vadd.f32 %v8929, %v8993
        %v9010 = vadd.f32 %v8930, %v8994
        %v9011 = vadd.f32 %v8931, %v8995
        %v9012 = vadd.f32 %v8932, %v8996
        %v9013 = vadd.f32 %v8933, %v8997
        %v9014 = vadd.f32 %v8934, %v8998
        %v9015 = vadd.f32 %v8935, %v8999
        %v9016 = vadd.f32 %v8936, %v9000
        %v9017 = vadd.f32 %v8937, %v9001
        %v9018 = vsel %vm8970, %v5235, 0.0
        %v9019 = vsel %vm8971, %v5236, 0.0
        %v9020 = vsel %vm8972, %v5237, 0.0
        %v9021 = vsel %vm8973, %v5238, 0.0
        %v9022 = vsel %vm8974, %v5239, 0.0
        %v9023 = vsel %vm8975, %v5240, 0.0
        %v9024 = vsel %vm8976, %v5241, 0.0
        %v9025 = vsel %vm8977, %v5242, 0.0
        %v9026 = vsel %vm8978, %v5243, 0.0
        %v9027 = vsel %vm8979, %v5244, 0.0
        %v9028 = vsel %vm8980, %v5245, 0.0
        %v9029 = vsel %vm8981, %v5246, 0.0
        %v9030 = vsel %vm8982, %v5247, 0.0
        %v9031 = vsel %vm8983, %v5248, 0.0
        %v9032 = vsel %vm8984, %v5249, 0.0
        %v9033 = vsel %vm8985, %v5250, 0.0
        %v9034 = vadd.f32 %v8954, %v9018
        %v9035 = vadd.f32 %v8955, %v9019
        %v9036 = vadd.f32 %v8956, %v9020
        %v9037 = vadd.f32 %v8957, %v9021
        %v9038 = vadd.f32 %v8958, %v9022
        %v9039 = vadd.f32 %v8959, %v9023
        %v9040 = vadd.f32 %v8960, %v9024
        %v9041 = vadd.f32 %v8961, %v9025
        %v9042 = vadd.f32 %v8962, %v9026
        %v9043 = vadd.f32 %v8963, %v9027
        %v9044 = vadd.f32 %v8964, %v9028
        %v9045 = vadd.f32 %v8965, %v9029
        %v9046 = vadd.f32 %v8966, %v9030
        %v9047 = vadd.f32 %v8967, %v9031
        %v9048 = vadd.f32 %v8968, %v9032
        %v9049 = vadd.f32 %v8969, %v9033
        %vm9050 = vcmp.eq.s32.totalorder %v5477, 3
        %vm9051 = vcmp.eq.s32.totalorder %v5480, 3
        %vm9052 = vcmp.eq.s32.totalorder %v5483, 3
        %vm9053 = vcmp.eq.s32.totalorder %v5486, 3
        %vm9054 = vcmp.eq.s32.totalorder %v5489, 3
        %vm9055 = vcmp.eq.s32.totalorder %v5492, 3
        %vm9056 = vcmp.eq.s32.totalorder %v5495, 3
        %vm9057 = vcmp.eq.s32.totalorder %v5498, 3
        %vm9058 = vcmp.eq.s32.totalorder %v5501, 3
        %vm9059 = vcmp.eq.s32.totalorder %v5504, 3
        %vm9060 = vcmp.eq.s32.totalorder %v5507, 3
        %vm9061 = vcmp.eq.s32.totalorder %v5510, 3
        %vm9062 = vcmp.eq.s32.totalorder %v5513, 3
        %vm9063 = vcmp.eq.s32.totalorder %v5516, 3
        %vm9064 = vcmp.eq.s32.totalorder %v5519, 3
        %vm9065 = vcmp.eq.s32.totalorder %v5522, 3
        %v9066 = vsel %vm9050, %v5379, 0.0
        %v9067 = vsel %vm9051, %v5380, 0.0
        %v9068 = vsel %vm9052, %v5381, 0.0
        %v9069 = vsel %vm9053, %v5382, 0.0
        %v9070 = vsel %vm9054, %v5383, 0.0
        %v9071 = vsel %vm9055, %v5384, 0.0
        %v9072 = vsel %vm9056, %v5385, 0.0
        %v9073 = vsel %vm9057, %v5386, 0.0
        %v9074 = vsel %vm9058, %v5387, 0.0
        %v9075 = vsel %vm9059, %v5388, 0.0
        %v9076 = vsel %vm9060, %v5389, 0.0
        %v9077 = vsel %vm9061, %v5390, 0.0
        %v9078 = vsel %vm9062, %v5391, 0.0
        %v9079 = vsel %vm9063, %v5392, 0.0
        %v9080 = vsel %vm9064, %v5393, 0.0
        %v9081 = vsel %vm9065, %v5394, 0.0
        %v9082 = vadd.f32 %v9002, %v9066
        %v9083 = vadd.f32 %v9003, %v9067
        %v9084 = vadd.f32 %v9004, %v9068
        %v9085 = vadd.f32 %v9005, %v9069
        %v9086 = vadd.f32 %v9006, %v9070
        %v9087 = vadd.f32 %v9007, %v9071
        %v9088 = vadd.f32 %v9008, %v9072
        %v9089 = vadd.f32 %v9009, %v9073
        %v9090 = vadd.f32 %v9010, %v9074
        %v9091 = vadd.f32 %v9011, %v9075
        %v9092 = vadd.f32 %v9012, %v9076
        %v9093 = vadd.f32 %v9013, %v9077
        %v9094 = vadd.f32 %v9014, %v9078
        %v9095 = vadd.f32 %v9015, %v9079
        %v9096 = vadd.f32 %v9016, %v9080
        %v9097 = vadd.f32 %v9017, %v9081
        %v9098 = vsel %vm9050, %v5459, 0.0
        %v9099 = vsel %vm9051, %v5460, 0.0
        %v9100 = vsel %vm9052, %v5461, 0.0
        %v9101 = vsel %vm9053, %v5462, 0.0
        %v9102 = vsel %vm9054, %v5463, 0.0
        %v9103 = vsel %vm9055, %v5464, 0.0
        %v9104 = vsel %vm9056, %v5465, 0.0
        %v9105 = vsel %vm9057, %v5466, 0.0
        %v9106 = vsel %vm9058, %v5467, 0.0
        %v9107 = vsel %vm9059, %v5468, 0.0
        %v9108 = vsel %vm9060, %v5469, 0.0
        %v9109 = vsel %vm9061, %v5470, 0.0
        %v9110 = vsel %vm9062, %v5471, 0.0
        %v9111 = vsel %vm9063, %v5472, 0.0
        %v9112 = vsel %vm9064, %v5473, 0.0
        %v9113 = vsel %vm9065, %v5474, 0.0
        %v9114 = vadd.f32 %v9034, %v9098
        %v9115 = vadd.f32 %v9035, %v9099
        %v9116 = vadd.f32 %v9036, %v9100
        %v9117 = vadd.f32 %v9037, %v9101
        %v9118 = vadd.f32 %v9038, %v9102
        %v9119 = vadd.f32 %v9039, %v9103
        %v9120 = vadd.f32 %v9040, %v9104
        %v9121 = vadd.f32 %v9041, %v9105
        %v9122 = vadd.f32 %v9042, %v9106
        %v9123 = vadd.f32 %v9043, %v9107
        %v9124 = vadd.f32 %v9044, %v9108
        %v9125 = vadd.f32 %v9045, %v9109
        %v9126 = vadd.f32 %v9046, %v9110
        %v9127 = vadd.f32 %v9047, %v9111
        %v9128 = vadd.f32 %v9048, %v9112
        %v9129 = vadd.f32 %v9049, %v9113
        %v9130 = vpack.c.bf16 %v9083, %v9082
        %v9131 = vpack.c.bf16 %v9085, %v9084
        %v9132 = vpack.c.bf16 %v9087, %v9086
        %v9133 = vpack.c.bf16 %v9089, %v9088
        %v9134 = vpack.c.bf16 %v9091, %v9090
        %v9135 = vpack.c.bf16 %v9093, %v9092
        %v9136 = vpack.c.bf16 %v9095, %v9094
        %v9137 = vpack.c.bf16 %v9097, %v9096
        %v9138 = vld [vmem:[%s4 + $0xc0] sm:$0xf]
        %v9139 = vld [vmem:[%s4 + $0xc4] sm:$0xf]
        %v9140 = vld [vmem:[%s4 + $0xc8] sm:$0xf]
        %v9141 = vld [vmem:[%s4 + $0xcc] sm:$0xf]
        %v9142 = vld [vmem:[%s4 + $0xd0] sm:$0xf]
        %v9143 = vld [vmem:[%s4 + $0xd4] sm:$0xf]
        %v9144 = vld [vmem:[%s4 + $0xd8] sm:$0xf]
        %v9145 = vld [vmem:[%s4 + $0xdc] sm:$0xf]
        %v9146 = vld [vmem:[%s4 + $0xe0] sm:$0xf]
        %v9147 = vld [vmem:[%s4 + $0xe4] sm:$0xf]
        %v9148 = vld [vmem:[%s4 + $0xe8] sm:$0xf]
        %v9149 = vld [vmem:[%s4 + $0xec] sm:$0xf]
        %v9150 = vld [vmem:[%s4 + $0xf0] sm:$0xf]
        %v9151 = vld [vmem:[%s4 + $0xf4] sm:$0xf]
        %v9152 = vld [vmem:[%s4 + $0xf8] sm:$0xf]
        %v9153 = vld [vmem:[%s4 + $0xfc] sm:$0xf]
        %v9170 = vunpack.c.l.b16 %v9138
        %v9171 = vunpack.c.l.b16 %v9139
        %v9172 = vunpack.c.l.b16 %v9140
        %v9173 = vunpack.c.l.b16 %v9141
        %v9174 = vunpack.c.l.b16 %v9142
        %v9175 = vunpack.c.l.b16 %v9143
        %v9176 = vunpack.c.l.b16 %v9144
        %v9177 = vunpack.c.l.b16 %v9145
        %v9178 = vunpack.c.l.b16 %v9146
        %v9179 = vunpack.c.l.b16 %v9147
        %v9180 = vunpack.c.l.b16 %v9148
        %v9181 = vunpack.c.l.b16 %v9149
        %v9182 = vunpack.c.l.b16 %v9150
        %v9183 = vunpack.c.l.b16 %v9151
        %v9184 = vunpack.c.l.b16 %v9152
        %v9185 = vunpack.c.l.b16 %v9153
        %v9186 = vpack.c.b16 %v9171, %v9170
        %v9187 = vpack.c.b16 %v9173, %v9172
        %v9188 = vpack.c.b16 %v9175, %v9174
        %v9189 = vpack.c.b16 %v9177, %v9176
        %v9190 = vpack.c.b16 %v9179, %v9178
        %v9191 = vpack.c.b16 %v9181, %v9180
        %v9192 = vpack.c.b16 %v9183, %v9182
        %v9193 = vpack.c.b16 %v9185, %v9184
        %9202 = vmatprep.subr.bf16.mxu0 0
        %9203 = vmatpush1.bf16.msra.mxu0 %v9186
        %9204 = vmatprep.subr.bf16.mxu0 0
        %9205 = vmatpush1.bf16.msra.mxu0 %v9187
        %9206 = vmatprep.subr.bf16.mxu0 0
        %9207 = vmatpush1.bf16.msra.mxu0 %v9188
        %9208 = vmatprep.subr.bf16.mxu0 0
        %9209 = vmatpush1.bf16.msra.mxu0 %v9189
        %9210 = vmatprep.subr.bf16.mxu0 0
        %9211 = vmatpush1.bf16.msra.mxu0 %v9190
        %9212 = vmatprep.subr.bf16.mxu0 0
        %9213 = vmatpush1.bf16.msra.mxu0 %v9191
        %9214 = vmatprep.subr.bf16.mxu0 0
        %9215 = vmatpush1.bf16.msra.mxu0 %v9192
        %9216 = vmatprep.subr.bf16.mxu0 0
        %9217 = vmatpush1.bf16.msra.mxu0 %v9193
        %9218 = vmatprep.subr.bf16.mxu0 0
        %9219 = vmatpush1.bf16.msra.mxu0 0
        %9220 = vmatprep.subr.bf16.mxu0 0
        %9221 = vmatpush1.bf16.msra.mxu0 0
        %9222 = vmatprep.subr.bf16.mxu0 0
        %9223 = vmatpush1.bf16.msra.mxu0 0
        %9224 = vmatprep.subr.bf16.mxu0 0
        %9225 = vmatpush1.bf16.msra.mxu0 0
        %9226 = vmatprep.subr.bf16.mxu0 0
        %9227 = vmatpush1.bf16.msra.mxu0 0
        %9228 = vmatprep.subr.bf16.mxu0 0
        %9229 = vmatpush1.bf16.msra.mxu0 0
        %9230 = vmatprep.subr.bf16.mxu0 0
        %9231 = vmatpush1.bf16.msra.mxu0 0
        %9232 = vmatprep.subr.bf16.mxu0 0
        %9233 = vmatpush1.bf16.msra.mxu0 0
        %9234 = vmatprep.mubr.bf16.mxu0 0
        %9235 = vmatmul.mubr.bf16.gmra.mrb[0].mxu0 %v9130
        %v9236 = vpop.f32.mrb[0].mxu0
        %v9237 = vadd.f32 0.0, %v9236
        %v9238 = vpop.f32.mrb[0].mxu0
        %v9239 = vpop.f32.mrb[0].mxu0
        %v9240 = vadd.f32 0.0, %v9239
        %v9241 = vpop.f32.mrb[0].mxu0
        %9242 = vmatprep.mubr.bf16.mxu0 0
        %9243 = vmatmul.mubr.bf16.gmra.mrb[0].mxu0 %v9131
        %v9244 = vpop.f32.mrb[0].mxu0
        %v9245 = vadd.f32 0.0, %v9244
        %v9246 = vpop.f32.mrb[0].mxu0
        %v9247 = vpop.f32.mrb[0].mxu0
        %v9248 = vadd.f32 0.0, %v9247
        %v9249 = vpop.f32.mrb[0].mxu0
        %9250 = vmatprep.mubr.bf16.mxu0 0
        %9251 = vmatmul.mubr.bf16.gmra.mrb[0].mxu0 %v9132
        %v9252 = vpop.f32.mrb[0].mxu0
        %v9253 = vadd.f32 0.0, %v9252
        %v9254 = vpop.f32.mrb[0].mxu0
        %v9255 = vpop.f32.mrb[0].mxu0
        %v9256 = vadd.f32 0.0, %v9255
        %v9257 = vpop.f32.mrb[0].mxu0
        %9258 = vmatprep.mubr.bf16.mxu0 0
        %9259 = vmatmul.mubr.bf16.gmra.mrb[0].mxu0 %v9133
        %v9260 = vpop.f32.mrb[0].mxu0
        %v9261 = vadd.f32 0.0, %v9260
        %v9262 = vpop.f32.mrb[0].mxu0
        %v9263 = vpop.f32.mrb[0].mxu0
        %v9264 = vadd.f32 0.0, %v9263
        %v9265 = vpop.f32.mrb[0].mxu0
        %9266 = vmatprep.mubr.bf16.mxu0 0
        %9267 = vmatmul.mubr.bf16.gmra.mrb[0].mxu0 %v9134
        %v9268 = vpop.f32.mrb[0].mxu0
        %v9269 = vadd.f32 0.0, %v9268
        %v9270 = vpop.f32.mrb[0].mxu0
        %v9271 = vpop.f32.mrb[0].mxu0
        %v9272 = vadd.f32 0.0, %v9271
        %v9273 = vpop.f32.mrb[0].mxu0
        %9274 = vmatprep.mubr.bf16.mxu0 0
        %9275 = vmatmul.mubr.bf16.gmra.mrb[0].mxu0 %v9135
        %v9276 = vpop.f32.mrb[0].mxu0
        %v9277 = vadd.f32 0.0, %v9276
        %v9278 = vpop.f32.mrb[0].mxu0
        %v9279 = vpop.f32.mrb[0].mxu0
        %v9280 = vadd.f32 0.0, %v9279
        %v9281 = vpop.f32.mrb[0].mxu0
        %9282 = vmatprep.mubr.bf16.mxu0 0
        %9283 = vmatmul.mubr.bf16.gmra.mrb[0].mxu0 %v9136
        %v9284 = vpop.f32.mrb[0].mxu0
        %v9285 = vadd.f32 0.0, %v9284
        %v9286 = vpop.f32.mrb[0].mxu0
        %v9287 = vpop.f32.mrb[0].mxu0
        %v9288 = vadd.f32 0.0, %v9287
        %v9289 = vpop.f32.mrb[0].mxu0
        %9290 = vmatprep.mubr.bf16.mxu0 0
        %9291 = vmatmul.mubr.bf16.gmra.mrb[0].mxu0 %v9137
        %v9292 = vpop.f32.mrb[0].mxu0
        %v9293 = vadd.f32 0.0, %v9292
        %v9294 = vpop.f32.mrb[0].mxu0
        %v9295 = vpop.f32.mrb[0].mxu0
        %v9296 = vadd.f32 0.0, %v9295
        %v9297 = vpop.f32.mrb[0].mxu0
        %9298 = vdwg.mxu0
        %v9299 = vadd.f32 %v8289, %v9237
        %v9300 = vadd.f32 %v8290, %v9240
        %v9301 = vadd.f32 %v8291, %v9245
        %v9302 = vadd.f32 %v8292, %v9248
        %v9303 = vadd.f32 %v8293, %v9253
        %v9304 = vadd.f32 %v8294, %v9256
        %v9305 = vadd.f32 %v8295, %v9261
        %v9306 = vadd.f32 %v8296, %v9264
        %v9307 = vadd.f32 %v8297, %v9269
        %v9308 = vadd.f32 %v8298, %v9272
        %v9309 = vadd.f32 %v8299, %v9277
        %v9310 = vadd.f32 %v8300, %v9280
        %v9311 = vadd.f32 %v8301, %v9285
        %v9312 = vadd.f32 %v8302, %v9288
        %v9313 = vadd.f32 %v8303, %v9293
        %v9314 = vadd.f32 %v8304, %v9296
        %v9315 = vpack.c.bf16 %v9115, %v9114
        %v9316 = vpack.c.bf16 %v9117, %v9116
        %v9317 = vpack.c.bf16 %v9119, %v9118
        %v9318 = vpack.c.bf16 %v9121, %v9120
        %v9319 = vpack.c.bf16 %v9123, %v9122
        %v9320 = vpack.c.bf16 %v9125, %v9124
        %v9321 = vpack.c.bf16 %v9127, %v9126
        %v9322 = vpack.c.bf16 %v9129, %v9128
        %v9323 = vld [vmem:[%s6195 + $0xc0] sm:$0xf]
        %v9324 = vld [vmem:[%s6195 + $0xc4] sm:$0xf]
        %v9325 = vld [vmem:[%s6195 + $0xc8] sm:$0xf]
        %v9326 = vld [vmem:[%s6195 + $0xcc] sm:$0xf]
        %v9327 = vld [vmem:[%s6195 + $0xd0] sm:$0xf]
        %v9328 = vld [vmem:[%s6195 + $0xd4] sm:$0xf]
        %v9329 = vld [vmem:[%s6195 + $0xd8] sm:$0xf]
        %v9330 = vld [vmem:[%s6195 + $0xdc] sm:$0xf]
        %v9331 = vld [vmem:[%s6195 + $0xe0] sm:$0xf]
        %v9332 = vld [vmem:[%s6195 + $0xe4] sm:$0xf]
        %v9333 = vld [vmem:[%s6195 + $0xe8] sm:$0xf]
        %v9334 = vld [vmem:[%s6195 + $0xec] sm:$0xf]
        %v9335 = vld [vmem:[%s6195 + $0xf0] sm:$0xf]
        %v9336 = vld [vmem:[%s6195 + $0xf4] sm:$0xf]
        %v9337 = vld [vmem:[%s6195 + $0xf8] sm:$0xf]
        %v9338 = vld [vmem:[%s6195 + $0xfc] sm:$0xf]
        %v9355 = vunpack.c.l.b16 %v9323
        %v9356 = vunpack.c.l.b16 %v9324
        %v9357 = vunpack.c.l.b16 %v9325
        %v9358 = vunpack.c.l.b16 %v9326
        %v9359 = vunpack.c.l.b16 %v9327
        %v9360 = vunpack.c.l.b16 %v9328
        %v9361 = vunpack.c.l.b16 %v9329
        %v9362 = vunpack.c.l.b16 %v9330
        %v9363 = vunpack.c.l.b16 %v9331
        %v9364 = vunpack.c.l.b16 %v9332
        %v9365 = vunpack.c.l.b16 %v9333
        %v9366 = vunpack.c.l.b16 %v9334
        %v9367 = vunpack.c.l.b16 %v9335
        %v9368 = vunpack.c.l.b16 %v9336
        %v9369 = vunpack.c.l.b16 %v9337
        %v9370 = vunpack.c.l.b16 %v9338
        %v9371 = vpack.c.b16 %v9356, %v9355
        %v9372 = vpack.c.b16 %v9358, %v9357
        %v9373 = vpack.c.b16 %v9360, %v9359
        %v9374 = vpack.c.b16 %v9362, %v9361
        %v9375 = vpack.c.b16 %v9364, %v9363
        %v9376 = vpack.c.b16 %v9366, %v9365
        %v9377 = vpack.c.b16 %v9368, %v9367
        %v9378 = vpack.c.b16 %v9370, %v9369
        %9387 = vmatprep.subr.bf16.mxu0 0
        %9388 = vmatpush1.bf16.msra.mxu0 %v9371
        %9389 = vmatprep.subr.bf16.mxu0 0
        %9390 = vmatpush1.bf16.msra.mxu0 %v9372
        %9391 = vmatprep.subr.bf16.mxu0 0
        %9392 = vmatpush1.bf16.msra.mxu0 %v9373
        %9393 = vmatprep.subr.bf16.mxu0 0
        %9394 = vmatpush1.bf16.msra.mxu0 %v9374
        %9395 = vmatprep.subr.bf16.mxu0 0
        %9396 = vmatpush1.bf16.msra.mxu0 %v9375
        %9397 = vmatprep.subr.bf16.mxu0 0
        %9398 = vmatpush1.bf16.msra.mxu0 %v9376
        %9399 = vmatprep.subr.bf16.mxu0 0
        %9400 = vmatpush1.bf16.msra.mxu0 %v9377
        %9401 = vmatprep.subr.bf16.mxu0 0
        %9402 = vmatpush1.bf16.msra.mxu0 %v9378
        %9403 = vmatprep.subr.bf16.mxu0 0
        %9404 = vmatpush1.bf16.msra.mxu0 0
        %9405 = vmatprep.subr.bf16.mxu0 0
        %9406 = vmatpush1.bf16.msra.mxu0 0
        %9407 = vmatprep.subr.bf16.mxu0 0
        %9408 = vmatpush1.bf16.msra.mxu0 0
        %9409 = vmatprep.subr.bf16.mxu0 0
        %9410 = vmatpush1.bf16.msra.mxu0 0
        %9411 = vmatprep.subr.bf16.mxu0 0
        %9412 = vmatpush1.bf16.msra.mxu0 0
        %9413 = vmatprep.subr.bf16.mxu0 0
        %9414 = vmatpush1.bf16.msra.mxu0 0
        %9415 = vmatprep.subr.bf16.mxu0 0
        %9416 = vmatpush1.bf16.msra.mxu0 0
        %9417 = vmatprep.subr.bf16.mxu0 0
        %9418 = vmatpush1.bf16.msra.mxu0 0
        %9419 = vmatprep.mubr.bf16.mxu0 0
        %9420 = vmatmul.mubr.bf16.gmra.mrb[0].mxu0 %v9315
        %v9421 = vpop.f32.mrb[0].mxu0
        %v9422 = vadd.f32 0.0, %v9421
        %v9423 = vpop.f32.mrb[0].mxu0
        %v9424 = vpop.f32.mrb[0].mxu0
        %v9425 = vadd.f32 0.0, %v9424
        %v9426 = vpop.f32.mrb[0].mxu0
        %9427 = vmatprep.mubr.bf16.mxu0 0
        %9428 = vmatmul.mubr.bf16.gmra.mrb[0].mxu0 %v9316
        %v9429 = vpop.f32.mrb[0].mxu0
        %v9430 = vadd.f32 0.0, %v9429
        %v9431 = vpop.f32.mrb[0].mxu0
        %v9432 = vpop.f32.mrb[0].mxu0
        %v9433 = vadd.f32 0.0, %v9432
        %v9434 = vpop.f32.mrb[0].mxu0
        %9435 = vmatprep.mubr.bf16.mxu0 0
        %9436 = vmatmul.mubr.bf16.gmra.mrb[0].mxu0 %v9317
        %v9437 = vpop.f32.mrb[0].mxu0
        %v9438 = vadd.f32 0.0, %v9437
        %v9439 = vpop.f32.mrb[0].mxu0
        %v9440 = vpop.f32.mrb[0].mxu0
        %v9441 = vadd.f32 0.0, %v9440
        %v9442 = vpop.f32.mrb[0].mxu0
        %9443 = vmatprep.mubr.bf16.mxu0 0
        %9444 = vmatmul.mubr.bf16.gmra.mrb[0].mxu0 %v9318
        %v9445 = vpop.f32.mrb[0].mxu0
        %v9446 = vadd.f32 0.0, %v9445
        %v9447 = vpop.f32.mrb[0].mxu0
        %v9448 = vpop.f32.mrb[0].mxu0
        %v9449 = vadd.f32 0.0, %v9448
        %v9450 = vpop.f32.mrb[0].mxu0
        %9451 = vmatprep.mubr.bf16.mxu0 0
        %9452 = vmatmul.mubr.bf16.gmra.mrb[0].mxu0 %v9319
        %v9453 = vpop.f32.mrb[0].mxu0
        %v9454 = vadd.f32 0.0, %v9453
        %v9455 = vpop.f32.mrb[0].mxu0
        %v9456 = vpop.f32.mrb[0].mxu0
        %v9457 = vadd.f32 0.0, %v9456
        %v9458 = vpop.f32.mrb[0].mxu0
        %9459 = vmatprep.mubr.bf16.mxu0 0
        %9460 = vmatmul.mubr.bf16.gmra.mrb[0].mxu0 %v9320
        %v9461 = vpop.f32.mrb[0].mxu0
        %v9462 = vadd.f32 0.0, %v9461
        %v9463 = vpop.f32.mrb[0].mxu0
        %v9464 = vpop.f32.mrb[0].mxu0
        %v9465 = vadd.f32 0.0, %v9464
        %v9466 = vpop.f32.mrb[0].mxu0
        %9467 = vmatprep.mubr.bf16.mxu0 0
        %9468 = vmatmul.mubr.bf16.gmra.mrb[0].mxu0 %v9321
        %v9469 = vpop.f32.mrb[0].mxu0
        %v9470 = vadd.f32 0.0, %v9469
        %v9471 = vpop.f32.mrb[0].mxu0
        %v9472 = vpop.f32.mrb[0].mxu0
        %v9473 = vadd.f32 0.0, %v9472
        %v9474 = vpop.f32.mrb[0].mxu0
        %9475 = vmatprep.mubr.bf16.mxu0 0
        %9476 = vmatmul.mubr.bf16.gmra.mrb[0].mxu0 %v9322
        %v9477 = vpop.f32.mrb[0].mxu0
        %v9478 = vadd.f32 0.0, %v9477
        %v9479 = vpop.f32.mrb[0].mxu0
        %v9480 = vpop.f32.mrb[0].mxu0
        %v9481 = vadd.f32 0.0, %v9480
        %v9482 = vpop.f32.mrb[0].mxu0
        %9483 = vdwg.mxu0
        %v9484 = vadd.f32 %v8474, %v9422
        %v9485 = vadd.f32 %v8475, %v9425
        %v9486 = vadd.f32 %v8476, %v9430
        %v9487 = vadd.f32 %v8477, %v9433
        %v9488 = vadd.f32 %v8478, %v9438
        %v9489 = vadd.f32 %v8479, %v9441
        %v9490 = vadd.f32 %v8480, %v9446
        %v9491 = vadd.f32 %v8481, %v9449
        %v9492 = vadd.f32 %v8482, %v9454
        %v9493 = vadd.f32 %v8483, %v9457
        %v9494 = vadd.f32 %v8484, %v9462
        %v9495 = vadd.f32 %v8485, %v9465
        %v9496 = vadd.f32 %v8486, %v9470
        %v9497 = vadd.f32 %v8487, %v9473
        %v9498 = vadd.f32 %v8488, %v9478
        %v9499 = vadd.f32 %v8489, %v9481
        %9516 = vrot.lane.b32.xlu0 %v9484, 64
        %v9517 = vpop.permute.xlu0 %9516
        %9518 = vrot.lane.b32.xlu0 %v9485, 64
        %v9519 = vpop.permute.xlu0 %9518
        %9520 = vrot.lane.b32.xlu0 %v9486, 64
        %v9521 = vpop.permute.xlu0 %9520
        %9522 = vrot.lane.b32.xlu0 %v9487, 64
        %v9523 = vpop.permute.xlu0 %9522
        %9524 = vrot.lane.b32.xlu0 %v9488, 64
        %v9525 = vpop.permute.xlu0 %9524
        %9526 = vrot.lane.b32.xlu0 %v9489, 64
        %v9527 = vpop.permute.xlu0 %9526
        %9528 = vrot.lane.b32.xlu0 %v9490, 64
        %v9529 = vpop.permute.xlu0 %9528
        %9530 = vrot.lane.b32.xlu0 %v9491, 64
        %v9531 = vpop.permute.xlu0 %9530
        %9532 = vrot.lane.b32.xlu0 %v9492, 64
        %v9533 = vpop.permute.xlu0 %9532
        %9534 = vrot.lane.b32.xlu0 %v9493, 64
        %v9535 = vpop.permute.xlu0 %9534
        %9536 = vrot.lane.b32.xlu0 %v9494, 64
        %v9537 = vpop.permute.xlu0 %9536
        %9538 = vrot.lane.b32.xlu0 %v9495, 64
        %v9539 = vpop.permute.xlu0 %9538
        %9540 = vrot.lane.b32.xlu0 %v9496, 64
        %v9541 = vpop.permute.xlu0 %9540
        %9542 = vrot.lane.b32.xlu0 %v9497, 64
        %v9543 = vpop.permute.xlu0 %9542
        %9544 = vrot.lane.b32.xlu0 %v9498, 64
        %v9545 = vpop.permute.xlu0 %9544
        %9546 = vrot.lane.b32.xlu0 %v9499, 64
        %v9547 = vpop.permute.xlu0 %9546
        %vm9564 = vcmask 523264
        %v9565 = vsel %vm9564, %v9299, %v9517
        %v9566 = vsel %vm9564, %v9300, %v9519
        %v9567 = vsel %vm9564, %v9301, %v9521
        %v9568 = vsel %vm9564, %v9302, %v9523
        %v9569 = vsel %vm9564, %v9303, %v9525
        %v9570 = vsel %vm9564, %v9304, %v9527
        %v9571 = vsel %vm9564, %v9305, %v9529
        %v9572 = vsel %vm9564, %v9306, %v9531
        %v9573 = vsel %vm9564, %v9307, %v9533
        %v9574 = vsel %vm9564, %v9308, %v9535
        %v9575 = vsel %vm9564, %v9309, %v9537
        %v9576 = vsel %vm9564, %v9310, %v9539
        %v9577 = vsel %vm9564, %v9311, %v9541
        %v9578 = vsel %vm9564, %v9312, %v9543
        %v9579 = vsel %vm9564, %v9313, %v9545
        %v9580 = vsel %vm9564, %v9314, %v9547
        %9581 = vst [vmem:[%s250] sm:$0xff] %v9565
        %9582 = vst [vmem:[%s250 + $0x8] sm:$0xff] %v9566
        %9583 = vst [vmem:[%s250 + $0x10] sm:$0xff] %v9567
        %9584 = vst [vmem:[%s250 + $0x18] sm:$0xff] %v9568
        %9585 = vst [vmem:[%s250 + $0x20] sm:$0xff] %v9569
        %9586 = vst [vmem:[%s250 + $0x28] sm:$0xff] %v9570
        %9587 = vst [vmem:[%s250 + $0x30] sm:$0xff] %v9571
        %9588 = vst [vmem:[%s250 + $0x38] sm:$0xff] %v9572
        %9589 = vst [vmem:[%s250 + $0x40] sm:$0xff] %v9573
        %9590 = vst [vmem:[%s250 + $0x48] sm:$0xff] %v9574
        %9591 = vst [vmem:[%s250 + $0x50] sm:$0xff] %v9575
        %9592 = vst [vmem:[%s250 + $0x58] sm:$0xff] %v9576
        %9593 = vst [vmem:[%s250 + $0x60] sm:$0xff] %v9577
        %9594 = vst [vmem:[%s250 + $0x68] sm:$0xff] %v9578
        %9595 = vst [vmem:[%s250 + $0x70] sm:$0xff] %v9579
        %9596 = vst [vmem:[%s250 + $0x78] sm:$0xff] %v9580
        %s9597 = sand.u32 %s147, 1
        %s9598 = scalar_lea.sflag [#allocation3], %s9597
        %s9599 = sand.u32 %s147, 1
        %s9600 = smul.addr %s9599, 128
        %s9601 = scalar_lea.vmem [#allocation2], %s9600
        // Predicated region
        $region41: #{multi_head_gat_forward.1} parent=39 // pred_check
          %p9602 = pneg %p157
        $region42: #{multi_head_gat_forward.1} parent=39 // pred_check_branch
          %9604 = sbr.rel (%p9602) target = $region44
        $region43: #{multi_head_gat_forward.1} parent=39 // pred_region
          %s9605 = smul.u32 16, %s19
          %s9607 = ssub.s32 2048, 2048
          %9608 = vsyncadd %s9598, %s9607
          %s9609 = smul.addr %s9605, 128
          %s9610 = scalar_lea.hbm %s5, %s9609
          %s9611 = sshll.u32 %s9601, 4
          %s9612 = int_to_ptr.vmem [resolvable:$true] %s9611
          %9617 = dma.vmem_to_hbm [thread:$0]  %s9612, 2048, %s9610, %s9598, 128, 128, 8
        $region44: #{multi_head_gat_forward.1} parent=39 // pred_fallthru
          _
      $region40: #{multi_head_gat_forward.1} parent=5 // pred_fallthru
        _
      %p9618 = scmp.le.s32.totalorder 2, %s14
      // Predicated region
      $region45: #{multi_head_gat_forward.1} parent=5 // pred_check
        %p9619 = pneg %p9618
      $region46: #{multi_head_gat_forward.1} parent=5 // pred_check_branch
        %9621 = sbr.rel (%p9619) target = $region48
      $region47: #{multi_head_gat_forward.1} parent=5 // pred_region
        %s9622 = ssub.s32 %s14, 2
        // Predicated region
        $region49: #{multi_head_gat_forward.1} parent=47 // pred_check
          %p9623 = pneg %p163
        $region50: #{multi_head_gat_forward.1} parent=47 // pred_check_branch
          %9625 = sbr.rel (%p9623) target = $region52
        $region51: #{multi_head_gat_forward.1} parent=47 // pred_region
          %s9626 = sand.u32 %s148, 1
          %s9627 = scalar_lea.sflag [#allocation3], %s9626
          %s9628 = sand.u32 %s148, 1
          %s9629 = smul.addr %s9628, 128
          %s9630 = scalar_lea.vmem [#allocation2], %s9629
          %9631 = dma.done %s9627, 2048
        $region52: #{multi_head_gat_forward.1} parent=47 // pred_fallthru
          _
      $region48: #{multi_head_gat_forward.1} parent=5 // pred_fallthru
        _
    $region6: #{multi_head_gat_forward.1} parent=1 // loop_footer
      %s18 = sadd.s32 1, %s14
    $region7: #{multi_head_gat_forward.1} parent=1 // loop_footer_branch
      %13 = sbr.rel target = $region3
    $region8: #{multi_head_gat_forward.1} parent=1 // loop_exit
      _
    %9632 = vsyncpa [#allocation3], 1
    %s9633 = scalar_lea.sflag [#allocation3], 1
    %9634 = vsyncpa %s9633, 1

</llo_original>
